<compile_context>
chip_gen: v5e
topology: v5e:2x2
jax: 0.10.0
libtpu: 0.0.40
codegen_flags: <defaults>
</compile_context>

<pallas_src>
import jax
import jax.numpy as jnp
from jax import lax
from jax.experimental import pallas as pl
from jax.experimental.pallas import tpu as pltpu


def _const_spec(arr):
    """Whole-array BlockSpec with a constant index map (broadcast operand)."""
    zeros = (0,) * arr.ndim
    return pl.BlockSpec(arr.shape, lambda b, z=zeros: z)


# ----------------------------------------------------------------------------
# Fused forward pass (single pallas_call, grid over batch)
# ----------------------------------------------------------------------------
def net_forward_pallas(p, x_nhwc):
    B, H, W, Cin = x_nhwc.shape
    bf16 = jnp.bfloat16

    # Stage spatial sizes (mirror Net.forward).
    ho1, wo1 = H - 2, W - 2            # conv1 (3x3)
    hp1, wp1 = ho1 // 2, wo1 // 2      # maxpool ; bn1 folded into conv2 (1x1)
    ho3, wo3 = hp1 - 2, wp1 - 2        # conv3 (3x3)
    hp2, wp2 = ho3 // 2, wo3 // 2      # maxpool ; bn2 folded into conv4 (1x1)
    ho5, wo5 = hp2 - 2, wp2 - 2        # conv5 (3x3)
    hp3, wp3 = ho5 // 2, wo5 // 2      # maxpool ; bn3 folded into conv6 (3x3)
    ho6, wo6 = hp3 - 2, wp3 - 2        # conv6 (3x3)
    assert ho6 >= 1 and wo6 >= 1, "input spatial size too small for this net"

    npix1 = ho1 * wo1                  # conv1 output rows (flat, row width wo1)
    npool1 = hp1 * wp1                 # pooled-1 rows (flat, row width wp1)
    npool2 = hp2 * wp2
    npool3 = hp3 * wp3
    # "wrap-around" im2col output lengths for the in-kernel 3x3 convs:
    # rows r*src_w + c are valid for c < wo; the trailing columns are garbage
    # that downstream pooling / averaging never reads.
    np3 = (ho3 - 1) * wp1 + wo3
    np5 = (ho5 - 1) * wp2 + wo5
    np6 = (ho6 - 1) * wp3 + wo6

    # -- conv1 im2col hoisted out of the kernel (layout-only, one-time XLA) --
    pieces = [x_nhwc[:, i:i + ho1, j:j + wo1, :]
              for i in range(3) for j in range(3)]
    p1 = jnp.concatenate(pieces, axis=-1)                 # (B, ho1, wo1, 9*Cin)
    p1 = p1.reshape(B, npix1, 9 * Cin).astype(bf16)

    # -- weights: im2col-flatten, fold BN into the following conv, cast bf16 --
    w1m = p["w1"].reshape(-1, 64).astype(bf16)
    b1 = p["b1"].reshape(1, 64)
    w2m = p["w2"].reshape(64, 32)                          # 1x1 conv
    w2f = (p["bn1_scale"][:, None] * w2m).astype(bf16)     # bn1 folded
    b2f = (p["b2"] + p["bn1_shift"] @ w2m).reshape(1, 32)
    w3m = p["w3"].reshape(-1, 32).astype(bf16)
    b3 = p["b3"].reshape(1, 32)
    w4m = p["w4"].reshape(32, 16)                          # 1x1 conv
    w4f = (p["bn2_scale"][:, None] * w4m).astype(bf16)     # bn2 folded
    b4f = (p["b4"] + p["bn2_shift"] @ w4m).reshape(1, 16)
    w5m = p["w5"].reshape(-1, 32).astype(bf16)
    b5 = p["b5"].reshape(1, 32)
    w6m = p["w6"].reshape(-1, 16)                          # rows: (i*3+j)*32+c
    s6 = jnp.tile(p["bn3_scale"], 9)
    t6 = jnp.tile(p["bn3_shift"], 9)
    w6f = (s6[:, None] * w6m).astype(bf16)                 # bn3 folded
    b6f = (p["b6"] + t6 @ w6m).reshape(1, 16)
    fcw = p["fc_w_t"]                                      # (16, 8), f32
    fcb = p["fc_b"].reshape(1, 8)

    params = [w1m, b1, w2f, b2f, w3m, b3, w4f, b4f, w5m, b5, w6f, b6f, fcw, fcb]

    # -- in-kernel helpers (trace-time; all slice starts are static ints) ----
    def pool2x2(src, dst, src_w, hp, wp):
        """MaxPool2d(2,2) from flat (rows, C) src (row width src_w) into flat
        dst (row width wp).  Statically unrolled (hp <= 23 here)."""
        for pr in range(hp):
            s0 = (2 * pr) * src_w
            s1 = s0 + src_w
            m = jnp.maximum(
                jnp.maximum(src[pl.ds(s0, wp, 2)], src[pl.ds(s0 + 1, wp, 2)]),
                jnp.maximum(src[pl.ds(s1, wp, 2)], src[pl.ds(s1 + 1, wp, 2)]))
            dst[pl.ds(pr * wp, wp)] = m

    def wrap_patch(v, src_w, n_rows):
        """9-tap wrap-around im2col patch (n_rows, 9*C), bf16, from a flat
        (rows, C) value.  Taps fold into the contraction dim of one matmul."""
        return jnp.concatenate(
            [v[i * src_w + j: i * src_w + j + n_rows, :].astype(bf16)
             for i in range(3) for j in range(3)], axis=-1)

    def kernel(p1_ref,
               w1_ref, b1_ref, w2_ref, b2_ref, w3_ref, b3_ref,
               w4_ref, b4_ref, w5_ref, b5_ref, w6_ref, b6_ref,
               fcw_ref, fcb_ref,
               o_ref,
               a1, a2, a3, a4, a5, a6):
        f32 = jnp.float32
        # conv1 (3x3, Cin->64) + ReLU : ONE matmul, M = npix1
        y1 = jnp.dot(p1_ref[...], w1_ref[...], preferred_element_type=f32)
        a1[...] = jnp.maximum(y1 + b1_ref[...], 0.0)
        # maxpool 2x2/2 (bn1 folded into conv2)
        pool2x2(a1, a2, wo1, hp1, wp1)
        # conv2 (1x1, 64->32, bn1 folded) + ReLU : ONE matmul, M = npool1
        y2 = jnp.dot(a2[...].astype(bf16), w2_ref[...], preferred_element_type=f32)
        y2 = jnp.maximum(y2 + b2_ref[...], 0.0)
        # conv3 (3x3, 32->32) + ReLU : ONE matmul on the wrap patch, M = np3
        y3 = jnp.dot(wrap_patch(y2, wp1, np3), w3_ref[...],
                     preferred_element_type=f32)
        a3[...] = jnp.maximum(y3 + b3_ref[...], 0.0)
        # maxpool (bn2 folded into conv4)
        pool2x2(a3, a4, wp1, hp2, wp2)
        # conv4 (1x1, 32->16, bn2 folded) + ReLU
        y4 = jnp.dot(a4[...].astype(bf16), w4_ref[...], preferred_element_type=f32)
        y4 = jnp.maximum(y4 + b4_ref[...], 0.0)
        # conv5 (3x3, 16->32) + ReLU
        y5 = jnp.dot(wrap_patch(y4, wp2, np5), w5_ref[...],
                     preferred_element_type=f32)
        a5[...] = jnp.maximum(y5 + b5_ref[...], 0.0)
        # maxpool (bn3 folded into conv6)
        pool2x2(a5, a6, wp2, hp3, wp3)
        # conv6 (3x3, 32->16, bn3 folded) + ReLU
        y6 = jnp.dot(wrap_patch(a6[...], wp3, np6), w6_ref[...],
                     preferred_element_type=f32)
        y6 = jnp.maximum(y6 + b6_ref[...], 0.0)
        # global average pool over the valid (ho6, wo6) grid + fc(16 -> 8)
        acc = jnp.zeros((1, 16), f32)
        for r in range(ho6):                     # tiny static loop
            acc = acc + jnp.sum(y6[r * wp3: r * wp3 + wo6, :],
                                axis=0, keepdims=True)
        mean = acc * (1.0 / float(ho6 * wo6))
        o_ref[...] = (jnp.dot(mean, fcw_ref[...], preferred_element_type=f32)
                      + fcb_ref[...])

    in_specs = [pl.BlockSpec((None, npix1, 9 * Cin), lambda b: (b, 0, 0))]
    in_specs += [_const_spec(a) for a in params]

    scratch = [
        pltpu.VMEM((npix1, 64), jnp.float32),    # a1: conv1 out (flat, width wo1)
        pltpu.VMEM((npool1, 64), jnp.float32),   # a2: pool1 out (flat, width wp1)
        pltpu.VMEM((np3, 32), jnp.float32),      # a3: conv3 out (wrap, width wp1)
        pltpu.VMEM((npool2, 32), jnp.float32),   # a4: pool2 out (flat, width wp2)
        pltpu.VMEM((np5, 32), jnp.float32),      # a5: conv5 out (wrap, width wp2)
        pltpu.VMEM((npool3, 32), jnp.float32),   # a6: pool3 out (flat, width wp3)
    ]

    out = pl.pallas_call(
        kernel,
        out_shape=jax.ShapeDtypeStruct((B, 1, 8), jnp.float32),
        grid=(B,),
        in_specs=in_specs,
        out_specs=pl.BlockSpec((None, 1, 8), lambda b: (b, 0, 0)),
        scratch_shapes=scratch,
        compiler_params=pltpu.CompilerParams(
            dimension_semantics=("parallel",),    # v7x: one image per TensorCore
            vmem_limit_bytes=32 * 1024 * 1024),
    )(p1, *params)

    return out.reshape(B, 8)


# ----------------------------------------------------------------------------
# Plain-JAX reference of the same network (for the correctness check)
# ----------------------------------------------------------------------------
def net_reference(p, x_nhwc):
    dn = ("NHWC", "HWIO", "NHWC")
    hp = lax.Precision.HIGHEST

    def conv(x, w, b):
        y = lax.conv_general_dilated(x, w, (1, 1), "VALID",
                                     dimension_numbers=dn, precision=hp)
        return jnp.maximum(y + b, 0.0)

    def pool_bn(x, s, t):
        y = lax.reduce_window(x, -jnp.inf, lax.max,
                              (1, 2, 2, 1), (1, 2, 2, 1), "VALID")
        return y * s.reshape(1, 1, 1, -1) + t.reshape(1, 1, 1, -1)

    x = conv(x_nhwc, p["w1"], p["b1"])
    x = pool_bn(x, p["bn1_scale"], p["bn1_shift"])
    x = conv(x, p["w2"], p["b2"])
    x = conv(x, p["w3"], p["b3"])
    x = pool_bn(x, p["bn2_scale"], p["bn2_shift"])
    x = conv(x, p["w4"], p["b4"])
    x = conv(x, p["w5"], p["b5"])
    x = pool_bn(x, p["bn3_scale"], p["bn3_shift"])
    x = conv(x, p["w6"], p["b6"])
    x = jnp.mean(x, axis=(1, 2))
    return x @ p["fc_w_t"] + p["fc_b"]


# ----------------------------------------------------------------------------
# Parameter init (deterministic, synthetic)
# ----------------------------------------------------------------------------
def init_params(key):
    keys = jax.random.split(key, 32)
    ki = iter(range(32))

    def conv_p(kh, kw, cin, cout):
        w = jax.random.normal(keys[next(ki)], (kh, kw, cin, cout), jnp.float32)
        w = w * (1.0 / (kh * kw * cin) ** 0.5)
        b = 0.1 * jax.random.normal(keys[next(ki)], (cout,), jnp.float32)
        return w, b

    def bn_p(c, eps=1e-5):
        gamma = 1.0 + 0.1 * jax.random.normal(keys[next(ki)], (c,), jnp.float32)
        beta = 0.1 * jax.random.normal(keys[next(ki)], (c,), jnp.float32)
        mean = 0.1 * jax.random.normal(keys[next(ki)], (c,), jnp.float32)
        var = jax.random.uniform(keys[next(ki)], (c,), jnp.float32, 0.5, 1.5)
        scale = gamma / jnp.sqrt(var + eps)
        shift = beta - mean * scale
        return scale, shift

    p = {}
    p["w1"], p["b1"] = conv_p(3, 3, 3, 64)
    p["bn1_scale"], p["bn1_shift"] = bn_p(64)
    p["w2"], p["b2"] = conv_p(1, 1, 64, 32)
    p["w3"], p["b3"] = conv_p(3, 3, 32, 32)
    p["bn2_scale"], p["bn2_shift"] = bn_p(32)
    p["w4"], p["b4"] = conv_p(1, 1, 32, 16)
    p["w5"], p["b5"] = conv_p(3, 3, 16, 32)
    p["bn3_scale"], p["bn3_shift"] = bn_p(32)
    p["w6"], p["b6"] = conv_p(3, 3, 32, 16)
    # fc: Linear(16, 8); stored pre-transposed as (in, out) = (16, 8)
    p["fc_w_t"] = jax.random.normal(keys[next(ki)], (16, 8), jnp.float32) * (
        1.0 / 16.0 ** 0.5
    )
    p["fc_b"] = 0.1 * jax.random.normal(keys[next(ki)], (8,), jnp.float32)
    return p


if __name__ == "__main__":
    key = jax.random.PRNGKey(0)
    pkey, xkey = jax.random.split(key)
    params = init_params(pkey)

    # PyTorch-style NCHW input; spatial must be >= 38 to survive the network.
    x_nchw = jax.random.normal(xkey, (2, 3, 48, 48), jnp.float32)
    x_nhwc = jnp.transpose(x_nchw, (0, 2, 3, 1))   # one-time layout change

    fwd = jax.jit(net_forward_pallas)
    y = jax.block_until_ready(fwd(params, x_nhwc))
    assert y.shape == (2, 8), y.shape
    assert bool(jnp.all(jnp.isfinite(y)))

    # Correctness check against the f32 HIGHEST-precision reference.  The
    # kernel uses bf16 MXU operands with f32 accumulation (per perf review),
    # so the tolerance documents that precision choice.
    y_ref = jax.block_until_ready(jax.jit(net_reference)(params, x_nhwc))
    assert jnp.allclose(y, y_ref, rtol=5e-2, atol=5e-2), (y, y_ref)

    print("KERNEL_OK")
</pallas_src>

<mosaic_0001>
module attributes {stable_mosaic.version = 11 : i64} {
  func.func @kernel(%arg0: i32, %arg1: memref<1x2116x27xbf16, #tpu.memory_space<vmem>>, %arg2: memref<27x64xbf16, #tpu.memory_space<vmem>>, %arg3: memref<1x64xf32, #tpu.memory_space<vmem>>, %arg4: memref<64x32xbf16, #tpu.memory_space<vmem>>, %arg5: memref<1x32xf32, #tpu.memory_space<vmem>>, %arg6: memref<288x32xbf16, #tpu.memory_space<vmem>>, %arg7: memref<1x32xf32, #tpu.memory_space<vmem>>, %arg8: memref<32x16xbf16, #tpu.memory_space<vmem>>, %arg9: memref<1x16xf32, #tpu.memory_space<vmem>>, %arg10: memref<144x32xbf16, #tpu.memory_space<vmem>>, %arg11: memref<1x32xf32, #tpu.memory_space<vmem>>, %arg12: memref<288x16xbf16, #tpu.memory_space<vmem>>, %arg13: memref<1x16xf32, #tpu.memory_space<vmem>>, %arg14: memref<16x8xf32, #tpu.memory_space<vmem>>, %arg15: memref<1x8xf32, #tpu.memory_space<vmem>>, %arg16: memref<1x1x8xf32, #tpu.memory_space<vmem>>, %arg17: memref<2116x64xf32, #tpu.memory_space<vmem>>, %arg18: memref<529x64xf32, #tpu.memory_space<vmem>>, %arg19: memref<481x32xf32, #tpu.memory_space<vmem>>, %arg20: memref<100x32xf32, #tpu.memory_space<vmem>>, %arg21: memref<78x32xf32, #tpu.memory_space<vmem>>, %arg22: memref<16x32xf32, #tpu.memory_space<vmem>>) attributes {dimension_semantics = [#tpu.dimension_semantics<parallel>], iteration_bounds = array<i64: 2>, scalar_prefetch = 0 : i64, scratch_operands = 6 : i64, tpu.core_type = #tpu.core_type<tc>, window_params = [{transform_indices = @transform_0, window_bounds = array<i64: 1, 2116, 27>}, {pipeline_mode = #tpu.pipeline_mode<synchronous>, transform_indices = @transform_1, window_bounds = array<i64: 27, 64>}, {pipeline_mode = #tpu.pipeline_mode<synchronous>, transform_indices = @transform_2, window_bounds = array<i64: 1, 64>}, {pipeline_mode = #tpu.pipeline_mode<synchronous>, transform_indices = @transform_3, window_bounds = array<i64: 64, 32>}, {pipeline_mode = #tpu.pipeline_mode<synchronous>, transform_indices = @transform_4, window_bounds = array<i64: 1, 32>}, {pipeline_mode = #tpu.pipeline_mode<synchronous>, transform_indices = @transform_5, window_bounds = array<i64: 288, 32>}, {pipeline_mode = #tpu.pipeline_mode<synchronous>, transform_indices = @transform_6, window_bounds = array<i64: 1, 32>}, {pipeline_mode = #tpu.pipeline_mode<synchronous>, transform_indices = @transform_7, window_bounds = array<i64: 32, 16>}, {pipeline_mode = #tpu.pipeline_mode<synchronous>, transform_indices = @transform_8, window_bounds = array<i64: 1, 16>}, {pipeline_mode = #tpu.pipeline_mode<synchronous>, transform_indices = @transform_9, window_bounds = array<i64: 144, 32>}, {pipeline_mode = #tpu.pipeline_mode<synchronous>, transform_indices = @transform_10, window_bounds = array<i64: 1, 32>}, {pipeline_mode = #tpu.pipeline_mode<synchronous>, transform_indices = @transform_11, window_bounds = array<i64: 288, 16>}, {pipeline_mode = #tpu.pipeline_mode<synchronous>, transform_indices = @transform_12, window_bounds = array<i64: 1, 16>}, {pipeline_mode = #tpu.pipeline_mode<synchronous>, transform_indices = @transform_13, window_bounds = array<i64: 16, 8>}, {pipeline_mode = #tpu.pipeline_mode<synchronous>, transform_indices = @transform_14, window_bounds = array<i64: 1, 8>}, {transform_indices = @transform_15, window_bounds = array<i64: 1, 1, 8>}]} {
    %c0 = arith.constant 0 : index
    %c0_0 = arith.constant 0 : index
    %c0_1 = arith.constant 0 : index
    %0 = vector.load %arg1[%c0, %c0_0, %c0_1] : memref<1x2116x27xbf16, #tpu.memory_space<vmem>>, vector<1x2116x27xbf16>
    %1 = vector.shape_cast %0 : vector<1x2116x27xbf16> to vector<2116x27xbf16>
    %c0_2 = arith.constant 0 : index
    %c0_3 = arith.constant 0 : index
    %2 = vector.load %arg2[%c0_2, %c0_3] : memref<27x64xbf16, #tpu.memory_space<vmem>>, vector<27x64xbf16>
    %cst = arith.constant dense<0.000000e+00> : vector<2116x64xf32>
    %3 = tpu.matmul %1, %2, %cst {dimension_numbers = #tpu.dot_dimension_numbers<[1], [0], [0], [1], [0, 0, 1, 1], [], []>} : vector<2116x27xbf16>, vector<27x64xbf16>, vector<2116x64xf32> -> vector<2116x64xf32>
    %c0_4 = arith.constant 0 : index
    %c0_5 = arith.constant 0 : index
    %4 = vector.load %arg3[%c0_4, %c0_5] : memref<1x64xf32, #tpu.memory_space<vmem>>, vector<1x64xf32>
    %5 = vector.broadcast %4 : vector<1x64xf32> to vector<2116x64xf32>
    %6 = arith.addf %3, %5 : vector<2116x64xf32>
    %cst_6 = arith.constant 0.000000e+00 : f32
    %7 = vector.broadcast %cst_6 : f32 to vector<2116x64xf32>
    %8 = arith.maximumf %6, %7 : vector<2116x64xf32>
    %c0_7 = arith.constant 0 : index
    %c0_8 = arith.constant 0 : index
    %9 = vector.load %arg17[%c0_7, %c0_8] : memref<2116x64xf32, #tpu.memory_space<vmem>>, vector<2116x64xf32>
    tpu.vector_store %arg17[%c0_7, %c0_8], %8 {strides = array<i32>} : memref<2116x64xf32, #tpu.memory_space<vmem>>, vector<2116x64xf32>,
    %c0_9 = arith.constant 0 : index
    %c0_10 = arith.constant 0 : index
    %10 = tpu.strided_load %arg17[%c0_9, %c0_10] {strides = array<i32: 2, 1>} : memref<2116x64xf32, #tpu.memory_space<vmem>>, vector<23x64xf32>
    %c1 = arith.constant 1 : index
    %c0_11 = arith.constant 0 : index
    %11 = tpu.strided_load %arg17[%c1, %c0_11] {strides = array<i32: 2, 1>} : memref<2116x64xf32, #tpu.memory_space<vmem>>, vector<23x64xf32>
    %12 = arith.maximumf %10, %11 : vector<23x64xf32>
    %c46 = arith.constant 46 : index
    %c0_12 = arith.constant 0 : index
    %13 = tpu.strided_load %arg17[%c46, %c0_12] {strides = array<i32: 2, 1>} : memref<2116x64xf32, #tpu.memory_space<vmem>>, vector<23x64xf32>
    %c47 = arith.constant 47 : index
    %c0_13 = arith.constant 0 : index
    %14 = tpu.strided_load %arg17[%c47, %c0_13] {strides = array<i32: 2, 1>} : memref<2116x64xf32, #tpu.memory_space<vmem>>, vector<23x64xf32>
    %15 = arith.maximumf %13, %14 : vector<23x64xf32>
    %16 = arith.maximumf %12, %15 : vector<23x64xf32>
    %c0_14 = arith.constant 0 : index
    %c0_15 = arith.constant 0 : index
    %17 = vector.load %arg18[%c0_14, %c0_15] : memref<529x64xf32, #tpu.memory_space<vmem>>, vector<23x64xf32>
    tpu.vector_store %arg18[%c0_14, %c0_15], %16 {strides = array<i32>} : memref<529x64xf32, #tpu.memory_space<vmem>>, vector<23x64xf32>,
    %c92 = arith.constant 92 : index
    %c0_16 = arith.constant 0 : index
    %18 = tpu.strided_load %arg17[%c92, %c0_16] {strides = array<i32: 2, 1>} : memref<2116x64xf32, #tpu.memory_space<vmem>>, vector<23x64xf32>
    %c93 = arith.constant 93 : index
    %c0_17 = arith.constant 0 : index
    %19 = tpu.strided_load %arg17[%c93, %c0_17] {strides = array<i32: 2, 1>} : memref<2116x64xf32, #tpu.memory_space<vmem>>, vector<23x64xf32>
    %20 = arith.maximumf %18, %19 : vector<23x64xf32>
    %c138 = arith.constant 138 : index
    %c0_18 = arith.constant 0 : index
    %21 = tpu.strided_load %arg17[%c138, %c0_18] {strides = array<i32: 2, 1>} : memref<2116x64xf32, #tpu.memory_space<vmem>>, vector<23x64xf32>
    %c139 = arith.constant 139 : index
    %c0_19 = arith.constant 0 : index
    %22 = tpu.strided_load %arg17[%c139, %c0_19] {strides = array<i32: 2, 1>} : memref<2116x64xf32, #tpu.memory_space<vmem>>, vector<23x64xf32>
    %23 = arith.maximumf %21, %22 : vector<23x64xf32>
    %24 = arith.maximumf %20, %23 : vector<23x64xf32>
    %c23 = arith.constant 23 : index
    %c0_20 = arith.constant 0 : index
    %25 = vector.load %arg18[%c23, %c0_20] : memref<529x64xf32, #tpu.memory_space<vmem>>, vector<23x64xf32>
    tpu.vector_store %arg18[%c23, %c0_20], %24 {strides = array<i32>} : memref<529x64xf32, #tpu.memory_space<vmem>>, vector<23x64xf32>,
    %c184 = arith.constant 184 : index
    %c0_21 = arith.constant 0 : index
    %26 = tpu.strided_load %arg17[%c184, %c0_21] {strides = array<i32: 2, 1>} : memref<2116x64xf32, #tpu.memory_space<vmem>>, vector<23x64xf32>
    %c185 = arith.constant 185 : index
    %c0_22 = arith.constant 0 : index
    %27 = tpu.strided_load %arg17[%c185, %c0_22] {strides = array<i32: 2, 1>} : memref<2116x64xf32, #tpu.memory_space<vmem>>, vector<23x64xf32>
    %28 = arith.maximumf %26, %27 : vector<23x64xf32>
    %c230 = arith.constant 230 : index
    %c0_23 = arith.constant 0 : index
    %29 = tpu.strided_load %arg17[%c230, %c0_23] {strides = array<i32: 2, 1>} : memref<2116x64xf32, #tpu.memory_space<vmem>>, vector<23x64xf32>
    %c231 = arith.constant 231 : index
    %c0_24 = arith.constant 0 : index
    %30 = tpu.strided_load %arg17[%c231, %c0_24] {strides = array<i32: 2, 1>} : memref<2116x64xf32, #tpu.memory_space<vmem>>, vector<23x64xf32>
    %31 = arith.maximumf %29, %30 : vector<23x64xf32>
    %32 = arith.maximumf %28, %31 : vector<23x64xf32>
    %c46_25 = arith.constant 46 : index
    %c0_26 = arith.constant 0 : index
    %33 = vector.load %arg18[%c46_25, %c0_26] : memref<529x64xf32, #tpu.memory_space<vmem>>, vector<23x64xf32>
    tpu.vector_store %arg18[%c46_25, %c0_26], %32 {strides = array<i32>} : memref<529x64xf32, #tpu.memory_space<vmem>>, vector<23x64xf32>,
    %c276 = arith.constant 276 : index
    %c0_27 = arith.constant 0 : index
    %34 = tpu.strided_load %arg17[%c276, %c0_27] {strides = array<i32: 2, 1>} : memref<2116x64xf32, #tpu.memory_space<vmem>>, vector<23x64xf32>
    %c277 = arith.constant 277 : index
    %c0_28 = arith.constant 0 : index
    %35 = tpu.strided_load %arg17[%c277, %c0_28] {strides = array<i32: 2, 1>} : memref<2116x64xf32, #tpu.memory_space<vmem>>, vector<23x64xf32>
    %36 = arith.maximumf %34, %35 : vector<23x64xf32>
    %c322 = arith.constant 322 : index
    %c0_29 = arith.constant 0 : index
    %37 = tpu.strided_load %arg17[%c322, %c0_29] {strides = array<i32: 2, 1>} : memref<2116x64xf32, #tpu.memory_space<vmem>>, vector<23x64xf32>
    %c323 = arith.constant 323 : index
    %c0_30 = arith.constant 0 : index
    %38 = tpu.strided_load %arg17[%c323, %c0_30] {strides = array<i32: 2, 1>} : memref<2116x64xf32, #tpu.memory_space<vmem>>, vector<23x64xf32>
    %39 = arith.maximumf %37, %38 : vector<23x64xf32>
    %40 = arith.maximumf %36, %39 : vector<23x64xf32>
    %c69 = arith.constant 69 : index
    %c0_31 = arith.constant 0 : index
    %41 = vector.load %arg18[%c69, %c0_31] : memref<529x64xf32, #tpu.memory_space<vmem>>, vector<23x64xf32>
    tpu.vector_store %arg18[%c69, %c0_31], %40 {strides = array<i32>} : memref<529x64xf32, #tpu.memory_space<vmem>>, vector<23x64xf32>,
    %c368 = arith.constant 368 : index
    %c0_32 = arith.constant 0 : index
    %42 = tpu.strided_load %arg17[%c368, %c0_32] {strides = array<i32: 2, 1>} : memref<2116x64xf32, #tpu.memory_space<vmem>>, vector<23x64xf32>
    %c369 = arith.constant 369 : index
    %c0_33 = arith.constant 0 : index
    %43 = tpu.strided_load %arg17[%c369, %c0_33] {strides = array<i32: 2, 1>} : memref<2116x64xf32, #tpu.memory_space<vmem>>, vector<23x64xf32>
    %44 = arith.maximumf %42, %43 : vector<23x64xf32>
    %c414 = arith.constant 414 : index
    %c0_34 = arith.constant 0 : index
    %45 = tpu.strided_load %arg17[%c414, %c0_34] {strides = array<i32: 2, 1>} : memref<2116x64xf32, #tpu.memory_space<vmem>>, vector<23x64xf32>
    %c415 = arith.constant 415 : index
    %c0_35 = arith.constant 0 : index
    %46 = tpu.strided_load %arg17[%c415, %c0_35] {strides = array<i32: 2, 1>} : memref<2116x64xf32, #tpu.memory_space<vmem>>, vector<23x64xf32>
    %47 = arith.maximumf %45, %46 : vector<23x64xf32>
    %48 = arith.maximumf %44, %47 : vector<23x64xf32>
    %c92_36 = arith.constant 92 : index
    %c0_37 = arith.constant 0 : index
    %49 = vector.load %arg18[%c92_36, %c0_37] : memref<529x64xf32, #tpu.memory_space<vmem>>, vector<23x64xf32>
    tpu.vector_store %arg18[%c92_36, %c0_37], %48 {strides = array<i32>} : memref<529x64xf32, #tpu.memory_space<vmem>>, vector<23x64xf32>,
    %c460 = arith.constant 460 : index
    %c0_38 = arith.constant 0 : index
    %50 = tpu.strided_load %arg17[%c460, %c0_38] {strides = array<i32: 2, 1>} : memref<2116x64xf32, #tpu.memory_space<vmem>>, vector<23x64xf32>
    %c461 = arith.constant 461 : index
    %c0_39 = arith.constant 0 : index
    %51 = tpu.strided_load %arg17[%c461, %c0_39] {strides = array<i32: 2, 1>} : memref<2116x64xf32, #tpu.memory_space<vmem>>, vector<23x64xf32>
    %52 = arith.maximumf %50, %51 : vector<23x64xf32>
    %c506 = arith.constant 506 : index
    %c0_40 = arith.constant 0 : index
    %53 = tpu.strided_load %arg17[%c506, %c0_40] {strides = array<i32: 2, 1>} : memref<2116x64xf32, #tpu.memory_space<vmem>>, vector<23x64xf32>
    %c507 = arith.constant 507 : index
    %c0_41 = arith.constant 0 : index
    %54 = tpu.strided_load %arg17[%c507, %c0_41] {strides = array<i32: 2, 1>} : memref<2116x64xf32, #tpu.memory_space<vmem>>, vector<23x64xf32>
    %55 = arith.maximumf %53, %54 : vector<23x64xf32>
    %56 = arith.maximumf %52, %55 : vector<23x64xf32>
    %c115 = arith.constant 115 : index
    %c0_42 = arith.constant 0 : index
    %57 = vector.load %arg18[%c115, %c0_42] : memref<529x64xf32, #tpu.memory_space<vmem>>, vector<23x64xf32>
    tpu.vector_store %arg18[%c115, %c0_42], %56 {strides = array<i32>} : memref<529x64xf32, #tpu.memory_space<vmem>>, vector<23x64xf32>,
    %c552 = arith.constant 552 : index
    %c0_43 = arith.constant 0 : index
    %58 = tpu.strided_load %arg17[%c552, %c0_43] {strides = array<i32: 2, 1>} : memref<2116x64xf32, #tpu.memory_space<vmem>>, vector<23x64xf32>
    %c553 = arith.constant 553 : index
    %c0_44 = arith.constant 0 : index
    %59 = tpu.strided_load %arg17[%c553, %c0_44] {strides = array<i32: 2, 1>} : memref<2116x64xf32, #tpu.memory_space<vmem>>, vector<23x64xf32>
    %60 = arith.maximumf %58, %59 : vector<23x64xf32>
    %c598 = arith.constant 598 : index
    %c0_45 = arith.constant 0 : index
    %61 = tpu.strided_load %arg17[%c598, %c0_45] {strides = array<i32: 2, 1>} : memref<2116x64xf32, #tpu.memory_space<vmem>>, vector<23x64xf32>
    %c599 = arith.constant 599 : index
    %c0_46 = arith.constant 0 : index
    %62 = tpu.strided_load %arg17[%c599, %c0_46] {strides = array<i32: 2, 1>} : memref<2116x64xf32, #tpu.memory_space<vmem>>, vector<23x64xf32>
    %63 = arith.maximumf %61, %62 : vector<23x64xf32>
    %64 = arith.maximumf %60, %63 : vector<23x64xf32>
    %c138_47 = arith.constant 138 : index
    %c0_48 = arith.constant 0 : index
    %65 = vector.load %arg18[%c138_47, %c0_48] : memref<529x64xf32, #tpu.memory_space<vmem>>, vector<23x64xf32>
    tpu.vector_store %arg18[%c138_47, %c0_48], %64 {strides = array<i32>} : memref<529x64xf32, #tpu.memory_space<vmem>>, vector<23x64xf32>,
    %c644 = arith.constant 644 : index
    %c0_49 = arith.constant 0 : index
    %66 = tpu.strided_load %arg17[%c644, %c0_49] {strides = array<i32: 2, 1>} : memref<2116x64xf32, #tpu.memory_space<vmem>>, vector<23x64xf32>
    %c645 = arith.constant 645 : index
    %c0_50 = arith.constant 0 : index
    %67 = tpu.strided_load %arg17[%c645, %c0_50] {strides = array<i32: 2, 1>} : memref<2116x64xf32, #tpu.memory_space<vmem>>, vector<23x64xf32>
    %68 = arith.maximumf %66, %67 : vector<23x64xf32>
    %c690 = arith.constant 690 : index
    %c0_51 = arith.constant 0 : index
    %69 = tpu.strided_load %arg17[%c690, %c0_51] {strides = array<i32: 2, 1>} : memref<2116x64xf32, #tpu.memory_space<vmem>>, vector<23x64xf32>
    %c691 = arith.constant 691 : index
    %c0_52 = arith.constant 0 : index
    %70 = tpu.strided_load %arg17[%c691, %c0_52] {strides = array<i32: 2, 1>} : memref<2116x64xf32, #tpu.memory_space<vmem>>, vector<23x64xf32>
    %71 = arith.maximumf %69, %70 : vector<23x64xf32>
    %72 = arith.maximumf %68, %71 : vector<23x64xf32>
    %c161 = arith.constant 161 : index
    %c0_53 = arith.constant 0 : index
    %73 = vector.load %arg18[%c161, %c0_53] : memref<529x64xf32, #tpu.memory_space<vmem>>, vector<23x64xf32>
    tpu.vector_store %arg18[%c161, %c0_53], %72 {strides = array<i32>} : memref<529x64xf32, #tpu.memory_space<vmem>>, vector<23x64xf32>,
    %c736 = arith.constant 736 : index
    %c0_54 = arith.constant 0 : index
    %74 = tpu.strided_load %arg17[%c736, %c0_54] {strides = array<i32: 2, 1>} : memref<2116x64xf32, #tpu.memory_space<vmem>>, vector<23x64xf32>
    %c737 = arith.constant 737 : index
    %c0_55 = arith.constant 0 : index
    %75 = tpu.strided_load %arg17[%c737, %c0_55] {strides = array<i32: 2, 1>} : memref<2116x64xf32, #tpu.memory_space<vmem>>, vector<23x64xf32>
    %76 = arith.maximumf %74, %75 : vector<23x64xf32>
    %c782 = arith.constant 782 : index
    %c0_56 = arith.constant 0 : index
    %77 = tpu.strided_load %arg17[%c782, %c0_56] {strides = array<i32: 2, 1>} : memref<2116x64xf32, #tpu.memory_space<vmem>>, vector<23x64xf32>
    %c783 = arith.constant 783 : index
    %c0_57 = arith.constant 0 : index
    %78 = tpu.strided_load %arg17[%c783, %c0_57] {strides = array<i32: 2, 1>} : memref<2116x64xf32, #tpu.memory_space<vmem>>, vector<23x64xf32>
    %79 = arith.maximumf %77, %78 : vector<23x64xf32>
    %80 = arith.maximumf %76, %79 : vector<23x64xf32>
    %c184_58 = arith.constant 184 : index
    %c0_59 = arith.constant 0 : index
    %81 = vector.load %arg18[%c184_58, %c0_59] : memref<529x64xf32, #tpu.memory_space<vmem>>, vector<23x64xf32>
    tpu.vector_store %arg18[%c184_58, %c0_59], %80 {strides = array<i32>} : memref<529x64xf32, #tpu.memory_space<vmem>>, vector<23x64xf32>,
    %c828 = arith.constant 828 : index
    %c0_60 = arith.constant 0 : index
    %82 = tpu.strided_load %arg17[%c828, %c0_60] {strides = array<i32: 2, 1>} : memref<2116x64xf32, #tpu.memory_space<vmem>>, vector<23x64xf32>
    %c829 = arith.constant 829 : index
    %c0_61 = arith.constant 0 : index
    %83 = tpu.strided_load %arg17[%c829, %c0_61] {strides = array<i32: 2, 1>} : memref<2116x64xf32, #tpu.memory_space<vmem>>, vector<23x64xf32>
    %84 = arith.maximumf %82, %83 : vector<23x64xf32>
    %c874 = arith.constant 874 : index
    %c0_62 = arith.constant 0 : index
    %85 = tpu.strided_load %arg17[%c874, %c0_62] {strides = array<i32: 2, 1>} : memref<2116x64xf32, #tpu.memory_space<vmem>>, vector<23x64xf32>
    %c875 = arith.constant 875 : index
    %c0_63 = arith.constant 0 : index
    %86 = tpu.strided_load %arg17[%c875, %c0_63] {strides = array<i32: 2, 1>} : memref<2116x64xf32, #tpu.memory_space<vmem>>, vector<23x64xf32>
    %87 = arith.maximumf %85, %86 : vector<23x64xf32>
    %88 = arith.maximumf %84, %87 : vector<23x64xf32>
    %c207 = arith.constant 207 : index
    %c0_64 = arith.constant 0 : index
    %89 = vector.load %arg18[%c207, %c0_64] : memref<529x64xf32, #tpu.memory_space<vmem>>, vector<23x64xf32>
    tpu.vector_store %arg18[%c207, %c0_64], %88 {strides = array<i32>} : memref<529x64xf32, #tpu.memory_space<vmem>>, vector<23x64xf32>,
    %c920 = arith.constant 920 : index
    %c0_65 = arith.constant 0 : index
    %90 = tpu.strided_load %arg17[%c920, %c0_65] {strides = array<i32: 2, 1>} : memref<2116x64xf32, #tpu.memory_space<vmem>>, vector<23x64xf32>
    %c921 = arith.constant 921 : index
    %c0_66 = arith.constant 0 : index
    %91 = tpu.strided_load %arg17[%c921, %c0_66] {strides = array<i32: 2, 1>} : memref<2116x64xf32, #tpu.memory_space<vmem>>, vector<23x64xf32>
    %92 = arith.maximumf %90, %91 : vector<23x64xf32>
    %c966 = arith.constant 966 : index
    %c0_67 = arith.constant 0 : index
    %93 = tpu.strided_load %arg17[%c966, %c0_67] {strides = array<i32: 2, 1>} : memref<2116x64xf32, #tpu.memory_space<vmem>>, vector<23x64xf32>
    %c967 = arith.constant 967 : index
    %c0_68 = arith.constant 0 : index
    %94 = tpu.strided_load %arg17[%c967, %c0_68] {strides = array<i32: 2, 1>} : memref<2116x64xf32, #tpu.memory_space<vmem>>, vector<23x64xf32>
    %95 = arith.maximumf %93, %94 : vector<23x64xf32>
    %96 = arith.maximumf %92, %95 : vector<23x64xf32>
    %c230_69 = arith.constant 230 : index
    %c0_70 = arith.constant 0 : index
    %97 = vector.load %arg18[%c230_69, %c0_70] : memref<529x64xf32, #tpu.memory_space<vmem>>, vector<23x64xf32>
    tpu.vector_store %arg18[%c230_69, %c0_70], %96 {strides = array<i32>} : memref<529x64xf32, #tpu.memory_space<vmem>>, vector<23x64xf32>,
    %c1012 = arith.constant 1012 : index
    %c0_71 = arith.constant 0 : index
    %98 = tpu.strided_load %arg17[%c1012, %c0_71] {strides = array<i32: 2, 1>} : memref<2116x64xf32, #tpu.memory_space<vmem>>, vector<23x64xf32>
    %c1013 = arith.constant 1013 : index
    %c0_72 = arith.constant 0 : index
    %99 = tpu.strided_load %arg17[%c1013, %c0_72] {strides = array<i32: 2, 1>} : memref<2116x64xf32, #tpu.memory_space<vmem>>, vector<23x64xf32>
    %100 = arith.maximumf %98, %99 : vector<23x64xf32>
    %c1058 = arith.constant 1058 : index
    %c0_73 = arith.constant 0 : index
    %101 = tpu.strided_load %arg17[%c1058, %c0_73] {strides = array<i32: 2, 1>} : memref<2116x64xf32, #tpu.memory_space<vmem>>, vector<23x64xf32>
    %c1059 = arith.constant 1059 : index
    %c0_74 = arith.constant 0 : index
    %102 = tpu.strided_load %arg17[%c1059, %c0_74] {strides = array<i32: 2, 1>} : memref<2116x64xf32, #tpu.memory_space<vmem>>, vector<23x64xf32>
    %103 = arith.maximumf %101, %102 : vector<23x64xf32>
    %104 = arith.maximumf %100, %103 : vector<23x64xf32>
    %c253 = arith.constant 253 : index
    %c0_75 = arith.constant 0 : index
    %105 = vector.load %arg18[%c253, %c0_75] : memref<529x64xf32, #tpu.memory_space<vmem>>, vector<23x64xf32>
    tpu.vector_store %arg18[%c253, %c0_75], %104 {strides = array<i32>} : memref<529x64xf32, #tpu.memory_space<vmem>>, vector<23x64xf32>,
    %c1104 = arith.constant 1104 : index
    %c0_76 = arith.constant 0 : index
    %106 = tpu.strided_load %arg17[%c1104, %c0_76] {strides = array<i32: 2, 1>} : memref<2116x64xf32, #tpu.memory_space<vmem>>, vector<23x64xf32>
    %c1105 = arith.constant 1105 : index
    %c0_77 = arith.constant 0 : index
    %107 = tpu.strided_load %arg17[%c1105, %c0_77] {strides = array<i32: 2, 1>} : memref<2116x64xf32, #tpu.memory_space<vmem>>, vector<23x64xf32>
    %108 = arith.maximumf %106, %107 : vector<23x64xf32>
    %c1150 = arith.constant 1150 : index
    %c0_78 = arith.constant 0 : index
    %109 = tpu.strided_load %arg17[%c1150, %c0_78] {strides = array<i32: 2, 1>} : memref<2116x64xf32, #tpu.memory_space<vmem>>, vector<23x64xf32>
    %c1151 = arith.constant 1151 : index
    %c0_79 = arith.constant 0 : index
    %110 = tpu.strided_load %arg17[%c1151, %c0_79] {strides = array<i32: 2, 1>} : memref<2116x64xf32, #tpu.memory_space<vmem>>, vector<23x64xf32>
    %111 = arith.maximumf %109, %110 : vector<23x64xf32>
    %112 = arith.maximumf %108, %111 : vector<23x64xf32>
    %c276_80 = arith.constant 276 : index
    %c0_81 = arith.constant 0 : index
    %113 = vector.load %arg18[%c276_80, %c0_81] : memref<529x64xf32, #tpu.memory_space<vmem>>, vector<23x64xf32>
    tpu.vector_store %arg18[%c276_80, %c0_81], %112 {strides = array<i32>} : memref<529x64xf32, #tpu.memory_space<vmem>>, vector<23x64xf32>,
    %c1196 = arith.constant 1196 : index
    %c0_82 = arith.constant 0 : index
    %114 = tpu.strided_load %arg17[%c1196, %c0_82] {strides = array<i32: 2, 1>} : memref<2116x64xf32, #tpu.memory_space<vmem>>, vector<23x64xf32>
    %c1197 = arith.constant 1197 : index
    %c0_83 = arith.constant 0 : index
    %115 = tpu.strided_load %arg17[%c1197, %c0_83] {strides = array<i32: 2, 1>} : memref<2116x64xf32, #tpu.memory_space<vmem>>, vector<23x64xf32>
    %116 = arith.maximumf %114, %115 : vector<23x64xf32>
    %c1242 = arith.constant 1242 : index
    %c0_84 = arith.constant 0 : index
    %117 = tpu.strided_load %arg17[%c1242, %c0_84] {strides = array<i32: 2, 1>} : memref<2116x64xf32, #tpu.memory_space<vmem>>, vector<23x64xf32>
    %c1243 = arith.constant 1243 : index
    %c0_85 = arith.constant 0 : index
    %118 = tpu.strided_load %arg17[%c1243, %c0_85] {strides = array<i32: 2, 1>} : memref<2116x64xf32, #tpu.memory_space<vmem>>, vector<23x64xf32>
    %119 = arith.maximumf %117, %118 : vector<23x64xf32>
    %120 = arith.maximumf %116, %119 : vector<23x64xf32>
    %c299 = arith.constant 299 : index
    %c0_86 = arith.constant 0 : index
    %121 = vector.load %arg18[%c299, %c0_86] : memref<529x64xf32, #tpu.memory_space<vmem>>, vector<23x64xf32>
    tpu.vector_store %arg18[%c299, %c0_86], %120 {strides = array<i32>} : memref<529x64xf32, #tpu.memory_space<vmem>>, vector<23x64xf32>,
    %c1288 = arith.constant 1288 : index
    %c0_87 = arith.constant 0 : index
    %122 = tpu.strided_load %arg17[%c1288, %c0_87] {strides = array<i32: 2, 1>} : memref<2116x64xf32, #tpu.memory_space<vmem>>, vector<23x64xf32>
    %c1289 = arith.constant 1289 : index
    %c0_88 = arith.constant 0 : index
    %123 = tpu.strided_load %arg17[%c1289, %c0_88] {strides = array<i32: 2, 1>} : memref<2116x64xf32, #tpu.memory_space<vmem>>, vector<23x64xf32>
    %124 = arith.maximumf %122, %123 : vector<23x64xf32>
    %c1334 = arith.constant 1334 : index
    %c0_89 = arith.constant 0 : index
    %125 = tpu.strided_load %arg17[%c1334, %c0_89] {strides = array<i32: 2, 1>} : memref<2116x64xf32, #tpu.memory_space<vmem>>, vector<23x64xf32>
    %c1335 = arith.constant 1335 : index
    %c0_90 = arith.constant 0 : index
    %126 = tpu.strided_load %arg17[%c1335, %c0_90] {strides = array<i32: 2, 1>} : memref<2116x64xf32, #tpu.memory_space<vmem>>, vector<23x64xf32>
    %127 = arith.maximumf %125, %126 : vector<23x64xf32>
    %128 = arith.maximumf %124, %127 : vector<23x64xf32>
    %c322_91 = arith.constant 322 : index
    %c0_92 = arith.constant 0 : index
    %129 = vector.load %arg18[%c322_91, %c0_92] : memref<529x64xf32, #tpu.memory_space<vmem>>, vector<23x64xf32>
    tpu.vector_store %arg18[%c322_91, %c0_92], %128 {strides = array<i32>} : memref<529x64xf32, #tpu.memory_space<vmem>>, vector<23x64xf32>,
    %c1380 = arith.constant 1380 : index
    %c0_93 = arith.constant 0 : index
    %130 = tpu.strided_load %arg17[%c1380, %c0_93] {strides = array<i32: 2, 1>} : memref<2116x64xf32, #tpu.memory_space<vmem>>, vector<23x64xf32>
    %c1381 = arith.constant 1381 : index
    %c0_94 = arith.constant 0 : index
    %131 = tpu.strided_load %arg17[%c1381, %c0_94] {strides = array<i32: 2, 1>} : memref<2116x64xf32, #tpu.memory_space<vmem>>, vector<23x64xf32>
    %132 = arith.maximumf %130, %131 : vector<23x64xf32>
    %c1426 = arith.constant 1426 : index
    %c0_95 = arith.constant 0 : index
    %133 = tpu.strided_load %arg17[%c1426, %c0_95] {strides = array<i32: 2, 1>} : memref<2116x64xf32, #tpu.memory_space<vmem>>, vector<23x64xf32>
    %c1427 = arith.constant 1427 : index
    %c0_96 = arith.constant 0 : index
    %134 = tpu.strided_load %arg17[%c1427, %c0_96] {strides = array<i32: 2, 1>} : memref<2116x64xf32, #tpu.memory_space<vmem>>, vector<23x64xf32>
    %135 = arith.maximumf %133, %134 : vector<23x64xf32>
    %136 = arith.maximumf %132, %135 : vector<23x64xf32>
    %c345 = arith.constant 345 : index
    %c0_97 = arith.constant 0 : index
    %137 = vector.load %arg18[%c345, %c0_97] : memref<529x64xf32, #tpu.memory_space<vmem>>, vector<23x64xf32>
    tpu.vector_store %arg18[%c345, %c0_97], %136 {strides = array<i32>} : memref<529x64xf32, #tpu.memory_space<vmem>>, vector<23x64xf32>,
    %c1472 = arith.constant 1472 : index
    %c0_98 = arith.constant 0 : index
    %138 = tpu.strided_load %arg17[%c1472, %c0_98] {strides = array<i32: 2, 1>} : memref<2116x64xf32, #tpu.memory_space<vmem>>, vector<23x64xf32>
    %c1473 = arith.constant 1473 : index
    %c0_99 = arith.constant 0 : index
    %139 = tpu.strided_load %arg17[%c1473, %c0_99] {strides = array<i32: 2, 1>} : memref<2116x64xf32, #tpu.memory_space<vmem>>, vector<23x64xf32>
    %140 = arith.maximumf %138, %139 : vector<23x64xf32>
    %c1518 = arith.constant 1518 : index
    %c0_100 = arith.constant 0 : index
    %141 = tpu.strided_load %arg17[%c1518, %c0_100] {strides = array<i32: 2, 1>} : memref<2116x64xf32, #tpu.memory_space<vmem>>, vector<23x64xf32>
    %c1519 = arith.constant 1519 : index
    %c0_101 = arith.constant 0 : index
    %142 = tpu.strided_load %arg17[%c1519, %c0_101] {strides = array<i32: 2, 1>} : memref<2116x64xf32, #tpu.memory_space<vmem>>, vector<23x64xf32>
    %143 = arith.maximumf %141, %142 : vector<23x64xf32>
    %144 = arith.maximumf %140, %143 : vector<23x64xf32>
    %c368_102 = arith.constant 368 : index
    %c0_103 = arith.constant 0 : index
    %145 = vector.load %arg18[%c368_102, %c0_103] : memref<529x64xf32, #tpu.memory_space<vmem>>, vector<23x64xf32>
    tpu.vector_store %arg18[%c368_102, %c0_103], %144 {strides = array<i32>} : memref<529x64xf32, #tpu.memory_space<vmem>>, vector<23x64xf32>,
    %c1564 = arith.constant 1564 : index
    %c0_104 = arith.constant 0 : index
    %146 = tpu.strided_load %arg17[%c1564, %c0_104] {strides = array<i32: 2, 1>} : memref<2116x64xf32, #tpu.memory_space<vmem>>, vector<23x64xf32>
    %c1565 = arith.constant 1565 : index
    %c0_105 = arith.constant 0 : index
    %147 = tpu.strided_load %arg17[%c1565, %c0_105] {strides = array<i32: 2, 1>} : memref<2116x64xf32, #tpu.memory_space<vmem>>, vector<23x64xf32>
    %148 = arith.maximumf %146, %147 : vector<23x64xf32>
    %c1610 = arith.constant 1610 : index
    %c0_106 = arith.constant 0 : index
    %149 = tpu.strided_load %arg17[%c1610, %c0_106] {strides = array<i32: 2, 1>} : memref<2116x64xf32, #tpu.memory_space<vmem>>, vector<23x64xf32>
    %c1611 = arith.constant 1611 : index
    %c0_107 = arith.constant 0 : index
    %150 = tpu.strided_load %arg17[%c1611, %c0_107] {strides = array<i32: 2, 1>} : memref<2116x64xf32, #tpu.memory_space<vmem>>, vector<23x64xf32>
    %151 = arith.maximumf %149, %150 : vector<23x64xf32>
    %152 = arith.maximumf %148, %151 : vector<23x64xf32>
    %c391 = arith.constant 391 : index
    %c0_108 = arith.constant 0 : index
    %153 = vector.load %arg18[%c391, %c0_108] : memref<529x64xf32, #tpu.memory_space<vmem>>, vector<23x64xf32>
    tpu.vector_store %arg18[%c391, %c0_108], %152 {strides = array<i32>} : memref<529x64xf32, #tpu.memory_space<vmem>>, vector<23x64xf32>,
    %c1656 = arith.constant 1656 : index
    %c0_109 = arith.constant 0 : index
    %154 = tpu.strided_load %arg17[%c1656, %c0_109] {strides = array<i32: 2, 1>} : memref<2116x64xf32, #tpu.memory_space<vmem>>, vector<23x64xf32>
    %c1657 = arith.constant 1657 : index
    %c0_110 = arith.constant 0 : index
    %155 = tpu.strided_load %arg17[%c1657, %c0_110] {strides = array<i32: 2, 1>} : memref<2116x64xf32, #tpu.memory_space<vmem>>, vector<23x64xf32>
    %156 = arith.maximumf %154, %155 : vector<23x64xf32>
    %c1702 = arith.constant 1702 : index
    %c0_111 = arith.constant 0 : index
    %157 = tpu.strided_load %arg17[%c1702, %c0_111] {strides = array<i32: 2, 1>} : memref<2116x64xf32, #tpu.memory_space<vmem>>, vector<23x64xf32>
    %c1703 = arith.constant 1703 : index
    %c0_112 = arith.constant 0 : index
    %158 = tpu.strided_load %arg17[%c1703, %c0_112] {strides = array<i32: 2, 1>} : memref<2116x64xf32, #tpu.memory_space<vmem>>, vector<23x64xf32>
    %159 = arith.maximumf %157, %158 : vector<23x64xf32>
    %160 = arith.maximumf %156, %159 : vector<23x64xf32>
    %c414_113 = arith.constant 414 : index
    %c0_114 = arith.constant 0 : index
    %161 = vector.load %arg18[%c414_113, %c0_114] : memref<529x64xf32, #tpu.memory_space<vmem>>, vector<23x64xf32>
    tpu.vector_store %arg18[%c414_113, %c0_114], %160 {strides = array<i32>} : memref<529x64xf32, #tpu.memory_space<vmem>>, vector<23x64xf32>,
    %c1748 = arith.constant 1748 : index
    %c0_115 = arith.constant 0 : index
    %162 = tpu.strided_load %arg17[%c1748, %c0_115] {strides = array<i32: 2, 1>} : memref<2116x64xf32, #tpu.memory_space<vmem>>, vector<23x64xf32>
    %c1749 = arith.constant 1749 : index
    %c0_116 = arith.constant 0 : index
    %163 = tpu.strided_load %arg17[%c1749, %c0_116] {strides = array<i32: 2, 1>} : memref<2116x64xf32, #tpu.memory_space<vmem>>, vector<23x64xf32>
    %164 = arith.maximumf %162, %163 : vector<23x64xf32>
    %c1794 = arith.constant 1794 : index
    %c0_117 = arith.constant 0 : index
    %165 = tpu.strided_load %arg17[%c1794, %c0_117] {strides = array<i32: 2, 1>} : memref<2116x64xf32, #tpu.memory_space<vmem>>, vector<23x64xf32>
    %c1795 = arith.constant 1795 : index
    %c0_118 = arith.constant 0 : index
    %166 = tpu.strided_load %arg17[%c1795, %c0_118] {strides = array<i32: 2, 1>} : memref<2116x64xf32, #tpu.memory_space<vmem>>, vector<23x64xf32>
    %167 = arith.maximumf %165, %166 : vector<23x64xf32>
    %168 = arith.maximumf %164, %167 : vector<23x64xf32>
    %c437 = arith.constant 437 : index
    %c0_119 = arith.constant 0 : index
    %169 = vector.load %arg18[%c437, %c0_119] : memref<529x64xf32, #tpu.memory_space<vmem>>, vector<23x64xf32>
    tpu.vector_store %arg18[%c437, %c0_119], %168 {strides = array<i32>} : memref<529x64xf32, #tpu.memory_space<vmem>>, vector<23x64xf32>,
    %c1840 = arith.constant 1840 : index
    %c0_120 = arith.constant 0 : index
    %170 = tpu.strided_load %arg17[%c1840, %c0_120] {strides = array<i32: 2, 1>} : memref<2116x64xf32, #tpu.memory_space<vmem>>, vector<23x64xf32>
    %c1841 = arith.constant 1841 : index
    %c0_121 = arith.constant 0 : index
    %171 = tpu.strided_load %arg17[%c1841, %c0_121] {strides = array<i32: 2, 1>} : memref<2116x64xf32, #tpu.memory_space<vmem>>, vector<23x64xf32>
    %172 = arith.maximumf %170, %171 : vector<23x64xf32>
    %c1886 = arith.constant 1886 : index
    %c0_122 = arith.constant 0 : index
    %173 = tpu.strided_load %arg17[%c1886, %c0_122] {strides = array<i32: 2, 1>} : memref<2116x64xf32, #tpu.memory_space<vmem>>, vector<23x64xf32>
    %c1887 = arith.constant 1887 : index
    %c0_123 = arith.constant 0 : index
    %174 = tpu.strided_load %arg17[%c1887, %c0_123] {strides = array<i32: 2, 1>} : memref<2116x64xf32, #tpu.memory_space<vmem>>, vector<23x64xf32>
    %175 = arith.maximumf %173, %174 : vector<23x64xf32>
    %176 = arith.maximumf %172, %175 : vector<23x64xf32>
    %c460_124 = arith.constant 460 : index
    %c0_125 = arith.constant 0 : index
    %177 = vector.load %arg18[%c460_124, %c0_125] : memref<529x64xf32, #tpu.memory_space<vmem>>, vector<23x64xf32>
    tpu.vector_store %arg18[%c460_124, %c0_125], %176 {strides = array<i32>} : memref<529x64xf32, #tpu.memory_space<vmem>>, vector<23x64xf32>,
    %c1932 = arith.constant 1932 : index
    %c0_126 = arith.constant 0 : index
    %178 = tpu.strided_load %arg17[%c1932, %c0_126] {strides = array<i32: 2, 1>} : memref<2116x64xf32, #tpu.memory_space<vmem>>, vector<23x64xf32>
    %c1933 = arith.constant 1933 : index
    %c0_127 = arith.constant 0 : index
    %179 = tpu.strided_load %arg17[%c1933, %c0_127] {strides = array<i32: 2, 1>} : memref<2116x64xf32, #tpu.memory_space<vmem>>, vector<23x64xf32>
    %180 = arith.maximumf %178, %179 : vector<23x64xf32>
    %c1978 = arith.constant 1978 : index
    %c0_128 = arith.constant 0 : index
    %181 = tpu.strided_load %arg17[%c1978, %c0_128] {strides = array<i32: 2, 1>} : memref<2116x64xf32, #tpu.memory_space<vmem>>, vector<23x64xf32>
    %c1979 = arith.constant 1979 : index
    %c0_129 = arith.constant 0 : index
    %182 = tpu.strided_load %arg17[%c1979, %c0_129] {strides = array<i32: 2, 1>} : memref<2116x64xf32, #tpu.memory_space<vmem>>, vector<23x64xf32>
    %183 = arith.maximumf %181, %182 : vector<23x64xf32>
    %184 = arith.maximumf %180, %183 : vector<23x64xf32>
    %c483 = arith.constant 483 : index
    %c0_130 = arith.constant 0 : index
    %185 = vector.load %arg18[%c483, %c0_130] : memref<529x64xf32, #tpu.memory_space<vmem>>, vector<23x64xf32>
    tpu.vector_store %arg18[%c483, %c0_130], %184 {strides = array<i32>} : memref<529x64xf32, #tpu.memory_space<vmem>>, vector<23x64xf32>,
    %c2024 = arith.constant 2024 : index
    %c0_131 = arith.constant 0 : index
    %186 = tpu.strided_load %arg17[%c2024, %c0_131] {strides = array<i32: 2, 1>} : memref<2116x64xf32, #tpu.memory_space<vmem>>, vector<23x64xf32>
    %c2025 = arith.constant 2025 : index
    %c0_132 = arith.constant 0 : index
    %187 = tpu.strided_load %arg17[%c2025, %c0_132] {strides = array<i32: 2, 1>} : memref<2116x64xf32, #tpu.memory_space<vmem>>, vector<23x64xf32>
    %188 = arith.maximumf %186, %187 : vector<23x64xf32>
    %c2070 = arith.constant 2070 : index
    %c0_133 = arith.constant 0 : index
    %189 = tpu.strided_load %arg17[%c2070, %c0_133] {strides = array<i32: 2, 1>} : memref<2116x64xf32, #tpu.memory_space<vmem>>, vector<23x64xf32>
    %c2071 = arith.constant 2071 : index
    %c0_134 = arith.constant 0 : index
    %190 = tpu.strided_load %arg17[%c2071, %c0_134] {strides = array<i32: 2, 1>} : memref<2116x64xf32, #tpu.memory_space<vmem>>, vector<23x64xf32>
    %191 = arith.maximumf %189, %190 : vector<23x64xf32>
    %192 = arith.maximumf %188, %191 : vector<23x64xf32>
    %c506_135 = arith.constant 506 : index
    %c0_136 = arith.constant 0 : index
    %193 = vector.load %arg18[%c506_135, %c0_136] : memref<529x64xf32, #tpu.memory_space<vmem>>, vector<23x64xf32>
    tpu.vector_store %arg18[%c506_135, %c0_136], %192 {strides = array<i32>} : memref<529x64xf32, #tpu.memory_space<vmem>>, vector<23x64xf32>,
    %c0_137 = arith.constant 0 : index
    %c0_138 = arith.constant 0 : index
    %194 = vector.load %arg18[%c0_137, %c0_138] : memref<529x64xf32, #tpu.memory_space<vmem>>, vector<529x64xf32>
    %195 = arith.truncf %194 : vector<529x64xf32> to vector<529x64xbf16>
    %c0_139 = arith.constant 0 : index
    %c0_140 = arith.constant 0 : index
    %196 = vector.load %arg4[%c0_139, %c0_140] : memref<64x32xbf16, #tpu.memory_space<vmem>>, vector<64x32xbf16>
    %cst_141 = arith.constant dense<0.000000e+00> : vector<529x32xf32>
    %197 = tpu.matmul %195, %196, %cst_141 {dimension_numbers = #tpu.dot_dimension_numbers<[1], [0], [0], [1], [0, 0, 1, 1], [], []>} : vector<529x64xbf16>, vector<64x32xbf16>, vector<529x32xf32> -> vector<529x32xf32>
    %c0_142 = arith.constant 0 : index
    %c0_143 = arith.constant 0 : index
    %198 = vector.load %arg5[%c0_142, %c0_143] : memref<1x32xf32, #tpu.memory_space<vmem>>, vector<1x32xf32>
    %199 = vector.broadcast %198 : vector<1x32xf32> to vector<529x32xf32>
    %200 = arith.addf %197, %199 : vector<529x32xf32>
    %cst_144 = arith.constant 0.000000e+00 : f32
    %201 = vector.broadcast %cst_144 : f32 to vector<529x32xf32>
    %202 = arith.maximumf %200, %201 : vector<529x32xf32>
    %203 = vector.extract_strided_slice %202 {offsets = [0, 0], sizes = [481, 32], strides = [1, 1]} : vector<529x32xf32> to vector<481x32xf32>
    %204 = arith.truncf %203 : vector<481x32xf32> to vector<481x32xbf16>
    %205 = vector.extract_strided_slice %202 {offsets = [1, 0], sizes = [481, 32], strides = [1, 1]} : vector<529x32xf32> to vector<481x32xf32>
    %206 = arith.truncf %205 : vector<481x32xf32> to vector<481x32xbf16>
    %207 = vector.extract_strided_slice %202 {offsets = [2, 0], sizes = [481, 32], strides = [1, 1]} : vector<529x32xf32> to vector<481x32xf32>
    %208 = arith.truncf %207 : vector<481x32xf32> to vector<481x32xbf16>
    %209 = vector.extract_strided_slice %202 {offsets = [23, 0], sizes = [481, 32], strides = [1, 1]} : vector<529x32xf32> to vector<481x32xf32>
    %210 = arith.truncf %209 : vector<481x32xf32> to vector<481x32xbf16>
    %211 = vector.extract_strided_slice %202 {offsets = [24, 0], sizes = [481, 32], strides = [1, 1]} : vector<529x32xf32> to vector<481x32xf32>
    %212 = arith.truncf %211 : vector<481x32xf32> to vector<481x32xbf16>
    %213 = vector.extract_strided_slice %202 {offsets = [25, 0], sizes = [481, 32], strides = [1, 1]} : vector<529x32xf32> to vector<481x32xf32>
    %214 = arith.truncf %213 : vector<481x32xf32> to vector<481x32xbf16>
    %215 = vector.extract_strided_slice %202 {offsets = [46, 0], sizes = [481, 32], strides = [1, 1]} : vector<529x32xf32> to vector<481x32xf32>
    %216 = arith.truncf %215 : vector<481x32xf32> to vector<481x32xbf16>
    %217 = vector.extract_strided_slice %202 {offsets = [47, 0], sizes = [481, 32], strides = [1, 1]} : vector<529x32xf32> to vector<481x32xf32>
    %218 = arith.truncf %217 : vector<481x32xf32> to vector<481x32xbf16>
    %219 = vector.extract_strided_slice %202 {offsets = [48, 0], sizes = [481, 32], strides = [1, 1]} : vector<529x32xf32> to vector<481x32xf32>
    %220 = arith.truncf %219 : vector<481x32xf32> to vector<481x32xbf16>
    %221 = tpu.concatenate %204, %206, %208, %210, %212, %214, %216, %218, %220 in 1 : vector<481x32xbf16>, vector<481x32xbf16>, vector<481x32xbf16>, vector<481x32xbf16>, vector<481x32xbf16>, vector<481x32xbf16>, vector<481x32xbf16>, vector<481x32xbf16>, vector<481x32xbf16> -> vector<481x288xbf16>
    %c0_145 = arith.constant 0 : index
    %c0_146 = arith.constant 0 : index
    %222 = vector.load %arg6[%c0_145, %c0_146] : memref<288x32xbf16, #tpu.memory_space<vmem>>, vector<288x32xbf16>
    %cst_147 = arith.constant dense<0.000000e+00> : vector<481x32xf32>
    %223 = tpu.matmul %221, %222, %cst_147 {dimension_numbers = #tpu.dot_dimension_numbers<[1], [0], [0], [1], [0, 0, 1, 1], [], []>} : vector<481x288xbf16>, vector<288x32xbf16>, vector<481x32xf32> -> vector<481x32xf32>
    %c0_148 = arith.constant 0 : index
    %c0_149 = arith.constant 0 : index
    %224 = vector.load %arg7[%c0_148, %c0_149] : memref<1x32xf32, #tpu.memory_space<vmem>>, vector<1x32xf32>
    %225 = vector.broadcast %224 : vector<1x32xf32> to vector<481x32xf32>
    %226 = arith.addf %223, %225 : vector<481x32xf32>
    %cst_150 = arith.constant 0.000000e+00 : f32
    %227 = vector.broadcast %cst_150 : f32 to vector<481x32xf32>
    %228 = arith.maximumf %226, %227 : vector<481x32xf32>
    %c0_151 = arith.constant 0 : index
    %c0_152 = arith.constant 0 : index
    %229 = vector.load %arg19[%c0_151, %c0_152] : memref<481x32xf32, #tpu.memory_space<vmem>>, vector<481x32xf32>
    tpu.vector_store %arg19[%c0_151, %c0_152], %228 {strides = array<i32>} : memref<481x32xf32, #tpu.memory_space<vmem>>, vector<481x32xf32>,
    %c0_153 = arith.constant 0 : index
    %c0_154 = arith.constant 0 : index
    %230 = tpu.strided_load %arg19[%c0_153, %c0_154] {strides = array<i32: 2, 1>} : memref<481x32xf32, #tpu.memory_space<vmem>>, vector<10x32xf32>
    %c1_155 = arith.constant 1 : index
    %c0_156 = arith.constant 0 : index
    %231 = tpu.strided_load %arg19[%c1_155, %c0_156] {strides = array<i32: 2, 1>} : memref<481x32xf32, #tpu.memory_space<vmem>>, vector<10x32xf32>
    %232 = arith.maximumf %230, %231 : vector<10x32xf32>
    %c23_157 = arith.constant 23 : index
    %c0_158 = arith.constant 0 : index
    %233 = tpu.strided_load %arg19[%c23_157, %c0_158] {strides = array<i32: 2, 1>} : memref<481x32xf32, #tpu.memory_space<vmem>>, vector<10x32xf32>
    %c24 = arith.constant 24 : index
    %c0_159 = arith.constant 0 : index
    %234 = tpu.strided_load %arg19[%c24, %c0_159] {strides = array<i32: 2, 1>} : memref<481x32xf32, #tpu.memory_space<vmem>>, vector<10x32xf32>
    %235 = arith.maximumf %233, %234 : vector<10x32xf32>
    %236 = arith.maximumf %232, %235 : vector<10x32xf32>
    %c0_160 = arith.constant 0 : index
    %c0_161 = arith.constant 0 : index
    %237 = vector.load %arg20[%c0_160, %c0_161] : memref<100x32xf32, #tpu.memory_space<vmem>>, vector<10x32xf32>
    tpu.vector_store %arg20[%c0_160, %c0_161], %236 {strides = array<i32>} : memref<100x32xf32, #tpu.memory_space<vmem>>, vector<10x32xf32>,
    %c46_162 = arith.constant 46 : index
    %c0_163 = arith.constant 0 : index
    %238 = tpu.strided_load %arg19[%c46_162, %c0_163] {strides = array<i32: 2, 1>} : memref<481x32xf32, #tpu.memory_space<vmem>>, vector<10x32xf32>
    %c47_164 = arith.constant 47 : index
    %c0_165 = arith.constant 0 : index
    %239 = tpu.strided_load %arg19[%c47_164, %c0_165] {strides = array<i32: 2, 1>} : memref<481x32xf32, #tpu.memory_space<vmem>>, vector<10x32xf32>
    %240 = arith.maximumf %238, %239 : vector<10x32xf32>
    %c69_166 = arith.constant 69 : index
    %c0_167 = arith.constant 0 : index
    %241 = tpu.strided_load %arg19[%c69_166, %c0_167] {strides = array<i32: 2, 1>} : memref<481x32xf32, #tpu.memory_space<vmem>>, vector<10x32xf32>
    %c70 = arith.constant 70 : index
    %c0_168 = arith.constant 0 : index
    %242 = tpu.strided_load %arg19[%c70, %c0_168] {strides = array<i32: 2, 1>} : memref<481x32xf32, #tpu.memory_space<vmem>>, vector<10x32xf32>
    %243 = arith.maximumf %241, %242 : vector<10x32xf32>
    %244 = arith.maximumf %240, %243 : vector<10x32xf32>
    %c10 = arith.constant 10 : index
    %c0_169 = arith.constant 0 : index
    %245 = vector.load %arg20[%c10, %c0_169] : memref<100x32xf32, #tpu.memory_space<vmem>>, vector<10x32xf32>
    tpu.vector_store %arg20[%c10, %c0_169], %244 {strides = array<i32>} : memref<100x32xf32, #tpu.memory_space<vmem>>, vector<10x32xf32>,
    %c92_170 = arith.constant 92 : index
    %c0_171 = arith.constant 0 : index
    %246 = tpu.strided_load %arg19[%c92_170, %c0_171] {strides = array<i32: 2, 1>} : memref<481x32xf32, #tpu.memory_space<vmem>>, vector<10x32xf32>
    %c93_172 = arith.constant 93 : index
    %c0_173 = arith.constant 0 : index
    %247 = tpu.strided_load %arg19[%c93_172, %c0_173] {strides = array<i32: 2, 1>} : memref<481x32xf32, #tpu.memory_space<vmem>>, vector<10x32xf32>
    %248 = arith.maximumf %246, %247 : vector<10x32xf32>
    %c115_174 = arith.constant 115 : index
    %c0_175 = arith.constant 0 : index
    %249 = tpu.strided_load %arg19[%c115_174, %c0_175] {strides = array<i32: 2, 1>} : memref<481x32xf32, #tpu.memory_space<vmem>>, vector<10x32xf32>
    %c116 = arith.constant 116 : index
    %c0_176 = arith.constant 0 : index
    %250 = tpu.strided_load %arg19[%c116, %c0_176] {strides = array<i32: 2, 1>} : memref<481x32xf32, #tpu.memory_space<vmem>>, vector<10x32xf32>
    %251 = arith.maximumf %249, %250 : vector<10x32xf32>
    %252 = arith.maximumf %248, %251 : vector<10x32xf32>
    %c20 = arith.constant 20 : index
    %c0_177 = arith.constant 0 : index
    %253 = vector.load %arg20[%c20, %c0_177] : memref<100x32xf32, #tpu.memory_space<vmem>>, vector<10x32xf32>
    tpu.vector_store %arg20[%c20, %c0_177], %252 {strides = array<i32>} : memref<100x32xf32, #tpu.memory_space<vmem>>, vector<10x32xf32>,
    %c138_178 = arith.constant 138 : index
    %c0_179 = arith.constant 0 : index
    %254 = tpu.strided_load %arg19[%c138_178, %c0_179] {strides = array<i32: 2, 1>} : memref<481x32xf32, #tpu.memory_space<vmem>>, vector<10x32xf32>
    %c139_180 = arith.constant 139 : index
    %c0_181 = arith.constant 0 : index
    %255 = tpu.strided_load %arg19[%c139_180, %c0_181] {strides = array<i32: 2, 1>} : memref<481x32xf32, #tpu.memory_space<vmem>>, vector<10x32xf32>
    %256 = arith.maximumf %254, %255 : vector<10x32xf32>
    %c161_182 = arith.constant 161 : index
    %c0_183 = arith.constant 0 : index
    %257 = tpu.strided_load %arg19[%c161_182, %c0_183] {strides = array<i32: 2, 1>} : memref<481x32xf32, #tpu.memory_space<vmem>>, vector<10x32xf32>
    %c162 = arith.constant 162 : index
    %c0_184 = arith.constant 0 : index
    %258 = tpu.strided_load %arg19[%c162, %c0_184] {strides = array<i32: 2, 1>} : memref<481x32xf32, #tpu.memory_space<vmem>>, vector<10x32xf32>
    %259 = arith.maximumf %257, %258 : vector<10x32xf32>
    %260 = arith.maximumf %256, %259 : vector<10x32xf32>
    %c30 = arith.constant 30 : index
    %c0_185 = arith.constant 0 : index
    %261 = vector.load %arg20[%c30, %c0_185] : memref<100x32xf32, #tpu.memory_space<vmem>>, vector<10x32xf32>
    tpu.vector_store %arg20[%c30, %c0_185], %260 {strides = array<i32>} : memref<100x32xf32, #tpu.memory_space<vmem>>, vector<10x32xf32>,
    %c184_186 = arith.constant 184 : index
    %c0_187 = arith.constant 0 : index
    %262 = tpu.strided_load %arg19[%c184_186, %c0_187] {strides = array<i32: 2, 1>} : memref<481x32xf32, #tpu.memory_space<vmem>>, vector<10x32xf32>
    %c185_188 = arith.constant 185 : index
    %c0_189 = arith.constant 0 : index
    %263 = tpu.strided_load %arg19[%c185_188, %c0_189] {strides = array<i32: 2, 1>} : memref<481x32xf32, #tpu.memory_space<vmem>>, vector<10x32xf32>
    %264 = arith.maximumf %262, %263 : vector<10x32xf32>
    %c207_190 = arith.constant 207 : index
    %c0_191 = arith.constant 0 : index
    %265 = tpu.strided_load %arg19[%c207_190, %c0_191] {strides = array<i32: 2, 1>} : memref<481x32xf32, #tpu.memory_space<vmem>>, vector<10x32xf32>
    %c208 = arith.constant 208 : index
    %c0_192 = arith.constant 0 : index
    %266 = tpu.strided_load %arg19[%c208, %c0_192] {strides = array<i32: 2, 1>} : memref<481x32xf32, #tpu.memory_space<vmem>>, vector<10x32xf32>
    %267 = arith.maximumf %265, %266 : vector<10x32xf32>
    %268 = arith.maximumf %264, %267 : vector<10x32xf32>
    %c40 = arith.constant 40 : index
    %c0_193 = arith.constant 0 : index
    %269 = vector.load %arg20[%c40, %c0_193] : memref<100x32xf32, #tpu.memory_space<vmem>>, vector<10x32xf32>
    tpu.vector_store %arg20[%c40, %c0_193], %268 {strides = array<i32>} : memref<100x32xf32, #tpu.memory_space<vmem>>, vector<10x32xf32>,
    %c230_194 = arith.constant 230 : index
    %c0_195 = arith.constant 0 : index
    %270 = tpu.strided_load %arg19[%c230_194, %c0_195] {strides = array<i32: 2, 1>} : memref<481x32xf32, #tpu.memory_space<vmem>>, vector<10x32xf32>
    %c231_196 = arith.constant 231 : index
    %c0_197 = arith.constant 0 : index
    %271 = tpu.strided_load %arg19[%c231_196, %c0_197] {strides = array<i32: 2, 1>} : memref<481x32xf32, #tpu.memory_space<vmem>>, vector<10x32xf32>
    %272 = arith.maximumf %270, %271 : vector<10x32xf32>
    %c253_198 = arith.constant 253 : index
    %c0_199 = arith.constant 0 : index
    %273 = tpu.strided_load %arg19[%c253_198, %c0_199] {strides = array<i32: 2, 1>} : memref<481x32xf32, #tpu.memory_space<vmem>>, vector<10x32xf32>
    %c254 = arith.constant 254 : index
    %c0_200 = arith.constant 0 : index
    %274 = tpu.strided_load %arg19[%c254, %c0_200] {strides = array<i32: 2, 1>} : memref<481x32xf32, #tpu.memory_space<vmem>>, vector<10x32xf32>
    %275 = arith.maximumf %273, %274 : vector<10x32xf32>
    %276 = arith.maximumf %272, %275 : vector<10x32xf32>
    %c50 = arith.constant 50 : index
    %c0_201 = arith.constant 0 : index
    %277 = vector.load %arg20[%c50, %c0_201] : memref<100x32xf32, #tpu.memory_space<vmem>>, vector<10x32xf32>
    tpu.vector_store %arg20[%c50, %c0_201], %276 {strides = array<i32>} : memref<100x32xf32, #tpu.memory_space<vmem>>, vector<10x32xf32>,
    %c276_202 = arith.constant 276 : index
    %c0_203 = arith.constant 0 : index
    %278 = tpu.strided_load %arg19[%c276_202, %c0_203] {strides = array<i32: 2, 1>} : memref<481x32xf32, #tpu.memory_space<vmem>>, vector<10x32xf32>
    %c277_204 = arith.constant 277 : index
    %c0_205 = arith.constant 0 : index
    %279 = tpu.strided_load %arg19[%c277_204, %c0_205] {strides = array<i32: 2, 1>} : memref<481x32xf32, #tpu.memory_space<vmem>>, vector<10x32xf32>
    %280 = arith.maximumf %278, %279 : vector<10x32xf32>
    %c299_206 = arith.constant 299 : index
    %c0_207 = arith.constant 0 : index
    %281 = tpu.strided_load %arg19[%c299_206, %c0_207] {strides = array<i32: 2, 1>} : memref<481x32xf32, #tpu.memory_space<vmem>>, vector<10x32xf32>
    %c300 = arith.constant 300 : index
    %c0_208 = arith.constant 0 : index
    %282 = tpu.strided_load %arg19[%c300, %c0_208] {strides = array<i32: 2, 1>} : memref<481x32xf32, #tpu.memory_space<vmem>>, vector<10x32xf32>
    %283 = arith.maximumf %281, %282 : vector<10x32xf32>
    %284 = arith.maximumf %280, %283 : vector<10x32xf32>
    %c60 = arith.constant 60 : index
    %c0_209 = arith.constant 0 : index
    %285 = vector.load %arg20[%c60, %c0_209] : memref<100x32xf32, #tpu.memory_space<vmem>>, vector<10x32xf32>
    tpu.vector_store %arg20[%c60, %c0_209], %284 {strides = array<i32>} : memref<100x32xf32, #tpu.memory_space<vmem>>, vector<10x32xf32>,
    %c322_210 = arith.constant 322 : index
    %c0_211 = arith.constant 0 : index
    %286 = tpu.strided_load %arg19[%c322_210, %c0_211] {strides = array<i32: 2, 1>} : memref<481x32xf32, #tpu.memory_space<vmem>>, vector<10x32xf32>
    %c323_212 = arith.constant 323 : index
    %c0_213 = arith.constant 0 : index
    %287 = tpu.strided_load %arg19[%c323_212, %c0_213] {strides = array<i32: 2, 1>} : memref<481x32xf32, #tpu.memory_space<vmem>>, vector<10x32xf32>
    %288 = arith.maximumf %286, %287 : vector<10x32xf32>
    %c345_214 = arith.constant 345 : index
    %c0_215 = arith.constant 0 : index
    %289 = tpu.strided_load %arg19[%c345_214, %c0_215] {strides = array<i32: 2, 1>} : memref<481x32xf32, #tpu.memory_space<vmem>>, vector<10x32xf32>
    %c346 = arith.constant 346 : index
    %c0_216 = arith.constant 0 : index
    %290 = tpu.strided_load %arg19[%c346, %c0_216] {strides = array<i32: 2, 1>} : memref<481x32xf32, #tpu.memory_space<vmem>>, vector<10x32xf32>
    %291 = arith.maximumf %289, %290 : vector<10x32xf32>
    %292 = arith.maximumf %288, %291 : vector<10x32xf32>
    %c70_217 = arith.constant 70 : index
    %c0_218 = arith.constant 0 : index
    %293 = vector.load %arg20[%c70_217, %c0_218] : memref<100x32xf32, #tpu.memory_space<vmem>>, vector<10x32xf32>
    tpu.vector_store %arg20[%c70_217, %c0_218], %292 {strides = array<i32>} : memref<100x32xf32, #tpu.memory_space<vmem>>, vector<10x32xf32>,
    %c368_219 = arith.constant 368 : index
    %c0_220 = arith.constant 0 : index
    %294 = tpu.strided_load %arg19[%c368_219, %c0_220] {strides = array<i32: 2, 1>} : memref<481x32xf32, #tpu.memory_space<vmem>>, vector<10x32xf32>
    %c369_221 = arith.constant 369 : index
    %c0_222 = arith.constant 0 : index
    %295 = tpu.strided_load %arg19[%c369_221, %c0_222] {strides = array<i32: 2, 1>} : memref<481x32xf32, #tpu.memory_space<vmem>>, vector<10x32xf32>
    %296 = arith.maximumf %294, %295 : vector<10x32xf32>
    %c391_223 = arith.constant 391 : index
    %c0_224 = arith.constant 0 : index
    %297 = tpu.strided_load %arg19[%c391_223, %c0_224] {strides = array<i32: 2, 1>} : memref<481x32xf32, #tpu.memory_space<vmem>>, vector<10x32xf32>
    %c392 = arith.constant 392 : index
    %c0_225 = arith.constant 0 : index
    %298 = tpu.strided_load %arg19[%c392, %c0_225] {strides = array<i32: 2, 1>} : memref<481x32xf32, #tpu.memory_space<vmem>>, vector<10x32xf32>
    %299 = arith.maximumf %297, %298 : vector<10x32xf32>
    %300 = arith.maximumf %296, %299 : vector<10x32xf32>
    %c80 = arith.constant 80 : index
    %c0_226 = arith.constant 0 : index
    %301 = vector.load %arg20[%c80, %c0_226] : memref<100x32xf32, #tpu.memory_space<vmem>>, vector<10x32xf32>
    tpu.vector_store %arg20[%c80, %c0_226], %300 {strides = array<i32>} : memref<100x32xf32, #tpu.memory_space<vmem>>, vector<10x32xf32>,
    %c414_227 = arith.constant 414 : index
    %c0_228 = arith.constant 0 : index
    %302 = tpu.strided_load %arg19[%c414_227, %c0_228] {strides = array<i32: 2, 1>} : memref<481x32xf32, #tpu.memory_space<vmem>>, vector<10x32xf32>
    %c415_229 = arith.constant 415 : index
    %c0_230 = arith.constant 0 : index
    %303 = tpu.strided_load %arg19[%c415_229, %c0_230] {strides = array<i32: 2, 1>} : memref<481x32xf32, #tpu.memory_space<vmem>>, vector<10x32xf32>
    %304 = arith.maximumf %302, %303 : vector<10x32xf32>
    %c437_231 = arith.constant 437 : index
    %c0_232 = arith.constant 0 : index
    %305 = tpu.strided_load %arg19[%c437_231, %c0_232] {strides = array<i32: 2, 1>} : memref<481x32xf32, #tpu.memory_space<vmem>>, vector<10x32xf32>
    %c438 = arith.constant 438 : index
    %c0_233 = arith.constant 0 : index
    %306 = tpu.strided_load %arg19[%c438, %c0_233] {strides = array<i32: 2, 1>} : memref<481x32xf32, #tpu.memory_space<vmem>>, vector<10x32xf32>
    %307 = arith.maximumf %305, %306 : vector<10x32xf32>
    %308 = arith.maximumf %304, %307 : vector<10x32xf32>
    %c90 = arith.constant 90 : index
    %c0_234 = arith.constant 0 : index
    %309 = vector.load %arg20[%c90, %c0_234] : memref<100x32xf32, #tpu.memory_space<vmem>>, vector<10x32xf32>
    tpu.vector_store %arg20[%c90, %c0_234], %308 {strides = array<i32>} : memref<100x32xf32, #tpu.memory_space<vmem>>, vector<10x32xf32>,
    %c0_235 = arith.constant 0 : index
    %c0_236 = arith.constant 0 : index
    %310 = vector.load %arg20[%c0_235, %c0_236] : memref<100x32xf32, #tpu.memory_space<vmem>>, vector<100x32xf32>
    %311 = arith.truncf %310 : vector<100x32xf32> to vector<100x32xbf16>
    %c0_237 = arith.constant 0 : index
    %c0_238 = arith.constant 0 : index
    %312 = vector.load %arg8[%c0_237, %c0_238] : memref<32x16xbf16, #tpu.memory_space<vmem>>, vector<32x16xbf16>
    %cst_239 = arith.constant dense<0.000000e+00> : vector<100x16xf32>
    %313 = tpu.matmul %311, %312, %cst_239 {dimension_numbers = #tpu.dot_dimension_numbers<[1], [0], [0], [1], [0, 0, 1, 1], [], []>} : vector<100x32xbf16>, vector<32x16xbf16>, vector<100x16xf32> -> vector<100x16xf32>
    %c0_240 = arith.constant 0 : index
    %c0_241 = arith.constant 0 : index
    %314 = vector.load %arg9[%c0_240, %c0_241] : memref<1x16xf32, #tpu.memory_space<vmem>>, vector<1x16xf32>
    %315 = vector.broadcast %314 : vector<1x16xf32> to vector<100x16xf32>
    %316 = arith.addf %313, %315 : vector<100x16xf32>
    %cst_242 = arith.constant 0.000000e+00 : f32
    %317 = vector.broadcast %cst_242 : f32 to vector<100x16xf32>
    %318 = arith.maximumf %316, %317 : vector<100x16xf32>
    %319 = vector.extract_strided_slice %318 {offsets = [0, 0], sizes = [78, 16], strides = [1, 1]} : vector<100x16xf32> to vector<78x16xf32>
    %320 = arith.truncf %319 : vector<78x16xf32> to vector<78x16xbf16>
    %321 = vector.extract_strided_slice %318 {offsets = [1, 0], sizes = [78, 16], strides = [1, 1]} : vector<100x16xf32> to vector<78x16xf32>
    %322 = arith.truncf %321 : vector<78x16xf32> to vector<78x16xbf16>
    %323 = vector.extract_strided_slice %318 {offsets = [2, 0], sizes = [78, 16], strides = [1, 1]} : vector<100x16xf32> to vector<78x16xf32>
    %324 = arith.truncf %323 : vector<78x16xf32> to vector<78x16xbf16>
    %325 = vector.extract_strided_slice %318 {offsets = [10, 0], sizes = [78, 16], strides = [1, 1]} : vector<100x16xf32> to vector<78x16xf32>
    %326 = arith.truncf %325 : vector<78x16xf32> to vector<78x16xbf16>
    %327 = vector.extract_strided_slice %318 {offsets = [11, 0], sizes = [78, 16], strides = [1, 1]} : vector<100x16xf32> to vector<78x16xf32>
    %328 = arith.truncf %327 : vector<78x16xf32> to vector<78x16xbf16>
    %329 = vector.extract_strided_slice %318 {offsets = [12, 0], sizes = [78, 16], strides = [1, 1]} : vector<100x16xf32> to vector<78x16xf32>
    %330 = arith.truncf %329 : vector<78x16xf32> to vector<78x16xbf16>
    %331 = vector.extract_strided_slice %318 {offsets = [20, 0], sizes = [78, 16], strides = [1, 1]} : vector<100x16xf32> to vector<78x16xf32>
    %332 = arith.truncf %331 : vector<78x16xf32> to vector<78x16xbf16>
    %333 = vector.extract_strided_slice %318 {offsets = [21, 0], sizes = [78, 16], strides = [1, 1]} : vector<100x16xf32> to vector<78x16xf32>
    %334 = arith.truncf %333 : vector<78x16xf32> to vector<78x16xbf16>
    %335 = vector.extract_strided_slice %318 {offsets = [22, 0], sizes = [78, 16], strides = [1, 1]} : vector<100x16xf32> to vector<78x16xf32>
    %336 = arith.truncf %335 : vector<78x16xf32> to vector<78x16xbf16>
    %337 = tpu.concatenate %320, %322, %324, %326, %328, %330, %332, %334, %336 in 1 : vector<78x16xbf16>, vector<78x16xbf16>, vector<78x16xbf16>, vector<78x16xbf16>, vector<78x16xbf16>, vector<78x16xbf16>, vector<78x16xbf16>, vector<78x16xbf16>, vector<78x16xbf16> -> vector<78x144xbf16>
    %c0_243 = arith.constant 0 : index
    %c0_244 = arith.constant 0 : index
    %338 = vector.load %arg10[%c0_243, %c0_244] : memref<144x32xbf16, #tpu.memory_space<vmem>>, vector<144x32xbf16>
    %cst_245 = arith.constant dense<0.000000e+00> : vector<78x32xf32>
    %339 = tpu.matmul %337, %338, %cst_245 {dimension_numbers = #tpu.dot_dimension_numbers<[1], [0], [0], [1], [0, 0, 1, 1], [], []>} : vector<78x144xbf16>, vector<144x32xbf16>, vector<78x32xf32> -> vector<78x32xf32>
    %c0_246 = arith.constant 0 : index
    %c0_247 = arith.constant 0 : index
    %340 = vector.load %arg11[%c0_246, %c0_247] : memref<1x32xf32, #tpu.memory_space<vmem>>, vector<1x32xf32>
    %341 = vector.broadcast %340 : vector<1x32xf32> to vector<78x32xf32>
    %342 = arith.addf %339, %341 : vector<78x32xf32>
    %cst_248 = arith.constant 0.000000e+00 : f32
    %343 = vector.broadcast %cst_248 : f32 to vector<78x32xf32>
    %344 = arith.maximumf %342, %343 : vector<78x32xf32>
    %c0_249 = arith.constant 0 : index
    %c0_250 = arith.constant 0 : index
    %345 = vector.load %arg21[%c0_249, %c0_250] : memref<78x32xf32, #tpu.memory_space<vmem>>, vector<78x32xf32>
    tpu.vector_store %arg21[%c0_249, %c0_250], %344 {strides = array<i32>} : memref<78x32xf32, #tpu.memory_space<vmem>>, vector<78x32xf32>,
    %c0_251 = arith.constant 0 : index
    %c0_252 = arith.constant 0 : index
    %346 = tpu.strided_load %arg21[%c0_251, %c0_252] {strides = array<i32: 2, 1>} : memref<78x32xf32, #tpu.memory_space<vmem>>, vector<4x32xf32>
    %c1_253 = arith.constant 1 : index
    %c0_254 = arith.constant 0 : index
    %347 = tpu.strided_load %arg21[%c1_253, %c0_254] {strides = array<i32: 2, 1>} : memref<78x32xf32, #tpu.memory_space<vmem>>, vector<4x32xf32>
    %348 = arith.maximumf %346, %347 : vector<4x32xf32>
    %c10_255 = arith.constant 10 : index
    %c0_256 = arith.constant 0 : index
    %349 = tpu.strided_load %arg21[%c10_255, %c0_256] {strides = array<i32: 2, 1>} : memref<78x32xf32, #tpu.memory_space<vmem>>, vector<4x32xf32>
    %c11 = arith.constant 11 : index
    %c0_257 = arith.constant 0 : index
    %350 = tpu.strided_load %arg21[%c11, %c0_257] {strides = array<i32: 2, 1>} : memref<78x32xf32, #tpu.memory_space<vmem>>, vector<4x32xf32>
    %351 = arith.maximumf %349, %350 : vector<4x32xf32>
    %352 = arith.maximumf %348, %351 : vector<4x32xf32>
    %c0_258 = arith.constant 0 : index
    %c0_259 = arith.constant 0 : index
    %353 = vector.load %arg22[%c0_258, %c0_259] : memref<16x32xf32, #tpu.memory_space<vmem>>, vector<4x32xf32>
    tpu.vector_store %arg22[%c0_258, %c0_259], %352 {strides = array<i32>} : memref<16x32xf32, #tpu.memory_space<vmem>>, vector<4x32xf32>,
    %c20_260 = arith.constant 20 : index
    %c0_261 = arith.constant 0 : index
    %354 = tpu.strided_load %arg21[%c20_260, %c0_261] {strides = array<i32: 2, 1>} : memref<78x32xf32, #tpu.memory_space<vmem>>, vector<4x32xf32>
    %c21 = arith.constant 21 : index
    %c0_262 = arith.constant 0 : index
    %355 = tpu.strided_load %arg21[%c21, %c0_262] {strides = array<i32: 2, 1>} : memref<78x32xf32, #tpu.memory_space<vmem>>, vector<4x32xf32>
    %356 = arith.maximumf %354, %355 : vector<4x32xf32>
    %c30_263 = arith.constant 30 : index
    %c0_264 = arith.constant 0 : index
    %357 = tpu.strided_load %arg21[%c30_263, %c0_264] {strides = array<i32: 2, 1>} : memref<78x32xf32, #tpu.memory_space<vmem>>, vector<4x32xf32>
    %c31 = arith.constant 31 : index
    %c0_265 = arith.constant 0 : index
    %358 = tpu.strided_load %arg21[%c31, %c0_265] {strides = array<i32: 2, 1>} : memref<78x32xf32, #tpu.memory_space<vmem>>, vector<4x32xf32>
    %359 = arith.maximumf %357, %358 : vector<4x32xf32>
    %360 = arith.maximumf %356, %359 : vector<4x32xf32>
    %c4 = arith.constant 4 : index
    %c0_266 = arith.constant 0 : index
    %361 = vector.load %arg22[%c4, %c0_266] : memref<16x32xf32, #tpu.memory_space<vmem>>, vector<4x32xf32>
    tpu.vector_store %arg22[%c4, %c0_266], %360 {strides = array<i32>} : memref<16x32xf32, #tpu.memory_space<vmem>>, vector<4x32xf32>,
    %c40_267 = arith.constant 40 : index
    %c0_268 = arith.constant 0 : index
    %362 = tpu.strided_load %arg21[%c40_267, %c0_268] {strides = array<i32: 2, 1>} : memref<78x32xf32, #tpu.memory_space<vmem>>, vector<4x32xf32>
    %c41 = arith.constant 41 : index
    %c0_269 = arith.constant 0 : index
    %363 = tpu.strided_load %arg21[%c41, %c0_269] {strides = array<i32: 2, 1>} : memref<78x32xf32, #tpu.memory_space<vmem>>, vector<4x32xf32>
    %364 = arith.maximumf %362, %363 : vector<4x32xf32>
    %c50_270 = arith.constant 50 : index
    %c0_271 = arith.constant 0 : index
    %365 = tpu.strided_load %arg21[%c50_270, %c0_271] {strides = array<i32: 2, 1>} : memref<78x32xf32, #tpu.memory_space<vmem>>, vector<4x32xf32>
    %c51 = arith.constant 51 : index
    %c0_272 = arith.constant 0 : index
    %366 = tpu.strided_load %arg21[%c51, %c0_272] {strides = array<i32: 2, 1>} : memref<78x32xf32, #tpu.memory_space<vmem>>, vector<4x32xf32>
    %367 = arith.maximumf %365, %366 : vector<4x32xf32>
    %368 = arith.maximumf %364, %367 : vector<4x32xf32>
    %c8 = arith.constant 8 : index
    %c0_273 = arith.constant 0 : index
    %369 = vector.load %arg22[%c8, %c0_273] : memref<16x32xf32, #tpu.memory_space<vmem>>, vector<4x32xf32>
    tpu.vector_store %arg22[%c8, %c0_273], %368 {strides = array<i32>} : memref<16x32xf32, #tpu.memory_space<vmem>>, vector<4x32xf32>,
    %c60_274 = arith.constant 60 : index
    %c0_275 = arith.constant 0 : index
    %370 = tpu.strided_load %arg21[%c60_274, %c0_275] {strides = array<i32: 2, 1>} : memref<78x32xf32, #tpu.memory_space<vmem>>, vector<4x32xf32>
    %c61 = arith.constant 61 : index
    %c0_276 = arith.constant 0 : index
    %371 = tpu.strided_load %arg21[%c61, %c0_276] {strides = array<i32: 2, 1>} : memref<78x32xf32, #tpu.memory_space<vmem>>, vector<4x32xf32>
    %372 = arith.maximumf %370, %371 : vector<4x32xf32>
    %c70_277 = arith.constant 70 : index
    %c0_278 = arith.constant 0 : index
    %373 = tpu.strided_load %arg21[%c70_277, %c0_278] {strides = array<i32: 2, 1>} : memref<78x32xf32, #tpu.memory_space<vmem>>, vector<4x32xf32>
    %c71 = arith.constant 71 : index
    %c0_279 = arith.constant 0 : index
    %374 = tpu.strided_load %arg21[%c71, %c0_279] {strides = array<i32: 2, 1>} : memref<78x32xf32, #tpu.memory_space<vmem>>, vector<4x32xf32>
    %375 = arith.maximumf %373, %374 : vector<4x32xf32>
    %376 = arith.maximumf %372, %375 : vector<4x32xf32>
    %c12 = arith.constant 12 : index
    %c0_280 = arith.constant 0 : index
    %377 = vector.load %arg22[%c12, %c0_280] : memref<16x32xf32, #tpu.memory_space<vmem>>, vector<4x32xf32>
    tpu.vector_store %arg22[%c12, %c0_280], %376 {strides = array<i32>} : memref<16x32xf32, #tpu.memory_space<vmem>>, vector<4x32xf32>,
    %c0_281 = arith.constant 0 : index
    %c0_282 = arith.constant 0 : index
    %378 = vector.load %arg22[%c0_281, %c0_282] : memref<16x32xf32, #tpu.memory_space<vmem>>, vector<16x32xf32>
    %379 = vector.extract_strided_slice %378 {offsets = [0, 0], sizes = [6, 32], strides = [1, 1]} : vector<16x32xf32> to vector<6x32xf32>
    %380 = arith.truncf %379 : vector<6x32xf32> to vector<6x32xbf16>
    %381 = vector.extract_strided_slice %378 {offsets = [1, 0], sizes = [6, 32], strides = [1, 1]} : vector<16x32xf32> to vector<6x32xf32>
    %382 = arith.truncf %381 : vector<6x32xf32> to vector<6x32xbf16>
    %383 = vector.extract_strided_slice %378 {offsets = [2, 0], sizes = [6, 32], strides = [1, 1]} : vector<16x32xf32> to vector<6x32xf32>
    %384 = arith.truncf %383 : vector<6x32xf32> to vector<6x32xbf16>
    %385 = vector.extract_strided_slice %378 {offsets = [4, 0], sizes = [6, 32], strides = [1, 1]} : vector<16x32xf32> to vector<6x32xf32>
    %386 = arith.truncf %385 : vector<6x32xf32> to vector<6x32xbf16>
    %387 = vector.extract_strided_slice %378 {offsets = [5, 0], sizes = [6, 32], strides = [1, 1]} : vector<16x32xf32> to vector<6x32xf32>
    %388 = arith.truncf %387 : vector<6x32xf32> to vector<6x32xbf16>
    %389 = vector.extract_strided_slice %378 {offsets = [6, 0], sizes = [6, 32], strides = [1, 1]} : vector<16x32xf32> to vector<6x32xf32>
    %390 = arith.truncf %389 : vector<6x32xf32> to vector<6x32xbf16>
    %391 = vector.extract_strided_slice %378 {offsets = [8, 0], sizes = [6, 32], strides = [1, 1]} : vector<16x32xf32> to vector<6x32xf32>
    %392 = arith.truncf %391 : vector<6x32xf32> to vector<6x32xbf16>
    %393 = vector.extract_strided_slice %378 {offsets = [9, 0], sizes = [6, 32], strides = [1, 1]} : vector<16x32xf32> to vector<6x32xf32>
    %394 = arith.truncf %393 : vector<6x32xf32> to vector<6x32xbf16>
    %395 = vector.extract_strided_slice %378 {offsets = [10, 0], sizes = [6, 32], strides = [1, 1]} : vector<16x32xf32> to vector<6x32xf32>
    %396 = arith.truncf %395 : vector<6x32xf32> to vector<6x32xbf16>
    %397 = tpu.concatenate %380, %382, %384, %386, %388, %390, %392, %394, %396 in 1 : vector<6x32xbf16>, vector<6x32xbf16>, vector<6x32xbf16>, vector<6x32xbf16>, vector<6x32xbf16>, vector<6x32xbf16>, vector<6x32xbf16>, vector<6x32xbf16>, vector<6x32xbf16> -> vector<6x288xbf16>
    %c0_283 = arith.constant 0 : index
    %c0_284 = arith.constant 0 : index
    %398 = vector.load %arg12[%c0_283, %c0_284] : memref<288x16xbf16, #tpu.memory_space<vmem>>, vector<288x16xbf16>
    %cst_285 = arith.constant dense<0.000000e+00> : vector<6x16xf32>
    %399 = tpu.matmul %397, %398, %cst_285 {dimension_numbers = #tpu.dot_dimension_numbers<[1], [0], [0], [1], [0, 0, 1, 1], [], []>} : vector<6x288xbf16>, vector<288x16xbf16>, vector<6x16xf32> -> vector<6x16xf32>
    %c0_286 = arith.constant 0 : index
    %c0_287 = arith.constant 0 : index
    %400 = vector.load %arg13[%c0_286, %c0_287] : memref<1x16xf32, #tpu.memory_space<vmem>>, vector<1x16xf32>
    %401 = vector.broadcast %400 : vector<1x16xf32> to vector<6x16xf32>
    %402 = arith.addf %399, %401 : vector<6x16xf32>
    %cst_288 = arith.constant 0.000000e+00 : f32
    %403 = vector.broadcast %cst_288 : f32 to vector<6x16xf32>
    %404 = arith.maximumf %402, %403 : vector<6x16xf32>
    %cst_289 = arith.constant 0.000000e+00 : f32
    %405 = vector.broadcast %cst_289 : f32 to vector<1x16xf32>
    %406 = vector.extract_strided_slice %404 {offsets = [0, 0], sizes = [2, 16], strides = [1, 1]} : vector<6x16xf32> to vector<2x16xf32>
    %cst_290 = arith.constant dense<0.000000e+00> : vector<16xf32>
    %407 = vector.multi_reduction <add>, %406, %cst_290 [0] : vector<2x16xf32> to vector<16xf32>
    %408 = vector.shape_cast %407 : vector<16xf32> to vector<1x16xf32>
    %409 = arith.addf %405, %408 : vector<1x16xf32>
    %410 = vector.extract_strided_slice %404 {offsets = [4, 0], sizes = [2, 16], strides = [1, 1]} : vector<6x16xf32> to vector<2x16xf32>
    %cst_291 = arith.constant dense<0.000000e+00> : vector<16xf32>
    %411 = vector.multi_reduction <add>, %410, %cst_291 [0] : vector<2x16xf32> to vector<16xf32>
    %412 = vector.shape_cast %411 : vector<16xf32> to vector<1x16xf32>
    %413 = arith.addf %409, %412 : vector<1x16xf32>
    %cst_292 = arith.constant 2.500000e-01 : f32
    %414 = vector.broadcast %cst_292 : f32 to vector<1x16xf32>
    %415 = arith.mulf %413, %414 : vector<1x16xf32>
    %c0_293 = arith.constant 0 : index
    %c0_294 = arith.constant 0 : index
    %416 = vector.load %arg14[%c0_293, %c0_294] : memref<16x8xf32, #tpu.memory_space<vmem>>, vector<16x8xf32>
    %cst_295 = arith.constant dense<0.000000e+00> : vector<1x8xf32>
    %417 = tpu.matmul %415, %416, %cst_295 {dimension_numbers = #tpu.dot_dimension_numbers<[1], [0], [0], [1], [0, 0, 1, 1], [], []>} : vector<1x16xf32>, vector<16x8xf32>, vector<1x8xf32> -> vector<1x8xf32>
    %c0_296 = arith.constant 0 : index
    %c0_297 = arith.constant 0 : index
    %418 = vector.load %arg15[%c0_296, %c0_297] : memref<1x8xf32, #tpu.memory_space<vmem>>, vector<1x8xf32>
    %419 = arith.addf %417, %418 : vector<1x8xf32>
    %c0_298 = arith.constant 0 : index
    %c0_299 = arith.constant 0 : index
    %c0_300 = arith.constant 0 : index
    %420 = vector.load %arg16[%c0_298, %c0_299, %c0_300] : memref<1x1x8xf32, #tpu.memory_space<vmem>>, vector<1x1x8xf32>
    %421 = vector.shape_cast %420 : vector<1x1x8xf32> to vector<1x8xf32>
    %422 = vector.shape_cast %419 : vector<1x8xf32> to vector<1x1x8xf32>
    tpu.vector_store %arg16[%c0_298, %c0_299, %c0_300], %422 {strides = array<i32>} : memref<1x1x8xf32, #tpu.memory_space<vmem>>, vector<1x1x8xf32>,
    return
  }
  func.func @transform_0(%arg0: i32) -> (i32, i32, i32) {
    %c0_i32 = arith.constant 0 : i32
    %c0_i32_0 = arith.constant 0 : i32
    %c0_i32_1 = arith.constant 0 : i32
    return %arg0, %c0_i32, %c0_i32_0 : i32, i32, i32
  }
  func.func @transform_1(%arg0: i32) -> (i32, i32) {
    %c0_i32 = arith.constant 0 : i32
    %c0_i32_0 = arith.constant 0 : i32
    %c0_i32_1 = arith.constant 0 : i32
    return %c0_i32, %c0_i32_0 : i32, i32
  }
  func.func @transform_2(%arg0: i32) -> (i32, i32) {
    %c0_i32 = arith.constant 0 : i32
    %c0_i32_0 = arith.constant 0 : i32
    %c0_i32_1 = arith.constant 0 : i32
    return %c0_i32, %c0_i32_0 : i32, i32
  }
  func.func @transform_3(%arg0: i32) -> (i32, i32) {
    %c0_i32 = arith.constant 0 : i32
    %c0_i32_0 = arith.constant 0 : i32
    %c0_i32_1 = arith.constant 0 : i32
    return %c0_i32, %c0_i32_0 : i32, i32
  }
  func.func @transform_4(%arg0: i32) -> (i32, i32) {
    %c0_i32 = arith.constant 0 : i32
    %c0_i32_0 = arith.constant 0 : i32
    %c0_i32_1 = arith.constant 0 : i32
    return %c0_i32, %c0_i32_0 : i32, i32
  }
  func.func @transform_5(%arg0: i32) -> (i32, i32) {
    %c0_i32 = arith.constant 0 : i32
    %c0_i32_0 = arith.constant 0 : i32
    %c0_i32_1 = arith.constant 0 : i32
    return %c0_i32, %c0_i32_0 : i32, i32
  }
  func.func @transform_6(%arg0: i32) -> (i32, i32) {
    %c0_i32 = arith.constant 0 : i32
    %c0_i32_0 = arith.constant 0 : i32
    %c0_i32_1 = arith.constant 0 : i32
    return %c0_i32, %c0_i32_0 : i32, i32
  }
  func.func @transform_7(%arg0: i32) -> (i32, i32) {
    %c0_i32 = arith.constant 0 : i32
    %c0_i32_0 = arith.constant 0 : i32
    %c0_i32_1 = arith.constant 0 : i32
    return %c0_i32, %c0_i32_0 : i32, i32
  }
  func.func @transform_8(%arg0: i32) -> (i32, i32) {
    %c0_i32 = arith.constant 0 : i32
    %c0_i32_0 = arith.constant 0 : i32
    %c0_i32_1 = arith.constant 0 : i32
    return %c0_i32, %c0_i32_0 : i32, i32
  }
  func.func @transform_9(%arg0: i32) -> (i32, i32) {
    %c0_i32 = arith.constant 0 : i32
    %c0_i32_0 = arith.constant 0 : i32
    %c0_i32_1 = arith.constant 0 : i32
    return %c0_i32, %c0_i32_0 : i32, i32
  }
  func.func @transform_10(%arg0: i32) -> (i32, i32) {
    %c0_i32 = arith.constant 0 : i32
    %c0_i32_0 = arith.constant 0 : i32
    %c0_i32_1 = arith.constant 0 : i32
    return %c0_i32, %c0_i32_0 : i32, i32
  }
  func.func @transform_11(%arg0: i32) -> (i32, i32) {
    %c0_i32 = arith.constant 0 : i32
    %c0_i32_0 = arith.constant 0 : i32
    %c0_i32_1 = arith.constant 0 : i32
    return %c0_i32, %c0_i32_0 : i32, i32
  }
  func.func @transform_12(%arg0: i32) -> (i32, i32) {
    %c0_i32 = arith.constant 0 : i32
    %c0_i32_0 = arith.constant 0 : i32
    %c0_i32_1 = arith.constant 0 : i32
    return %c0_i32, %c0_i32_0 : i32, i32
  }
  func.func @transform_13(%arg0: i32) -> (i32, i32) {
    %c0_i32 = arith.constant 0 : i32
    %c0_i32_0 = arith.constant 0 : i32
    %c0_i32_1 = arith.constant 0 : i32
    return %c0_i32, %c0_i32_0 : i32, i32
  }
  func.func @transform_14(%arg0: i32) -> (i32, i32) {
    %c0_i32 = arith.constant 0 : i32
    %c0_i32_0 = arith.constant 0 : i32
    %c0_i32_1 = arith.constant 0 : i32
    return %c0_i32, %c0_i32_0 : i32, i32
  }
  func.func @transform_15(%arg0: i32) -> (i32, i32, i32) {
    %c0_i32 = arith.constant 0 : i32
    %c0_i32_0 = arith.constant 0 : i32
    %c0_i32_1 = arith.constant 0 : i32
    return %arg0, %c0_i32, %c0_i32_0 : i32, i32, i32
  }
}

</mosaic_0001>

<llo_original>
// kernel: tile.13
$region0: #{tile.13}
  #allocation0 [shape = 's32[1]{0}', space=sflag, size = 0x4, scoped, tag = 'scoped memory for tile.13']
  %s0 = inlined_call_operand.vmem [shape: f32[32], index: 0, kind: input, shape index: {}]
  %s1 = inlined_call_operand.vmem [shape: f32[9,32], index: 1, kind: output, shape index: {}]
  // Predicated region
  $region2: #{tile.13} parent=0 // pred_check
    _
  $region3: #{tile.13} parent=0 // pred_check_branch
    %3 = sbr.rel (0) target = $region5
  $region4: #{tile.13} parent=0 // pred_region
    _
  $region5: #{tile.13} parent=0 // pred_fallthru
    _
  %v4 = vld [vmem:[%s0] ss:$0 sm:$0xff]
  %5 = vst [vmem:[%s1] sm:$0xff] %v4
  %s6 = scalar_lea.vmem %s1, 8
  %7 = vst [vmem:[%s6] sm:$0xff] %v4

// kernel: mul.21
$region0: #{mul.21}
  %s0 = inlined_call_operand.vmem [shape: f32[9,32], index: 0, kind: input, shape index: {}]
  %s1 = inlined_call_operand.vmem [shape: f32[288], index: 1, kind: output, shape index: {}]
  $region1: #{mul.21} parent=0
    #allocation0 [shape = 'u8[4096]{0}', space=vmem, size = 0x1000, scoped, tag = 'scoped mem for output reshape']
    %v2 = vld [vmem:[%s0] ss:$4 sm:$0x7]
    %vm3 = vcmask 261120
    %4 = vst.msk [vmem:[#allocation0] sm:$0x7] %vm3, %v2
    %s5 = scalar_lea.vmem %s0, 3
    %s6 = smov 3
    %v7 = vld [vmem:[%s5] ss:$4 sm:%s6]
    %8 = vrot.lane.b32.xlu0 %v7, 96
    %v9 = vpop.permute.xlu0 %8
    %vm10 = vcmask 1048320
    %11 = vst.msk [vmem:[#allocation0] sm:$0x3] %vm10, %v9
    %s12 = scalar_lea.vmem %s0, 2
    %s13 = smov 3
    %v14 = vld [vmem:[%s12] ss:$4 sm:%s13]
    %15 = vrot.lane.b32.xlu0 %v14, 64
    %v16 = vpop.permute.xlu0 %15
    %vm17 = vcmask 785920
    %18 = vst.msk [vmem:[#allocation0] sm:$0x3] %vm17, %v16
    %s19 = scalar_lea.vmem %s0, 1
    %s20 = smov 3
    %v21 = vld [vmem:[%s19] ss:$4 sm:%s20]
    %22 = vrot.lane.b32.xlu0 %v21, 32
    %v23 = vpop.permute.xlu0 %22
    %vm24 = vcmask 523520
    %25 = vst.msk [vmem:[#allocation0] sm:$0x3] %vm24, %v23
    %s27 = ssub.s32 16, 1
    %v28 = vld [vmem:[#allocation0] sm:%s27]
    %s30 = ssub.s32 16, 1
    %31 = vst [vmem:[%s1] sm:%s30] %v28

// kernel: net_forward_pallas.1
$region0: #{net_forward_pallas.1}
  #allocation0 [shape = 'u32[]', space=smem, size = 0x4, offset = 0x4, fixed_abs, tag = 'smem constant byte address 0x4 - core index']
  #allocation1 [shape = 'u32[72,128]{1,0:T(1,128)}', space=vmem, size = 0x9000, scoped, tag = 'internal scratch']
  #allocation2 [shape = 'f32[2116,64]{1,0:T(8,128)}', space=vmem, size = 0x109000, scoped, tag = 'scratch operand']
  #allocation3 [shape = 'f32[529,64]{1,0:T(8,128)}', space=vmem, size = 0x43000, scoped, tag = 'scratch operand']
  #allocation4 [shape = 'f32[481,32]{1,0:T(8,128)}', space=vmem, size = 0x3d000, scoped, tag = 'scratch operand']
  #allocation5 [shape = 'f32[100,32]{1,0:T(8,128)}', space=vmem, size = 0xd000, scoped, tag = 'scratch operand']
  #allocation6 [shape = 'f32[78,32]{1,0:T(8,128)}', space=vmem, size = 0xa000, scoped, tag = 'scratch operand']
  #allocation7 [shape = 'f32[16,32]{1,0:T(8,128)}', space=vmem, size = 0x2000, scoped, tag = 'scratch operand']
  %s0 = inlined_call_operand.vmem [shape: bf16[2,2116,27], index: 0, kind: input, shape index: {}]
  %s1 = inlined_call_operand.vmem [shape: bf16[27,64], index: 1, kind: input, shape index: {}]
  %s2 = inlined_call_operand.vmem [shape: f32[1,64], index: 2, kind: input, shape index: {}]
  %s3 = inlined_call_operand.vmem [shape: bf16[64,32], index: 3, kind: input, shape index: {}]
  %s4 = inlined_call_operand.vmem [shape: f32[1,32], index: 4, kind: input, shape index: {}]
  %s5 = inlined_call_operand.vmem [shape: bf16[288,32], index: 5, kind: input, shape index: {}]
  %s6 = inlined_call_operand.vmem [shape: f32[1,32], index: 6, kind: input, shape index: {}]
  %s7 = inlined_call_operand.vmem [shape: bf16[32,16], index: 7, kind: input, shape index: {}]
  %s8 = inlined_call_operand.vmem [shape: f32[1,16], index: 8, kind: input, shape index: {}]
  %s9 = inlined_call_operand.vmem [shape: bf16[144,32], index: 9, kind: input, shape index: {}]
  %s10 = inlined_call_operand.vmem [shape: f32[1,32], index: 10, kind: input, shape index: {}]
  %s11 = inlined_call_operand.vmem [shape: bf16[288,16], index: 11, kind: input, shape index: {}]
  %s12 = inlined_call_operand.vmem [shape: f32[1,16], index: 12, kind: input, shape index: {}]
  %s13 = inlined_call_operand.vmem [shape: f32[16,8], index: 13, kind: input, shape index: {}]
  %s14 = inlined_call_operand.vmem [shape: f32[1,8], index: 14, kind: input, shape index: {}]
  %s15 = inlined_call_operand.hbm [shape: f32[2,1,8], index: 15, kind: output, shape index: {}]
  %s16 = sld [smem:[#allocation0]]
  $region93: #{net_forward_pallas.1} parent=0
    _
  %s18 = ssub.s32 1, %s16
  %s19 = scalar_select 0, %s18, %s16
  $region1: #{net_forward_pallas.1} parent=0
    #allocation8 [shape = 'u8[1024]{0}', space=vmem, size = 0x400, scoped, tag = 'output window, operand 0']
    #allocation9 [shape = 's32[2]{0}', space=sflag, size = 0x8, scoped, tag = 'scoped memory for net_forward_pallas.1']
    %20 = vsyncpa [#allocation9], 0
    %s21 = scalar_lea.sflag [#allocation9], 1
    %22 = vsyncpa %s21, 0
    loop: start=0, step=1, limit=4
    $region2: #{net_forward_pallas.1} parent=1 // loop_pre_header
      _
    $region3: #{net_forward_pallas.1} parent=1 // loop_header
      %s24 = sphi 0, %s28
      %p25 = scmp.ge.s32.totalorder %s24, 4
      %s34 = sphi 0, %s36
      %s37 = sphi 0, %s34
      %s38 = sphi 0, %s37
      %s54 = sphi 0, %s38
      %s58 = sphi 0, %s58
      %s60 = sphi 0, %s58
      %s61 = sphi 0, %s60
      %s75 = sphi 0, %s61
      %s79 = sphi 0, %s79
      %s81 = sphi 0, %s79
      %s82 = sphi 0, %s81
      %s96 = sphi 0, %s82
      %s100 = sphi 0, %s100
      %s102 = sphi 0, %s100
      %s103 = sphi 0, %s102
      %s117 = sphi 0, %s103
      %s121 = sphi 0, %s121
      %s123 = sphi 0, %s121
      %s124 = sphi 0, %s123
      %s138 = sphi 0, %s124
      %s142 = sphi 0, %s142
      %s144 = sphi 0, %s142
      %s145 = sphi 0, %s144
      %s159 = sphi 0, %s145
      %s163 = sphi 0, %s163
      %s165 = sphi 0, %s163
      %s166 = sphi 0, %s165
      %s180 = sphi 0, %s166
      %s184 = sphi 0, %s184
      %s186 = sphi 0, %s184
      %s187 = sphi 0, %s186
      %s201 = sphi 0, %s187
      %s205 = sphi 0, %s205
      %s207 = sphi 0, %s205
      %s208 = sphi 0, %s207
      %s222 = sphi 0, %s208
      %s226 = sphi 0, %s226
      %s228 = sphi 0, %s226
      %s229 = sphi 0, %s228
      %s243 = sphi 0, %s229
      %s247 = sphi 0, %s247
      %s249 = sphi 0, %s247
      %s250 = sphi 0, %s249
      %s264 = sphi 0, %s250
      %s268 = sphi 0, %s268
      %s270 = sphi 0, %s268
      %s271 = sphi 0, %s270
      %s285 = sphi 0, %s271
      %s289 = sphi 0, %s289
      %s291 = sphi 0, %s289
      %s292 = sphi 0, %s291
      %s306 = sphi 0, %s292
      %s310 = sphi 0, %s310
      %s312 = sphi 0, %s310
      %s313 = sphi 0, %s312
      %s327 = sphi 0, %s313
      %s331 = sphi 0, %s331
      %s333 = sphi 0, %s331
      %s334 = sphi 0, %s333
      %s348 = sphi 0, %s334
      %s354 = sphi 0, %s356
      %s357 = sphi 0, %s354
      %s358 = sphi 0, %s357
      %s374 = sphi 0, %s358
    $region4: #{net_forward_pallas.1} parent=1 // loop_header_branch
      %27 = sbr.rel (%p25) target = $region8
    $region5: #{net_forward_pallas.1} parent=1 // loop_body
      %s29 = ssub.s32 %s24, 1
      %s30 = ssub.s32 %s24, 2
      %s31 = sadd.s32 %s24, 1
      %s32 = ssub.s32 %s24, %s31
      %p33 = scmp.eq.s32.totalorder %s32, 0
      %s35 = sadd.s32 %s34, 1
      %s36 = scalar_select %p33, %s34, %s35
      %p39 = pneg %p33
      %p40 = scmp.eq.s32.totalorder %s24, 1
      %p41 = por %p39, %p40
      %p42 = scmp.ne.s32.totalorder %s34, %s37
      %p43 = scmp.eq.s32.totalorder %s24, 0
      %p44 = por %p42, %p43
      %p45 = scmp.ne.s32.totalorder %s34, %s37
      %p46 = scmp.eq.s32.totalorder %s29, 1
      %p47 = por %p45, %p46
      %p48 = scmp.ne.s32.totalorder %s37, %s38
      %p49 = scmp.eq.s32.totalorder %s29, 0
      %p50 = por %p48, %p49
      %p51 = scmp.ne.s32.totalorder %s37, %s38
      %p52 = scmp.eq.s32.totalorder %s30, 1
      %p53 = por %p51, %p52
      %p55 = scmp.ne.s32.totalorder %s38, %s54
      %p56 = scmp.eq.s32.totalorder %s30, 0
      %p57 = por %p55, %p56
      %s59 = sadd.s32 %s58, 1
      %p62 = scmp.eq.s32.totalorder %s24, 1
      %p63 = scmp.ne.s32.totalorder %s58, %s60
      %p64 = scmp.eq.s32.totalorder %s24, 0
      %p65 = por %p63, %p64
      %p66 = scmp.ne.s32.totalorder %s58, %s60
      %p67 = scmp.eq.s32.totalorder %s29, 1
      %p68 = por %p66, %p67
      %p69 = scmp.ne.s32.totalorder %s60, %s61
      %p70 = scmp.eq.s32.totalorder %s29, 0
      %p71 = por %p69, %p70
      %p72 = scmp.ne.s32.totalorder %s60, %s61
      %p73 = scmp.eq.s32.totalorder %s30, 1
      %p74 = por %p72, %p73
      %p76 = scmp.ne.s32.totalorder %s61, %s75
      %p77 = scmp.eq.s32.totalorder %s30, 0
      %p78 = por %p76, %p77
      %s80 = sadd.s32 %s79, 1
      %p83 = scmp.eq.s32.totalorder %s24, 1
      %p84 = scmp.ne.s32.totalorder %s79, %s81
      %p85 = scmp.eq.s32.totalorder %s24, 0
      %p86 = por %p84, %p85
      %p87 = scmp.ne.s32.totalorder %s79, %s81
      %p88 = scmp.eq.s32.totalorder %s29, 1
      %p89 = por %p87, %p88
      %p90 = scmp.ne.s32.totalorder %s81, %s82
      %p91 = scmp.eq.s32.totalorder %s29, 0
      %p92 = por %p90, %p91
      %p93 = scmp.ne.s32.totalorder %s81, %s82
      %p94 = scmp.eq.s32.totalorder %s30, 1
      %p95 = por %p93, %p94
      %p97 = scmp.ne.s32.totalorder %s82, %s96
      %p98 = scmp.eq.s32.totalorder %s30, 0
      %p99 = por %p97, %p98
      %s101 = sadd.s32 %s100, 1
      %p104 = scmp.eq.s32.totalorder %s24, 1
      %p105 = scmp.ne.s32.totalorder %s100, %s102
      %p106 = scmp.eq.s32.totalorder %s24, 0
      %p107 = por %p105, %p106
      %p108 = scmp.ne.s32.totalorder %s100, %s102
      %p109 = scmp.eq.s32.totalorder %s29, 1
      %p110 = por %p108, %p109
      %p111 = scmp.ne.s32.totalorder %s102, %s103
      %p112 = scmp.eq.s32.totalorder %s29, 0
      %p113 = por %p111, %p112
      %p114 = scmp.ne.s32.totalorder %s102, %s103
      %p115 = scmp.eq.s32.totalorder %s30, 1
      %p116 = por %p114, %p115
      %p118 = scmp.ne.s32.totalorder %s103, %s117
      %p119 = scmp.eq.s32.totalorder %s30, 0
      %p120 = por %p118, %p119
      %s122 = sadd.s32 %s121, 1
      %p125 = scmp.eq.s32.totalorder %s24, 1
      %p126 = scmp.ne.s32.totalorder %s121, %s123
      %p127 = scmp.eq.s32.totalorder %s24, 0
      %p128 = por %p126, %p127
      %p129 = scmp.ne.s32.totalorder %s121, %s123
      %p130 = scmp.eq.s32.totalorder %s29, 1
      %p131 = por %p129, %p130
      %p132 = scmp.ne.s32.totalorder %s123, %s124
      %p133 = scmp.eq.s32.totalorder %s29, 0
      %p134 = por %p132, %p133
      %p135 = scmp.ne.s32.totalorder %s123, %s124
      %p136 = scmp.eq.s32.totalorder %s30, 1
      %p137 = por %p135, %p136
      %p139 = scmp.ne.s32.totalorder %s124, %s138
      %p140 = scmp.eq.s32.totalorder %s30, 0
      %p141 = por %p139, %p140
      %s143 = sadd.s32 %s142, 1
      %p146 = scmp.eq.s32.totalorder %s24, 1
      %p147 = scmp.ne.s32.totalorder %s142, %s144
      %p148 = scmp.eq.s32.totalorder %s24, 0
      %p149 = por %p147, %p148
      %p150 = scmp.ne.s32.totalorder %s142, %s144
      %p151 = scmp.eq.s32.totalorder %s29, 1
      %p152 = por %p150, %p151
      %p153 = scmp.ne.s32.totalorder %s144, %s145
      %p154 = scmp.eq.s32.totalorder %s29, 0
      %p155 = por %p153, %p154
      %p156 = scmp.ne.s32.totalorder %s144, %s145
      %p157 = scmp.eq.s32.totalorder %s30, 1
      %p158 = por %p156, %p157
      %p160 = scmp.ne.s32.totalorder %s145, %s159
      %p161 = scmp.eq.s32.totalorder %s30, 0
      %p162 = por %p160, %p161
      %s164 = sadd.s32 %s163, 1
      %p167 = scmp.eq.s32.totalorder %s24, 1
      %p168 = scmp.ne.s32.totalorder %s163, %s165
      %p169 = scmp.eq.s32.totalorder %s24, 0
      %p170 = por %p168, %p169
      %p171 = scmp.ne.s32.totalorder %s163, %s165
      %p172 = scmp.eq.s32.totalorder %s29, 1
      %p173 = por %p171, %p172
      %p174 = scmp.ne.s32.totalorder %s165, %s166
      %p175 = scmp.eq.s32.totalorder %s29, 0
      %p176 = por %p174, %p175
      %p177 = scmp.ne.s32.totalorder %s165, %s166
      %p178 = scmp.eq.s32.totalorder %s30, 1
      %p179 = por %p177, %p178
      %p181 = scmp.ne.s32.totalorder %s166, %s180
      %p182 = scmp.eq.s32.totalorder %s30, 0
      %p183 = por %p181, %p182
      %s185 = sadd.s32 %s184, 1
      %p188 = scmp.eq.s32.totalorder %s24, 1
      %p189 = scmp.ne.s32.totalorder %s184, %s186
      %p190 = scmp.eq.s32.totalorder %s24, 0
      %p191 = por %p189, %p190
      %p192 = scmp.ne.s32.totalorder %s184, %s186
      %p193 = scmp.eq.s32.totalorder %s29, 1
      %p194 = por %p192, %p193
      %p195 = scmp.ne.s32.totalorder %s186, %s187
      %p196 = scmp.eq.s32.totalorder %s29, 0
      %p197 = por %p195, %p196
      %p198 = scmp.ne.s32.totalorder %s186, %s187
      %p199 = scmp.eq.s32.totalorder %s30, 1
      %p200 = por %p198, %p199
      %p202 = scmp.ne.s32.totalorder %s187, %s201
      %p203 = scmp.eq.s32.totalorder %s30, 0
      %p204 = por %p202, %p203
      %s206 = sadd.s32 %s205, 1
      %p209 = scmp.eq.s32.totalorder %s24, 1
      %p210 = scmp.ne.s32.totalorder %s205, %s207
      %p211 = scmp.eq.s32.totalorder %s24, 0
      %p212 = por %p210, %p211
      %p213 = scmp.ne.s32.totalorder %s205, %s207
      %p214 = scmp.eq.s32.totalorder %s29, 1
      %p215 = por %p213, %p214
      %p216 = scmp.ne.s32.totalorder %s207, %s208
      %p217 = scmp.eq.s32.totalorder %s29, 0
      %p218 = por %p216, %p217
      %p219 = scmp.ne.s32.totalorder %s207, %s208
      %p220 = scmp.eq.s32.totalorder %s30, 1
      %p221 = por %p219, %p220
      %p223 = scmp.ne.s32.totalorder %s208, %s222
      %p224 = scmp.eq.s32.totalorder %s30, 0
      %p225 = por %p223, %p224
      %s227 = sadd.s32 %s226, 1
      %p230 = scmp.eq.s32.totalorder %s24, 1
      %p231 = scmp.ne.s32.totalorder %s226, %s228
      %p232 = scmp.eq.s32.totalorder %s24, 0
      %p233 = por %p231, %p232
      %p234 = scmp.ne.s32.totalorder %s226, %s228
      %p235 = scmp.eq.s32.totalorder %s29, 1
      %p236 = por %p234, %p235
      %p237 = scmp.ne.s32.totalorder %s228, %s229
      %p238 = scmp.eq.s32.totalorder %s29, 0
      %p239 = por %p237, %p238
      %p240 = scmp.ne.s32.totalorder %s228, %s229
      %p241 = scmp.eq.s32.totalorder %s30, 1
      %p242 = por %p240, %p241
      %p244 = scmp.ne.s32.totalorder %s229, %s243
      %p245 = scmp.eq.s32.totalorder %s30, 0
      %p246 = por %p244, %p245
      %s248 = sadd.s32 %s247, 1
      %p251 = scmp.eq.s32.totalorder %s24, 1
      %p252 = scmp.ne.s32.totalorder %s247, %s249
      %p253 = scmp.eq.s32.totalorder %s24, 0
      %p254 = por %p252, %p253
      %p255 = scmp.ne.s32.totalorder %s247, %s249
      %p256 = scmp.eq.s32.totalorder %s29, 1
      %p257 = por %p255, %p256
      %p258 = scmp.ne.s32.totalorder %s249, %s250
      %p259 = scmp.eq.s32.totalorder %s29, 0
      %p260 = por %p258, %p259
      %p261 = scmp.ne.s32.totalorder %s249, %s250
      %p262 = scmp.eq.s32.totalorder %s30, 1
      %p263 = por %p261, %p262
      %p265 = scmp.ne.s32.totalorder %s250, %s264
      %p266 = scmp.eq.s32.totalorder %s30, 0
      %p267 = por %p265, %p266
      %s269 = sadd.s32 %s268, 1
      %p272 = scmp.eq.s32.totalorder %s24, 1
      %p273 = scmp.ne.s32.totalorder %s268, %s270
      %p274 = scmp.eq.s32.totalorder %s24, 0
      %p275 = por %p273, %p274
      %p276 = scmp.ne.s32.totalorder %s268, %s270
      %p277 = scmp.eq.s32.totalorder %s29, 1
      %p278 = por %p276, %p277
      %p279 = scmp.ne.s32.totalorder %s270, %s271
      %p280 = scmp.eq.s32.totalorder %s29, 0
      %p281 = por %p279, %p280
      %p282 = scmp.ne.s32.totalorder %s270, %s271
      %p283 = scmp.eq.s32.totalorder %s30, 1
      %p284 = por %p282, %p283
      %p286 = scmp.ne.s32.totalorder %s271, %s285
      %p287 = scmp.eq.s32.totalorder %s30, 0
      %p288 = por %p286, %p287
      %s290 = sadd.s32 %s289, 1
      %p293 = scmp.eq.s32.totalorder %s24, 1
      %p294 = scmp.ne.s32.totalorder %s289, %s291
      %p295 = scmp.eq.s32.totalorder %s24, 0
      %p296 = por %p294, %p295
      %p297 = scmp.ne.s32.totalorder %s289, %s291
      %p298 = scmp.eq.s32.totalorder %s29, 1
      %p299 = por %p297, %p298
      %p300 = scmp.ne.s32.totalorder %s291, %s292
      %p301 = scmp.eq.s32.totalorder %s29, 0
      %p302 = por %p300, %p301
      %p303 = scmp.ne.s32.totalorder %s291, %s292
      %p304 = scmp.eq.s32.totalorder %s30, 1
      %p305 = por %p303, %p304
      %p307 = scmp.ne.s32.totalorder %s292, %s306
      %p308 = scmp.eq.s32.totalorder %s30, 0
      %p309 = por %p307, %p308
      %s311 = sadd.s32 %s310, 1
      %p314 = scmp.eq.s32.totalorder %s24, 1
      %p315 = scmp.ne.s32.totalorder %s310, %s312
      %p316 = scmp.eq.s32.totalorder %s24, 0
      %p317 = por %p315, %p316
      %p318 = scmp.ne.s32.totalorder %s310, %s312
      %p319 = scmp.eq.s32.totalorder %s29, 1
      %p320 = por %p318, %p319
      %p321 = scmp.ne.s32.totalorder %s312, %s313
      %p322 = scmp.eq.s32.totalorder %s29, 0
      %p323 = por %p321, %p322
      %p324 = scmp.ne.s32.totalorder %s312, %s313
      %p325 = scmp.eq.s32.totalorder %s30, 1
      %p326 = por %p324, %p325
      %p328 = scmp.ne.s32.totalorder %s313, %s327
      %p329 = scmp.eq.s32.totalorder %s30, 0
      %p330 = por %p328, %p329
      %s332 = sadd.s32 %s331, 1
      %p335 = scmp.eq.s32.totalorder %s24, 1
      %p336 = scmp.ne.s32.totalorder %s331, %s333
      %p337 = scmp.eq.s32.totalorder %s24, 0
      %p338 = por %p336, %p337
      %p339 = scmp.ne.s32.totalorder %s331, %s333
      %p340 = scmp.eq.s32.totalorder %s29, 1
      %p341 = por %p339, %p340
      %p342 = scmp.ne.s32.totalorder %s333, %s334
      %p343 = scmp.eq.s32.totalorder %s29, 0
      %p344 = por %p342, %p343
      %p345 = scmp.ne.s32.totalorder %s333, %s334
      %p346 = scmp.eq.s32.totalorder %s30, 1
      %p347 = por %p345, %p346
      %p349 = scmp.ne.s32.totalorder %s334, %s348
      %p350 = scmp.eq.s32.totalorder %s30, 0
      %p351 = por %p349, %p350
      %s352 = ssub.s32 %s24, %s31
      %p353 = scmp.eq.s32.totalorder %s352, 0
      %s355 = sadd.s32 %s354, 1
      %s356 = scalar_select %p353, %s354, %s355
      %p359 = pneg %p353
      %p360 = scmp.eq.s32.totalorder %s24, 1
      %p361 = por %p359, %p360
      %p362 = scmp.ne.s32.totalorder %s354, %s357
      %p363 = scmp.eq.s32.totalorder %s24, 0
      %p364 = por %p362, %p363
      %p365 = scmp.ne.s32.totalorder %s354, %s357
      %p366 = scmp.eq.s32.totalorder %s29, 1
      %p367 = por %p365, %p366
      %p368 = scmp.ne.s32.totalorder %s357, %s358
      %p369 = scmp.eq.s32.totalorder %s29, 0
      %p370 = por %p368, %p369
      %p371 = scmp.ne.s32.totalorder %s357, %s358
      %p372 = scmp.eq.s32.totalorder %s30, 1
      %p373 = por %p371, %p372
      %p375 = scmp.ne.s32.totalorder %s358, %s374
      %p376 = scmp.eq.s32.totalorder %s30, 0
      %p377 = por %p375, %p376
      %p378 = scmp.le.s32.totalorder 1, %s24
      %p379 = scmp.lt.s32.totalorder %s24, 3
      %p380 = pnand %p378, %p379
      %p381 = pneg %p380
      // Predicated region
      $region9: #{net_forward_pallas.1} parent=5 // pred_check
        _
      $region10: #{net_forward_pallas.1} parent=5 // pred_check_branch
        %383 = sbr.rel (%p380) target = $region12
      $region11: #{net_forward_pallas.1} parent=5 // pred_region
        %s384 = ssub.s32 %s24, 1
        // Predicated region
        $region13: #{net_forward_pallas.1} parent=11 // pred_check
          %p385 = pneg %p71
        $region14: #{net_forward_pallas.1} parent=11 // pred_check_branch
          %387 = sbr.rel (%p385) target = $region16
        $region15: #{net_forward_pallas.1} parent=11 // pred_region
          _
        $region16: #{net_forward_pallas.1} parent=11 // pred_fallthru
          _
        // Predicated region
        $region17: #{net_forward_pallas.1} parent=11 // pred_check
          %p388 = pneg %p92
        $region18: #{net_forward_pallas.1} parent=11 // pred_check_branch
          %390 = sbr.rel (%p388) target = $region20
        $region19: #{net_forward_pallas.1} parent=11 // pred_region
          _
        $region20: #{net_forward_pallas.1} parent=11 // pred_fallthru
          _
        // Predicated region
        $region21: #{net_forward_pallas.1} parent=11 // pred_check
          %p391 = pneg %p113
        $region22: #{net_forward_pallas.1} parent=11 // pred_check_branch
          %393 = sbr.rel (%p391) target = $region24
        $region23: #{net_forward_pallas.1} parent=11 // pred_region
          _
        $region24: #{net_forward_pallas.1} parent=11 // pred_fallthru
          _
        // Predicated region
        $region25: #{net_forward_pallas.1} parent=11 // pred_check
          %p394 = pneg %p134
        $region26: #{net_forward_pallas.1} parent=11 // pred_check_branch
          %396 = sbr.rel (%p394) target = $region28
        $region27: #{net_forward_pallas.1} parent=11 // pred_region
          _
        $region28: #{net_forward_pallas.1} parent=11 // pred_fallthru
          _
        // Predicated region
        $region29: #{net_forward_pallas.1} parent=11 // pred_check
          %p397 = pneg %p155
        $region30: #{net_forward_pallas.1} parent=11 // pred_check_branch
          %399 = sbr.rel (%p397) target = $region32
        $region31: #{net_forward_pallas.1} parent=11 // pred_region
          _
        $region32: #{net_forward_pallas.1} parent=11 // pred_fallthru
          _
        // Predicated region
        $region33: #{net_forward_pallas.1} parent=11 // pred_check
          %p400 = pneg %p176
        $region34: #{net_forward_pallas.1} parent=11 // pred_check_branch
          %402 = sbr.rel (%p400) target = $region36
        $region35: #{net_forward_pallas.1} parent=11 // pred_region
          _
        $region36: #{net_forward_pallas.1} parent=11 // pred_fallthru
          _
        // Predicated region
        $region37: #{net_forward_pallas.1} parent=11 // pred_check
          %p403 = pneg %p197
        $region38: #{net_forward_pallas.1} parent=11 // pred_check_branch
          %405 = sbr.rel (%p403) target = $region40
        $region39: #{net_forward_pallas.1} parent=11 // pred_region
          _
        $region40: #{net_forward_pallas.1} parent=11 // pred_fallthru
          _
        // Predicated region
        $region41: #{net_forward_pallas.1} parent=11 // pred_check
          %p406 = pneg %p218
        $region42: #{net_forward_pallas.1} parent=11 // pred_check_branch
          %408 = sbr.rel (%p406) target = $region44
        $region43: #{net_forward_pallas.1} parent=11 // pred_region
          _
        $region44: #{net_forward_pallas.1} parent=11 // pred_fallthru
          _
        // Predicated region
        $region45: #{net_forward_pallas.1} parent=11 // pred_check
          %p409 = pneg %p239
        $region46: #{net_forward_pallas.1} parent=11 // pred_check_branch
          %411 = sbr.rel (%p409) target = $region48
        $region47: #{net_forward_pallas.1} parent=11 // pred_region
          _
        $region48: #{net_forward_pallas.1} parent=11 // pred_fallthru
          _
        // Predicated region
        $region49: #{net_forward_pallas.1} parent=11 // pred_check
          %p412 = pneg %p260
        $region50: #{net_forward_pallas.1} parent=11 // pred_check_branch
          %414 = sbr.rel (%p412) target = $region52
        $region51: #{net_forward_pallas.1} parent=11 // pred_region
          _
        $region52: #{net_forward_pallas.1} parent=11 // pred_fallthru
          _
        // Predicated region
        $region53: #{net_forward_pallas.1} parent=11 // pred_check
          %p415 = pneg %p281
        $region54: #{net_forward_pallas.1} parent=11 // pred_check_branch
          %417 = sbr.rel (%p415) target = $region56
        $region55: #{net_forward_pallas.1} parent=11 // pred_region
          _
        $region56: #{net_forward_pallas.1} parent=11 // pred_fallthru
          _
        // Predicated region
        $region57: #{net_forward_pallas.1} parent=11 // pred_check
          %p418 = pneg %p302
        $region58: #{net_forward_pallas.1} parent=11 // pred_check_branch
          %420 = sbr.rel (%p418) target = $region60
        $region59: #{net_forward_pallas.1} parent=11 // pred_region
          _
        $region60: #{net_forward_pallas.1} parent=11 // pred_fallthru
          _
        // Predicated region
        $region61: #{net_forward_pallas.1} parent=11 // pred_check
          %p421 = pneg %p323
        $region62: #{net_forward_pallas.1} parent=11 // pred_check_branch
          %423 = sbr.rel (%p421) target = $region64
        $region63: #{net_forward_pallas.1} parent=11 // pred_region
          _
        $region64: #{net_forward_pallas.1} parent=11 // pred_fallthru
          _
        // Predicated region
        $region65: #{net_forward_pallas.1} parent=11 // pred_check
          %p424 = pneg %p344
        $region66: #{net_forward_pallas.1} parent=11 // pred_check_branch
          %426 = sbr.rel (%p424) target = $region68
        $region67: #{net_forward_pallas.1} parent=11 // pred_region
          _
        $region68: #{net_forward_pallas.1} parent=11 // pred_fallthru
          _
      $region12: #{net_forward_pallas.1} parent=5 // pred_fallthru
        _
      %p427 = scmp.lt.s32.totalorder %s24, 2
      // Predicated region
      $region69: #{net_forward_pallas.1} parent=5 // pred_check
        %p428 = pneg %p427
      $region70: #{net_forward_pallas.1} parent=5 // pred_check_branch
        %430 = sbr.rel (%p428) target = $region72
      $region71: #{net_forward_pallas.1} parent=5 // pred_region
        // Predicated region
        $region73: #{net_forward_pallas.1} parent=71 // pred_check
          %p431 = pneg %p44
        $region74: #{net_forward_pallas.1} parent=71 // pred_check_branch
          %433 = sbr.rel (%p431) target = $region76
        $region75: #{net_forward_pallas.1} parent=71 // pred_region
          %p434 = scmp.lt.s32.totalorder %s24, 1
          %s435 = scalar_select %p434, %s24, 1
          %s436 = smul.addr %s435, 265
          %s437 = smul.addr %s436, 4
          %s438 = scalar_lea.vmem %s0, %s437
        $region76: #{net_forward_pallas.1} parent=71 // pred_fallthru
          _
      $region72: #{net_forward_pallas.1} parent=5 // pred_fallthru
        _
      %p439 = scmp.le.s32.totalorder 1, %s24
      %p440 = scmp.lt.s32.totalorder %s24, 3
      %p441 = pnand %p439, %p440
      %p442 = pneg %p441
      // Predicated region
      $region77: #{net_forward_pallas.1} parent=5 // pred_check
        _
      $region78: #{net_forward_pallas.1} parent=5 // pred_check_branch
        %444 = sbr.rel (%p441) target = $region80
      $region79: #{net_forward_pallas.1} parent=5 // pred_region
        %s445 = ssub.s32 %s24, 1
        %p446 = scmp.lt.s32.totalorder %s29, 1
        %s447 = scalar_select %p446, %s29, 1
        %s448 = smul.addr %s447, 265
        %s449 = smul.addr %s448, 4
        %s450 = scalar_lea.vmem %s0, %s449
        %p451 = pneg %p50
        %p452 = pneg %p47
        %p453 = pneg %p71
        %p454 = pneg %p68
        %p455 = pneg %p92
        %p456 = pneg %p89
        %p457 = pneg %p113
        %p458 = pneg %p110
        %p459 = pneg %p134
        %p460 = pneg %p131
        %p461 = pneg %p155
        %p462 = pneg %p152
        %p463 = pneg %p176
        %p464 = pneg %p173
        %p465 = pneg %p197
        %p466 = pneg %p194
        %p467 = pneg %p218
        %p468 = pneg %p215
        %p469 = pneg %p239
        %p470 = pneg %p236
        %p471 = pneg %p260
        %p472 = pneg %p257
        %p473 = pneg %p281
        %p474 = pneg %p278
        %p475 = pneg %p302
        %p476 = pneg %p299
        %p477 = pneg %p323
        %p478 = pneg %p320
        %p479 = pneg %p344
        %p480 = pneg %p341
        %p481 = pneg %p370
        %p482 = pneg %p367
        %s483 = sand.u32 %s357, 1
        %s484 = scalar_lea.sflag [#allocation9], %s483
        %s485 = sand.u32 %s357, 1
        %s486 = scalar_lea.vmem [#allocation8], %s485
        %p487 = scmp.lt.s32.totalorder %s29, 1
        %s488 = scalar_select %p487, %s29, 1
        %s489 = smul.addr %s488, 265
        %s490 = smul.addr %s489, 4
        %s491 = scalar_lea.vmem %s0, %s490
        %v493 = vld [vmem:[%s491] sm:$0xf]
        %v494 = vld [vmem:[%s491 + $0x4] sm:$0xf]
        %v495 = vld [vmem:[%s491 + $0x8] sm:$0xf]
        %v496 = vld [vmem:[%s491 + $0xc] sm:$0xf]
        %v497 = vld [vmem:[%s491 + $0x10] sm:$0xf]
        %v498 = vld [vmem:[%s491 + $0x14] sm:$0xf]
        %v499 = vld [vmem:[%s491 + $0x18] sm:$0xf]
        %v500 = vld [vmem:[%s491 + $0x1c] sm:$0xf]
        %v501 = vld [vmem:[%s491 + $0x20] sm:$0xf]
        %v502 = vld [vmem:[%s491 + $0x24] sm:$0xf]
        %v503 = vld [vmem:[%s491 + $0x28] sm:$0xf]
        %v504 = vld [vmem:[%s491 + $0x2c] sm:$0xf]
        %v505 = vld [vmem:[%s491 + $0x30] sm:$0xf]
        %v506 = vld [vmem:[%s491 + $0x34] sm:$0xf]
        %v507 = vld [vmem:[%s491 + $0x38] sm:$0xf]
        %v508 = vld [vmem:[%s491 + $0x3c] sm:$0xf]
        %v509 = vld [vmem:[%s491 + $0x40] sm:$0xf]
        %v510 = vld [vmem:[%s491 + $0x44] sm:$0xf]
        %v511 = vld [vmem:[%s491 + $0x48] sm:$0xf]
        %v512 = vld [vmem:[%s491 + $0x4c] sm:$0xf]
        %v513 = vld [vmem:[%s491 + $0x50] sm:$0xf]
        %v514 = vld [vmem:[%s491 + $0x54] sm:$0xf]
        %v515 = vld [vmem:[%s491 + $0x58] sm:$0xf]
        %v516 = vld [vmem:[%s491 + $0x5c] sm:$0xf]
        %v517 = vld [vmem:[%s491 + $0x60] sm:$0xf]
        %v518 = vld [vmem:[%s491 + $0x64] sm:$0xf]
        %v519 = vld [vmem:[%s491 + $0x68] sm:$0xf]
        %v520 = vld [vmem:[%s491 + $0x6c] sm:$0xf]
        %v521 = vld [vmem:[%s491 + $0x70] sm:$0xf]
        %v522 = vld [vmem:[%s491 + $0x74] sm:$0xf]
        %v523 = vld [vmem:[%s491 + $0x78] sm:$0xf]
        %v524 = vld [vmem:[%s491 + $0x7c] sm:$0xf]
        %v525 = vld [vmem:[%s491 + $0x80] sm:$0xf]
        %v526 = vld [vmem:[%s491 + $0x84] sm:$0xf]
        %v527 = vld [vmem:[%s491 + $0x88] sm:$0xf]
        %v528 = vld [vmem:[%s491 + $0x8c] sm:$0xf]
        %v529 = vld [vmem:[%s491 + $0x90] sm:$0xf]
        %v530 = vld [vmem:[%s491 + $0x94] sm:$0xf]
        %v531 = vld [vmem:[%s491 + $0x98] sm:$0xf]
        %v532 = vld [vmem:[%s491 + $0x9c] sm:$0xf]
        %v533 = vld [vmem:[%s491 + $0xa0] sm:$0xf]
        %v534 = vld [vmem:[%s491 + $0xa4] sm:$0xf]
        %v535 = vld [vmem:[%s491 + $0xa8] sm:$0xf]
        %v536 = vld [vmem:[%s491 + $0xac] sm:$0xf]
        %v537 = vld [vmem:[%s491 + $0xb0] sm:$0xf]
        %v538 = vld [vmem:[%s491 + $0xb4] sm:$0xf]
        %v539 = vld [vmem:[%s491 + $0xb8] sm:$0xf]
        %v540 = vld [vmem:[%s491 + $0xbc] sm:$0xf]
        %v541 = vld [vmem:[%s491 + $0xc0] sm:$0xf]
        %v542 = vld [vmem:[%s491 + $0xc4] sm:$0xf]
        %v543 = vld [vmem:[%s491 + $0xc8] sm:$0xf]
        %v544 = vld [vmem:[%s491 + $0xcc] sm:$0xf]
        %v545 = vld [vmem:[%s491 + $0xd0] sm:$0xf]
        %v546 = vld [vmem:[%s491 + $0xd4] sm:$0xf]
        %v547 = vld [vmem:[%s491 + $0xd8] sm:$0xf]
        %v548 = vld [vmem:[%s491 + $0xdc] sm:$0xf]
        %v549 = vld [vmem:[%s491 + $0xe0] sm:$0xf]
        %v550 = vld [vmem:[%s491 + $0xe4] sm:$0xf]
        %v551 = vld [vmem:[%s491 + $0xe8] sm:$0xf]
        %v552 = vld [vmem:[%s491 + $0xec] sm:$0xf]
        %v553 = vld [vmem:[%s491 + $0xf0] sm:$0xf]
        %v554 = vld [vmem:[%s491 + $0xf4] sm:$0xf]
        %v555 = vld [vmem:[%s491 + $0xf8] sm:$0xf]
        %v556 = vld [vmem:[%s491 + $0xfc] sm:$0xf]
        %v557 = vld [vmem:[%s491 + $0x100] sm:$0xf]
        %v558 = vld [vmem:[%s491 + $0x104] sm:$0xf]
        %v559 = vld [vmem:[%s491 + $0x108] sm:$0xf]
        %v560 = vld [vmem:[%s491 + $0x10c] sm:$0xf]
        %v561 = vld [vmem:[%s491 + $0x110] sm:$0xf]
        %v562 = vld [vmem:[%s491 + $0x114] sm:$0xf]
        %v563 = vld [vmem:[%s491 + $0x118] sm:$0xf]
        %v564 = vld [vmem:[%s491 + $0x11c] sm:$0xf]
        %v565 = vld [vmem:[%s491 + $0x120] sm:$0xf]
        %v566 = vld [vmem:[%s491 + $0x124] sm:$0xf]
        %v567 = vld [vmem:[%s491 + $0x128] sm:$0xf]
        %v568 = vld [vmem:[%s491 + $0x12c] sm:$0xf]
        %v569 = vld [vmem:[%s491 + $0x130] sm:$0xf]
        %v570 = vld [vmem:[%s491 + $0x134] sm:$0xf]
        %v571 = vld [vmem:[%s491 + $0x138] sm:$0xf]
        %v572 = vld [vmem:[%s491 + $0x13c] sm:$0xf]
        %v573 = vld [vmem:[%s491 + $0x140] sm:$0xf]
        %v574 = vld [vmem:[%s491 + $0x144] sm:$0xf]
        %v575 = vld [vmem:[%s491 + $0x148] sm:$0xf]
        %v576 = vld [vmem:[%s491 + $0x14c] sm:$0xf]
        %v577 = vld [vmem:[%s491 + $0x150] sm:$0xf]
        %v578 = vld [vmem:[%s491 + $0x154] sm:$0xf]
        %v579 = vld [vmem:[%s491 + $0x158] sm:$0xf]
        %v580 = vld [vmem:[%s491 + $0x15c] sm:$0xf]
        %v581 = vld [vmem:[%s491 + $0x160] sm:$0xf]
        %v582 = vld [vmem:[%s491 + $0x164] sm:$0xf]
        %v583 = vld [vmem:[%s491 + $0x168] sm:$0xf]
        %v584 = vld [vmem:[%s491 + $0x16c] sm:$0xf]
        %v585 = vld [vmem:[%s491 + $0x170] sm:$0xf]
        %v586 = vld [vmem:[%s491 + $0x174] sm:$0xf]
        %v587 = vld [vmem:[%s491 + $0x178] sm:$0xf]
        %v588 = vld [vmem:[%s491 + $0x17c] sm:$0xf]
        %v589 = vld [vmem:[%s491 + $0x180] sm:$0xf]
        %v590 = vld [vmem:[%s491 + $0x184] sm:$0xf]
        %v591 = vld [vmem:[%s491 + $0x188] sm:$0xf]
        %v592 = vld [vmem:[%s491 + $0x18c] sm:$0xf]
        %v593 = vld [vmem:[%s491 + $0x190] sm:$0xf]
        %v594 = vld [vmem:[%s491 + $0x194] sm:$0xf]
        %v595 = vld [vmem:[%s491 + $0x198] sm:$0xf]
        %v596 = vld [vmem:[%s491 + $0x19c] sm:$0xf]
        %v597 = vld [vmem:[%s491 + $0x1a0] sm:$0xf]
        %v598 = vld [vmem:[%s491 + $0x1a4] sm:$0xf]
        %v599 = vld [vmem:[%s491 + $0x1a8] sm:$0xf]
        %v600 = vld [vmem:[%s491 + $0x1ac] sm:$0xf]
        %v601 = vld [vmem:[%s491 + $0x1b0] sm:$0xf]
        %v602 = vld [vmem:[%s491 + $0x1b4] sm:$0xf]
        %v603 = vld [vmem:[%s491 + $0x1b8] sm:$0xf]
        %v604 = vld [vmem:[%s491 + $0x1bc] sm:$0xf]
        %v605 = vld [vmem:[%s491 + $0x1c0] sm:$0xf]
        %v606 = vld [vmem:[%s491 + $0x1c4] sm:$0xf]
        %v607 = vld [vmem:[%s491 + $0x1c8] sm:$0xf]
        %v608 = vld [vmem:[%s491 + $0x1cc] sm:$0xf]
        %v609 = vld [vmem:[%s491 + $0x1d0] sm:$0xf]
        %v610 = vld [vmem:[%s491 + $0x1d4] sm:$0xf]
        %v611 = vld [vmem:[%s491 + $0x1d8] sm:$0xf]
        %v612 = vld [vmem:[%s491 + $0x1dc] sm:$0xf]
        %v613 = vld [vmem:[%s491 + $0x1e0] sm:$0xf]
        %v614 = vld [vmem:[%s491 + $0x1e4] sm:$0xf]
        %v615 = vld [vmem:[%s491 + $0x1e8] sm:$0xf]
        %v616 = vld [vmem:[%s491 + $0x1ec] sm:$0xf]
        %v617 = vld [vmem:[%s491 + $0x1f0] sm:$0xf]
        %v618 = vld [vmem:[%s491 + $0x1f4] sm:$0xf]
        %v619 = vld [vmem:[%s491 + $0x1f8] sm:$0xf]
        %v620 = vld [vmem:[%s491 + $0x1fc] sm:$0xf]
        %v621 = vld [vmem:[%s491 + $0x200] sm:$0xf]
        %v622 = vld [vmem:[%s491 + $0x204] sm:$0xf]
        %v623 = vld [vmem:[%s491 + $0x208] sm:$0xf]
        %v624 = vld [vmem:[%s491 + $0x20c] sm:$0xf]
        %v625 = vld [vmem:[%s491 + $0x210] sm:$0xf]
        %v626 = vld [vmem:[%s491 + $0x214] sm:$0xf]
        %v627 = vld [vmem:[%s491 + $0x218] sm:$0xf]
        %v628 = vld [vmem:[%s491 + $0x21c] sm:$0xf]
        %v629 = vld [vmem:[%s491 + $0x220] sm:$0xf]
        %v630 = vld [vmem:[%s491 + $0x224] sm:$0xf]
        %v631 = vld [vmem:[%s491 + $0x228] sm:$0xf]
        %v632 = vld [vmem:[%s491 + $0x22c] sm:$0xf]
        %v633 = vld [vmem:[%s491 + $0x230] sm:$0xf]
        %v634 = vld [vmem:[%s491 + $0x234] sm:$0xf]
        %v635 = vld [vmem:[%s491 + $0x238] sm:$0xf]
        %v636 = vld [vmem:[%s491 + $0x23c] sm:$0xf]
        %v637 = vld [vmem:[%s491 + $0x240] sm:$0xf]
        %v638 = vld [vmem:[%s491 + $0x244] sm:$0xf]
        %v639 = vld [vmem:[%s491 + $0x248] sm:$0xf]
        %v640 = vld [vmem:[%s491 + $0x24c] sm:$0xf]
        %v641 = vld [vmem:[%s491 + $0x250] sm:$0xf]
        %v642 = vld [vmem:[%s491 + $0x254] sm:$0xf]
        %v643 = vld [vmem:[%s491 + $0x258] sm:$0xf]
        %v644 = vld [vmem:[%s491 + $0x25c] sm:$0xf]
        %v645 = vld [vmem:[%s491 + $0x260] sm:$0xf]
        %v646 = vld [vmem:[%s491 + $0x264] sm:$0xf]
        %v647 = vld [vmem:[%s491 + $0x268] sm:$0xf]
        %v648 = vld [vmem:[%s491 + $0x26c] sm:$0xf]
        %v649 = vld [vmem:[%s491 + $0x270] sm:$0xf]
        %v650 = vld [vmem:[%s491 + $0x274] sm:$0xf]
        %v651 = vld [vmem:[%s491 + $0x278] sm:$0xf]
        %v652 = vld [vmem:[%s491 + $0x27c] sm:$0xf]
        %v653 = vld [vmem:[%s491 + $0x280] sm:$0xf]
        %v654 = vld [vmem:[%s491 + $0x284] sm:$0xf]
        %v655 = vld [vmem:[%s491 + $0x288] sm:$0xf]
        %v656 = vld [vmem:[%s491 + $0x28c] sm:$0xf]
        %v657 = vld [vmem:[%s491 + $0x290] sm:$0xf]
        %v658 = vld [vmem:[%s491 + $0x294] sm:$0xf]
        %v659 = vld [vmem:[%s491 + $0x298] sm:$0xf]
        %v660 = vld [vmem:[%s491 + $0x29c] sm:$0xf]
        %v661 = vld [vmem:[%s491 + $0x2a0] sm:$0xf]
        %v662 = vld [vmem:[%s491 + $0x2a4] sm:$0xf]
        %v663 = vld [vmem:[%s491 + $0x2a8] sm:$0xf]
        %v664 = vld [vmem:[%s491 + $0x2ac] sm:$0xf]
        %v665 = vld [vmem:[%s491 + $0x2b0] sm:$0xf]
        %v666 = vld [vmem:[%s491 + $0x2b4] sm:$0xf]
        %v667 = vld [vmem:[%s491 + $0x2b8] sm:$0xf]
        %v668 = vld [vmem:[%s491 + $0x2bc] sm:$0xf]
        %v669 = vld [vmem:[%s491 + $0x2c0] sm:$0xf]
        %v670 = vld [vmem:[%s491 + $0x2c4] sm:$0xf]
        %v671 = vld [vmem:[%s491 + $0x2c8] sm:$0xf]
        %v672 = vld [vmem:[%s491 + $0x2cc] sm:$0xf]
        %v673 = vld [vmem:[%s491 + $0x2d0] sm:$0xf]
        %v674 = vld [vmem:[%s491 + $0x2d4] sm:$0xf]
        %v675 = vld [vmem:[%s491 + $0x2d8] sm:$0xf]
        %v676 = vld [vmem:[%s491 + $0x2dc] sm:$0xf]
        %v677 = vld [vmem:[%s491 + $0x2e0] sm:$0xf]
        %v678 = vld [vmem:[%s491 + $0x2e4] sm:$0xf]
        %v679 = vld [vmem:[%s491 + $0x2e8] sm:$0xf]
        %v680 = vld [vmem:[%s491 + $0x2ec] sm:$0xf]
        %v681 = vld [vmem:[%s491 + $0x2f0] sm:$0xf]
        %v682 = vld [vmem:[%s491 + $0x2f4] sm:$0xf]
        %v683 = vld [vmem:[%s491 + $0x2f8] sm:$0xf]
        %v684 = vld [vmem:[%s491 + $0x2fc] sm:$0xf]
        %v685 = vld [vmem:[%s491 + $0x300] sm:$0xf]
        %v686 = vld [vmem:[%s491 + $0x304] sm:$0xf]
        %v687 = vld [vmem:[%s491 + $0x308] sm:$0xf]
        %v688 = vld [vmem:[%s491 + $0x30c] sm:$0xf]
        %v689 = vld [vmem:[%s491 + $0x310] sm:$0xf]
        %v690 = vld [vmem:[%s491 + $0x314] sm:$0xf]
        %v691 = vld [vmem:[%s491 + $0x318] sm:$0xf]
        %v692 = vld [vmem:[%s491 + $0x31c] sm:$0xf]
        %v693 = vld [vmem:[%s491 + $0x320] sm:$0xf]
        %v694 = vld [vmem:[%s491 + $0x324] sm:$0xf]
        %v695 = vld [vmem:[%s491 + $0x328] sm:$0xf]
        %v696 = vld [vmem:[%s491 + $0x32c] sm:$0xf]
        %v697 = vld [vmem:[%s491 + $0x330] sm:$0xf]
        %v698 = vld [vmem:[%s491 + $0x334] sm:$0xf]
        %v699 = vld [vmem:[%s491 + $0x338] sm:$0xf]
        %v700 = vld [vmem:[%s491 + $0x33c] sm:$0xf]
        %v701 = vld [vmem:[%s491 + $0x340] sm:$0xf]
        %v702 = vld [vmem:[%s491 + $0x344] sm:$0xf]
        %v703 = vld [vmem:[%s491 + $0x348] sm:$0xf]
        %v704 = vld [vmem:[%s491 + $0x34c] sm:$0xf]
        %v705 = vld [vmem:[%s491 + $0x350] sm:$0xf]
        %v706 = vld [vmem:[%s491 + $0x354] sm:$0xf]
        %v707 = vld [vmem:[%s491 + $0x358] sm:$0xf]
        %v708 = vld [vmem:[%s491 + $0x35c] sm:$0xf]
        %v709 = vld [vmem:[%s491 + $0x360] sm:$0xf]
        %v710 = vld [vmem:[%s491 + $0x364] sm:$0xf]
        %v711 = vld [vmem:[%s491 + $0x368] sm:$0xf]
        %v712 = vld [vmem:[%s491 + $0x36c] sm:$0xf]
        %v713 = vld [vmem:[%s491 + $0x370] sm:$0xf]
        %v714 = vld [vmem:[%s491 + $0x374] sm:$0xf]
        %v715 = vld [vmem:[%s491 + $0x378] sm:$0xf]
        %v716 = vld [vmem:[%s491 + $0x37c] sm:$0xf]
        %v717 = vld [vmem:[%s491 + $0x380] sm:$0xf]
        %v718 = vld [vmem:[%s491 + $0x384] sm:$0xf]
        %v719 = vld [vmem:[%s491 + $0x388] sm:$0xf]
        %v720 = vld [vmem:[%s491 + $0x38c] sm:$0xf]
        %v721 = vld [vmem:[%s491 + $0x390] sm:$0xf]
        %v722 = vld [vmem:[%s491 + $0x394] sm:$0xf]
        %v723 = vld [vmem:[%s491 + $0x398] sm:$0xf]
        %v724 = vld [vmem:[%s491 + $0x39c] sm:$0xf]
        %v725 = vld [vmem:[%s491 + $0x3a0] sm:$0xf]
        %v726 = vld [vmem:[%s491 + $0x3a4] sm:$0xf]
        %v727 = vld [vmem:[%s491 + $0x3a8] sm:$0xf]
        %v728 = vld [vmem:[%s491 + $0x3ac] sm:$0xf]
        %v729 = vld [vmem:[%s491 + $0x3b0] sm:$0xf]
        %v730 = vld [vmem:[%s491 + $0x3b4] sm:$0xf]
        %v731 = vld [vmem:[%s491 + $0x3b8] sm:$0xf]
        %v732 = vld [vmem:[%s491 + $0x3bc] sm:$0xf]
        %v733 = vld [vmem:[%s491 + $0x3c0] sm:$0xf]
        %v734 = vld [vmem:[%s491 + $0x3c4] sm:$0xf]
        %v735 = vld [vmem:[%s491 + $0x3c8] sm:$0xf]
        %v736 = vld [vmem:[%s491 + $0x3cc] sm:$0xf]
        %v737 = vld [vmem:[%s491 + $0x3d0] sm:$0xf]
        %v738 = vld [vmem:[%s491 + $0x3d4] sm:$0xf]
        %v739 = vld [vmem:[%s491 + $0x3d8] sm:$0xf]
        %v740 = vld [vmem:[%s491 + $0x3dc] sm:$0xf]
        %v741 = vld [vmem:[%s491 + $0x3e0] sm:$0xf]
        %v742 = vld [vmem:[%s491 + $0x3e4] sm:$0xf]
        %v743 = vld [vmem:[%s491 + $0x3e8] sm:$0xf]
        %v744 = vld [vmem:[%s491 + $0x3ec] sm:$0xf]
        %v745 = vld [vmem:[%s491 + $0x3f0] sm:$0xf]
        %v746 = vld [vmem:[%s491 + $0x3f4] sm:$0xf]
        %v747 = vld [vmem:[%s491 + $0x3f8] sm:$0xf]
        %v748 = vld [vmem:[%s491 + $0x3fc] sm:$0xf]
        %v749 = vld [vmem:[%s491 + $0x400] sm:$0xf]
        %v750 = vld [vmem:[%s491 + $0x404] sm:$0xf]
        %v751 = vld [vmem:[%s491 + $0x408] sm:$0xf]
        %v752 = vld [vmem:[%s491 + $0x40c] sm:$0xf]
        %v753 = vld [vmem:[%s491 + $0x410] sm:$0xf]
        %v754 = vld [vmem:[%s491 + $0x414] sm:$0xf]
        %v755 = vld [vmem:[%s491 + $0x418] sm:$0xf]
        %v756 = vld [vmem:[%s491 + $0x41c] sm:$0xf]
        %v757 = vld [vmem:[%s491 + $0x420] sm:$0x3]
        %v758 = vld [vmem:[%s1] sm:$0xf]
        %v759 = vld [vmem:[%s1 + $0x4] sm:$0xf]
        %v760 = vld [vmem:[%s1 + $0x8] sm:$0xf]
        %v761 = vld [vmem:[%s1 + $0xc] sm:$0x3]
        %v762 = vld [vmem:[%s2] sm:$0x1]
        %v764 = vperm.slane %v762, 0
        %v1031 = vunpack.c.l.b16 %v493
        %v1032 = vunpack.c.l.b16 %v494
        %v1033 = vunpack.c.l.b16 %v495
        %v1034 = vunpack.c.l.b16 %v496
        %v1035 = vunpack.c.l.b16 %v497
        %v1036 = vunpack.c.l.b16 %v498
        %v1037 = vunpack.c.l.b16 %v499
        %v1038 = vunpack.c.l.b16 %v500
        %v1039 = vunpack.c.l.b16 %v501
        %v1040 = vunpack.c.l.b16 %v502
        %v1041 = vunpack.c.l.b16 %v503
        %v1042 = vunpack.c.l.b16 %v504
        %v1043 = vunpack.c.l.b16 %v505
        %v1044 = vunpack.c.l.b16 %v506
        %v1045 = vunpack.c.l.b16 %v507
        %v1046 = vunpack.c.l.b16 %v508
        %v1047 = vunpack.c.l.b16 %v509
        %v1048 = vunpack.c.l.b16 %v510
        %v1049 = vunpack.c.l.b16 %v511
        %v1050 = vunpack.c.l.b16 %v512
        %v1051 = vunpack.c.l.b16 %v513
        %v1052 = vunpack.c.l.b16 %v514
        %v1053 = vunpack.c.l.b16 %v515
        %v1054 = vunpack.c.l.b16 %v516
        %v1055 = vunpack.c.l.b16 %v517
        %v1056 = vunpack.c.l.b16 %v518
        %v1057 = vunpack.c.l.b16 %v519
        %v1058 = vunpack.c.l.b16 %v520
        %v1059 = vunpack.c.l.b16 %v521
        %v1060 = vunpack.c.l.b16 %v522
        %v1061 = vunpack.c.l.b16 %v523
        %v1062 = vunpack.c.l.b16 %v524
        %v1063 = vunpack.c.l.b16 %v525
        %v1064 = vunpack.c.l.b16 %v526
        %v1065 = vunpack.c.l.b16 %v527
        %v1066 = vunpack.c.l.b16 %v528
        %v1067 = vunpack.c.l.b16 %v529
        %v1068 = vunpack.c.l.b16 %v530
        %v1069 = vunpack.c.l.b16 %v531
        %v1070 = vunpack.c.l.b16 %v532
        %v1071 = vunpack.c.l.b16 %v533
        %v1072 = vunpack.c.l.b16 %v534
        %v1073 = vunpack.c.l.b16 %v535
        %v1074 = vunpack.c.l.b16 %v536
        %v1075 = vunpack.c.l.b16 %v537
        %v1076 = vunpack.c.l.b16 %v538
        %v1077 = vunpack.c.l.b16 %v539
        %v1078 = vunpack.c.l.b16 %v540
        %v1079 = vunpack.c.l.b16 %v541
        %v1080 = vunpack.c.l.b16 %v542
        %v1081 = vunpack.c.l.b16 %v543
        %v1082 = vunpack.c.l.b16 %v544
        %v1083 = vunpack.c.l.b16 %v545
        %v1084 = vunpack.c.l.b16 %v546
        %v1085 = vunpack.c.l.b16 %v547
        %v1086 = vunpack.c.l.b16 %v548
        %v1087 = vunpack.c.l.b16 %v549
        %v1088 = vunpack.c.l.b16 %v550
        %v1089 = vunpack.c.l.b16 %v551
        %v1090 = vunpack.c.l.b16 %v552
        %v1091 = vunpack.c.l.b16 %v553
        %v1092 = vunpack.c.l.b16 %v554
        %v1093 = vunpack.c.l.b16 %v555
        %v1094 = vunpack.c.l.b16 %v556
        %v1095 = vunpack.c.l.b16 %v557
        %v1096 = vunpack.c.l.b16 %v558
        %v1097 = vunpack.c.l.b16 %v559
        %v1098 = vunpack.c.l.b16 %v560
        %v1099 = vunpack.c.l.b16 %v561
        %v1100 = vunpack.c.l.b16 %v562
        %v1101 = vunpack.c.l.b16 %v563
        %v1102 = vunpack.c.l.b16 %v564
        %v1103 = vunpack.c.l.b16 %v565
        %v1104 = vunpack.c.l.b16 %v566
        %v1105 = vunpack.c.l.b16 %v567
        %v1106 = vunpack.c.l.b16 %v568
        %v1107 = vunpack.c.l.b16 %v569
        %v1108 = vunpack.c.l.b16 %v570
        %v1109 = vunpack.c.l.b16 %v571
        %v1110 = vunpack.c.l.b16 %v572
        %v1111 = vunpack.c.l.b16 %v573
        %v1112 = vunpack.c.l.b16 %v574
        %v1113 = vunpack.c.l.b16 %v575
        %v1114 = vunpack.c.l.b16 %v576
        %v1115 = vunpack.c.l.b16 %v577
        %v1116 = vunpack.c.l.b16 %v578
        %v1117 = vunpack.c.l.b16 %v579
        %v1118 = vunpack.c.l.b16 %v580
        %v1119 = vunpack.c.l.b16 %v581
        %v1120 = vunpack.c.l.b16 %v582
        %v1121 = vunpack.c.l.b16 %v583
        %v1122 = vunpack.c.l.b16 %v584
        %v1123 = vunpack.c.l.b16 %v585
        %v1124 = vunpack.c.l.b16 %v586
        %v1125 = vunpack.c.l.b16 %v587
        %v1126 = vunpack.c.l.b16 %v588
        %v1127 = vunpack.c.l.b16 %v589
        %v1128 = vunpack.c.l.b16 %v590
        %v1129 = vunpack.c.l.b16 %v591
        %v1130 = vunpack.c.l.b16 %v592
        %v1131 = vunpack.c.l.b16 %v593
        %v1132 = vunpack.c.l.b16 %v594
        %v1133 = vunpack.c.l.b16 %v595
        %v1134 = vunpack.c.l.b16 %v596
        %v1135 = vunpack.c.l.b16 %v597
        %v1136 = vunpack.c.l.b16 %v598
        %v1137 = vunpack.c.l.b16 %v599
        %v1138 = vunpack.c.l.b16 %v600
        %v1139 = vunpack.c.l.b16 %v601
        %v1140 = vunpack.c.l.b16 %v602
        %v1141 = vunpack.c.l.b16 %v603
        %v1142 = vunpack.c.l.b16 %v604
        %v1143 = vunpack.c.l.b16 %v605
        %v1144 = vunpack.c.l.b16 %v606
        %v1145 = vunpack.c.l.b16 %v607
        %v1146 = vunpack.c.l.b16 %v608
        %v1147 = vunpack.c.l.b16 %v609
        %v1148 = vunpack.c.l.b16 %v610
        %v1149 = vunpack.c.l.b16 %v611
        %v1150 = vunpack.c.l.b16 %v612
        %v1151 = vunpack.c.l.b16 %v613
        %v1152 = vunpack.c.l.b16 %v614
        %v1153 = vunpack.c.l.b16 %v615
        %v1154 = vunpack.c.l.b16 %v616
        %v1155 = vunpack.c.l.b16 %v617
        %v1156 = vunpack.c.l.b16 %v618
        %v1157 = vunpack.c.l.b16 %v619
        %v1158 = vunpack.c.l.b16 %v620
        %v1159 = vunpack.c.l.b16 %v621
        %v1160 = vunpack.c.l.b16 %v622
        %v1161 = vunpack.c.l.b16 %v623
        %v1162 = vunpack.c.l.b16 %v624
        %v1163 = vunpack.c.l.b16 %v625
        %v1164 = vunpack.c.l.b16 %v626
        %v1165 = vunpack.c.l.b16 %v627
        %v1166 = vunpack.c.l.b16 %v628
        %v1167 = vunpack.c.l.b16 %v629
        %v1168 = vunpack.c.l.b16 %v630
        %v1169 = vunpack.c.l.b16 %v631
        %v1170 = vunpack.c.l.b16 %v632
        %v1171 = vunpack.c.l.b16 %v633
        %v1172 = vunpack.c.l.b16 %v634
        %v1173 = vunpack.c.l.b16 %v635
        %v1174 = vunpack.c.l.b16 %v636
        %v1175 = vunpack.c.l.b16 %v637
        %v1176 = vunpack.c.l.b16 %v638
        %v1177 = vunpack.c.l.b16 %v639
        %v1178 = vunpack.c.l.b16 %v640
        %v1179 = vunpack.c.l.b16 %v641
        %v1180 = vunpack.c.l.b16 %v642
        %v1181 = vunpack.c.l.b16 %v643
        %v1182 = vunpack.c.l.b16 %v644
        %v1183 = vunpack.c.l.b16 %v645
        %v1184 = vunpack.c.l.b16 %v646
        %v1185 = vunpack.c.l.b16 %v647
        %v1186 = vunpack.c.l.b16 %v648
        %v1187 = vunpack.c.l.b16 %v649
        %v1188 = vunpack.c.l.b16 %v650
        %v1189 = vunpack.c.l.b16 %v651
        %v1190 = vunpack.c.l.b16 %v652
        %v1191 = vunpack.c.l.b16 %v653
        %v1192 = vunpack.c.l.b16 %v654
        %v1193 = vunpack.c.l.b16 %v655
        %v1194 = vunpack.c.l.b16 %v656
        %v1195 = vunpack.c.l.b16 %v657
        %v1196 = vunpack.c.l.b16 %v658
        %v1197 = vunpack.c.l.b16 %v659
        %v1198 = vunpack.c.l.b16 %v660
        %v1199 = vunpack.c.l.b16 %v661
        %v1200 = vunpack.c.l.b16 %v662
        %v1201 = vunpack.c.l.b16 %v663
        %v1202 = vunpack.c.l.b16 %v664
        %v1203 = vunpack.c.l.b16 %v665
        %v1204 = vunpack.c.l.b16 %v666
        %v1205 = vunpack.c.l.b16 %v667
        %v1206 = vunpack.c.l.b16 %v668
        %v1207 = vunpack.c.l.b16 %v669
        %v1208 = vunpack.c.l.b16 %v670
        %v1209 = vunpack.c.l.b16 %v671
        %v1210 = vunpack.c.l.b16 %v672
        %v1211 = vunpack.c.l.b16 %v673
        %v1212 = vunpack.c.l.b16 %v674
        %v1213 = vunpack.c.l.b16 %v675
        %v1214 = vunpack.c.l.b16 %v676
        %v1215 = vunpack.c.l.b16 %v677
        %v1216 = vunpack.c.l.b16 %v678
        %v1217 = vunpack.c.l.b16 %v679
        %v1218 = vunpack.c.l.b16 %v680
        %v1219 = vunpack.c.l.b16 %v681
        %v1220 = vunpack.c.l.b16 %v682
        %v1221 = vunpack.c.l.b16 %v683
        %v1222 = vunpack.c.l.b16 %v684
        %v1223 = vunpack.c.l.b16 %v685
        %v1224 = vunpack.c.l.b16 %v686
        %v1225 = vunpack.c.l.b16 %v687
        %v1226 = vunpack.c.l.b16 %v688
        %v1227 = vunpack.c.l.b16 %v689
        %v1228 = vunpack.c.l.b16 %v690
        %v1229 = vunpack.c.l.b16 %v691
        %v1230 = vunpack.c.l.b16 %v692
        %v1231 = vunpack.c.l.b16 %v693
        %v1232 = vunpack.c.l.b16 %v694
        %v1233 = vunpack.c.l.b16 %v695
        %v1234 = vunpack.c.l.b16 %v696
        %v1235 = vunpack.c.l.b16 %v697
        %v1236 = vunpack.c.l.b16 %v698
        %v1237 = vunpack.c.l.b16 %v699
        %v1238 = vunpack.c.l.b16 %v700
        %v1239 = vunpack.c.l.b16 %v701
        %v1240 = vunpack.c.l.b16 %v702
        %v1241 = vunpack.c.l.b16 %v703
        %v1242 = vunpack.c.l.b16 %v704
        %v1243 = vunpack.c.l.b16 %v705
        %v1244 = vunpack.c.l.b16 %v706
        %v1245 = vunpack.c.l.b16 %v707
        %v1246 = vunpack.c.l.b16 %v708
        %v1247 = vunpack.c.l.b16 %v709
        %v1248 = vunpack.c.l.b16 %v710
        %v1249 = vunpack.c.l.b16 %v711
        %v1250 = vunpack.c.l.b16 %v712
        %v1251 = vunpack.c.l.b16 %v713
        %v1252 = vunpack.c.l.b16 %v714
        %v1253 = vunpack.c.l.b16 %v715
        %v1254 = vunpack.c.l.b16 %v716
        %v1255 = vunpack.c.l.b16 %v717
        %v1256 = vunpack.c.l.b16 %v718
        %v1257 = vunpack.c.l.b16 %v719
        %v1258 = vunpack.c.l.b16 %v720
        %v1259 = vunpack.c.l.b16 %v721
        %v1260 = vunpack.c.l.b16 %v722
        %v1261 = vunpack.c.l.b16 %v723
        %v1262 = vunpack.c.l.b16 %v724
        %v1263 = vunpack.c.l.b16 %v725
        %v1264 = vunpack.c.l.b16 %v726
        %v1265 = vunpack.c.l.b16 %v727
        %v1266 = vunpack.c.l.b16 %v728
        %v1267 = vunpack.c.l.b16 %v729
        %v1268 = vunpack.c.l.b16 %v730
        %v1269 = vunpack.c.l.b16 %v731
        %v1270 = vunpack.c.l.b16 %v732
        %v1271 = vunpack.c.l.b16 %v733
        %v1272 = vunpack.c.l.b16 %v734
        %v1273 = vunpack.c.l.b16 %v735
        %v1274 = vunpack.c.l.b16 %v736
        %v1275 = vunpack.c.l.b16 %v737
        %v1276 = vunpack.c.l.b16 %v738
        %v1277 = vunpack.c.l.b16 %v739
        %v1278 = vunpack.c.l.b16 %v740
        %v1279 = vunpack.c.l.b16 %v741
        %v1280 = vunpack.c.l.b16 %v742
        %v1281 = vunpack.c.l.b16 %v743
        %v1282 = vunpack.c.l.b16 %v744
        %v1283 = vunpack.c.l.b16 %v745
        %v1284 = vunpack.c.l.b16 %v746
        %v1285 = vunpack.c.l.b16 %v747
        %v1286 = vunpack.c.l.b16 %v748
        %v1287 = vunpack.c.l.b16 %v749
        %v1288 = vunpack.c.l.b16 %v750
        %v1289 = vunpack.c.l.b16 %v751
        %v1290 = vunpack.c.l.b16 %v752
        %v1291 = vunpack.c.l.b16 %v753
        %v1292 = vunpack.c.l.b16 %v754
        %v1293 = vunpack.c.l.b16 %v755
        %v1294 = vunpack.c.l.b16 %v756
        %v1295 = vunpack.c.l.b16 %v757
        %v1296 = vpack.c.b16 %v1032, %v1031
        %v1297 = vpack.c.b16 %v1034, %v1033
        %v1298 = vpack.c.b16 %v1036, %v1035
        %v1299 = vpack.c.b16 %v1038, %v1037
        %v1300 = vpack.c.b16 %v1040, %v1039
        %v1301 = vpack.c.b16 %v1042, %v1041
        %v1302 = vpack.c.b16 %v1044, %v1043
        %v1303 = vpack.c.b16 %v1046, %v1045
        %v1304 = vpack.c.b16 %v1048, %v1047
        %v1305 = vpack.c.b16 %v1050, %v1049
        %v1306 = vpack.c.b16 %v1052, %v1051
        %v1307 = vpack.c.b16 %v1054, %v1053
        %v1308 = vpack.c.b16 %v1056, %v1055
        %v1309 = vpack.c.b16 %v1058, %v1057
        %v1310 = vpack.c.b16 %v1060, %v1059
        %v1311 = vpack.c.b16 %v1062, %v1061
        %v1312 = vpack.c.b16 %v1064, %v1063
        %v1313 = vpack.c.b16 %v1066, %v1065
        %v1314 = vpack.c.b16 %v1068, %v1067
        %v1315 = vpack.c.b16 %v1070, %v1069
        %v1316 = vpack.c.b16 %v1072, %v1071
        %v1317 = vpack.c.b16 %v1074, %v1073
        %v1318 = vpack.c.b16 %v1076, %v1075
        %v1319 = vpack.c.b16 %v1078, %v1077
        %v1320 = vpack.c.b16 %v1080, %v1079
        %v1321 = vpack.c.b16 %v1082, %v1081
        %v1322 = vpack.c.b16 %v1084, %v1083
        %v1323 = vpack.c.b16 %v1086, %v1085
        %v1324 = vpack.c.b16 %v1088, %v1087
        %v1325 = vpack.c.b16 %v1090, %v1089
        %v1326 = vpack.c.b16 %v1092, %v1091
        %v1327 = vpack.c.b16 %v1094, %v1093
        %v1328 = vpack.c.b16 %v1096, %v1095
        %v1329 = vpack.c.b16 %v1098, %v1097
        %v1330 = vpack.c.b16 %v1100, %v1099
        %v1331 = vpack.c.b16 %v1102, %v1101
        %v1332 = vpack.c.b16 %v1104, %v1103
        %v1333 = vpack.c.b16 %v1106, %v1105
        %v1334 = vpack.c.b16 %v1108, %v1107
        %v1335 = vpack.c.b16 %v1110, %v1109
        %v1336 = vpack.c.b16 %v1112, %v1111
        %v1337 = vpack.c.b16 %v1114, %v1113
        %v1338 = vpack.c.b16 %v1116, %v1115
        %v1339 = vpack.c.b16 %v1118, %v1117
        %v1340 = vpack.c.b16 %v1120, %v1119
        %v1341 = vpack.c.b16 %v1122, %v1121
        %v1342 = vpack.c.b16 %v1124, %v1123
        %v1343 = vpack.c.b16 %v1126, %v1125
        %v1344 = vpack.c.b16 %v1128, %v1127
        %v1345 = vpack.c.b16 %v1130, %v1129
        %v1346 = vpack.c.b16 %v1132, %v1131
        %v1347 = vpack.c.b16 %v1134, %v1133
        %v1348 = vpack.c.b16 %v1136, %v1135
        %v1349 = vpack.c.b16 %v1138, %v1137
        %v1350 = vpack.c.b16 %v1140, %v1139
        %v1351 = vpack.c.b16 %v1142, %v1141
        %v1352 = vpack.c.b16 %v1144, %v1143
        %v1353 = vpack.c.b16 %v1146, %v1145
        %v1354 = vpack.c.b16 %v1148, %v1147
        %v1355 = vpack.c.b16 %v1150, %v1149
        %v1356 = vpack.c.b16 %v1152, %v1151
        %v1357 = vpack.c.b16 %v1154, %v1153
        %v1358 = vpack.c.b16 %v1156, %v1155
        %v1359 = vpack.c.b16 %v1158, %v1157
        %v1360 = vpack.c.b16 %v1160, %v1159
        %v1361 = vpack.c.b16 %v1162, %v1161
        %v1362 = vpack.c.b16 %v1164, %v1163
        %v1363 = vpack.c.b16 %v1166, %v1165
        %v1364 = vpack.c.b16 %v1168, %v1167
        %v1365 = vpack.c.b16 %v1170, %v1169
        %v1366 = vpack.c.b16 %v1172, %v1171
        %v1367 = vpack.c.b16 %v1174, %v1173
        %v1368 = vpack.c.b16 %v1176, %v1175
        %v1369 = vpack.c.b16 %v1178, %v1177
        %v1370 = vpack.c.b16 %v1180, %v1179
        %v1371 = vpack.c.b16 %v1182, %v1181
        %v1372 = vpack.c.b16 %v1184, %v1183
        %v1373 = vpack.c.b16 %v1186, %v1185
        %v1374 = vpack.c.b16 %v1188, %v1187
        %v1375 = vpack.c.b16 %v1190, %v1189
        %v1376 = vpack.c.b16 %v1192, %v1191
        %v1377 = vpack.c.b16 %v1194, %v1193
        %v1378 = vpack.c.b16 %v1196, %v1195
        %v1379 = vpack.c.b16 %v1198, %v1197
        %v1380 = vpack.c.b16 %v1200, %v1199
        %v1381 = vpack.c.b16 %v1202, %v1201
        %v1382 = vpack.c.b16 %v1204, %v1203
        %v1383 = vpack.c.b16 %v1206, %v1205
        %v1384 = vpack.c.b16 %v1208, %v1207
        %v1385 = vpack.c.b16 %v1210, %v1209
        %v1386 = vpack.c.b16 %v1212, %v1211
        %v1387 = vpack.c.b16 %v1214, %v1213
        %v1388 = vpack.c.b16 %v1216, %v1215
        %v1389 = vpack.c.b16 %v1218, %v1217
        %v1390 = vpack.c.b16 %v1220, %v1219
        %v1391 = vpack.c.b16 %v1222, %v1221
        %v1392 = vpack.c.b16 %v1224, %v1223
        %v1393 = vpack.c.b16 %v1226, %v1225
        %v1394 = vpack.c.b16 %v1228, %v1227
        %v1395 = vpack.c.b16 %v1230, %v1229
        %v1396 = vpack.c.b16 %v1232, %v1231
        %v1397 = vpack.c.b16 %v1234, %v1233
        %v1398 = vpack.c.b16 %v1236, %v1235
        %v1399 = vpack.c.b16 %v1238, %v1237
        %v1400 = vpack.c.b16 %v1240, %v1239
        %v1401 = vpack.c.b16 %v1242, %v1241
        %v1402 = vpack.c.b16 %v1244, %v1243
        %v1403 = vpack.c.b16 %v1246, %v1245
        %v1404 = vpack.c.b16 %v1248, %v1247
        %v1405 = vpack.c.b16 %v1250, %v1249
        %v1406 = vpack.c.b16 %v1252, %v1251
        %v1407 = vpack.c.b16 %v1254, %v1253
        %v1408 = vpack.c.b16 %v1256, %v1255
        %v1409 = vpack.c.b16 %v1258, %v1257
        %v1410 = vpack.c.b16 %v1260, %v1259
        %v1411 = vpack.c.b16 %v1262, %v1261
        %v1412 = vpack.c.b16 %v1264, %v1263
        %v1413 = vpack.c.b16 %v1266, %v1265
        %v1414 = vpack.c.b16 %v1268, %v1267
        %v1415 = vpack.c.b16 %v1270, %v1269
        %v1416 = vpack.c.b16 %v1272, %v1271
        %v1417 = vpack.c.b16 %v1274, %v1273
        %v1418 = vpack.c.b16 %v1276, %v1275
        %v1419 = vpack.c.b16 %v1278, %v1277
        %v1420 = vpack.c.b16 %v1280, %v1279
        %v1421 = vpack.c.b16 %v1282, %v1281
        %v1422 = vpack.c.b16 %v1284, %v1283
        %v1423 = vpack.c.b16 %v1286, %v1285
        %v1424 = vpack.c.b16 %v1288, %v1287
        %v1425 = vpack.c.b16 %v1290, %v1289
        %v1426 = vpack.c.b16 %v1292, %v1291
        %v1427 = vpack.c.b16 %v1294, %v1293
        %v1428 = vpack.c.b16 %v1295, %v1295
        %v1433 = vunpack.c.l.b16 %v758
        %v1434 = vunpack.c.l.b16 %v759
        %v1435 = vunpack.c.l.b16 %v760
        %v1436 = vunpack.c.l.b16 %v761
        %v1437 = vpack.c.b16 %v1434, %v1433
        %v1438 = vpack.c.b16 %v1436, %v1435
        %vm1440 = vcmask 220160
        %v1442 = vsel %vm1440, %v1296, 0
        %v1445 = vsel %vm1440, %v1297, 0
        %v1448 = vsel %vm1440, %v1298, 0
        %v1451 = vsel %vm1440, %v1299, 0
        %v1454 = vsel %vm1440, %v1300, 0
        %v1457 = vsel %vm1440, %v1301, 0
        %v1460 = vsel %vm1440, %v1302, 0
        %v1463 = vsel %vm1440, %v1303, 0
        %v1466 = vsel %vm1440, %v1304, 0
        %v1469 = vsel %vm1440, %v1305, 0
        %v1472 = vsel %vm1440, %v1306, 0
        %v1475 = vsel %vm1440, %v1307, 0
        %v1478 = vsel %vm1440, %v1308, 0
        %v1481 = vsel %vm1440, %v1309, 0
        %v1484 = vsel %vm1440, %v1310, 0
        %v1487 = vsel %vm1440, %v1311, 0
        %v1490 = vsel %vm1440, %v1312, 0
        %v1493 = vsel %vm1440, %v1313, 0
        %v1496 = vsel %vm1440, %v1314, 0
        %v1499 = vsel %vm1440, %v1315, 0
        %v1502 = vsel %vm1440, %v1316, 0
        %v1505 = vsel %vm1440, %v1317, 0
        %v1508 = vsel %vm1440, %v1318, 0
        %v1511 = vsel %vm1440, %v1319, 0
        %v1514 = vsel %vm1440, %v1320, 0
        %v1517 = vsel %vm1440, %v1321, 0
        %v1520 = vsel %vm1440, %v1322, 0
        %v1523 = vsel %vm1440, %v1323, 0
        %v1526 = vsel %vm1440, %v1324, 0
        %v1529 = vsel %vm1440, %v1325, 0
        %v1532 = vsel %vm1440, %v1326, 0
        %v1535 = vsel %vm1440, %v1327, 0
        %v1538 = vsel %vm1440, %v1328, 0
        %v1541 = vsel %vm1440, %v1329, 0
        %v1544 = vsel %vm1440, %v1330, 0
        %v1547 = vsel %vm1440, %v1331, 0
        %v1550 = vsel %vm1440, %v1332, 0
        %v1553 = vsel %vm1440, %v1333, 0
        %v1556 = vsel %vm1440, %v1334, 0
        %v1559 = vsel %vm1440, %v1335, 0
        %v1562 = vsel %vm1440, %v1336, 0
        %v1565 = vsel %vm1440, %v1337, 0
        %v1568 = vsel %vm1440, %v1338, 0
        %v1571 = vsel %vm1440, %v1339, 0
        %v1574 = vsel %vm1440, %v1340, 0
        %v1577 = vsel %vm1440, %v1341, 0
        %v1580 = vsel %vm1440, %v1342, 0
        %v1583 = vsel %vm1440, %v1343, 0
        %v1586 = vsel %vm1440, %v1344, 0
        %v1589 = vsel %vm1440, %v1345, 0
        %v1592 = vsel %vm1440, %v1346, 0
        %v1595 = vsel %vm1440, %v1347, 0
        %v1598 = vsel %vm1440, %v1348, 0
        %v1601 = vsel %vm1440, %v1349, 0
        %v1604 = vsel %vm1440, %v1350, 0
        %v1607 = vsel %vm1440, %v1351, 0
        %v1610 = vsel %vm1440, %v1352, 0
        %v1613 = vsel %vm1440, %v1353, 0
        %v1616 = vsel %vm1440, %v1354, 0
        %v1619 = vsel %vm1440, %v1355, 0
        %v1622 = vsel %vm1440, %v1356, 0
        %v1625 = vsel %vm1440, %v1357, 0
        %v1628 = vsel %vm1440, %v1358, 0
        %v1631 = vsel %vm1440, %v1359, 0
        %v1634 = vsel %vm1440, %v1360, 0
        %v1637 = vsel %vm1440, %v1361, 0
        %v1640 = vsel %vm1440, %v1362, 0
        %v1643 = vsel %vm1440, %v1363, 0
        %v1646 = vsel %vm1440, %v1364, 0
        %v1649 = vsel %vm1440, %v1365, 0
        %v1652 = vsel %vm1440, %v1366, 0
        %v1655 = vsel %vm1440, %v1367, 0
        %v1658 = vsel %vm1440, %v1368, 0
        %v1661 = vsel %vm1440, %v1369, 0
        %v1664 = vsel %vm1440, %v1370, 0
        %v1667 = vsel %vm1440, %v1371, 0
        %v1670 = vsel %vm1440, %v1372, 0
        %v1673 = vsel %vm1440, %v1373, 0
        %v1676 = vsel %vm1440, %v1374, 0
        %v1679 = vsel %vm1440, %v1375, 0
        %v1682 = vsel %vm1440, %v1376, 0
        %v1685 = vsel %vm1440, %v1377, 0
        %v1688 = vsel %vm1440, %v1378, 0
        %v1691 = vsel %vm1440, %v1379, 0
        %v1694 = vsel %vm1440, %v1380, 0
        %v1697 = vsel %vm1440, %v1381, 0
        %v1700 = vsel %vm1440, %v1382, 0
        %v1703 = vsel %vm1440, %v1383, 0
        %v1706 = vsel %vm1440, %v1384, 0
        %v1709 = vsel %vm1440, %v1385, 0
        %v1712 = vsel %vm1440, %v1386, 0
        %v1715 = vsel %vm1440, %v1387, 0
        %v1718 = vsel %vm1440, %v1388, 0
        %v1721 = vsel %vm1440, %v1389, 0
        %v1724 = vsel %vm1440, %v1390, 0
        %v1727 = vsel %vm1440, %v1391, 0
        %v1730 = vsel %vm1440, %v1392, 0
        %v1733 = vsel %vm1440, %v1393, 0
        %v1736 = vsel %vm1440, %v1394, 0
        %v1739 = vsel %vm1440, %v1395, 0
        %v1742 = vsel %vm1440, %v1396, 0
        %v1745 = vsel %vm1440, %v1397, 0
        %v1748 = vsel %vm1440, %v1398, 0
        %v1751 = vsel %vm1440, %v1399, 0
        %v1754 = vsel %vm1440, %v1400, 0
        %v1757 = vsel %vm1440, %v1401, 0
        %v1760 = vsel %vm1440, %v1402, 0
        %v1763 = vsel %vm1440, %v1403, 0
        %v1766 = vsel %vm1440, %v1404, 0
        %v1769 = vsel %vm1440, %v1405, 0
        %v1772 = vsel %vm1440, %v1406, 0
        %v1775 = vsel %vm1440, %v1407, 0
        %v1778 = vsel %vm1440, %v1408, 0
        %v1781 = vsel %vm1440, %v1409, 0
        %v1784 = vsel %vm1440, %v1410, 0
        %v1787 = vsel %vm1440, %v1411, 0
        %v1790 = vsel %vm1440, %v1412, 0
        %v1793 = vsel %vm1440, %v1413, 0
        %v1796 = vsel %vm1440, %v1414, 0
        %v1799 = vsel %vm1440, %v1415, 0
        %v1802 = vsel %vm1440, %v1416, 0
        %v1805 = vsel %vm1440, %v1417, 0
        %v1808 = vsel %vm1440, %v1418, 0
        %v1811 = vsel %vm1440, %v1419, 0
        %v1814 = vsel %vm1440, %v1420, 0
        %v1817 = vsel %vm1440, %v1421, 0
        %v1820 = vsel %vm1440, %v1422, 0
        %v1823 = vsel %vm1440, %v1423, 0
        %v1826 = vsel %vm1440, %v1424, 0
        %v1829 = vsel %vm1440, %v1425, 0
        %v1832 = vsel %vm1440, %v1426, 0
        %v1835 = vsel %vm1440, %v1427, 0
        %v1838 = vsel %vm1440, %v1428, 0
        %vm1840 = vcmask 1044480
        %vm1841 = vcmask 1045504
        %v1842 = vsel %vm1840, 4294967295, 65535
        %v1843 = vsel %vm1841, %v1842, 0
        %v1845 = vand.u32 %v1438, %v1843
        %1847 = vmatpush.bf16.msra.mxu0 0
        %1848 = vmatpush.bf16.msra.mxu0 0
        %1849 = vmatpush.bf16.msra.mxu0 0
        %1850 = vmatpush.bf16.msra.mxu0 0
        %1851 = vmatpush.bf16.msra.mxu0 0
        %1852 = vmatpush.bf16.msra.mxu0 0
        %1853 = vmatpush.bf16.msra.mxu0 %v1845
        %1854 = vmatpush.bf16.msra.mxu0 %v1437
        %1855 = vmatmul.bf16.gmra.mxu0 %v1442
        %v1856 = vpop.f32.mrf.mxu0
        %v1857 = vadd.f32 %v764, %v1856
        %v1858 = vpop.f32.mrf.mxu0
        %v1859 = vadd.f32 %v764, %v1858
        %1860 = vmatmul.bf16.gmra.mxu0 %v1445
        %v1861 = vpop.f32.mrf.mxu0
        %v1862 = vadd.f32 %v764, %v1861
        %v1863 = vpop.f32.mrf.mxu0
        %v1864 = vadd.f32 %v764, %v1863
        %1865 = vmatmul.bf16.gmra.mxu0 %v1448
        %v1866 = vpop.f32.mrf.mxu0
        %v1867 = vadd.f32 %v764, %v1866
        %v1868 = vpop.f32.mrf.mxu0
        %v1869 = vadd.f32 %v764, %v1868
        %1870 = vmatmul.bf16.gmra.mxu0 %v1451
        %v1871 = vpop.f32.mrf.mxu0
        %v1872 = vadd.f32 %v764, %v1871
        %v1873 = vpop.f32.mrf.mxu0
        %v1874 = vadd.f32 %v764, %v1873
        %1875 = vmatmul.bf16.gmra.mxu0 %v1454
        %v1876 = vpop.f32.mrf.mxu0
        %v1877 = vadd.f32 %v764, %v1876
        %v1878 = vpop.f32.mrf.mxu0
        %v1879 = vadd.f32 %v764, %v1878
        %1880 = vmatmul.bf16.gmra.mxu0 %v1457
        %v1881 = vpop.f32.mrf.mxu0
        %v1882 = vadd.f32 %v764, %v1881
        %v1883 = vpop.f32.mrf.mxu0
        %v1884 = vadd.f32 %v764, %v1883
        %1885 = vmatmul.bf16.gmra.mxu0 %v1460
        %v1886 = vpop.f32.mrf.mxu0
        %v1887 = vadd.f32 %v764, %v1886
        %v1888 = vpop.f32.mrf.mxu0
        %v1889 = vadd.f32 %v764, %v1888
        %1890 = vmatmul.bf16.gmra.mxu0 %v1463
        %v1891 = vpop.f32.mrf.mxu0
        %v1892 = vadd.f32 %v764, %v1891
        %v1893 = vpop.f32.mrf.mxu0
        %v1894 = vadd.f32 %v764, %v1893
        %1895 = vmatmul.bf16.gmra.mxu0 %v1466
        %v1896 = vpop.f32.mrf.mxu0
        %v1897 = vadd.f32 %v764, %v1896
        %v1898 = vpop.f32.mrf.mxu0
        %v1899 = vadd.f32 %v764, %v1898
        %1900 = vmatmul.bf16.gmra.mxu0 %v1469
        %v1901 = vpop.f32.mrf.mxu0
        %v1902 = vadd.f32 %v764, %v1901
        %v1903 = vpop.f32.mrf.mxu0
        %v1904 = vadd.f32 %v764, %v1903
        %1905 = vmatmul.bf16.gmra.mxu0 %v1472
        %v1906 = vpop.f32.mrf.mxu0
        %v1907 = vadd.f32 %v764, %v1906
        %v1908 = vpop.f32.mrf.mxu0
        %v1909 = vadd.f32 %v764, %v1908
        %1910 = vmatmul.bf16.gmra.mxu0 %v1475
        %v1911 = vpop.f32.mrf.mxu0
        %v1912 = vadd.f32 %v764, %v1911
        %v1913 = vpop.f32.mrf.mxu0
        %v1914 = vadd.f32 %v764, %v1913
        %1915 = vmatmul.bf16.gmra.mxu0 %v1478
        %v1916 = vpop.f32.mrf.mxu0
        %v1917 = vadd.f32 %v764, %v1916
        %v1918 = vpop.f32.mrf.mxu0
        %v1919 = vadd.f32 %v764, %v1918
        %1920 = vmatmul.bf16.gmra.mxu0 %v1481
        %v1921 = vpop.f32.mrf.mxu0
        %v1922 = vadd.f32 %v764, %v1921
        %v1923 = vpop.f32.mrf.mxu0
        %v1924 = vadd.f32 %v764, %v1923
        %1925 = vmatmul.bf16.gmra.mxu0 %v1484
        %v1926 = vpop.f32.mrf.mxu0
        %v1927 = vadd.f32 %v764, %v1926
        %v1928 = vpop.f32.mrf.mxu0
        %v1929 = vadd.f32 %v764, %v1928
        %1930 = vmatmul.bf16.gmra.mxu0 %v1487
        %v1931 = vpop.f32.mrf.mxu0
        %v1932 = vadd.f32 %v764, %v1931
        %v1933 = vpop.f32.mrf.mxu0
        %v1934 = vadd.f32 %v764, %v1933
        %1935 = vmatmul.bf16.gmra.mxu0 %v1490
        %v1936 = vpop.f32.mrf.mxu0
        %v1937 = vadd.f32 %v764, %v1936
        %v1938 = vpop.f32.mrf.mxu0
        %v1939 = vadd.f32 %v764, %v1938
        %1940 = vmatmul.bf16.gmra.mxu0 %v1493
        %v1941 = vpop.f32.mrf.mxu0
        %v1942 = vadd.f32 %v764, %v1941
        %v1943 = vpop.f32.mrf.mxu0
        %v1944 = vadd.f32 %v764, %v1943
        %1945 = vmatmul.bf16.gmra.mxu0 %v1496
        %v1946 = vpop.f32.mrf.mxu0
        %v1947 = vadd.f32 %v764, %v1946
        %v1948 = vpop.f32.mrf.mxu0
        %v1949 = vadd.f32 %v764, %v1948
        %1950 = vmatmul.bf16.gmra.mxu0 %v1499
        %v1951 = vpop.f32.mrf.mxu0
        %v1952 = vadd.f32 %v764, %v1951
        %v1953 = vpop.f32.mrf.mxu0
        %v1954 = vadd.f32 %v764, %v1953
        %1955 = vmatmul.bf16.gmra.mxu0 %v1502
        %v1956 = vpop.f32.mrf.mxu0
        %v1957 = vadd.f32 %v764, %v1956
        %v1958 = vpop.f32.mrf.mxu0
        %v1959 = vadd.f32 %v764, %v1958
        %1960 = vmatmul.bf16.gmra.mxu0 %v1505
        %v1961 = vpop.f32.mrf.mxu0
        %v1962 = vadd.f32 %v764, %v1961
        %v1963 = vpop.f32.mrf.mxu0
        %v1964 = vadd.f32 %v764, %v1963
        %1965 = vmatmul.bf16.gmra.mxu0 %v1508
        %v1966 = vpop.f32.mrf.mxu0
        %v1967 = vadd.f32 %v764, %v1966
        %v1968 = vpop.f32.mrf.mxu0
        %v1969 = vadd.f32 %v764, %v1968
        %1970 = vmatmul.bf16.gmra.mxu0 %v1511
        %v1971 = vpop.f32.mrf.mxu0
        %v1972 = vadd.f32 %v764, %v1971
        %v1973 = vpop.f32.mrf.mxu0
        %v1974 = vadd.f32 %v764, %v1973
        %1975 = vmatmul.bf16.gmra.mxu0 %v1514
        %v1976 = vpop.f32.mrf.mxu0
        %v1977 = vadd.f32 %v764, %v1976
        %v1978 = vpop.f32.mrf.mxu0
        %v1979 = vadd.f32 %v764, %v1978
        %1980 = vmatmul.bf16.gmra.mxu0 %v1517
        %v1981 = vpop.f32.mrf.mxu0
        %v1982 = vadd.f32 %v764, %v1981
        %v1983 = vpop.f32.mrf.mxu0
        %v1984 = vadd.f32 %v764, %v1983
        %1985 = vmatmul.bf16.gmra.mxu0 %v1520
        %v1986 = vpop.f32.mrf.mxu0
        %v1987 = vadd.f32 %v764, %v1986
        %v1988 = vpop.f32.mrf.mxu0
        %v1989 = vadd.f32 %v764, %v1988
        %1990 = vmatmul.bf16.gmra.mxu0 %v1523
        %v1991 = vpop.f32.mrf.mxu0
        %v1992 = vadd.f32 %v764, %v1991
        %v1993 = vpop.f32.mrf.mxu0
        %v1994 = vadd.f32 %v764, %v1993
        %1995 = vmatmul.bf16.gmra.mxu0 %v1526
        %v1996 = vpop.f32.mrf.mxu0
        %v1997 = vadd.f32 %v764, %v1996
        %v1998 = vpop.f32.mrf.mxu0
        %v1999 = vadd.f32 %v764, %v1998
        %2000 = vmatmul.bf16.gmra.mxu0 %v1529
        %v2001 = vpop.f32.mrf.mxu0
        %v2002 = vadd.f32 %v764, %v2001
        %v2003 = vpop.f32.mrf.mxu0
        %v2004 = vadd.f32 %v764, %v2003
        %2005 = vmatmul.bf16.gmra.mxu0 %v1532
        %v2006 = vpop.f32.mrf.mxu0
        %v2007 = vadd.f32 %v764, %v2006
        %v2008 = vpop.f32.mrf.mxu0
        %v2009 = vadd.f32 %v764, %v2008
        %2010 = vmatmul.bf16.gmra.mxu0 %v1535
        %v2011 = vpop.f32.mrf.mxu0
        %v2012 = vadd.f32 %v764, %v2011
        %v2013 = vpop.f32.mrf.mxu0
        %v2014 = vadd.f32 %v764, %v2013
        %2015 = vmatmul.bf16.gmra.mxu0 %v1538
        %v2016 = vpop.f32.mrf.mxu0
        %v2017 = vadd.f32 %v764, %v2016
        %v2018 = vpop.f32.mrf.mxu0
        %v2019 = vadd.f32 %v764, %v2018
        %2020 = vmatmul.bf16.gmra.mxu0 %v1541
        %v2021 = vpop.f32.mrf.mxu0
        %v2022 = vadd.f32 %v764, %v2021
        %v2023 = vpop.f32.mrf.mxu0
        %v2024 = vadd.f32 %v764, %v2023
        %2025 = vmatmul.bf16.gmra.mxu0 %v1544
        %v2026 = vpop.f32.mrf.mxu0
        %v2027 = vadd.f32 %v764, %v2026
        %v2028 = vpop.f32.mrf.mxu0
        %v2029 = vadd.f32 %v764, %v2028
        %2030 = vmatmul.bf16.gmra.mxu0 %v1547
        %v2031 = vpop.f32.mrf.mxu0
        %v2032 = vadd.f32 %v764, %v2031
        %v2033 = vpop.f32.mrf.mxu0
        %v2034 = vadd.f32 %v764, %v2033
        %2035 = vmatmul.bf16.gmra.mxu0 %v1550
        %v2036 = vpop.f32.mrf.mxu0
        %v2037 = vadd.f32 %v764, %v2036
        %v2038 = vpop.f32.mrf.mxu0
        %v2039 = vadd.f32 %v764, %v2038
        %2040 = vmatmul.bf16.gmra.mxu0 %v1553
        %v2041 = vpop.f32.mrf.mxu0
        %v2042 = vadd.f32 %v764, %v2041
        %v2043 = vpop.f32.mrf.mxu0
        %v2044 = vadd.f32 %v764, %v2043
        %2045 = vmatmul.bf16.gmra.mxu0 %v1556
        %v2046 = vpop.f32.mrf.mxu0
        %v2047 = vadd.f32 %v764, %v2046
        %v2048 = vpop.f32.mrf.mxu0
        %v2049 = vadd.f32 %v764, %v2048
        %2050 = vmatmul.bf16.gmra.mxu0 %v1559
        %v2051 = vpop.f32.mrf.mxu0
        %v2052 = vadd.f32 %v764, %v2051
        %v2053 = vpop.f32.mrf.mxu0
        %v2054 = vadd.f32 %v764, %v2053
        %2055 = vmatmul.bf16.gmra.mxu0 %v1562
        %v2056 = vpop.f32.mrf.mxu0
        %v2057 = vadd.f32 %v764, %v2056
        %v2058 = vpop.f32.mrf.mxu0
        %v2059 = vadd.f32 %v764, %v2058
        %2060 = vmatmul.bf16.gmra.mxu0 %v1565
        %v2061 = vpop.f32.mrf.mxu0
        %v2062 = vadd.f32 %v764, %v2061
        %v2063 = vpop.f32.mrf.mxu0
        %v2064 = vadd.f32 %v764, %v2063
        %2065 = vmatmul.bf16.gmra.mxu0 %v1568
        %v2066 = vpop.f32.mrf.mxu0
        %v2067 = vadd.f32 %v764, %v2066
        %v2068 = vpop.f32.mrf.mxu0
        %v2069 = vadd.f32 %v764, %v2068
        %2070 = vmatmul.bf16.gmra.mxu0 %v1571
        %v2071 = vpop.f32.mrf.mxu0
        %v2072 = vadd.f32 %v764, %v2071
        %v2073 = vpop.f32.mrf.mxu0
        %v2074 = vadd.f32 %v764, %v2073
        %2075 = vmatmul.bf16.gmra.mxu0 %v1574
        %v2076 = vpop.f32.mrf.mxu0
        %v2077 = vadd.f32 %v764, %v2076
        %v2078 = vpop.f32.mrf.mxu0
        %v2079 = vadd.f32 %v764, %v2078
        %2080 = vmatmul.bf16.gmra.mxu0 %v1577
        %v2081 = vpop.f32.mrf.mxu0
        %v2082 = vadd.f32 %v764, %v2081
        %v2083 = vpop.f32.mrf.mxu0
        %v2084 = vadd.f32 %v764, %v2083
        %2085 = vmatmul.bf16.gmra.mxu0 %v1580
        %v2086 = vpop.f32.mrf.mxu0
        %v2087 = vadd.f32 %v764, %v2086
        %v2088 = vpop.f32.mrf.mxu0
        %v2089 = vadd.f32 %v764, %v2088
        %2090 = vmatmul.bf16.gmra.mxu0 %v1583
        %v2091 = vpop.f32.mrf.mxu0
        %v2092 = vadd.f32 %v764, %v2091
        %v2093 = vpop.f32.mrf.mxu0
        %v2094 = vadd.f32 %v764, %v2093
        %2095 = vmatmul.bf16.gmra.mxu0 %v1586
        %v2096 = vpop.f32.mrf.mxu0
        %v2097 = vadd.f32 %v764, %v2096
        %v2098 = vpop.f32.mrf.mxu0
        %v2099 = vadd.f32 %v764, %v2098
        %2100 = vmatmul.bf16.gmra.mxu0 %v1589
        %v2101 = vpop.f32.mrf.mxu0
        %v2102 = vadd.f32 %v764, %v2101
        %v2103 = vpop.f32.mrf.mxu0
        %v2104 = vadd.f32 %v764, %v2103
        %2105 = vmatmul.bf16.gmra.mxu0 %v1592
        %v2106 = vpop.f32.mrf.mxu0
        %v2107 = vadd.f32 %v764, %v2106
        %v2108 = vpop.f32.mrf.mxu0
        %v2109 = vadd.f32 %v764, %v2108
        %2110 = vmatmul.bf16.gmra.mxu0 %v1595
        %v2111 = vpop.f32.mrf.mxu0
        %v2112 = vadd.f32 %v764, %v2111
        %v2113 = vpop.f32.mrf.mxu0
        %v2114 = vadd.f32 %v764, %v2113
        %2115 = vmatmul.bf16.gmra.mxu0 %v1598
        %v2116 = vpop.f32.mrf.mxu0
        %v2117 = vadd.f32 %v764, %v2116
        %v2118 = vpop.f32.mrf.mxu0
        %v2119 = vadd.f32 %v764, %v2118
        %2120 = vmatmul.bf16.gmra.mxu0 %v1601
        %v2121 = vpop.f32.mrf.mxu0
        %v2122 = vadd.f32 %v764, %v2121
        %v2123 = vpop.f32.mrf.mxu0
        %v2124 = vadd.f32 %v764, %v2123
        %2125 = vmatmul.bf16.gmra.mxu0 %v1604
        %v2126 = vpop.f32.mrf.mxu0
        %v2127 = vadd.f32 %v764, %v2126
        %v2128 = vpop.f32.mrf.mxu0
        %v2129 = vadd.f32 %v764, %v2128
        %2130 = vmatmul.bf16.gmra.mxu0 %v1607
        %v2131 = vpop.f32.mrf.mxu0
        %v2132 = vadd.f32 %v764, %v2131
        %v2133 = vpop.f32.mrf.mxu0
        %v2134 = vadd.f32 %v764, %v2133
        %2135 = vmatmul.bf16.gmra.mxu0 %v1610
        %v2136 = vpop.f32.mrf.mxu0
        %v2137 = vadd.f32 %v764, %v2136
        %v2138 = vpop.f32.mrf.mxu0
        %v2139 = vadd.f32 %v764, %v2138
        %2140 = vmatmul.bf16.gmra.mxu0 %v1613
        %v2141 = vpop.f32.mrf.mxu0
        %v2142 = vadd.f32 %v764, %v2141
        %v2143 = vpop.f32.mrf.mxu0
        %v2144 = vadd.f32 %v764, %v2143
        %2145 = vmatmul.bf16.gmra.mxu0 %v1616
        %v2146 = vpop.f32.mrf.mxu0
        %v2147 = vadd.f32 %v764, %v2146
        %v2148 = vpop.f32.mrf.mxu0
        %v2149 = vadd.f32 %v764, %v2148
        %2150 = vmatmul.bf16.gmra.mxu0 %v1619
        %v2151 = vpop.f32.mrf.mxu0
        %v2152 = vadd.f32 %v764, %v2151
        %v2153 = vpop.f32.mrf.mxu0
        %v2154 = vadd.f32 %v764, %v2153
        %2155 = vmatmul.bf16.gmra.mxu0 %v1622
        %v2156 = vpop.f32.mrf.mxu0
        %v2157 = vadd.f32 %v764, %v2156
        %v2158 = vpop.f32.mrf.mxu0
        %v2159 = vadd.f32 %v764, %v2158
        %2160 = vmatmul.bf16.gmra.mxu0 %v1625
        %v2161 = vpop.f32.mrf.mxu0
        %v2162 = vadd.f32 %v764, %v2161
        %v2163 = vpop.f32.mrf.mxu0
        %v2164 = vadd.f32 %v764, %v2163
        %2165 = vmatmul.bf16.gmra.mxu0 %v1628
        %v2166 = vpop.f32.mrf.mxu0
        %v2167 = vadd.f32 %v764, %v2166
        %v2168 = vpop.f32.mrf.mxu0
        %v2169 = vadd.f32 %v764, %v2168
        %2170 = vmatmul.bf16.gmra.mxu0 %v1631
        %v2171 = vpop.f32.mrf.mxu0
        %v2172 = vadd.f32 %v764, %v2171
        %v2173 = vpop.f32.mrf.mxu0
        %v2174 = vadd.f32 %v764, %v2173
        %2175 = vmatmul.bf16.gmra.mxu0 %v1634
        %v2176 = vpop.f32.mrf.mxu0
        %v2177 = vadd.f32 %v764, %v2176
        %v2178 = vpop.f32.mrf.mxu0
        %v2179 = vadd.f32 %v764, %v2178
        %2180 = vmatmul.bf16.gmra.mxu0 %v1637
        %v2181 = vpop.f32.mrf.mxu0
        %v2182 = vadd.f32 %v764, %v2181
        %v2183 = vpop.f32.mrf.mxu0
        %v2184 = vadd.f32 %v764, %v2183
        %2185 = vmatmul.bf16.gmra.mxu0 %v1640
        %v2186 = vpop.f32.mrf.mxu0
        %v2187 = vadd.f32 %v764, %v2186
        %v2188 = vpop.f32.mrf.mxu0
        %v2189 = vadd.f32 %v764, %v2188
        %2190 = vmatmul.bf16.gmra.mxu0 %v1643
        %v2191 = vpop.f32.mrf.mxu0
        %v2192 = vadd.f32 %v764, %v2191
        %v2193 = vpop.f32.mrf.mxu0
        %v2194 = vadd.f32 %v764, %v2193
        %2195 = vmatmul.bf16.gmra.mxu0 %v1646
        %v2196 = vpop.f32.mrf.mxu0
        %v2197 = vadd.f32 %v764, %v2196
        %v2198 = vpop.f32.mrf.mxu0
        %v2199 = vadd.f32 %v764, %v2198
        %2200 = vmatmul.bf16.gmra.mxu0 %v1649
        %v2201 = vpop.f32.mrf.mxu0
        %v2202 = vadd.f32 %v764, %v2201
        %v2203 = vpop.f32.mrf.mxu0
        %v2204 = vadd.f32 %v764, %v2203
        %2205 = vmatmul.bf16.gmra.mxu0 %v1652
        %v2206 = vpop.f32.mrf.mxu0
        %v2207 = vadd.f32 %v764, %v2206
        %v2208 = vpop.f32.mrf.mxu0
        %v2209 = vadd.f32 %v764, %v2208
        %2210 = vmatmul.bf16.gmra.mxu0 %v1655
        %v2211 = vpop.f32.mrf.mxu0
        %v2212 = vadd.f32 %v764, %v2211
        %v2213 = vpop.f32.mrf.mxu0
        %v2214 = vadd.f32 %v764, %v2213
        %2215 = vmatmul.bf16.gmra.mxu0 %v1658
        %v2216 = vpop.f32.mrf.mxu0
        %v2217 = vadd.f32 %v764, %v2216
        %v2218 = vpop.f32.mrf.mxu0
        %v2219 = vadd.f32 %v764, %v2218
        %2220 = vmatmul.bf16.gmra.mxu0 %v1661
        %v2221 = vpop.f32.mrf.mxu0
        %v2222 = vadd.f32 %v764, %v2221
        %v2223 = vpop.f32.mrf.mxu0
        %v2224 = vadd.f32 %v764, %v2223
        %2225 = vmatmul.bf16.gmra.mxu0 %v1664
        %v2226 = vpop.f32.mrf.mxu0
        %v2227 = vadd.f32 %v764, %v2226
        %v2228 = vpop.f32.mrf.mxu0
        %v2229 = vadd.f32 %v764, %v2228
        %2230 = vmatmul.bf16.gmra.mxu0 %v1667
        %v2231 = vpop.f32.mrf.mxu0
        %v2232 = vadd.f32 %v764, %v2231
        %v2233 = vpop.f32.mrf.mxu0
        %v2234 = vadd.f32 %v764, %v2233
        %2235 = vmatmul.bf16.gmra.mxu0 %v1670
        %v2236 = vpop.f32.mrf.mxu0
        %v2237 = vadd.f32 %v764, %v2236
        %v2238 = vpop.f32.mrf.mxu0
        %v2239 = vadd.f32 %v764, %v2238
        %2240 = vmatmul.bf16.gmra.mxu0 %v1673
        %v2241 = vpop.f32.mrf.mxu0
        %v2242 = vadd.f32 %v764, %v2241
        %v2243 = vpop.f32.mrf.mxu0
        %v2244 = vadd.f32 %v764, %v2243
        %2245 = vmatmul.bf16.gmra.mxu0 %v1676
        %v2246 = vpop.f32.mrf.mxu0
        %v2247 = vadd.f32 %v764, %v2246
        %v2248 = vpop.f32.mrf.mxu0
        %v2249 = vadd.f32 %v764, %v2248
        %2250 = vmatmul.bf16.gmra.mxu0 %v1679
        %v2251 = vpop.f32.mrf.mxu0
        %v2252 = vadd.f32 %v764, %v2251
        %v2253 = vpop.f32.mrf.mxu0
        %v2254 = vadd.f32 %v764, %v2253
        %2255 = vmatmul.bf16.gmra.mxu0 %v1682
        %v2256 = vpop.f32.mrf.mxu0
        %v2257 = vadd.f32 %v764, %v2256
        %v2258 = vpop.f32.mrf.mxu0
        %v2259 = vadd.f32 %v764, %v2258
        %2260 = vmatmul.bf16.gmra.mxu0 %v1685
        %v2261 = vpop.f32.mrf.mxu0
        %v2262 = vadd.f32 %v764, %v2261
        %v2263 = vpop.f32.mrf.mxu0
        %v2264 = vadd.f32 %v764, %v2263
        %2265 = vmatmul.bf16.gmra.mxu0 %v1688
        %v2266 = vpop.f32.mrf.mxu0
        %v2267 = vadd.f32 %v764, %v2266
        %v2268 = vpop.f32.mrf.mxu0
        %v2269 = vadd.f32 %v764, %v2268
        %2270 = vmatmul.bf16.gmra.mxu0 %v1691
        %v2271 = vpop.f32.mrf.mxu0
        %v2272 = vadd.f32 %v764, %v2271
        %v2273 = vpop.f32.mrf.mxu0
        %v2274 = vadd.f32 %v764, %v2273
        %2275 = vmatmul.bf16.gmra.mxu0 %v1694
        %v2276 = vpop.f32.mrf.mxu0
        %v2277 = vadd.f32 %v764, %v2276
        %v2278 = vpop.f32.mrf.mxu0
        %v2279 = vadd.f32 %v764, %v2278
        %2280 = vmatmul.bf16.gmra.mxu0 %v1697
        %v2281 = vpop.f32.mrf.mxu0
        %v2282 = vadd.f32 %v764, %v2281
        %v2283 = vpop.f32.mrf.mxu0
        %v2284 = vadd.f32 %v764, %v2283
        %2285 = vmatmul.bf16.gmra.mxu0 %v1700
        %v2286 = vpop.f32.mrf.mxu0
        %v2287 = vadd.f32 %v764, %v2286
        %v2288 = vpop.f32.mrf.mxu0
        %v2289 = vadd.f32 %v764, %v2288
        %2290 = vmatmul.bf16.gmra.mxu0 %v1703
        %v2291 = vpop.f32.mrf.mxu0
        %v2292 = vadd.f32 %v764, %v2291
        %v2293 = vpop.f32.mrf.mxu0
        %v2294 = vadd.f32 %v764, %v2293
        %2295 = vmatmul.bf16.gmra.mxu0 %v1706
        %v2296 = vpop.f32.mrf.mxu0
        %v2297 = vadd.f32 %v764, %v2296
        %v2298 = vpop.f32.mrf.mxu0
        %v2299 = vadd.f32 %v764, %v2298
        %2300 = vmatmul.bf16.gmra.mxu0 %v1709
        %v2301 = vpop.f32.mrf.mxu0
        %v2302 = vadd.f32 %v764, %v2301
        %v2303 = vpop.f32.mrf.mxu0
        %v2304 = vadd.f32 %v764, %v2303
        %2305 = vmatmul.bf16.gmra.mxu0 %v1712
        %v2306 = vpop.f32.mrf.mxu0
        %v2307 = vadd.f32 %v764, %v2306
        %v2308 = vpop.f32.mrf.mxu0
        %v2309 = vadd.f32 %v764, %v2308
        %2310 = vmatmul.bf16.gmra.mxu0 %v1715
        %v2311 = vpop.f32.mrf.mxu0
        %v2312 = vadd.f32 %v764, %v2311
        %v2313 = vpop.f32.mrf.mxu0
        %v2314 = vadd.f32 %v764, %v2313
        %2315 = vmatmul.bf16.gmra.mxu0 %v1718
        %v2316 = vpop.f32.mrf.mxu0
        %v2317 = vadd.f32 %v764, %v2316
        %v2318 = vpop.f32.mrf.mxu0
        %v2319 = vadd.f32 %v764, %v2318
        %2320 = vmatmul.bf16.gmra.mxu0 %v1721
        %v2321 = vpop.f32.mrf.mxu0
        %v2322 = vadd.f32 %v764, %v2321
        %v2323 = vpop.f32.mrf.mxu0
        %v2324 = vadd.f32 %v764, %v2323
        %2325 = vmatmul.bf16.gmra.mxu0 %v1724
        %v2326 = vpop.f32.mrf.mxu0
        %v2327 = vadd.f32 %v764, %v2326
        %v2328 = vpop.f32.mrf.mxu0
        %v2329 = vadd.f32 %v764, %v2328
        %2330 = vmatmul.bf16.gmra.mxu0 %v1727
        %v2331 = vpop.f32.mrf.mxu0
        %v2332 = vadd.f32 %v764, %v2331
        %v2333 = vpop.f32.mrf.mxu0
        %v2334 = vadd.f32 %v764, %v2333
        %2335 = vmatmul.bf16.gmra.mxu0 %v1730
        %v2336 = vpop.f32.mrf.mxu0
        %v2337 = vadd.f32 %v764, %v2336
        %v2338 = vpop.f32.mrf.mxu0
        %v2339 = vadd.f32 %v764, %v2338
        %2340 = vmatmul.bf16.gmra.mxu0 %v1733
        %v2341 = vpop.f32.mrf.mxu0
        %v2342 = vadd.f32 %v764, %v2341
        %v2343 = vpop.f32.mrf.mxu0
        %v2344 = vadd.f32 %v764, %v2343
        %2345 = vmatmul.bf16.gmra.mxu0 %v1736
        %v2346 = vpop.f32.mrf.mxu0
        %v2347 = vadd.f32 %v764, %v2346
        %v2348 = vpop.f32.mrf.mxu0
        %v2349 = vadd.f32 %v764, %v2348
        %2350 = vmatmul.bf16.gmra.mxu0 %v1739
        %v2351 = vpop.f32.mrf.mxu0
        %v2352 = vadd.f32 %v764, %v2351
        %v2353 = vpop.f32.mrf.mxu0
        %v2354 = vadd.f32 %v764, %v2353
        %2355 = vmatmul.bf16.gmra.mxu0 %v1742
        %v2356 = vpop.f32.mrf.mxu0
        %v2357 = vadd.f32 %v764, %v2356
        %v2358 = vpop.f32.mrf.mxu0
        %v2359 = vadd.f32 %v764, %v2358
        %2360 = vmatmul.bf16.gmra.mxu0 %v1745
        %v2361 = vpop.f32.mrf.mxu0
        %v2362 = vadd.f32 %v764, %v2361
        %v2363 = vpop.f32.mrf.mxu0
        %v2364 = vadd.f32 %v764, %v2363
        %2365 = vmatmul.bf16.gmra.mxu0 %v1748
        %v2366 = vpop.f32.mrf.mxu0
        %v2367 = vadd.f32 %v764, %v2366
        %v2368 = vpop.f32.mrf.mxu0
        %v2369 = vadd.f32 %v764, %v2368
        %2370 = vmatmul.bf16.gmra.mxu0 %v1751
        %v2371 = vpop.f32.mrf.mxu0
        %v2372 = vadd.f32 %v764, %v2371
        %v2373 = vpop.f32.mrf.mxu0
        %v2374 = vadd.f32 %v764, %v2373
        %2375 = vmatmul.bf16.gmra.mxu0 %v1754
        %v2376 = vpop.f32.mrf.mxu0
        %v2377 = vadd.f32 %v764, %v2376
        %v2378 = vpop.f32.mrf.mxu0
        %v2379 = vadd.f32 %v764, %v2378
        %2380 = vmatmul.bf16.gmra.mxu0 %v1757
        %v2381 = vpop.f32.mrf.mxu0
        %v2382 = vadd.f32 %v764, %v2381
        %v2383 = vpop.f32.mrf.mxu0
        %v2384 = vadd.f32 %v764, %v2383
        %2385 = vmatmul.bf16.gmra.mxu0 %v1760
        %v2386 = vpop.f32.mrf.mxu0
        %v2387 = vadd.f32 %v764, %v2386
        %v2388 = vpop.f32.mrf.mxu0
        %v2389 = vadd.f32 %v764, %v2388
        %2390 = vmatmul.bf16.gmra.mxu0 %v1763
        %v2391 = vpop.f32.mrf.mxu0
        %v2392 = vadd.f32 %v764, %v2391
        %v2393 = vpop.f32.mrf.mxu0
        %v2394 = vadd.f32 %v764, %v2393
        %2395 = vmatmul.bf16.gmra.mxu0 %v1766
        %v2396 = vpop.f32.mrf.mxu0
        %v2397 = vadd.f32 %v764, %v2396
        %v2398 = vpop.f32.mrf.mxu0
        %v2399 = vadd.f32 %v764, %v2398
        %2400 = vmatmul.bf16.gmra.mxu0 %v1769
        %v2401 = vpop.f32.mrf.mxu0
        %v2402 = vadd.f32 %v764, %v2401
        %v2403 = vpop.f32.mrf.mxu0
        %v2404 = vadd.f32 %v764, %v2403
        %2405 = vmatmul.bf16.gmra.mxu0 %v1772
        %v2406 = vpop.f32.mrf.mxu0
        %v2407 = vadd.f32 %v764, %v2406
        %v2408 = vpop.f32.mrf.mxu0
        %v2409 = vadd.f32 %v764, %v2408
        %2410 = vmatmul.bf16.gmra.mxu0 %v1775
        %v2411 = vpop.f32.mrf.mxu0
        %v2412 = vadd.f32 %v764, %v2411
        %v2413 = vpop.f32.mrf.mxu0
        %v2414 = vadd.f32 %v764, %v2413
        %2415 = vmatmul.bf16.gmra.mxu0 %v1778
        %v2416 = vpop.f32.mrf.mxu0
        %v2417 = vadd.f32 %v764, %v2416
        %v2418 = vpop.f32.mrf.mxu0
        %v2419 = vadd.f32 %v764, %v2418
        %2420 = vmatmul.bf16.gmra.mxu0 %v1781
        %v2421 = vpop.f32.mrf.mxu0
        %v2422 = vadd.f32 %v764, %v2421
        %v2423 = vpop.f32.mrf.mxu0
        %v2424 = vadd.f32 %v764, %v2423
        %2425 = vmatmul.bf16.gmra.mxu0 %v1784
        %v2426 = vpop.f32.mrf.mxu0
        %v2427 = vadd.f32 %v764, %v2426
        %v2428 = vpop.f32.mrf.mxu0
        %v2429 = vadd.f32 %v764, %v2428
        %2430 = vmatmul.bf16.gmra.mxu0 %v1787
        %v2431 = vpop.f32.mrf.mxu0
        %v2432 = vadd.f32 %v764, %v2431
        %v2433 = vpop.f32.mrf.mxu0
        %v2434 = vadd.f32 %v764, %v2433
        %2435 = vmatmul.bf16.gmra.mxu0 %v1790
        %v2436 = vpop.f32.mrf.mxu0
        %v2437 = vadd.f32 %v764, %v2436
        %v2438 = vpop.f32.mrf.mxu0
        %v2439 = vadd.f32 %v764, %v2438
        %2440 = vmatmul.bf16.gmra.mxu0 %v1793
        %v2441 = vpop.f32.mrf.mxu0
        %v2442 = vadd.f32 %v764, %v2441
        %v2443 = vpop.f32.mrf.mxu0
        %v2444 = vadd.f32 %v764, %v2443
        %2445 = vmatmul.bf16.gmra.mxu0 %v1796
        %v2446 = vpop.f32.mrf.mxu0
        %v2447 = vadd.f32 %v764, %v2446
        %v2448 = vpop.f32.mrf.mxu0
        %v2449 = vadd.f32 %v764, %v2448
        %2450 = vmatmul.bf16.gmra.mxu0 %v1799
        %v2451 = vpop.f32.mrf.mxu0
        %v2452 = vadd.f32 %v764, %v2451
        %v2453 = vpop.f32.mrf.mxu0
        %v2454 = vadd.f32 %v764, %v2453
        %2455 = vmatmul.bf16.gmra.mxu0 %v1802
        %v2456 = vpop.f32.mrf.mxu0
        %v2457 = vadd.f32 %v764, %v2456
        %v2458 = vpop.f32.mrf.mxu0
        %v2459 = vadd.f32 %v764, %v2458
        %2460 = vmatmul.bf16.gmra.mxu0 %v1805
        %v2461 = vpop.f32.mrf.mxu0
        %v2462 = vadd.f32 %v764, %v2461
        %v2463 = vpop.f32.mrf.mxu0
        %v2464 = vadd.f32 %v764, %v2463
        %2465 = vmatmul.bf16.gmra.mxu0 %v1808
        %v2466 = vpop.f32.mrf.mxu0
        %v2467 = vadd.f32 %v764, %v2466
        %v2468 = vpop.f32.mrf.mxu0
        %v2469 = vadd.f32 %v764, %v2468
        %2470 = vmatmul.bf16.gmra.mxu0 %v1811
        %v2471 = vpop.f32.mrf.mxu0
        %v2472 = vadd.f32 %v764, %v2471
        %v2473 = vpop.f32.mrf.mxu0
        %v2474 = vadd.f32 %v764, %v2473
        %2475 = vmatmul.bf16.gmra.mxu0 %v1814
        %v2476 = vpop.f32.mrf.mxu0
        %v2477 = vadd.f32 %v764, %v2476
        %v2478 = vpop.f32.mrf.mxu0
        %v2479 = vadd.f32 %v764, %v2478
        %2480 = vmatmul.bf16.gmra.mxu0 %v1817
        %v2481 = vpop.f32.mrf.mxu0
        %v2482 = vadd.f32 %v764, %v2481
        %v2483 = vpop.f32.mrf.mxu0
        %v2484 = vadd.f32 %v764, %v2483
        %2485 = vmatmul.bf16.gmra.mxu0 %v1820
        %v2486 = vpop.f32.mrf.mxu0
        %v2487 = vadd.f32 %v764, %v2486
        %v2488 = vpop.f32.mrf.mxu0
        %v2489 = vadd.f32 %v764, %v2488
        %2490 = vmatmul.bf16.gmra.mxu0 %v1823
        %v2491 = vpop.f32.mrf.mxu0
        %v2492 = vadd.f32 %v764, %v2491
        %v2493 = vpop.f32.mrf.mxu0
        %v2494 = vadd.f32 %v764, %v2493
        %2495 = vmatmul.bf16.gmra.mxu0 %v1826
        %v2496 = vpop.f32.mrf.mxu0
        %v2497 = vadd.f32 %v764, %v2496
        %v2498 = vpop.f32.mrf.mxu0
        %v2499 = vadd.f32 %v764, %v2498
        %2500 = vmatmul.bf16.gmra.mxu0 %v1829
        %v2501 = vpop.f32.mrf.mxu0
        %v2502 = vadd.f32 %v764, %v2501
        %v2503 = vpop.f32.mrf.mxu0
        %v2504 = vadd.f32 %v764, %v2503
        %2505 = vmatmul.bf16.gmra.mxu0 %v1832
        %v2506 = vpop.f32.mrf.mxu0
        %v2507 = vadd.f32 %v764, %v2506
        %v2508 = vpop.f32.mrf.mxu0
        %v2509 = vadd.f32 %v764, %v2508
        %2510 = vmatmul.bf16.gmra.mxu0 %v1835
        %v2511 = vpop.f32.mrf.mxu0
        %v2512 = vadd.f32 %v764, %v2511
        %v2513 = vpop.f32.mrf.mxu0
        %v2514 = vadd.f32 %v764, %v2513
        %2515 = vmatmul.bf16.gmra.mxu0 %v1838
        %v2516 = vpop.f32.mrf.mxu0
        %v2517 = vadd.f32 %v764, %v2516
        %v2518 = vpop.f32.mrf.mxu0
        %2519 = vdwg.mxu0
        %v2520 = vmax.f32 %v1857, 0.0
        %v2521 = vmax.f32 %v1859, 0.0
        %v2522 = vmax.f32 %v1862, 0.0
        %v2523 = vmax.f32 %v1864, 0.0
        %v2524 = vmax.f32 %v1867, 0.0
        %v2525 = vmax.f32 %v1869, 0.0
        %v2526 = vmax.f32 %v1872, 0.0
        %v2527 = vmax.f32 %v1874, 0.0
        %v2528 = vmax.f32 %v1877, 0.0
        %v2529 = vmax.f32 %v1879, 0.0
        %v2530 = vmax.f32 %v1882, 0.0
        %v2531 = vmax.f32 %v1884, 0.0
        %v2532 = vmax.f32 %v1887, 0.0
        %v2533 = vmax.f32 %v1889, 0.0
        %v2534 = vmax.f32 %v1892, 0.0
        %v2535 = vmax.f32 %v1894, 0.0
        %v2536 = vmax.f32 %v1897, 0.0
        %v2537 = vmax.f32 %v1899, 0.0
        %v2538 = vmax.f32 %v1902, 0.0
        %v2539 = vmax.f32 %v1904, 0.0
        %v2540 = vmax.f32 %v1907, 0.0
        %v2541 = vmax.f32 %v1909, 0.0
        %v2542 = vmax.f32 %v1912, 0.0
        %v2543 = vmax.f32 %v1914, 0.0
        %v2544 = vmax.f32 %v1917, 0.0
        %v2545 = vmax.f32 %v1919, 0.0
        %v2546 = vmax.f32 %v1922, 0.0
        %v2547 = vmax.f32 %v1924, 0.0
        %v2548 = vmax.f32 %v1927, 0.0
        %v2549 = vmax.f32 %v1929, 0.0
        %v2550 = vmax.f32 %v1932, 0.0
        %v2551 = vmax.f32 %v1934, 0.0
        %v2552 = vmax.f32 %v1937, 0.0
        %v2553 = vmax.f32 %v1939, 0.0
        %v2554 = vmax.f32 %v1942, 0.0
        %v2555 = vmax.f32 %v1944, 0.0
        %v2556 = vmax.f32 %v1947, 0.0
        %v2557 = vmax.f32 %v1949, 0.0
        %v2558 = vmax.f32 %v1952, 0.0
        %v2559 = vmax.f32 %v1954, 0.0
        %v2560 = vmax.f32 %v1957, 0.0
        %v2561 = vmax.f32 %v1959, 0.0
        %v2562 = vmax.f32 %v1962, 0.0
        %v2563 = vmax.f32 %v1964, 0.0
        %v2564 = vmax.f32 %v1967, 0.0
        %v2565 = vmax.f32 %v1969, 0.0
        %v2566 = vmax.f32 %v1972, 0.0
        %v2567 = vmax.f32 %v1974, 0.0
        %v2568 = vmax.f32 %v1977, 0.0
        %v2569 = vmax.f32 %v1979, 0.0
        %v2570 = vmax.f32 %v1982, 0.0
        %v2571 = vmax.f32 %v1984, 0.0
        %v2572 = vmax.f32 %v1987, 0.0
        %v2573 = vmax.f32 %v1989, 0.0
        %v2574 = vmax.f32 %v1992, 0.0
        %v2575 = vmax.f32 %v1994, 0.0
        %v2576 = vmax.f32 %v1997, 0.0
        %v2577 = vmax.f32 %v1999, 0.0
        %v2578 = vmax.f32 %v2002, 0.0
        %v2579 = vmax.f32 %v2004, 0.0
        %v2580 = vmax.f32 %v2007, 0.0
        %v2581 = vmax.f32 %v2009, 0.0
        %v2582 = vmax.f32 %v2012, 0.0
        %v2583 = vmax.f32 %v2014, 0.0
        %v2584 = vmax.f32 %v2017, 0.0
        %v2585 = vmax.f32 %v2019, 0.0
        %v2586 = vmax.f32 %v2022, 0.0
        %v2587 = vmax.f32 %v2024, 0.0
        %v2588 = vmax.f32 %v2027, 0.0
        %v2589 = vmax.f32 %v2029, 0.0
        %v2590 = vmax.f32 %v2032, 0.0
        %v2591 = vmax.f32 %v2034, 0.0
        %v2592 = vmax.f32 %v2037, 0.0
        %v2593 = vmax.f32 %v2039, 0.0
        %v2594 = vmax.f32 %v2042, 0.0
        %v2595 = vmax.f32 %v2044, 0.0
        %v2596 = vmax.f32 %v2047, 0.0
        %v2597 = vmax.f32 %v2049, 0.0
        %v2598 = vmax.f32 %v2052, 0.0
        %v2599 = vmax.f32 %v2054, 0.0
        %v2600 = vmax.f32 %v2057, 0.0
        %v2601 = vmax.f32 %v2059, 0.0
        %v2602 = vmax.f32 %v2062, 0.0
        %v2603 = vmax.f32 %v2064, 0.0
        %v2604 = vmax.f32 %v2067, 0.0
        %v2605 = vmax.f32 %v2069, 0.0
        %v2606 = vmax.f32 %v2072, 0.0
        %v2607 = vmax.f32 %v2074, 0.0
        %v2608 = vmax.f32 %v2077, 0.0
        %v2609 = vmax.f32 %v2079, 0.0
        %v2610 = vmax.f32 %v2082, 0.0
        %v2611 = vmax.f32 %v2084, 0.0
        %v2612 = vmax.f32 %v2087, 0.0
        %v2613 = vmax.f32 %v2089, 0.0
        %v2614 = vmax.f32 %v2092, 0.0
        %v2615 = vmax.f32 %v2094, 0.0
        %v2616 = vmax.f32 %v2097, 0.0
        %v2617 = vmax.f32 %v2099, 0.0
        %v2618 = vmax.f32 %v2102, 0.0
        %v2619 = vmax.f32 %v2104, 0.0
        %v2620 = vmax.f32 %v2107, 0.0
        %v2621 = vmax.f32 %v2109, 0.0
        %v2622 = vmax.f32 %v2112, 0.0
        %v2623 = vmax.f32 %v2114, 0.0
        %v2624 = vmax.f32 %v2117, 0.0
        %v2625 = vmax.f32 %v2119, 0.0
        %v2626 = vmax.f32 %v2122, 0.0
        %v2627 = vmax.f32 %v2124, 0.0
        %v2628 = vmax.f32 %v2127, 0.0
        %v2629 = vmax.f32 %v2129, 0.0
        %v2630 = vmax.f32 %v2132, 0.0
        %v2631 = vmax.f32 %v2134, 0.0
        %v2632 = vmax.f32 %v2137, 0.0
        %v2633 = vmax.f32 %v2139, 0.0
        %v2634 = vmax.f32 %v2142, 0.0
        %v2635 = vmax.f32 %v2144, 0.0
        %v2636 = vmax.f32 %v2147, 0.0
        %v2637 = vmax.f32 %v2149, 0.0
        %v2638 = vmax.f32 %v2152, 0.0
        %v2639 = vmax.f32 %v2154, 0.0
        %v2640 = vmax.f32 %v2157, 0.0
        %v2641 = vmax.f32 %v2159, 0.0
        %v2642 = vmax.f32 %v2162, 0.0
        %v2643 = vmax.f32 %v2164, 0.0
        %v2644 = vmax.f32 %v2167, 0.0
        %v2645 = vmax.f32 %v2169, 0.0
        %v2646 = vmax.f32 %v2172, 0.0
        %v2647 = vmax.f32 %v2174, 0.0
        %v2648 = vmax.f32 %v2177, 0.0
        %v2649 = vmax.f32 %v2179, 0.0
        %v2650 = vmax.f32 %v2182, 0.0
        %v2651 = vmax.f32 %v2184, 0.0
        %v2652 = vmax.f32 %v2187, 0.0
        %v2653 = vmax.f32 %v2189, 0.0
        %v2654 = vmax.f32 %v2192, 0.0
        %v2655 = vmax.f32 %v2194, 0.0
        %v2656 = vmax.f32 %v2197, 0.0
        %v2657 = vmax.f32 %v2199, 0.0
        %v2658 = vmax.f32 %v2202, 0.0
        %v2659 = vmax.f32 %v2204, 0.0
        %v2660 = vmax.f32 %v2207, 0.0
        %v2661 = vmax.f32 %v2209, 0.0
        %v2662 = vmax.f32 %v2212, 0.0
        %v2663 = vmax.f32 %v2214, 0.0
        %v2664 = vmax.f32 %v2217, 0.0
        %v2665 = vmax.f32 %v2219, 0.0
        %v2666 = vmax.f32 %v2222, 0.0
        %v2667 = vmax.f32 %v2224, 0.0
        %v2668 = vmax.f32 %v2227, 0.0
        %v2669 = vmax.f32 %v2229, 0.0
        %v2670 = vmax.f32 %v2232, 0.0
        %v2671 = vmax.f32 %v2234, 0.0
        %v2672 = vmax.f32 %v2237, 0.0
        %v2673 = vmax.f32 %v2239, 0.0
        %v2674 = vmax.f32 %v2242, 0.0
        %v2675 = vmax.f32 %v2244, 0.0
        %v2676 = vmax.f32 %v2247, 0.0
        %v2677 = vmax.f32 %v2249, 0.0
        %v2678 = vmax.f32 %v2252, 0.0
        %v2679 = vmax.f32 %v2254, 0.0
        %v2680 = vmax.f32 %v2257, 0.0
        %v2681 = vmax.f32 %v2259, 0.0
        %v2682 = vmax.f32 %v2262, 0.0
        %v2683 = vmax.f32 %v2264, 0.0
        %v2684 = vmax.f32 %v2267, 0.0
        %v2685 = vmax.f32 %v2269, 0.0
        %v2686 = vmax.f32 %v2272, 0.0
        %v2687 = vmax.f32 %v2274, 0.0
        %v2688 = vmax.f32 %v2277, 0.0
        %v2689 = vmax.f32 %v2279, 0.0
        %v2690 = vmax.f32 %v2282, 0.0
        %v2691 = vmax.f32 %v2284, 0.0
        %v2692 = vmax.f32 %v2287, 0.0
        %v2693 = vmax.f32 %v2289, 0.0
        %v2694 = vmax.f32 %v2292, 0.0
        %v2695 = vmax.f32 %v2294, 0.0
        %v2696 = vmax.f32 %v2297, 0.0
        %v2697 = vmax.f32 %v2299, 0.0
        %v2698 = vmax.f32 %v2302, 0.0
        %v2699 = vmax.f32 %v2304, 0.0
        %v2700 = vmax.f32 %v2307, 0.0
        %v2701 = vmax.f32 %v2309, 0.0
        %v2702 = vmax.f32 %v2312, 0.0
        %v2703 = vmax.f32 %v2314, 0.0
        %v2704 = vmax.f32 %v2317, 0.0
        %v2705 = vmax.f32 %v2319, 0.0
        %v2706 = vmax.f32 %v2322, 0.0
        %v2707 = vmax.f32 %v2324, 0.0
        %v2708 = vmax.f32 %v2327, 0.0
        %v2709 = vmax.f32 %v2329, 0.0
        %v2710 = vmax.f32 %v2332, 0.0
        %v2711 = vmax.f32 %v2334, 0.0
        %v2712 = vmax.f32 %v2337, 0.0
        %v2713 = vmax.f32 %v2339, 0.0
        %v2714 = vmax.f32 %v2342, 0.0
        %v2715 = vmax.f32 %v2344, 0.0
        %v2716 = vmax.f32 %v2347, 0.0
        %v2717 = vmax.f32 %v2349, 0.0
        %v2718 = vmax.f32 %v2352, 0.0
        %v2719 = vmax.f32 %v2354, 0.0
        %v2720 = vmax.f32 %v2357, 0.0
        %v2721 = vmax.f32 %v2359, 0.0
        %v2722 = vmax.f32 %v2362, 0.0
        %v2723 = vmax.f32 %v2364, 0.0
        %v2724 = vmax.f32 %v2367, 0.0
        %v2725 = vmax.f32 %v2369, 0.0
        %v2726 = vmax.f32 %v2372, 0.0
        %v2727 = vmax.f32 %v2374, 0.0
        %v2728 = vmax.f32 %v2377, 0.0
        %v2729 = vmax.f32 %v2379, 0.0
        %v2730 = vmax.f32 %v2382, 0.0
        %v2731 = vmax.f32 %v2384, 0.0
        %v2732 = vmax.f32 %v2387, 0.0
        %v2733 = vmax.f32 %v2389, 0.0
        %v2734 = vmax.f32 %v2392, 0.0
        %v2735 = vmax.f32 %v2394, 0.0
        %v2736 = vmax.f32 %v2397, 0.0
        %v2737 = vmax.f32 %v2399, 0.0
        %v2738 = vmax.f32 %v2402, 0.0
        %v2739 = vmax.f32 %v2404, 0.0
        %v2740 = vmax.f32 %v2407, 0.0
        %v2741 = vmax.f32 %v2409, 0.0
        %v2742 = vmax.f32 %v2412, 0.0
        %v2743 = vmax.f32 %v2414, 0.0
        %v2744 = vmax.f32 %v2417, 0.0
        %v2745 = vmax.f32 %v2419, 0.0
        %v2746 = vmax.f32 %v2422, 0.0
        %v2747 = vmax.f32 %v2424, 0.0
        %v2748 = vmax.f32 %v2427, 0.0
        %v2749 = vmax.f32 %v2429, 0.0
        %v2750 = vmax.f32 %v2432, 0.0
        %v2751 = vmax.f32 %v2434, 0.0
        %v2752 = vmax.f32 %v2437, 0.0
        %v2753 = vmax.f32 %v2439, 0.0
        %v2754 = vmax.f32 %v2442, 0.0
        %v2755 = vmax.f32 %v2444, 0.0
        %v2756 = vmax.f32 %v2447, 0.0
        %v2757 = vmax.f32 %v2449, 0.0
        %v2758 = vmax.f32 %v2452, 0.0
        %v2759 = vmax.f32 %v2454, 0.0
        %v2760 = vmax.f32 %v2457, 0.0
        %v2761 = vmax.f32 %v2459, 0.0
        %v2762 = vmax.f32 %v2462, 0.0
        %v2763 = vmax.f32 %v2464, 0.0
        %v2764 = vmax.f32 %v2467, 0.0
        %v2765 = vmax.f32 %v2469, 0.0
        %v2766 = vmax.f32 %v2472, 0.0
        %v2767 = vmax.f32 %v2474, 0.0
        %v2768 = vmax.f32 %v2477, 0.0
        %v2769 = vmax.f32 %v2479, 0.0
        %v2770 = vmax.f32 %v2482, 0.0
        %v2771 = vmax.f32 %v2484, 0.0
        %v2772 = vmax.f32 %v2487, 0.0
        %v2773 = vmax.f32 %v2489, 0.0
        %v2774 = vmax.f32 %v2492, 0.0
        %v2775 = vmax.f32 %v2494, 0.0
        %v2776 = vmax.f32 %v2497, 0.0
        %v2777 = vmax.f32 %v2499, 0.0
        %v2778 = vmax.f32 %v2502, 0.0
        %v2779 = vmax.f32 %v2504, 0.0
        %v2780 = vmax.f32 %v2507, 0.0
        %v2781 = vmax.f32 %v2509, 0.0
        %v2782 = vmax.f32 %v2512, 0.0
        %v2783 = vmax.f32 %v2514, 0.0
        %v2784 = vmax.f32 %v2517, 0.0
        %vm2785 = vcmask 523264
        %2786 = vst.msk [vmem:[#allocation2] sm:$0xff] %vm2785, %v2520
        %2787 = vst.msk [vmem:[#allocation2 + $0x8] sm:$0xff] %vm2785, %v2521
        %2788 = vst.msk [vmem:[#allocation2 + $0x10] sm:$0xff] %vm2785, %v2522
        %2789 = vst.msk [vmem:[#allocation2 + $0x18] sm:$0xff] %vm2785, %v2523
        %2790 = vst.msk [vmem:[#allocation2 + $0x20] sm:$0xff] %vm2785, %v2524
        %2791 = vst.msk [vmem:[#allocation2 + $0x28] sm:$0xff] %vm2785, %v2525
        %2792 = vst.msk [vmem:[#allocation2 + $0x30] sm:$0xff] %vm2785, %v2526
        %2793 = vst.msk [vmem:[#allocation2 + $0x38] sm:$0xff] %vm2785, %v2527
        %2794 = vst.msk [vmem:[#allocation2 + $0x40] sm:$0xff] %vm2785, %v2528
        %2795 = vst.msk [vmem:[#allocation2 + $0x48] sm:$0xff] %vm2785, %v2529
        %2796 = vst.msk [vmem:[#allocation2 + $0x50] sm:$0xff] %vm2785, %v2530
        %2797 = vst.msk [vmem:[#allocation2 + $0x58] sm:$0xff] %vm2785, %v2531
        %2798 = vst.msk [vmem:[#allocation2 + $0x60] sm:$0xff] %vm2785, %v2532
        %2799 = vst.msk [vmem:[#allocation2 + $0x68] sm:$0xff] %vm2785, %v2533
        %2800 = vst.msk [vmem:[#allocation2 + $0x70] sm:$0xff] %vm2785, %v2534
        %2801 = vst.msk [vmem:[#allocation2 + $0x78] sm:$0xff] %vm2785, %v2535
        %2802 = vst.msk [vmem:[#allocation2 + $0x80] sm:$0xff] %vm2785, %v2536
        %2803 = vst.msk [vmem:[#allocation2 + $0x88] sm:$0xff] %vm2785, %v2537
        %2804 = vst.msk [vmem:[#allocation2 + $0x90] sm:$0xff] %vm2785, %v2538
        %2805 = vst.msk [vmem:[#allocation2 + $0x98] sm:$0xff] %vm2785, %v2539
        %2806 = vst.msk [vmem:[#allocation2 + $0xa0] sm:$0xff] %vm2785, %v2540
        %2807 = vst.msk [vmem:[#allocation2 + $0xa8] sm:$0xff] %vm2785, %v2541
        %2808 = vst.msk [vmem:[#allocation2 + $0xb0] sm:$0xff] %vm2785, %v2542
        %2809 = vst.msk [vmem:[#allocation2 + $0xb8] sm:$0xff] %vm2785, %v2543
        %2810 = vst.msk [vmem:[#allocation2 + $0xc0] sm:$0xff] %vm2785, %v2544
        %2811 = vst.msk [vmem:[#allocation2 + $0xc8] sm:$0xff] %vm2785, %v2545
        %2812 = vst.msk [vmem:[#allocation2 + $0xd0] sm:$0xff] %vm2785, %v2546
        %2813 = vst.msk [vmem:[#allocation2 + $0xd8] sm:$0xff] %vm2785, %v2547
        %2814 = vst.msk [vmem:[#allocation2 + $0xe0] sm:$0xff] %vm2785, %v2548
        %2815 = vst.msk [vmem:[#allocation2 + $0xe8] sm:$0xff] %vm2785, %v2549
        %2816 = vst.msk [vmem:[#allocation2 + $0xf0] sm:$0xff] %vm2785, %v2550
        %2817 = vst.msk [vmem:[#allocation2 + $0xf8] sm:$0xff] %vm2785, %v2551
        %2818 = vst.msk [vmem:[#allocation2 + $0x100] sm:$0xff] %vm2785, %v2552
        %2819 = vst.msk [vmem:[#allocation2 + $0x108] sm:$0xff] %vm2785, %v2553
        %2820 = vst.msk [vmem:[#allocation2 + $0x110] sm:$0xff] %vm2785, %v2554
        %2821 = vst.msk [vmem:[#allocation2 + $0x118] sm:$0xff] %vm2785, %v2555
        %2822 = vst.msk [vmem:[#allocation2 + $0x120] sm:$0xff] %vm2785, %v2556
        %2823 = vst.msk [vmem:[#allocation2 + $0x128] sm:$0xff] %vm2785, %v2557
        %2824 = vst.msk [vmem:[#allocation2 + $0x130] sm:$0xff] %vm2785, %v2558
        %2825 = vst.msk [vmem:[#allocation2 + $0x138] sm:$0xff] %vm2785, %v2559
        %2826 = vst.msk [vmem:[#allocation2 + $0x140] sm:$0xff] %vm2785, %v2560
        %2827 = vst.msk [vmem:[#allocation2 + $0x148] sm:$0xff] %vm2785, %v2561
        %2828 = vst.msk [vmem:[#allocation2 + $0x150] sm:$0xff] %vm2785, %v2562
        %2829 = vst.msk [vmem:[#allocation2 + $0x158] sm:$0xff] %vm2785, %v2563
        %2830 = vst.msk [vmem:[#allocation2 + $0x160] sm:$0xff] %vm2785, %v2564
        %2831 = vst.msk [vmem:[#allocation2 + $0x168] sm:$0xff] %vm2785, %v2565
        %2832 = vst.msk [vmem:[#allocation2 + $0x170] sm:$0xff] %vm2785, %v2566
        %2833 = vst.msk [vmem:[#allocation2 + $0x178] sm:$0xff] %vm2785, %v2567
        %2834 = vst.msk [vmem:[#allocation2 + $0x180] sm:$0xff] %vm2785, %v2568
        %2835 = vst.msk [vmem:[#allocation2 + $0x188] sm:$0xff] %vm2785, %v2569
        %2836 = vst.msk [vmem:[#allocation2 + $0x190] sm:$0xff] %vm2785, %v2570
        %2837 = vst.msk [vmem:[#allocation2 + $0x198] sm:$0xff] %vm2785, %v2571
        %2838 = vst.msk [vmem:[#allocation2 + $0x1a0] sm:$0xff] %vm2785, %v2572
        %2839 = vst.msk [vmem:[#allocation2 + $0x1a8] sm:$0xff] %vm2785, %v2573
        %2840 = vst.msk [vmem:[#allocation2 + $0x1b0] sm:$0xff] %vm2785, %v2574
        %2841 = vst.msk [vmem:[#allocation2 + $0x1b8] sm:$0xff] %vm2785, %v2575
        %2842 = vst.msk [vmem:[#allocation2 + $0x1c0] sm:$0xff] %vm2785, %v2576
        %2843 = vst.msk [vmem:[#allocation2 + $0x1c8] sm:$0xff] %vm2785, %v2577
        %2844 = vst.msk [vmem:[#allocation2 + $0x1d0] sm:$0xff] %vm2785, %v2578
        %2845 = vst.msk [vmem:[#allocation2 + $0x1d8] sm:$0xff] %vm2785, %v2579
        %2846 = vst.msk [vmem:[#allocation2 + $0x1e0] sm:$0xff] %vm2785, %v2580
        %2847 = vst.msk [vmem:[#allocation2 + $0x1e8] sm:$0xff] %vm2785, %v2581
        %2848 = vst.msk [vmem:[#allocation2 + $0x1f0] sm:$0xff] %vm2785, %v2582
        %2849 = vst.msk [vmem:[#allocation2 + $0x1f8] sm:$0xff] %vm2785, %v2583
        %2850 = vst.msk [vmem:[#allocation2 + $0x200] sm:$0xff] %vm2785, %v2584
        %2851 = vst.msk [vmem:[#allocation2 + $0x208] sm:$0xff] %vm2785, %v2585
        %2852 = vst.msk [vmem:[#allocation2 + $0x210] sm:$0xff] %vm2785, %v2586
        %2853 = vst.msk [vmem:[#allocation2 + $0x218] sm:$0xff] %vm2785, %v2587
        %2854 = vst.msk [vmem:[#allocation2 + $0x220] sm:$0xff] %vm2785, %v2588
        %2855 = vst.msk [vmem:[#allocation2 + $0x228] sm:$0xff] %vm2785, %v2589
        %2856 = vst.msk [vmem:[#allocation2 + $0x230] sm:$0xff] %vm2785, %v2590
        %2857 = vst.msk [vmem:[#allocation2 + $0x238] sm:$0xff] %vm2785, %v2591
        %2858 = vst.msk [vmem:[#allocation2 + $0x240] sm:$0xff] %vm2785, %v2592
        %2859 = vst.msk [vmem:[#allocation2 + $0x248] sm:$0xff] %vm2785, %v2593
        %2860 = vst.msk [vmem:[#allocation2 + $0x250] sm:$0xff] %vm2785, %v2594
        %2861 = vst.msk [vmem:[#allocation2 + $0x258] sm:$0xff] %vm2785, %v2595
        %2862 = vst.msk [vmem:[#allocation2 + $0x260] sm:$0xff] %vm2785, %v2596
        %2863 = vst.msk [vmem:[#allocation2 + $0x268] sm:$0xff] %vm2785, %v2597
        %2864 = vst.msk [vmem:[#allocation2 + $0x270] sm:$0xff] %vm2785, %v2598
        %2865 = vst.msk [vmem:[#allocation2 + $0x278] sm:$0xff] %vm2785, %v2599
        %2866 = vst.msk [vmem:[#allocation2 + $0x280] sm:$0xff] %vm2785, %v2600
        %2867 = vst.msk [vmem:[#allocation2 + $0x288] sm:$0xff] %vm2785, %v2601
        %2868 = vst.msk [vmem:[#allocation2 + $0x290] sm:$0xff] %vm2785, %v2602
        %2869 = vst.msk [vmem:[#allocation2 + $0x298] sm:$0xff] %vm2785, %v2603
        %2870 = vst.msk [vmem:[#allocation2 + $0x2a0] sm:$0xff] %vm2785, %v2604
        %2871 = vst.msk [vmem:[#allocation2 + $0x2a8] sm:$0xff] %vm2785, %v2605
        %2872 = vst.msk [vmem:[#allocation2 + $0x2b0] sm:$0xff] %vm2785, %v2606
        %2873 = vst.msk [vmem:[#allocation2 + $0x2b8] sm:$0xff] %vm2785, %v2607
        %2874 = vst.msk [vmem:[#allocation2 + $0x2c0] sm:$0xff] %vm2785, %v2608
        %2875 = vst.msk [vmem:[#allocation2 + $0x2c8] sm:$0xff] %vm2785, %v2609
        %2876 = vst.msk [vmem:[#allocation2 + $0x2d0] sm:$0xff] %vm2785, %v2610
        %2877 = vst.msk [vmem:[#allocation2 + $0x2d8] sm:$0xff] %vm2785, %v2611
        %2878 = vst.msk [vmem:[#allocation2 + $0x2e0] sm:$0xff] %vm2785, %v2612
        %2879 = vst.msk [vmem:[#allocation2 + $0x2e8] sm:$0xff] %vm2785, %v2613
        %2880 = vst.msk [vmem:[#allocation2 + $0x2f0] sm:$0xff] %vm2785, %v2614
        %2881 = vst.msk [vmem:[#allocation2 + $0x2f8] sm:$0xff] %vm2785, %v2615
        %2882 = vst.msk [vmem:[#allocation2 + $0x300] sm:$0xff] %vm2785, %v2616
        %2883 = vst.msk [vmem:[#allocation2 + $0x308] sm:$0xff] %vm2785, %v2617
        %2884 = vst.msk [vmem:[#allocation2 + $0x310] sm:$0xff] %vm2785, %v2618
        %2885 = vst.msk [vmem:[#allocation2 + $0x318] sm:$0xff] %vm2785, %v2619
        %2886 = vst.msk [vmem:[#allocation2 + $0x320] sm:$0xff] %vm2785, %v2620
        %2887 = vst.msk [vmem:[#allocation2 + $0x328] sm:$0xff] %vm2785, %v2621
        %2888 = vst.msk [vmem:[#allocation2 + $0x330] sm:$0xff] %vm2785, %v2622
        %2889 = vst.msk [vmem:[#allocation2 + $0x338] sm:$0xff] %vm2785, %v2623
        %2890 = vst.msk [vmem:[#allocation2 + $0x340] sm:$0xff] %vm2785, %v2624
        %2891 = vst.msk [vmem:[#allocation2 + $0x348] sm:$0xff] %vm2785, %v2625
        %2892 = vst.msk [vmem:[#allocation2 + $0x350] sm:$0xff] %vm2785, %v2626
        %2893 = vst.msk [vmem:[#allocation2 + $0x358] sm:$0xff] %vm2785, %v2627
        %2894 = vst.msk [vmem:[#allocation2 + $0x360] sm:$0xff] %vm2785, %v2628
        %2895 = vst.msk [vmem:[#allocation2 + $0x368] sm:$0xff] %vm2785, %v2629
        %2896 = vst.msk [vmem:[#allocation2 + $0x370] sm:$0xff] %vm2785, %v2630
        %2897 = vst.msk [vmem:[#allocation2 + $0x378] sm:$0xff] %vm2785, %v2631
        %2898 = vst.msk [vmem:[#allocation2 + $0x380] sm:$0xff] %vm2785, %v2632
        %2899 = vst.msk [vmem:[#allocation2 + $0x388] sm:$0xff] %vm2785, %v2633
        %2900 = vst.msk [vmem:[#allocation2 + $0x390] sm:$0xff] %vm2785, %v2634
        %2901 = vst.msk [vmem:[#allocation2 + $0x398] sm:$0xff] %vm2785, %v2635
        %2902 = vst.msk [vmem:[#allocation2 + $0x3a0] sm:$0xff] %vm2785, %v2636
        %2903 = vst.msk [vmem:[#allocation2 + $0x3a8] sm:$0xff] %vm2785, %v2637
        %2904 = vst.msk [vmem:[#allocation2 + $0x3b0] sm:$0xff] %vm2785, %v2638
        %2905 = vst.msk [vmem:[#allocation2 + $0x3b8] sm:$0xff] %vm2785, %v2639
        %2906 = vst.msk [vmem:[#allocation2 + $0x3c0] sm:$0xff] %vm2785, %v2640
        %2907 = vst.msk [vmem:[#allocation2 + $0x3c8] sm:$0xff] %vm2785, %v2641
        %2908 = vst.msk [vmem:[#allocation2 + $0x3d0] sm:$0xff] %vm2785, %v2642
        %2909 = vst.msk [vmem:[#allocation2 + $0x3d8] sm:$0xff] %vm2785, %v2643
        %2910 = vst.msk [vmem:[#allocation2 + $0x3e0] sm:$0xff] %vm2785, %v2644
        %2911 = vst.msk [vmem:[#allocation2 + $0x3e8] sm:$0xff] %vm2785, %v2645
        %2912 = vst.msk [vmem:[#allocation2 + $0x3f0] sm:$0xff] %vm2785, %v2646
        %2913 = vst.msk [vmem:[#allocation2 + $0x3f8] sm:$0xff] %vm2785, %v2647
        %2914 = vst.msk [vmem:[#allocation2 + $0x400] sm:$0xff] %vm2785, %v2648
        %2915 = vst.msk [vmem:[#allocation2 + $0x408] sm:$0xff] %vm2785, %v2649
        %2916 = vst.msk [vmem:[#allocation2 + $0x410] sm:$0xff] %vm2785, %v2650
        %2917 = vst.msk [vmem:[#allocation2 + $0x418] sm:$0xff] %vm2785, %v2651
        %2918 = vst.msk [vmem:[#allocation2 + $0x420] sm:$0xff] %vm2785, %v2652
        %2919 = vst.msk [vmem:[#allocation2 + $0x428] sm:$0xff] %vm2785, %v2653
        %2920 = vst.msk [vmem:[#allocation2 + $0x430] sm:$0xff] %vm2785, %v2654
        %2921 = vst.msk [vmem:[#allocation2 + $0x438] sm:$0xff] %vm2785, %v2655
        %2922 = vst.msk [vmem:[#allocation2 + $0x440] sm:$0xff] %vm2785, %v2656
        %2923 = vst.msk [vmem:[#allocation2 + $0x448] sm:$0xff] %vm2785, %v2657
        %2924 = vst.msk [vmem:[#allocation2 + $0x450] sm:$0xff] %vm2785, %v2658
        %2925 = vst.msk [vmem:[#allocation2 + $0x458] sm:$0xff] %vm2785, %v2659
        %2926 = vst.msk [vmem:[#allocation2 + $0x460] sm:$0xff] %vm2785, %v2660
        %2927 = vst.msk [vmem:[#allocation2 + $0x468] sm:$0xff] %vm2785, %v2661
        %2928 = vst.msk [vmem:[#allocation2 + $0x470] sm:$0xff] %vm2785, %v2662
        %2929 = vst.msk [vmem:[#allocation2 + $0x478] sm:$0xff] %vm2785, %v2663
        %2930 = vst.msk [vmem:[#allocation2 + $0x480] sm:$0xff] %vm2785, %v2664
        %2931 = vst.msk [vmem:[#allocation2 + $0x488] sm:$0xff] %vm2785, %v2665
        %2932 = vst.msk [vmem:[#allocation2 + $0x490] sm:$0xff] %vm2785, %v2666
        %2933 = vst.msk [vmem:[#allocation2 + $0x498] sm:$0xff] %vm2785, %v2667
        %2934 = vst.msk [vmem:[#allocation2 + $0x4a0] sm:$0xff] %vm2785, %v2668
        %2935 = vst.msk [vmem:[#allocation2 + $0x4a8] sm:$0xff] %vm2785, %v2669
        %2936 = vst.msk [vmem:[#allocation2 + $0x4b0] sm:$0xff] %vm2785, %v2670
        %2937 = vst.msk [vmem:[#allocation2 + $0x4b8] sm:$0xff] %vm2785, %v2671
        %2938 = vst.msk [vmem:[#allocation2 + $0x4c0] sm:$0xff] %vm2785, %v2672
        %2939 = vst.msk [vmem:[#allocation2 + $0x4c8] sm:$0xff] %vm2785, %v2673
        %2940 = vst.msk [vmem:[#allocation2 + $0x4d0] sm:$0xff] %vm2785, %v2674
        %2941 = vst.msk [vmem:[#allocation2 + $0x4d8] sm:$0xff] %vm2785, %v2675
        %2942 = vst.msk [vmem:[#allocation2 + $0x4e0] sm:$0xff] %vm2785, %v2676
        %2943 = vst.msk [vmem:[#allocation2 + $0x4e8] sm:$0xff] %vm2785, %v2677
        %2944 = vst.msk [vmem:[#allocation2 + $0x4f0] sm:$0xff] %vm2785, %v2678
        %2945 = vst.msk [vmem:[#allocation2 + $0x4f8] sm:$0xff] %vm2785, %v2679
        %2946 = vst.msk [vmem:[#allocation2 + $0x500] sm:$0xff] %vm2785, %v2680
        %2947 = vst.msk [vmem:[#allocation2 + $0x508] sm:$0xff] %vm2785, %v2681
        %2948 = vst.msk [vmem:[#allocation2 + $0x510] sm:$0xff] %vm2785, %v2682
        %2949 = vst.msk [vmem:[#allocation2 + $0x518] sm:$0xff] %vm2785, %v2683
        %2950 = vst.msk [vmem:[#allocation2 + $0x520] sm:$0xff] %vm2785, %v2684
        %2951 = vst.msk [vmem:[#allocation2 + $0x528] sm:$0xff] %vm2785, %v2685
        %2952 = vst.msk [vmem:[#allocation2 + $0x530] sm:$0xff] %vm2785, %v2686
        %2953 = vst.msk [vmem:[#allocation2 + $0x538] sm:$0xff] %vm2785, %v2687
        %2954 = vst.msk [vmem:[#allocation2 + $0x540] sm:$0xff] %vm2785, %v2688
        %2955 = vst.msk [vmem:[#allocation2 + $0x548] sm:$0xff] %vm2785, %v2689
        %2956 = vst.msk [vmem:[#allocation2 + $0x550] sm:$0xff] %vm2785, %v2690
        %2957 = vst.msk [vmem:[#allocation2 + $0x558] sm:$0xff] %vm2785, %v2691
        %2958 = vst.msk [vmem:[#allocation2 + $0x560] sm:$0xff] %vm2785, %v2692
        %2959 = vst.msk [vmem:[#allocation2 + $0x568] sm:$0xff] %vm2785, %v2693
        %2960 = vst.msk [vmem:[#allocation2 + $0x570] sm:$0xff] %vm2785, %v2694
        %2961 = vst.msk [vmem:[#allocation2 + $0x578] sm:$0xff] %vm2785, %v2695
        %2962 = vst.msk [vmem:[#allocation2 + $0x580] sm:$0xff] %vm2785, %v2696
        %2963 = vst.msk [vmem:[#allocation2 + $0x588] sm:$0xff] %vm2785, %v2697
        %2964 = vst.msk [vmem:[#allocation2 + $0x590] sm:$0xff] %vm2785, %v2698
        %2965 = vst.msk [vmem:[#allocation2 + $0x598] sm:$0xff] %vm2785, %v2699
        %2966 = vst.msk [vmem:[#allocation2 + $0x5a0] sm:$0xff] %vm2785, %v2700
        %2967 = vst.msk [vmem:[#allocation2 + $0x5a8] sm:$0xff] %vm2785, %v2701
        %2968 = vst.msk [vmem:[#allocation2 + $0x5b0] sm:$0xff] %vm2785, %v2702
        %2969 = vst.msk [vmem:[#allocation2 + $0x5b8] sm:$0xff] %vm2785, %v2703
        %2970 = vst.msk [vmem:[#allocation2 + $0x5c0] sm:$0xff] %vm2785, %v2704
        %2971 = vst.msk [vmem:[#allocation2 + $0x5c8] sm:$0xff] %vm2785, %v2705
        %2972 = vst.msk [vmem:[#allocation2 + $0x5d0] sm:$0xff] %vm2785, %v2706
        %2973 = vst.msk [vmem:[#allocation2 + $0x5d8] sm:$0xff] %vm2785, %v2707
        %2974 = vst.msk [vmem:[#allocation2 + $0x5e0] sm:$0xff] %vm2785, %v2708
        %2975 = vst.msk [vmem:[#allocation2 + $0x5e8] sm:$0xff] %vm2785, %v2709
        %2976 = vst.msk [vmem:[#allocation2 + $0x5f0] sm:$0xff] %vm2785, %v2710
        %2977 = vst.msk [vmem:[#allocation2 + $0x5f8] sm:$0xff] %vm2785, %v2711
        %2978 = vst.msk [vmem:[#allocation2 + $0x600] sm:$0xff] %vm2785, %v2712
        %2979 = vst.msk [vmem:[#allocation2 + $0x608] sm:$0xff] %vm2785, %v2713
        %2980 = vst.msk [vmem:[#allocation2 + $0x610] sm:$0xff] %vm2785, %v2714
        %2981 = vst.msk [vmem:[#allocation2 + $0x618] sm:$0xff] %vm2785, %v2715
        %2982 = vst.msk [vmem:[#allocation2 + $0x620] sm:$0xff] %vm2785, %v2716
        %2983 = vst.msk [vmem:[#allocation2 + $0x628] sm:$0xff] %vm2785, %v2717
        %2984 = vst.msk [vmem:[#allocation2 + $0x630] sm:$0xff] %vm2785, %v2718
        %2985 = vst.msk [vmem:[#allocation2 + $0x638] sm:$0xff] %vm2785, %v2719
        %2986 = vst.msk [vmem:[#allocation2 + $0x640] sm:$0xff] %vm2785, %v2720
        %2987 = vst.msk [vmem:[#allocation2 + $0x648] sm:$0xff] %vm2785, %v2721
        %2988 = vst.msk [vmem:[#allocation2 + $0x650] sm:$0xff] %vm2785, %v2722
        %2989 = vst.msk [vmem:[#allocation2 + $0x658] sm:$0xff] %vm2785, %v2723
        %2990 = vst.msk [vmem:[#allocation2 + $0x660] sm:$0xff] %vm2785, %v2724
        %2991 = vst.msk [vmem:[#allocation2 + $0x668] sm:$0xff] %vm2785, %v2725
        %2992 = vst.msk [vmem:[#allocation2 + $0x670] sm:$0xff] %vm2785, %v2726
        %2993 = vst.msk [vmem:[#allocation2 + $0x678] sm:$0xff] %vm2785, %v2727
        %2994 = vst.msk [vmem:[#allocation2 + $0x680] sm:$0xff] %vm2785, %v2728
        %2995 = vst.msk [vmem:[#allocation2 + $0x688] sm:$0xff] %vm2785, %v2729
        %2996 = vst.msk [vmem:[#allocation2 + $0x690] sm:$0xff] %vm2785, %v2730
        %2997 = vst.msk [vmem:[#allocation2 + $0x698] sm:$0xff] %vm2785, %v2731
        %2998 = vst.msk [vmem:[#allocation2 + $0x6a0] sm:$0xff] %vm2785, %v2732
        %2999 = vst.msk [vmem:[#allocation2 + $0x6a8] sm:$0xff] %vm2785, %v2733
        %3000 = vst.msk [vmem:[#allocation2 + $0x6b0] sm:$0xff] %vm2785, %v2734
        %3001 = vst.msk [vmem:[#allocation2 + $0x6b8] sm:$0xff] %vm2785, %v2735
        %3002 = vst.msk [vmem:[#allocation2 + $0x6c0] sm:$0xff] %vm2785, %v2736
        %3003 = vst.msk [vmem:[#allocation2 + $0x6c8] sm:$0xff] %vm2785, %v2737
        %3004 = vst.msk [vmem:[#allocation2 + $0x6d0] sm:$0xff] %vm2785, %v2738
        %3005 = vst.msk [vmem:[#allocation2 + $0x6d8] sm:$0xff] %vm2785, %v2739
        %3006 = vst.msk [vmem:[#allocation2 + $0x6e0] sm:$0xff] %vm2785, %v2740
        %3007 = vst.msk [vmem:[#allocation2 + $0x6e8] sm:$0xff] %vm2785, %v2741
        %3008 = vst.msk [vmem:[#allocation2 + $0x6f0] sm:$0xff] %vm2785, %v2742
        %3009 = vst.msk [vmem:[#allocation2 + $0x6f8] sm:$0xff] %vm2785, %v2743
        %3010 = vst.msk [vmem:[#allocation2 + $0x700] sm:$0xff] %vm2785, %v2744
        %3011 = vst.msk [vmem:[#allocation2 + $0x708] sm:$0xff] %vm2785, %v2745
        %3012 = vst.msk [vmem:[#allocation2 + $0x710] sm:$0xff] %vm2785, %v2746
        %3013 = vst.msk [vmem:[#allocation2 + $0x718] sm:$0xff] %vm2785, %v2747
        %3014 = vst.msk [vmem:[#allocation2 + $0x720] sm:$0xff] %vm2785, %v2748
        %3015 = vst.msk [vmem:[#allocation2 + $0x728] sm:$0xff] %vm2785, %v2749
        %3016 = vst.msk [vmem:[#allocation2 + $0x730] sm:$0xff] %vm2785, %v2750
        %3017 = vst.msk [vmem:[#allocation2 + $0x738] sm:$0xff] %vm2785, %v2751
        %3018 = vst.msk [vmem:[#allocation2 + $0x740] sm:$0xff] %vm2785, %v2752
        %3019 = vst.msk [vmem:[#allocation2 + $0x748] sm:$0xff] %vm2785, %v2753
        %3020 = vst.msk [vmem:[#allocation2 + $0x750] sm:$0xff] %vm2785, %v2754
        %3021 = vst.msk [vmem:[#allocation2 + $0x758] sm:$0xff] %vm2785, %v2755
        %3022 = vst.msk [vmem:[#allocation2 + $0x760] sm:$0xff] %vm2785, %v2756
        %3023 = vst.msk [vmem:[#allocation2 + $0x768] sm:$0xff] %vm2785, %v2757
        %3024 = vst.msk [vmem:[#allocation2 + $0x770] sm:$0xff] %vm2785, %v2758
        %3025 = vst.msk [vmem:[#allocation2 + $0x778] sm:$0xff] %vm2785, %v2759
        %3026 = vst.msk [vmem:[#allocation2 + $0x780] sm:$0xff] %vm2785, %v2760
        %3027 = vst.msk [vmem:[#allocation2 + $0x788] sm:$0xff] %vm2785, %v2761
        %3028 = vst.msk [vmem:[#allocation2 + $0x790] sm:$0xff] %vm2785, %v2762
        %3029 = vst.msk [vmem:[#allocation2 + $0x798] sm:$0xff] %vm2785, %v2763
        %3030 = vst.msk [vmem:[#allocation2 + $0x7a0] sm:$0xff] %vm2785, %v2764
        %3031 = vst.msk [vmem:[#allocation2 + $0x7a8] sm:$0xff] %vm2785, %v2765
        %3032 = vst.msk [vmem:[#allocation2 + $0x7b0] sm:$0xff] %vm2785, %v2766
        %3033 = vst.msk [vmem:[#allocation2 + $0x7b8] sm:$0xff] %vm2785, %v2767
        %3034 = vst.msk [vmem:[#allocation2 + $0x7c0] sm:$0xff] %vm2785, %v2768
        %3035 = vst.msk [vmem:[#allocation2 + $0x7c8] sm:$0xff] %vm2785, %v2769
        %3036 = vst.msk [vmem:[#allocation2 + $0x7d0] sm:$0xff] %vm2785, %v2770
        %3037 = vst.msk [vmem:[#allocation2 + $0x7d8] sm:$0xff] %vm2785, %v2771
        %3038 = vst.msk [vmem:[#allocation2 + $0x7e0] sm:$0xff] %vm2785, %v2772
        %3039 = vst.msk [vmem:[#allocation2 + $0x7e8] sm:$0xff] %vm2785, %v2773
        %3040 = vst.msk [vmem:[#allocation2 + $0x7f0] sm:$0xff] %vm2785, %v2774
        %3041 = vst.msk [vmem:[#allocation2 + $0x7f8] sm:$0xff] %vm2785, %v2775
        %3042 = vst.msk [vmem:[#allocation2 + $0x800] sm:$0xff] %vm2785, %v2776
        %3043 = vst.msk [vmem:[#allocation2 + $0x808] sm:$0xff] %vm2785, %v2777
        %3044 = vst.msk [vmem:[#allocation2 + $0x810] sm:$0xff] %vm2785, %v2778
        %3045 = vst.msk [vmem:[#allocation2 + $0x818] sm:$0xff] %vm2785, %v2779
        %3046 = vst.msk [vmem:[#allocation2 + $0x820] sm:$0xff] %vm2785, %v2780
        %3047 = vst.msk [vmem:[#allocation2 + $0x828] sm:$0xff] %vm2785, %v2781
        %3048 = vst.msk [vmem:[#allocation2 + $0x830] sm:$0xff] %vm2785, %v2782
        %3049 = vst.msk [vmem:[#allocation2 + $0x838] sm:$0xff] %vm2785, %v2783
        %vm3050 = vcmask 519168
        %3051 = vst.msk [vmem:[#allocation2 + $0x840] sm:$0xf] %vm3050, %v2784
        %v3052 = vld [vmem:[#allocation2] ss:$2 sm:$0xff]
        %s3053 = scalar_lea.vmem [#allocation2], 16
        %v3054 = vld [vmem:[%s3053] ss:$2 sm:$0xff]
        %s3055 = scalar_lea.vmem [#allocation2], 32
        %v3056 = vld [vmem:[%s3055] ss:$2 sm:$0x7f]
        %s3057 = scalar_lea.vmem [#allocation2], 1
        %v3058 = vld [vmem:[%s3057] ss:$2 sm:$0xff]
        %s3059 = scalar_lea.vmem [#allocation2], 17
        %v3060 = vld [vmem:[%s3059] ss:$2 sm:$0xff]
        %s3061 = scalar_lea.vmem [#allocation2], 33
        %v3062 = vld [vmem:[%s3061] ss:$2 sm:$0x7f]
        %v3063 = vmax.f32 %v3052, %v3058
        %v3064 = vmax.f32 %v3054, %v3060
        %v3065 = vmax.f32 %v3056, %v3062
        %s3066 = scalar_lea.vmem [#allocation2], 46
        %v3067 = vld [vmem:[%s3066] ss:$2 sm:$0xff]
        %s3068 = scalar_lea.vmem [#allocation2], 62
        %v3069 = vld [vmem:[%s3068] ss:$2 sm:$0xff]
        %s3070 = scalar_lea.vmem [#allocation2], 78
        %v3071 = vld [vmem:[%s3070] ss:$2 sm:$0x7f]
        %s3072 = scalar_lea.vmem [#allocation2], 47
        %v3073 = vld [vmem:[%s3072] ss:$2 sm:$0xff]
        %s3074 = scalar_lea.vmem [#allocation2], 63
        %v3075 = vld [vmem:[%s3074] ss:$2 sm:$0xff]
        %s3076 = scalar_lea.vmem [#allocation2], 79
        %v3077 = vld [vmem:[%s3076] ss:$2 sm:$0x7f]
        %v3078 = vmax.f32 %v3067, %v3073
        %v3079 = vmax.f32 %v3069, %v3075
        %v3080 = vmax.f32 %v3071, %v3077
        %v3081 = vmax.f32 %v3063, %v3078
        %v3082 = vmax.f32 %v3064, %v3079
        %v3083 = vmax.f32 %v3065, %v3080
        %3084 = vst.msk [vmem:[#allocation3] sm:$0xff] %vm2785, %v3081
        %3085 = vst.msk [vmem:[#allocation3 + $0x8] sm:$0xff] %vm2785, %v3082
        %vm3086 = vcmask 522240
        %3087 = vst.msk [vmem:[#allocation3 + $0x10] sm:$0x7f] %vm3086, %v3083
        %s3088 = scalar_lea.vmem [#allocation2], 92
        %v3089 = vld [vmem:[%s3088] ss:$2 sm:$0xff]
        %s3090 = scalar_lea.vmem [#allocation2], 108
        %v3091 = vld [vmem:[%s3090] ss:$2 sm:$0xff]
        %s3092 = scalar_lea.vmem [#allocation2], 124
        %v3093 = vld [vmem:[%s3092] ss:$2 sm:$0x7f]
        %s3094 = scalar_lea.vmem [#allocation2], 93
        %v3095 = vld [vmem:[%s3094] ss:$2 sm:$0xff]
        %s3096 = scalar_lea.vmem [#allocation2], 109
        %v3097 = vld [vmem:[%s3096] ss:$2 sm:$0xff]
        %s3098 = scalar_lea.vmem [#allocation2], 125
        %v3099 = vld [vmem:[%s3098] ss:$2 sm:$0x7f]
        %v3100 = vmax.f32 %v3089, %v3095
        %v3101 = vmax.f32 %v3091, %v3097
        %v3102 = vmax.f32 %v3093, %v3099
        %s3103 = scalar_lea.vmem [#allocation2], 138
        %v3104 = vld [vmem:[%s3103] ss:$2 sm:$0xff]
        %s3105 = scalar_lea.vmem [#allocation2], 154
        %v3106 = vld [vmem:[%s3105] ss:$2 sm:$0xff]
        %s3107 = scalar_lea.vmem [#allocation2], 170
        %v3108 = vld [vmem:[%s3107] ss:$2 sm:$0x7f]
        %s3109 = scalar_lea.vmem [#allocation2], 139
        %v3110 = vld [vmem:[%s3109] ss:$2 sm:$0xff]
        %s3111 = scalar_lea.vmem [#allocation2], 155
        %v3112 = vld [vmem:[%s3111] ss:$2 sm:$0xff]
        %s3113 = scalar_lea.vmem [#allocation2], 171
        %v3114 = vld [vmem:[%s3113] ss:$2 sm:$0x7f]
        %v3115 = vmax.f32 %v3104, %v3110
        %v3116 = vmax.f32 %v3106, %v3112
        %v3117 = vmax.f32 %v3108, %v3114
        %v3118 = vmax.f32 %v3100, %v3115
        %v3119 = vmax.f32 %v3101, %v3116
        %v3120 = vmax.f32 %v3102, %v3117
        %3121 = vst.msk [vmem:[#allocation3 + $0x17] sm:$0xff] %vm2785, %v3118
        %3122 = vst.msk [vmem:[#allocation3 + $0x1f] sm:$0xff] %vm2785, %v3119
        %3123 = vst.msk [vmem:[#allocation3 + $0x27] sm:$0x7f] %vm3086, %v3120
        %s3124 = scalar_lea.vmem [#allocation2], 184
        %v3125 = vld [vmem:[%s3124] ss:$2 sm:$0xff]
        %s3126 = scalar_lea.vmem [#allocation2], 200
        %v3127 = vld [vmem:[%s3126] ss:$2 sm:$0xff]
        %s3128 = scalar_lea.vmem [#allocation2], 216
        %v3129 = vld [vmem:[%s3128] ss:$2 sm:$0x7f]
        %s3130 = scalar_lea.vmem [#allocation2], 185
        %v3131 = vld [vmem:[%s3130] ss:$2 sm:$0xff]
        %s3132 = scalar_lea.vmem [#allocation2], 201
        %v3133 = vld [vmem:[%s3132] ss:$2 sm:$0xff]
        %s3134 = scalar_lea.vmem [#allocation2], 217
        %v3135 = vld [vmem:[%s3134] ss:$2 sm:$0x7f]
        %v3136 = vmax.f32 %v3125, %v3131
        %v3137 = vmax.f32 %v3127, %v3133
        %v3138 = vmax.f32 %v3129, %v3135
        %s3139 = scalar_lea.vmem [#allocation2], 230
        %v3140 = vld [vmem:[%s3139] ss:$2 sm:$0xff]
        %s3141 = scalar_lea.vmem [#allocation2], 246
        %v3142 = vld [vmem:[%s3141] ss:$2 sm:$0xff]
        %s3143 = scalar_lea.vmem [#allocation2], 262
        %v3144 = vld [vmem:[%s3143] ss:$2 sm:$0x7f]
        %s3145 = scalar_lea.vmem [#allocation2], 231
        %v3146 = vld [vmem:[%s3145] ss:$2 sm:$0xff]
        %s3147 = scalar_lea.vmem [#allocation2], 247
        %v3148 = vld [vmem:[%s3147] ss:$2 sm:$0xff]
        %s3149 = scalar_lea.vmem [#allocation2], 263
        %v3150 = vld [vmem:[%s3149] ss:$2 sm:$0x7f]
        %v3151 = vmax.f32 %v3140, %v3146
        %v3152 = vmax.f32 %v3142, %v3148
        %v3153 = vmax.f32 %v3144, %v3150
        %v3154 = vmax.f32 %v3136, %v3151
        %v3155 = vmax.f32 %v3137, %v3152
        %v3156 = vmax.f32 %v3138, %v3153
        %3157 = vst.msk [vmem:[#allocation3 + $0x2e] sm:$0xff] %vm2785, %v3154
        %3158 = vst.msk [vmem:[#allocation3 + $0x36] sm:$0xff] %vm2785, %v3155
        %3159 = vst.msk [vmem:[#allocation3 + $0x3e] sm:$0x7f] %vm3086, %v3156
        %s3160 = scalar_lea.vmem [#allocation2], 276
        %v3161 = vld [vmem:[%s3160] ss:$2 sm:$0xff]
        %s3162 = scalar_lea.vmem [#allocation2], 292
        %v3163 = vld [vmem:[%s3162] ss:$2 sm:$0xff]
        %s3164 = scalar_lea.vmem [#allocation2], 308
        %v3165 = vld [vmem:[%s3164] ss:$2 sm:$0x7f]
        %s3166 = scalar_lea.vmem [#allocation2], 277
        %v3167 = vld [vmem:[%s3166] ss:$2 sm:$0xff]
        %s3168 = scalar_lea.vmem [#allocation2], 293
        %v3169 = vld [vmem:[%s3168] ss:$2 sm:$0xff]
        %s3170 = scalar_lea.vmem [#allocation2], 309
        %v3171 = vld [vmem:[%s3170] ss:$2 sm:$0x7f]
        %v3172 = vmax.f32 %v3161, %v3167
        %v3173 = vmax.f32 %v3163, %v3169
        %v3174 = vmax.f32 %v3165, %v3171
        %s3175 = scalar_lea.vmem [#allocation2], 322
        %v3176 = vld [vmem:[%s3175] ss:$2 sm:$0xff]
        %s3177 = scalar_lea.vmem [#allocation2], 338
        %v3178 = vld [vmem:[%s3177] ss:$2 sm:$0xff]
        %s3179 = scalar_lea.vmem [#allocation2], 354
        %v3180 = vld [vmem:[%s3179] ss:$2 sm:$0x7f]
        %s3181 = scalar_lea.vmem [#allocation2], 323
        %v3182 = vld [vmem:[%s3181] ss:$2 sm:$0xff]
        %s3183 = scalar_lea.vmem [#allocation2], 339
        %v3184 = vld [vmem:[%s3183] ss:$2 sm:$0xff]
        %s3185 = scalar_lea.vmem [#allocation2], 355
        %v3186 = vld [vmem:[%s3185] ss:$2 sm:$0x7f]
        %v3187 = vmax.f32 %v3176, %v3182
        %v3188 = vmax.f32 %v3178, %v3184
        %v3189 = vmax.f32 %v3180, %v3186
        %v3190 = vmax.f32 %v3172, %v3187
        %v3191 = vmax.f32 %v3173, %v3188
        %v3192 = vmax.f32 %v3174, %v3189
        %3193 = vst.msk [vmem:[#allocation3 + $0x45] sm:$0xff] %vm2785, %v3190
        %3194 = vst.msk [vmem:[#allocation3 + $0x4d] sm:$0xff] %vm2785, %v3191
        %3195 = vst.msk [vmem:[#allocation3 + $0x55] sm:$0x7f] %vm3086, %v3192
        %s3196 = scalar_lea.vmem [#allocation2], 368
        %v3197 = vld [vmem:[%s3196] ss:$2 sm:$0xff]
        %s3198 = scalar_lea.vmem [#allocation2], 384
        %v3199 = vld [vmem:[%s3198] ss:$2 sm:$0xff]
        %s3200 = scalar_lea.vmem [#allocation2], 400
        %v3201 = vld [vmem:[%s3200] ss:$2 sm:$0x7f]
        %s3202 = scalar_lea.vmem [#allocation2], 369
        %v3203 = vld [vmem:[%s3202] ss:$2 sm:$0xff]
        %s3204 = scalar_lea.vmem [#allocation2], 385
        %v3205 = vld [vmem:[%s3204] ss:$2 sm:$0xff]
        %s3206 = scalar_lea.vmem [#allocation2], 401
        %v3207 = vld [vmem:[%s3206] ss:$2 sm:$0x7f]
        %v3208 = vmax.f32 %v3197, %v3203
        %v3209 = vmax.f32 %v3199, %v3205
        %v3210 = vmax.f32 %v3201, %v3207
        %s3211 = scalar_lea.vmem [#allocation2], 414
        %v3212 = vld [vmem:[%s3211] ss:$2 sm:$0xff]
        %s3213 = scalar_lea.vmem [#allocation2], 430
        %v3214 = vld [vmem:[%s3213] ss:$2 sm:$0xff]
        %s3215 = scalar_lea.vmem [#allocation2], 446
        %v3216 = vld [vmem:[%s3215] ss:$2 sm:$0x7f]
        %s3217 = scalar_lea.vmem [#allocation2], 415
        %v3218 = vld [vmem:[%s3217] ss:$2 sm:$0xff]
        %s3219 = scalar_lea.vmem [#allocation2], 431
        %v3220 = vld [vmem:[%s3219] ss:$2 sm:$0xff]
        %s3221 = scalar_lea.vmem [#allocation2], 447
        %v3222 = vld [vmem:[%s3221] ss:$2 sm:$0x7f]
        %v3223 = vmax.f32 %v3212, %v3218
        %v3224 = vmax.f32 %v3214, %v3220
        %v3225 = vmax.f32 %v3216, %v3222
        %v3226 = vmax.f32 %v3208, %v3223
        %v3227 = vmax.f32 %v3209, %v3224
        %v3228 = vmax.f32 %v3210, %v3225
        %3229 = vst.msk [vmem:[#allocation3 + $0x5c] sm:$0xff] %vm2785, %v3226
        %3230 = vst.msk [vmem:[#allocation3 + $0x64] sm:$0xff] %vm2785, %v3227
        %3231 = vst.msk [vmem:[#allocation3 + $0x6c] sm:$0x7f] %vm3086, %v3228
        %s3232 = scalar_lea.vmem [#allocation2], 460
        %v3233 = vld [vmem:[%s3232] ss:$2 sm:$0xff]
        %s3234 = scalar_lea.vmem [#allocation2], 476
        %v3235 = vld [vmem:[%s3234] ss:$2 sm:$0xff]
        %s3236 = scalar_lea.vmem [#allocation2], 492
        %v3237 = vld [vmem:[%s3236] ss:$2 sm:$0x7f]
        %s3238 = scalar_lea.vmem [#allocation2], 461
        %v3239 = vld [vmem:[%s3238] ss:$2 sm:$0xff]
        %s3240 = scalar_lea.vmem [#allocation2], 477
        %v3241 = vld [vmem:[%s3240] ss:$2 sm:$0xff]
        %s3242 = scalar_lea.vmem [#allocation2], 493
        %v3243 = vld [vmem:[%s3242] ss:$2 sm:$0x7f]
        %v3244 = vmax.f32 %v3233, %v3239
        %v3245 = vmax.f32 %v3235, %v3241
        %v3246 = vmax.f32 %v3237, %v3243
        %s3247 = scalar_lea.vmem [#allocation2], 506
        %v3248 = vld [vmem:[%s3247] ss:$2 sm:$0xff]
        %s3249 = scalar_lea.vmem [#allocation2], 522
        %v3250 = vld [vmem:[%s3249] ss:$2 sm:$0xff]
        %s3251 = scalar_lea.vmem [#allocation2], 538
        %v3252 = vld [vmem:[%s3251] ss:$2 sm:$0x7f]
        %s3253 = scalar_lea.vmem [#allocation2], 507
        %v3254 = vld [vmem:[%s3253] ss:$2 sm:$0xff]
        %s3255 = scalar_lea.vmem [#allocation2], 523
        %v3256 = vld [vmem:[%s3255] ss:$2 sm:$0xff]
        %s3257 = scalar_lea.vmem [#allocation2], 539
        %v3258 = vld [vmem:[%s3257] ss:$2 sm:$0x7f]
        %v3259 = vmax.f32 %v3248, %v3254
        %v3260 = vmax.f32 %v3250, %v3256
        %v3261 = vmax.f32 %v3252, %v3258
        %v3262 = vmax.f32 %v3244, %v3259
        %v3263 = vmax.f32 %v3245, %v3260
        %v3264 = vmax.f32 %v3246, %v3261
        %3265 = vst.msk [vmem:[#allocation3 + $0x73] sm:$0xff] %vm2785, %v3262
        %3266 = vst.msk [vmem:[#allocation3 + $0x7b] sm:$0xff] %vm2785, %v3263
        %3267 = vst.msk [vmem:[#allocation3 + $0x83] sm:$0x7f] %vm3086, %v3264
        %s3268 = scalar_lea.vmem [#allocation2], 552
        %v3269 = vld [vmem:[%s3268] ss:$2 sm:$0xff]
        %s3270 = scalar_lea.vmem [#allocation2], 568
        %v3271 = vld [vmem:[%s3270] ss:$2 sm:$0xff]
        %s3272 = scalar_lea.vmem [#allocation2], 584
        %v3273 = vld [vmem:[%s3272] ss:$2 sm:$0x7f]
        %s3274 = scalar_lea.vmem [#allocation2], 553
        %v3275 = vld [vmem:[%s3274] ss:$2 sm:$0xff]
        %s3276 = scalar_lea.vmem [#allocation2], 569
        %v3277 = vld [vmem:[%s3276] ss:$2 sm:$0xff]
        %s3278 = scalar_lea.vmem [#allocation2], 585
        %v3279 = vld [vmem:[%s3278] ss:$2 sm:$0x7f]
        %v3280 = vmax.f32 %v3269, %v3275
        %v3281 = vmax.f32 %v3271, %v3277
        %v3282 = vmax.f32 %v3273, %v3279
        %s3283 = scalar_lea.vmem [#allocation2], 598
        %v3284 = vld [vmem:[%s3283] ss:$2 sm:$0xff]
        %s3285 = scalar_lea.vmem [#allocation2], 614
        %v3286 = vld [vmem:[%s3285] ss:$2 sm:$0xff]
        %s3287 = scalar_lea.vmem [#allocation2], 630
        %v3288 = vld [vmem:[%s3287] ss:$2 sm:$0x7f]
        %s3289 = scalar_lea.vmem [#allocation2], 599
        %v3290 = vld [vmem:[%s3289] ss:$2 sm:$0xff]
        %s3291 = scalar_lea.vmem [#allocation2], 615
        %v3292 = vld [vmem:[%s3291] ss:$2 sm:$0xff]
        %s3293 = scalar_lea.vmem [#allocation2], 631
        %v3294 = vld [vmem:[%s3293] ss:$2 sm:$0x7f]
        %v3295 = vmax.f32 %v3284, %v3290
        %v3296 = vmax.f32 %v3286, %v3292
        %v3297 = vmax.f32 %v3288, %v3294
        %v3298 = vmax.f32 %v3280, %v3295
        %v3299 = vmax.f32 %v3281, %v3296
        %v3300 = vmax.f32 %v3282, %v3297
        %3301 = vst.msk [vmem:[#allocation3 + $0x8a] sm:$0xff] %vm2785, %v3298
        %3302 = vst.msk [vmem:[#allocation3 + $0x92] sm:$0xff] %vm2785, %v3299
        %3303 = vst.msk [vmem:[#allocation3 + $0x9a] sm:$0x7f] %vm3086, %v3300
        %s3304 = scalar_lea.vmem [#allocation2], 644
        %v3305 = vld [vmem:[%s3304] ss:$2 sm:$0xff]
        %s3306 = scalar_lea.vmem [#allocation2], 660
        %v3307 = vld [vmem:[%s3306] ss:$2 sm:$0xff]
        %s3308 = scalar_lea.vmem [#allocation2], 676
        %v3309 = vld [vmem:[%s3308] ss:$2 sm:$0x7f]
        %s3310 = scalar_lea.vmem [#allocation2], 645
        %v3311 = vld [vmem:[%s3310] ss:$2 sm:$0xff]
        %s3312 = scalar_lea.vmem [#allocation2], 661
        %v3313 = vld [vmem:[%s3312] ss:$2 sm:$0xff]
        %s3314 = scalar_lea.vmem [#allocation2], 677
        %v3315 = vld [vmem:[%s3314] ss:$2 sm:$0x7f]
        %v3316 = vmax.f32 %v3305, %v3311
        %v3317 = vmax.f32 %v3307, %v3313
        %v3318 = vmax.f32 %v3309, %v3315
        %s3319 = scalar_lea.vmem [#allocation2], 690
        %v3320 = vld [vmem:[%s3319] ss:$2 sm:$0xff]
        %s3321 = scalar_lea.vmem [#allocation2], 706
        %v3322 = vld [vmem:[%s3321] ss:$2 sm:$0xff]
        %s3323 = scalar_lea.vmem [#allocation2], 722
        %v3324 = vld [vmem:[%s3323] ss:$2 sm:$0x7f]
        %s3325 = scalar_lea.vmem [#allocation2], 691
        %v3326 = vld [vmem:[%s3325] ss:$2 sm:$0xff]
        %s3327 = scalar_lea.vmem [#allocation2], 707
        %v3328 = vld [vmem:[%s3327] ss:$2 sm:$0xff]
        %s3329 = scalar_lea.vmem [#allocation2], 723
        %v3330 = vld [vmem:[%s3329] ss:$2 sm:$0x7f]
        %v3331 = vmax.f32 %v3320, %v3326
        %v3332 = vmax.f32 %v3322, %v3328
        %v3333 = vmax.f32 %v3324, %v3330
        %v3334 = vmax.f32 %v3316, %v3331
        %v3335 = vmax.f32 %v3317, %v3332
        %v3336 = vmax.f32 %v3318, %v3333
        %3337 = vst.msk [vmem:[#allocation3 + $0xa1] sm:$0xff] %vm2785, %v3334
        %3338 = vst.msk [vmem:[#allocation3 + $0xa9] sm:$0xff] %vm2785, %v3335
        %3339 = vst.msk [vmem:[#allocation3 + $0xb1] sm:$0x7f] %vm3086, %v3336
        %s3340 = scalar_lea.vmem [#allocation2], 736
        %v3341 = vld [vmem:[%s3340] ss:$2 sm:$0xff]
        %s3342 = scalar_lea.vmem [#allocation2], 752
        %v3343 = vld [vmem:[%s3342] ss:$2 sm:$0xff]
        %s3344 = scalar_lea.vmem [#allocation2], 768
        %v3345 = vld [vmem:[%s3344] ss:$2 sm:$0x7f]
        %s3346 = scalar_lea.vmem [#allocation2], 737
        %v3347 = vld [vmem:[%s3346] ss:$2 sm:$0xff]
        %s3348 = scalar_lea.vmem [#allocation2], 753
        %v3349 = vld [vmem:[%s3348] ss:$2 sm:$0xff]
        %s3350 = scalar_lea.vmem [#allocation2], 769
        %v3351 = vld [vmem:[%s3350] ss:$2 sm:$0x7f]
        %v3352 = vmax.f32 %v3341, %v3347
        %v3353 = vmax.f32 %v3343, %v3349
        %v3354 = vmax.f32 %v3345, %v3351
        %s3355 = scalar_lea.vmem [#allocation2], 782
        %v3356 = vld [vmem:[%s3355] ss:$2 sm:$0xff]
        %s3357 = scalar_lea.vmem [#allocation2], 798
        %v3358 = vld [vmem:[%s3357] ss:$2 sm:$0xff]
        %s3359 = scalar_lea.vmem [#allocation2], 814
        %v3360 = vld [vmem:[%s3359] ss:$2 sm:$0x7f]
        %s3361 = scalar_lea.vmem [#allocation2], 783
        %v3362 = vld [vmem:[%s3361] ss:$2 sm:$0xff]
        %s3363 = scalar_lea.vmem [#allocation2], 799
        %v3364 = vld [vmem:[%s3363] ss:$2 sm:$0xff]
        %s3365 = scalar_lea.vmem [#allocation2], 815
        %v3366 = vld [vmem:[%s3365] ss:$2 sm:$0x7f]
        %v3367 = vmax.f32 %v3356, %v3362
        %v3368 = vmax.f32 %v3358, %v3364
        %v3369 = vmax.f32 %v3360, %v3366
        %v3370 = vmax.f32 %v3352, %v3367
        %v3371 = vmax.f32 %v3353, %v3368
        %v3372 = vmax.f32 %v3354, %v3369
        %3373 = vst.msk [vmem:[#allocation3 + $0xb8] sm:$0xff] %vm2785, %v3370
        %3374 = vst.msk [vmem:[#allocation3 + $0xc0] sm:$0xff] %vm2785, %v3371
        %3375 = vst.msk [vmem:[#allocation3 + $0xc8] sm:$0x7f] %vm3086, %v3372
        %s3376 = scalar_lea.vmem [#allocation2], 828
        %v3377 = vld [vmem:[%s3376] ss:$2 sm:$0xff]
        %s3378 = scalar_lea.vmem [#allocation2], 844
        %v3379 = vld [vmem:[%s3378] ss:$2 sm:$0xff]
        %s3380 = scalar_lea.vmem [#allocation2], 860
        %v3381 = vld [vmem:[%s3380] ss:$2 sm:$0x7f]
        %s3382 = scalar_lea.vmem [#allocation2], 829
        %v3383 = vld [vmem:[%s3382] ss:$2 sm:$0xff]
        %s3384 = scalar_lea.vmem [#allocation2], 845
        %v3385 = vld [vmem:[%s3384] ss:$2 sm:$0xff]
        %s3386 = scalar_lea.vmem [#allocation2], 861
        %v3387 = vld [vmem:[%s3386] ss:$2 sm:$0x7f]
        %v3388 = vmax.f32 %v3377, %v3383
        %v3389 = vmax.f32 %v3379, %v3385
        %v3390 = vmax.f32 %v3381, %v3387
        %s3391 = scalar_lea.vmem [#allocation2], 874
        %v3392 = vld [vmem:[%s3391] ss:$2 sm:$0xff]
        %s3393 = scalar_lea.vmem [#allocation2], 890
        %v3394 = vld [vmem:[%s3393] ss:$2 sm:$0xff]
        %s3395 = scalar_lea.vmem [#allocation2], 906
        %v3396 = vld [vmem:[%s3395] ss:$2 sm:$0x7f]
        %s3397 = scalar_lea.vmem [#allocation2], 875
        %v3398 = vld [vmem:[%s3397] ss:$2 sm:$0xff]
        %s3399 = scalar_lea.vmem [#allocation2], 891
        %v3400 = vld [vmem:[%s3399] ss:$2 sm:$0xff]
        %s3401 = scalar_lea.vmem [#allocation2], 907
        %v3402 = vld [vmem:[%s3401] ss:$2 sm:$0x7f]
        %v3403 = vmax.f32 %v3392, %v3398
        %v3404 = vmax.f32 %v3394, %v3400
        %v3405 = vmax.f32 %v3396, %v3402
        %v3406 = vmax.f32 %v3388, %v3403
        %v3407 = vmax.f32 %v3389, %v3404
        %v3408 = vmax.f32 %v3390, %v3405
        %3409 = vst.msk [vmem:[#allocation3 + $0xcf] sm:$0xff] %vm2785, %v3406
        %3410 = vst.msk [vmem:[#allocation3 + $0xd7] sm:$0xff] %vm2785, %v3407
        %3411 = vst.msk [vmem:[#allocation3 + $0xdf] sm:$0x7f] %vm3086, %v3408
        %s3412 = scalar_lea.vmem [#allocation2], 920
        %v3413 = vld [vmem:[%s3412] ss:$2 sm:$0xff]
        %s3414 = scalar_lea.vmem [#allocation2], 936
        %v3415 = vld [vmem:[%s3414] ss:$2 sm:$0xff]
        %s3416 = scalar_lea.vmem [#allocation2], 952
        %v3417 = vld [vmem:[%s3416] ss:$2 sm:$0x7f]
        %s3418 = scalar_lea.vmem [#allocation2], 921
        %v3419 = vld [vmem:[%s3418] ss:$2 sm:$0xff]
        %s3420 = scalar_lea.vmem [#allocation2], 937
        %v3421 = vld [vmem:[%s3420] ss:$2 sm:$0xff]
        %s3422 = scalar_lea.vmem [#allocation2], 953
        %v3423 = vld [vmem:[%s3422] ss:$2 sm:$0x7f]
        %v3424 = vmax.f32 %v3413, %v3419
        %v3425 = vmax.f32 %v3415, %v3421
        %v3426 = vmax.f32 %v3417, %v3423
        %s3427 = scalar_lea.vmem [#allocation2], 966
        %v3428 = vld [vmem:[%s3427] ss:$2 sm:$0xff]
        %s3429 = scalar_lea.vmem [#allocation2], 982
        %v3430 = vld [vmem:[%s3429] ss:$2 sm:$0xff]
        %s3431 = scalar_lea.vmem [#allocation2], 998
        %v3432 = vld [vmem:[%s3431] ss:$2 sm:$0x7f]
        %s3433 = scalar_lea.vmem [#allocation2], 967
        %v3434 = vld [vmem:[%s3433] ss:$2 sm:$0xff]
        %s3435 = scalar_lea.vmem [#allocation2], 983
        %v3436 = vld [vmem:[%s3435] ss:$2 sm:$0xff]
        %s3437 = scalar_lea.vmem [#allocation2], 999
        %v3438 = vld [vmem:[%s3437] ss:$2 sm:$0x7f]
        %v3439 = vmax.f32 %v3428, %v3434
        %v3440 = vmax.f32 %v3430, %v3436
        %v3441 = vmax.f32 %v3432, %v3438
        %v3442 = vmax.f32 %v3424, %v3439
        %v3443 = vmax.f32 %v3425, %v3440
        %v3444 = vmax.f32 %v3426, %v3441
        %3445 = vst.msk [vmem:[#allocation3 + $0xe6] sm:$0xff] %vm2785, %v3442
        %3446 = vst.msk [vmem:[#allocation3 + $0xee] sm:$0xff] %vm2785, %v3443
        %3447 = vst.msk [vmem:[#allocation3 + $0xf6] sm:$0x7f] %vm3086, %v3444
        %s3448 = scalar_lea.vmem [#allocation2], 1012
        %v3449 = vld [vmem:[%s3448] ss:$2 sm:$0xff]
        %s3450 = scalar_lea.vmem [#allocation2], 1028
        %v3451 = vld [vmem:[%s3450] ss:$2 sm:$0xff]
        %s3452 = scalar_lea.vmem [#allocation2], 1044
        %v3453 = vld [vmem:[%s3452] ss:$2 sm:$0x7f]
        %s3454 = scalar_lea.vmem [#allocation2], 1013
        %v3455 = vld [vmem:[%s3454] ss:$2 sm:$0xff]
        %s3456 = scalar_lea.vmem [#allocation2], 1029
        %v3457 = vld [vmem:[%s3456] ss:$2 sm:$0xff]
        %s3458 = scalar_lea.vmem [#allocation2], 1045
        %v3459 = vld [vmem:[%s3458] ss:$2 sm:$0x7f]
        %v3460 = vmax.f32 %v3449, %v3455
        %v3461 = vmax.f32 %v3451, %v3457
        %v3462 = vmax.f32 %v3453, %v3459
        %s3463 = scalar_lea.vmem [#allocation2], 1058
        %v3464 = vld [vmem:[%s3463] ss:$2 sm:$0xff]
        %s3465 = scalar_lea.vmem [#allocation2], 1074
        %v3466 = vld [vmem:[%s3465] ss:$2 sm:$0xff]
        %s3467 = scalar_lea.vmem [#allocation2], 1090
        %v3468 = vld [vmem:[%s3467] ss:$2 sm:$0x7f]
        %s3469 = scalar_lea.vmem [#allocation2], 1059
        %v3470 = vld [vmem:[%s3469] ss:$2 sm:$0xff]
        %s3471 = scalar_lea.vmem [#allocation2], 1075
        %v3472 = vld [vmem:[%s3471] ss:$2 sm:$0xff]
        %s3473 = scalar_lea.vmem [#allocation2], 1091
        %v3474 = vld [vmem:[%s3473] ss:$2 sm:$0x7f]
        %v3475 = vmax.f32 %v3464, %v3470
        %v3476 = vmax.f32 %v3466, %v3472
        %v3477 = vmax.f32 %v3468, %v3474
        %v3478 = vmax.f32 %v3460, %v3475
        %v3479 = vmax.f32 %v3461, %v3476
        %v3480 = vmax.f32 %v3462, %v3477
        %3481 = vst.msk [vmem:[#allocation3 + $0xfd] sm:$0xff] %vm2785, %v3478
        %3482 = vst.msk [vmem:[#allocation3 + $0x105] sm:$0xff] %vm2785, %v3479
        %3483 = vst.msk [vmem:[#allocation3 + $0x10d] sm:$0x7f] %vm3086, %v3480
        %s3484 = scalar_lea.vmem [#allocation2], 1104
        %v3485 = vld [vmem:[%s3484] ss:$2 sm:$0xff]
        %s3486 = scalar_lea.vmem [#allocation2], 1120
        %v3487 = vld [vmem:[%s3486] ss:$2 sm:$0xff]
        %s3488 = scalar_lea.vmem [#allocation2], 1136
        %v3489 = vld [vmem:[%s3488] ss:$2 sm:$0x7f]
        %s3490 = scalar_lea.vmem [#allocation2], 1105
        %v3491 = vld [vmem:[%s3490] ss:$2 sm:$0xff]
        %s3492 = scalar_lea.vmem [#allocation2], 1121
        %v3493 = vld [vmem:[%s3492] ss:$2 sm:$0xff]
        %s3494 = scalar_lea.vmem [#allocation2], 1137
        %v3495 = vld [vmem:[%s3494] ss:$2 sm:$0x7f]
        %v3496 = vmax.f32 %v3485, %v3491
        %v3497 = vmax.f32 %v3487, %v3493
        %v3498 = vmax.f32 %v3489, %v3495
        %s3499 = scalar_lea.vmem [#allocation2], 1150
        %v3500 = vld [vmem:[%s3499] ss:$2 sm:$0xff]
        %s3501 = scalar_lea.vmem [#allocation2], 1166
        %v3502 = vld [vmem:[%s3501] ss:$2 sm:$0xff]
        %s3503 = scalar_lea.vmem [#allocation2], 1182
        %v3504 = vld [vmem:[%s3503] ss:$2 sm:$0x7f]
        %s3505 = scalar_lea.vmem [#allocation2], 1151
        %v3506 = vld [vmem:[%s3505] ss:$2 sm:$0xff]
        %s3507 = scalar_lea.vmem [#allocation2], 1167
        %v3508 = vld [vmem:[%s3507] ss:$2 sm:$0xff]
        %s3509 = scalar_lea.vmem [#allocation2], 1183
        %v3510 = vld [vmem:[%s3509] ss:$2 sm:$0x7f]
        %v3511 = vmax.f32 %v3500, %v3506
        %v3512 = vmax.f32 %v3502, %v3508
        %v3513 = vmax.f32 %v3504, %v3510
        %v3514 = vmax.f32 %v3496, %v3511
        %v3515 = vmax.f32 %v3497, %v3512
        %v3516 = vmax.f32 %v3498, %v3513
        %3517 = vst.msk [vmem:[#allocation3 + $0x114] sm:$0xff] %vm2785, %v3514
        %3518 = vst.msk [vmem:[#allocation3 + $0x11c] sm:$0xff] %vm2785, %v3515
        %3519 = vst.msk [vmem:[#allocation3 + $0x124] sm:$0x7f] %vm3086, %v3516
        %s3520 = scalar_lea.vmem [#allocation2], 1196
        %v3521 = vld [vmem:[%s3520] ss:$2 sm:$0xff]
        %s3522 = scalar_lea.vmem [#allocation2], 1212
        %v3523 = vld [vmem:[%s3522] ss:$2 sm:$0xff]
        %s3524 = scalar_lea.vmem [#allocation2], 1228
        %v3525 = vld [vmem:[%s3524] ss:$2 sm:$0x7f]
        %s3526 = scalar_lea.vmem [#allocation2], 1197
        %v3527 = vld [vmem:[%s3526] ss:$2 sm:$0xff]
        %s3528 = scalar_lea.vmem [#allocation2], 1213
        %v3529 = vld [vmem:[%s3528] ss:$2 sm:$0xff]
        %s3530 = scalar_lea.vmem [#allocation2], 1229
        %v3531 = vld [vmem:[%s3530] ss:$2 sm:$0x7f]
        %v3532 = vmax.f32 %v3521, %v3527
        %v3533 = vmax.f32 %v3523, %v3529
        %v3534 = vmax.f32 %v3525, %v3531
        %s3535 = scalar_lea.vmem [#allocation2], 1242
        %v3536 = vld [vmem:[%s3535] ss:$2 sm:$0xff]
        %s3537 = scalar_lea.vmem [#allocation2], 1258
        %v3538 = vld [vmem:[%s3537] ss:$2 sm:$0xff]
        %s3539 = scalar_lea.vmem [#allocation2], 1274
        %v3540 = vld [vmem:[%s3539] ss:$2 sm:$0x7f]
        %s3541 = scalar_lea.vmem [#allocation2], 1243
        %v3542 = vld [vmem:[%s3541] ss:$2 sm:$0xff]
        %s3543 = scalar_lea.vmem [#allocation2], 1259
        %v3544 = vld [vmem:[%s3543] ss:$2 sm:$0xff]
        %s3545 = scalar_lea.vmem [#allocation2], 1275
        %v3546 = vld [vmem:[%s3545] ss:$2 sm:$0x7f]
        %v3547 = vmax.f32 %v3536, %v3542
        %v3548 = vmax.f32 %v3538, %v3544
        %v3549 = vmax.f32 %v3540, %v3546
        %v3550 = vmax.f32 %v3532, %v3547
        %v3551 = vmax.f32 %v3533, %v3548
        %v3552 = vmax.f32 %v3534, %v3549
        %3553 = vst.msk [vmem:[#allocation3 + $0x12b] sm:$0xff] %vm2785, %v3550
        %3554 = vst.msk [vmem:[#allocation3 + $0x133] sm:$0xff] %vm2785, %v3551
        %3555 = vst.msk [vmem:[#allocation3 + $0x13b] sm:$0x7f] %vm3086, %v3552
        %s3556 = scalar_lea.vmem [#allocation2], 1288
        %v3557 = vld [vmem:[%s3556] ss:$2 sm:$0xff]
        %s3558 = scalar_lea.vmem [#allocation2], 1304
        %v3559 = vld [vmem:[%s3558] ss:$2 sm:$0xff]
        %s3560 = scalar_lea.vmem [#allocation2], 1320
        %v3561 = vld [vmem:[%s3560] ss:$2 sm:$0x7f]
        %s3562 = scalar_lea.vmem [#allocation2], 1289
        %v3563 = vld [vmem:[%s3562] ss:$2 sm:$0xff]
        %s3564 = scalar_lea.vmem [#allocation2], 1305
        %v3565 = vld [vmem:[%s3564] ss:$2 sm:$0xff]
        %s3566 = scalar_lea.vmem [#allocation2], 1321
        %v3567 = vld [vmem:[%s3566] ss:$2 sm:$0x7f]
        %v3568 = vmax.f32 %v3557, %v3563
        %v3569 = vmax.f32 %v3559, %v3565
        %v3570 = vmax.f32 %v3561, %v3567
        %s3571 = scalar_lea.vmem [#allocation2], 1334
        %v3572 = vld [vmem:[%s3571] ss:$2 sm:$0xff]
        %s3573 = scalar_lea.vmem [#allocation2], 1350
        %v3574 = vld [vmem:[%s3573] ss:$2 sm:$0xff]
        %s3575 = scalar_lea.vmem [#allocation2], 1366
        %v3576 = vld [vmem:[%s3575] ss:$2 sm:$0x7f]
        %s3577 = scalar_lea.vmem [#allocation2], 1335
        %v3578 = vld [vmem:[%s3577] ss:$2 sm:$0xff]
        %s3579 = scalar_lea.vmem [#allocation2], 1351
        %v3580 = vld [vmem:[%s3579] ss:$2 sm:$0xff]
        %s3581 = scalar_lea.vmem [#allocation2], 1367
        %v3582 = vld [vmem:[%s3581] ss:$2 sm:$0x7f]
        %v3583 = vmax.f32 %v3572, %v3578
        %v3584 = vmax.f32 %v3574, %v3580
        %v3585 = vmax.f32 %v3576, %v3582
        %v3586 = vmax.f32 %v3568, %v3583
        %v3587 = vmax.f32 %v3569, %v3584
        %v3588 = vmax.f32 %v3570, %v3585
        %3589 = vst.msk [vmem:[#allocation3 + $0x142] sm:$0xff] %vm2785, %v3586
        %3590 = vst.msk [vmem:[#allocation3 + $0x14a] sm:$0xff] %vm2785, %v3587
        %3591 = vst.msk [vmem:[#allocation3 + $0x152] sm:$0x7f] %vm3086, %v3588
        %s3592 = scalar_lea.vmem [#allocation2], 1380
        %v3593 = vld [vmem:[%s3592] ss:$2 sm:$0xff]
        %s3594 = scalar_lea.vmem [#allocation2], 1396
        %v3595 = vld [vmem:[%s3594] ss:$2 sm:$0xff]
        %s3596 = scalar_lea.vmem [#allocation2], 1412
        %v3597 = vld [vmem:[%s3596] ss:$2 sm:$0x7f]
        %s3598 = scalar_lea.vmem [#allocation2], 1381
        %v3599 = vld [vmem:[%s3598] ss:$2 sm:$0xff]
        %s3600 = scalar_lea.vmem [#allocation2], 1397
        %v3601 = vld [vmem:[%s3600] ss:$2 sm:$0xff]
        %s3602 = scalar_lea.vmem [#allocation2], 1413
        %v3603 = vld [vmem:[%s3602] ss:$2 sm:$0x7f]
        %v3604 = vmax.f32 %v3593, %v3599
        %v3605 = vmax.f32 %v3595, %v3601
        %v3606 = vmax.f32 %v3597, %v3603
        %s3607 = scalar_lea.vmem [#allocation2], 1426
        %v3608 = vld [vmem:[%s3607] ss:$2 sm:$0xff]
        %s3609 = scalar_lea.vmem [#allocation2], 1442
        %v3610 = vld [vmem:[%s3609] ss:$2 sm:$0xff]
        %s3611 = scalar_lea.vmem [#allocation2], 1458
        %v3612 = vld [vmem:[%s3611] ss:$2 sm:$0x7f]
        %s3613 = scalar_lea.vmem [#allocation2], 1427
        %v3614 = vld [vmem:[%s3613] ss:$2 sm:$0xff]
        %s3615 = scalar_lea.vmem [#allocation2], 1443
        %v3616 = vld [vmem:[%s3615] ss:$2 sm:$0xff]
        %s3617 = scalar_lea.vmem [#allocation2], 1459
        %v3618 = vld [vmem:[%s3617] ss:$2 sm:$0x7f]
        %v3619 = vmax.f32 %v3608, %v3614
        %v3620 = vmax.f32 %v3610, %v3616
        %v3621 = vmax.f32 %v3612, %v3618
        %v3622 = vmax.f32 %v3604, %v3619
        %v3623 = vmax.f32 %v3605, %v3620
        %v3624 = vmax.f32 %v3606, %v3621
        %3625 = vst.msk [vmem:[#allocation3 + $0x159] sm:$0xff] %vm2785, %v3622
        %3626 = vst.msk [vmem:[#allocation3 + $0x161] sm:$0xff] %vm2785, %v3623
        %3627 = vst.msk [vmem:[#allocation3 + $0x169] sm:$0x7f] %vm3086, %v3624
        %s3628 = scalar_lea.vmem [#allocation2], 1472
        %v3629 = vld [vmem:[%s3628] ss:$2 sm:$0xff]
        %s3630 = scalar_lea.vmem [#allocation2], 1488
        %v3631 = vld [vmem:[%s3630] ss:$2 sm:$0xff]
        %s3632 = scalar_lea.vmem [#allocation2], 1504
        %v3633 = vld [vmem:[%s3632] ss:$2 sm:$0x7f]
        %s3634 = scalar_lea.vmem [#allocation2], 1473
        %v3635 = vld [vmem:[%s3634] ss:$2 sm:$0xff]
        %s3636 = scalar_lea.vmem [#allocation2], 1489
        %v3637 = vld [vmem:[%s3636] ss:$2 sm:$0xff]
        %s3638 = scalar_lea.vmem [#allocation2], 1505
        %v3639 = vld [vmem:[%s3638] ss:$2 sm:$0x7f]
        %v3640 = vmax.f32 %v3629, %v3635
        %v3641 = vmax.f32 %v3631, %v3637
        %v3642 = vmax.f32 %v3633, %v3639
        %s3643 = scalar_lea.vmem [#allocation2], 1518
        %v3644 = vld [vmem:[%s3643] ss:$2 sm:$0xff]
        %s3645 = scalar_lea.vmem [#allocation2], 1534
        %v3646 = vld [vmem:[%s3645] ss:$2 sm:$0xff]
        %s3647 = scalar_lea.vmem [#allocation2], 1550
        %v3648 = vld [vmem:[%s3647] ss:$2 sm:$0x7f]
        %s3649 = scalar_lea.vmem [#allocation2], 1519
        %v3650 = vld [vmem:[%s3649] ss:$2 sm:$0xff]
        %s3651 = scalar_lea.vmem [#allocation2], 1535
        %v3652 = vld [vmem:[%s3651] ss:$2 sm:$0xff]
        %s3653 = scalar_lea.vmem [#allocation2], 1551
        %v3654 = vld [vmem:[%s3653] ss:$2 sm:$0x7f]
        %v3655 = vmax.f32 %v3644, %v3650
        %v3656 = vmax.f32 %v3646, %v3652
        %v3657 = vmax.f32 %v3648, %v3654
        %v3658 = vmax.f32 %v3640, %v3655
        %v3659 = vmax.f32 %v3641, %v3656
        %v3660 = vmax.f32 %v3642, %v3657
        %3661 = vst.msk [vmem:[#allocation3 + $0x170] sm:$0xff] %vm2785, %v3658
        %3662 = vst.msk [vmem:[#allocation3 + $0x178] sm:$0xff] %vm2785, %v3659
        %3663 = vst.msk [vmem:[#allocation3 + $0x180] sm:$0x7f] %vm3086, %v3660
        %s3664 = scalar_lea.vmem [#allocation2], 1564
        %v3665 = vld [vmem:[%s3664] ss:$2 sm:$0xff]
        %s3666 = scalar_lea.vmem [#allocation2], 1580
        %v3667 = vld [vmem:[%s3666] ss:$2 sm:$0xff]
        %s3668 = scalar_lea.vmem [#allocation2], 1596
        %v3669 = vld [vmem:[%s3668] ss:$2 sm:$0x7f]
        %s3670 = scalar_lea.vmem [#allocation2], 1565
        %v3671 = vld [vmem:[%s3670] ss:$2 sm:$0xff]
        %s3672 = scalar_lea.vmem [#allocation2], 1581
        %v3673 = vld [vmem:[%s3672] ss:$2 sm:$0xff]
        %s3674 = scalar_lea.vmem [#allocation2], 1597
        %v3675 = vld [vmem:[%s3674] ss:$2 sm:$0x7f]
        %v3676 = vmax.f32 %v3665, %v3671
        %v3677 = vmax.f32 %v3667, %v3673
        %v3678 = vmax.f32 %v3669, %v3675
        %s3679 = scalar_lea.vmem [#allocation2], 1610
        %v3680 = vld [vmem:[%s3679] ss:$2 sm:$0xff]
        %s3681 = scalar_lea.vmem [#allocation2], 1626
        %v3682 = vld [vmem:[%s3681] ss:$2 sm:$0xff]
        %s3683 = scalar_lea.vmem [#allocation2], 1642
        %v3684 = vld [vmem:[%s3683] ss:$2 sm:$0x7f]
        %s3685 = scalar_lea.vmem [#allocation2], 1611
        %v3686 = vld [vmem:[%s3685] ss:$2 sm:$0xff]
        %s3687 = scalar_lea.vmem [#allocation2], 1627
        %v3688 = vld [vmem:[%s3687] ss:$2 sm:$0xff]
        %s3689 = scalar_lea.vmem [#allocation2], 1643
        %v3690 = vld [vmem:[%s3689] ss:$2 sm:$0x7f]
        %v3691 = vmax.f32 %v3680, %v3686
        %v3692 = vmax.f32 %v3682, %v3688
        %v3693 = vmax.f32 %v3684, %v3690
        %v3694 = vmax.f32 %v3676, %v3691
        %v3695 = vmax.f32 %v3677, %v3692
        %v3696 = vmax.f32 %v3678, %v3693
        %3697 = vst.msk [vmem:[#allocation3 + $0x187] sm:$0xff] %vm2785, %v3694
        %3698 = vst.msk [vmem:[#allocation3 + $0x18f] sm:$0xff] %vm2785, %v3695
        %3699 = vst.msk [vmem:[#allocation3 + $0x197] sm:$0x7f] %vm3086, %v3696
        %s3700 = scalar_lea.vmem [#allocation2], 1656
        %v3701 = vld [vmem:[%s3700] ss:$2 sm:$0xff]
        %s3702 = scalar_lea.vmem [#allocation2], 1672
        %v3703 = vld [vmem:[%s3702] ss:$2 sm:$0xff]
        %s3704 = scalar_lea.vmem [#allocation2], 1688
        %v3705 = vld [vmem:[%s3704] ss:$2 sm:$0x7f]
        %s3706 = scalar_lea.vmem [#allocation2], 1657
        %v3707 = vld [vmem:[%s3706] ss:$2 sm:$0xff]
        %s3708 = scalar_lea.vmem [#allocation2], 1673
        %v3709 = vld [vmem:[%s3708] ss:$2 sm:$0xff]
        %s3710 = scalar_lea.vmem [#allocation2], 1689
        %v3711 = vld [vmem:[%s3710] ss:$2 sm:$0x7f]
        %v3712 = vmax.f32 %v3701, %v3707
        %v3713 = vmax.f32 %v3703, %v3709
        %v3714 = vmax.f32 %v3705, %v3711
        %s3715 = scalar_lea.vmem [#allocation2], 1702
        %v3716 = vld [vmem:[%s3715] ss:$2 sm:$0xff]
        %s3717 = scalar_lea.vmem [#allocation2], 1718
        %v3718 = vld [vmem:[%s3717] ss:$2 sm:$0xff]
        %s3719 = scalar_lea.vmem [#allocation2], 1734
        %v3720 = vld [vmem:[%s3719] ss:$2 sm:$0x7f]
        %s3721 = scalar_lea.vmem [#allocation2], 1703
        %v3722 = vld [vmem:[%s3721] ss:$2 sm:$0xff]
        %s3723 = scalar_lea.vmem [#allocation2], 1719
        %v3724 = vld [vmem:[%s3723] ss:$2 sm:$0xff]
        %s3725 = scalar_lea.vmem [#allocation2], 1735
        %v3726 = vld [vmem:[%s3725] ss:$2 sm:$0x7f]
        %v3727 = vmax.f32 %v3716, %v3722
        %v3728 = vmax.f32 %v3718, %v3724
        %v3729 = vmax.f32 %v3720, %v3726
        %v3730 = vmax.f32 %v3712, %v3727
        %v3731 = vmax.f32 %v3713, %v3728
        %v3732 = vmax.f32 %v3714, %v3729
        %3733 = vst.msk [vmem:[#allocation3 + $0x19e] sm:$0xff] %vm2785, %v3730
        %3734 = vst.msk [vmem:[#allocation3 + $0x1a6] sm:$0xff] %vm2785, %v3731
        %3735 = vst.msk [vmem:[#allocation3 + $0x1ae] sm:$0x7f] %vm3086, %v3732
        %s3736 = scalar_lea.vmem [#allocation2], 1748
        %v3737 = vld [vmem:[%s3736] ss:$2 sm:$0xff]
        %s3738 = scalar_lea.vmem [#allocation2], 1764
        %v3739 = vld [vmem:[%s3738] ss:$2 sm:$0xff]
        %s3740 = scalar_lea.vmem [#allocation2], 1780
        %v3741 = vld [vmem:[%s3740] ss:$2 sm:$0x7f]
        %s3742 = scalar_lea.vmem [#allocation2], 1749
        %v3743 = vld [vmem:[%s3742] ss:$2 sm:$0xff]
        %s3744 = scalar_lea.vmem [#allocation2], 1765
        %v3745 = vld [vmem:[%s3744] ss:$2 sm:$0xff]
        %s3746 = scalar_lea.vmem [#allocation2], 1781
        %v3747 = vld [vmem:[%s3746] ss:$2 sm:$0x7f]
        %v3748 = vmax.f32 %v3737, %v3743
        %v3749 = vmax.f32 %v3739, %v3745
        %v3750 = vmax.f32 %v3741, %v3747
        %s3751 = scalar_lea.vmem [#allocation2], 1794
        %v3752 = vld [vmem:[%s3751] ss:$2 sm:$0xff]
        %s3753 = scalar_lea.vmem [#allocation2], 1810
        %v3754 = vld [vmem:[%s3753] ss:$2 sm:$0xff]
        %s3755 = scalar_lea.vmem [#allocation2], 1826
        %v3756 = vld [vmem:[%s3755] ss:$2 sm:$0x7f]
        %s3757 = scalar_lea.vmem [#allocation2], 1795
        %v3758 = vld [vmem:[%s3757] ss:$2 sm:$0xff]
        %s3759 = scalar_lea.vmem [#allocation2], 1811
        %v3760 = vld [vmem:[%s3759] ss:$2 sm:$0xff]
        %s3761 = scalar_lea.vmem [#allocation2], 1827
        %v3762 = vld [vmem:[%s3761] ss:$2 sm:$0x7f]
        %v3763 = vmax.f32 %v3752, %v3758
        %v3764 = vmax.f32 %v3754, %v3760
        %v3765 = vmax.f32 %v3756, %v3762
        %v3766 = vmax.f32 %v3748, %v3763
        %v3767 = vmax.f32 %v3749, %v3764
        %v3768 = vmax.f32 %v3750, %v3765
        %3769 = vst.msk [vmem:[#allocation3 + $0x1b5] sm:$0xff] %vm2785, %v3766
        %3770 = vst.msk [vmem:[#allocation3 + $0x1bd] sm:$0xff] %vm2785, %v3767
        %3771 = vst.msk [vmem:[#allocation3 + $0x1c5] sm:$0x7f] %vm3086, %v3768
        %s3772 = scalar_lea.vmem [#allocation2], 1840
        %v3773 = vld [vmem:[%s3772] ss:$2 sm:$0xff]
        %s3774 = scalar_lea.vmem [#allocation2], 1856
        %v3775 = vld [vmem:[%s3774] ss:$2 sm:$0xff]
        %s3776 = scalar_lea.vmem [#allocation2], 1872
        %v3777 = vld [vmem:[%s3776] ss:$2 sm:$0x7f]
        %s3778 = scalar_lea.vmem [#allocation2], 1841
        %v3779 = vld [vmem:[%s3778] ss:$2 sm:$0xff]
        %s3780 = scalar_lea.vmem [#allocation2], 1857
        %v3781 = vld [vmem:[%s3780] ss:$2 sm:$0xff]
        %s3782 = scalar_lea.vmem [#allocation2], 1873
        %v3783 = vld [vmem:[%s3782] ss:$2 sm:$0x7f]
        %v3784 = vmax.f32 %v3773, %v3779
        %v3785 = vmax.f32 %v3775, %v3781
        %v3786 = vmax.f32 %v3777, %v3783
        %s3787 = scalar_lea.vmem [#allocation2], 1886
        %v3788 = vld [vmem:[%s3787] ss:$2 sm:$0xff]
        %s3789 = scalar_lea.vmem [#allocation2], 1902
        %v3790 = vld [vmem:[%s3789] ss:$2 sm:$0xff]
        %s3791 = scalar_lea.vmem [#allocation2], 1918
        %v3792 = vld [vmem:[%s3791] ss:$2 sm:$0x7f]
        %s3793 = scalar_lea.vmem [#allocation2], 1887
        %v3794 = vld [vmem:[%s3793] ss:$2 sm:$0xff]
        %s3795 = scalar_lea.vmem [#allocation2], 1903
        %v3796 = vld [vmem:[%s3795] ss:$2 sm:$0xff]
        %s3797 = scalar_lea.vmem [#allocation2], 1919
        %v3798 = vld [vmem:[%s3797] ss:$2 sm:$0x7f]
        %v3799 = vmax.f32 %v3788, %v3794
        %v3800 = vmax.f32 %v3790, %v3796
        %v3801 = vmax.f32 %v3792, %v3798
        %v3802 = vmax.f32 %v3784, %v3799
        %v3803 = vmax.f32 %v3785, %v3800
        %v3804 = vmax.f32 %v3786, %v3801
        %3805 = vst.msk [vmem:[#allocation3 + $0x1cc] sm:$0xff] %vm2785, %v3802
        %3806 = vst.msk [vmem:[#allocation3 + $0x1d4] sm:$0xff] %vm2785, %v3803
        %3807 = vst.msk [vmem:[#allocation3 + $0x1dc] sm:$0x7f] %vm3086, %v3804
        %s3808 = scalar_lea.vmem [#allocation2], 1932
        %v3809 = vld [vmem:[%s3808] ss:$2 sm:$0xff]
        %s3810 = scalar_lea.vmem [#allocation2], 1948
        %v3811 = vld [vmem:[%s3810] ss:$2 sm:$0xff]
        %s3812 = scalar_lea.vmem [#allocation2], 1964
        %v3813 = vld [vmem:[%s3812] ss:$2 sm:$0x7f]
        %s3814 = scalar_lea.vmem [#allocation2], 1933
        %v3815 = vld [vmem:[%s3814] ss:$2 sm:$0xff]
        %s3816 = scalar_lea.vmem [#allocation2], 1949
        %v3817 = vld [vmem:[%s3816] ss:$2 sm:$0xff]
        %s3818 = scalar_lea.vmem [#allocation2], 1965
        %v3819 = vld [vmem:[%s3818] ss:$2 sm:$0x7f]
        %v3820 = vmax.f32 %v3809, %v3815
        %v3821 = vmax.f32 %v3811, %v3817
        %v3822 = vmax.f32 %v3813, %v3819
        %s3823 = scalar_lea.vmem [#allocation2], 1978
        %v3824 = vld [vmem:[%s3823] ss:$2 sm:$0xff]
        %s3825 = scalar_lea.vmem [#allocation2], 1994
        %v3826 = vld [vmem:[%s3825] ss:$2 sm:$0xff]
        %s3827 = scalar_lea.vmem [#allocation2], 2010
        %v3828 = vld [vmem:[%s3827] ss:$2 sm:$0x7f]
        %s3829 = scalar_lea.vmem [#allocation2], 1979
        %v3830 = vld [vmem:[%s3829] ss:$2 sm:$0xff]
        %s3831 = scalar_lea.vmem [#allocation2], 1995
        %v3832 = vld [vmem:[%s3831] ss:$2 sm:$0xff]
        %s3833 = scalar_lea.vmem [#allocation2], 2011
        %v3834 = vld [vmem:[%s3833] ss:$2 sm:$0x7f]
        %v3835 = vmax.f32 %v3824, %v3830
        %v3836 = vmax.f32 %v3826, %v3832
        %v3837 = vmax.f32 %v3828, %v3834
        %v3838 = vmax.f32 %v3820, %v3835
        %v3839 = vmax.f32 %v3821, %v3836
        %v3840 = vmax.f32 %v3822, %v3837
        %3841 = vst.msk [vmem:[#allocation3 + $0x1e3] sm:$0xff] %vm2785, %v3838
        %3842 = vst.msk [vmem:[#allocation3 + $0x1eb] sm:$0xff] %vm2785, %v3839
        %3843 = vst.msk [vmem:[#allocation3 + $0x1f3] sm:$0x7f] %vm3086, %v3840
        %s3844 = scalar_lea.vmem [#allocation2], 2024
        %v3845 = vld [vmem:[%s3844] ss:$2 sm:$0xff]
        %s3846 = scalar_lea.vmem [#allocation2], 2040
        %v3847 = vld [vmem:[%s3846] ss:$2 sm:$0xff]
        %s3848 = scalar_lea.vmem [#allocation2], 2056
        %v3849 = vld [vmem:[%s3848] ss:$2 sm:$0x7f]
        %s3850 = scalar_lea.vmem [#allocation2], 2025
        %v3851 = vld [vmem:[%s3850] ss:$2 sm:$0xff]
        %s3852 = scalar_lea.vmem [#allocation2], 2041
        %v3853 = vld [vmem:[%s3852] ss:$2 sm:$0xff]
        %s3854 = scalar_lea.vmem [#allocation2], 2057
        %v3855 = vld [vmem:[%s3854] ss:$2 sm:$0x7f]
        %v3856 = vmax.f32 %v3845, %v3851
        %v3857 = vmax.f32 %v3847, %v3853
        %v3858 = vmax.f32 %v3849, %v3855
        %s3859 = scalar_lea.vmem [#allocation2], 2070
        %v3860 = vld [vmem:[%s3859] ss:$2 sm:$0xff]
        %s3861 = scalar_lea.vmem [#allocation2], 2086
        %v3862 = vld [vmem:[%s3861] ss:$2 sm:$0xff]
        %s3863 = scalar_lea.vmem [#allocation2], 2102
        %v3864 = vld [vmem:[%s3863] ss:$2 sm:$0x7f]
        %s3865 = scalar_lea.vmem [#allocation2], 2071
        %v3866 = vld [vmem:[%s3865] ss:$2 sm:$0xff]
        %s3867 = scalar_lea.vmem [#allocation2], 2087
        %v3868 = vld [vmem:[%s3867] ss:$2 sm:$0xff]
        %s3869 = scalar_lea.vmem [#allocation2], 2103
        %v3870 = vld [vmem:[%s3869] ss:$2 sm:$0x7f]
        %v3871 = vmax.f32 %v3860, %v3866
        %v3872 = vmax.f32 %v3862, %v3868
        %v3873 = vmax.f32 %v3864, %v3870
        %v3874 = vmax.f32 %v3856, %v3871
        %v3875 = vmax.f32 %v3857, %v3872
        %v3876 = vmax.f32 %v3858, %v3873
        %3877 = vst.msk [vmem:[#allocation3 + $0x1fa] sm:$0xff] %vm2785, %v3874
        %3878 = vst.msk [vmem:[#allocation3 + $0x202] sm:$0xff] %vm2785, %v3875
        %3879 = vst.msk [vmem:[#allocation3 + $0x20a] sm:$0x7f] %vm3086, %v3876
        %v3880 = vld [vmem:[#allocation3] sm:$0xff]
        %v3881 = vld [vmem:[#allocation3 + $0x8] sm:$0xff]
        %v3882 = vld [vmem:[#allocation3 + $0x10] sm:$0xff]
        %v3883 = vld [vmem:[#allocation3 + $0x18] sm:$0xff]
        %v3884 = vld [vmem:[#allocation3 + $0x20] sm:$0xff]
        %v3885 = vld [vmem:[#allocation3 + $0x28] sm:$0xff]
        %v3886 = vld [vmem:[#allocation3 + $0x30] sm:$0xff]
        %v3887 = vld [vmem:[#allocation3 + $0x38] sm:$0xff]
        %v3888 = vld [vmem:[#allocation3 + $0x40] sm:$0xff]
        %v3889 = vld [vmem:[#allocation3 + $0x48] sm:$0xff]
        %v3890 = vld [vmem:[#allocation3 + $0x50] sm:$0xff]
        %v3891 = vld [vmem:[#allocation3 + $0x58] sm:$0xff]
        %v3892 = vld [vmem:[#allocation3 + $0x60] sm:$0xff]
        %v3893 = vld [vmem:[#allocation3 + $0x68] sm:$0xff]
        %v3894 = vld [vmem:[#allocation3 + $0x70] sm:$0xff]
        %v3895 = vld [vmem:[#allocation3 + $0x78] sm:$0xff]
        %v3896 = vld [vmem:[#allocation3 + $0x80] sm:$0xff]
        %v3897 = vld [vmem:[#allocation3 + $0x88] sm:$0xff]
        %v3898 = vld [vmem:[#allocation3 + $0x90] sm:$0xff]
        %v3899 = vld [vmem:[#allocation3 + $0x98] sm:$0xff]
        %v3900 = vld [vmem:[#allocation3 + $0xa0] sm:$0xff]
        %v3901 = vld [vmem:[#allocation3 + $0xa8] sm:$0xff]
        %v3902 = vld [vmem:[#allocation3 + $0xb0] sm:$0xff]
        %v3903 = vld [vmem:[#allocation3 + $0xb8] sm:$0xff]
        %v3904 = vld [vmem:[#allocation3 + $0xc0] sm:$0xff]
        %v3905 = vld [vmem:[#allocation3 + $0xc8] sm:$0xff]
        %v3906 = vld [vmem:[#allocation3 + $0xd0] sm:$0xff]
        %v3907 = vld [vmem:[#allocation3 + $0xd8] sm:$0xff]
        %v3908 = vld [vmem:[#allocation3 + $0xe0] sm:$0xff]
        %v3909 = vld [vmem:[#allocation3 + $0xe8] sm:$0xff]
        %v3910 = vld [vmem:[#allocation3 + $0xf0] sm:$0xff]
        %v3911 = vld [vmem:[#allocation3 + $0xf8] sm:$0xff]
        %v3912 = vld [vmem:[#allocation3 + $0x100] sm:$0xff]
        %v3913 = vld [vmem:[#allocation3 + $0x108] sm:$0xff]
        %v3914 = vld [vmem:[#allocation3 + $0x110] sm:$0xff]
        %v3915 = vld [vmem:[#allocation3 + $0x118] sm:$0xff]
        %v3916 = vld [vmem:[#allocation3 + $0x120] sm:$0xff]
        %v3917 = vld [vmem:[#allocation3 + $0x128] sm:$0xff]
        %v3918 = vld [vmem:[#allocation3 + $0x130] sm:$0xff]
        %v3919 = vld [vmem:[#allocation3 + $0x138] sm:$0xff]
        %v3920 = vld [vmem:[#allocation3 + $0x140] sm:$0xff]
        %v3921 = vld [vmem:[#allocation3 + $0x148] sm:$0xff]
        %v3922 = vld [vmem:[#allocation3 + $0x150] sm:$0xff]
        %v3923 = vld [vmem:[#allocation3 + $0x158] sm:$0xff]
        %v3924 = vld [vmem:[#allocation3 + $0x160] sm:$0xff]
        %v3925 = vld [vmem:[#allocation3 + $0x168] sm:$0xff]
        %v3926 = vld [vmem:[#allocation3 + $0x170] sm:$0xff]
        %v3927 = vld [vmem:[#allocation3 + $0x178] sm:$0xff]
        %v3928 = vld [vmem:[#allocation3 + $0x180] sm:$0xff]
        %v3929 = vld [vmem:[#allocation3 + $0x188] sm:$0xff]
        %v3930 = vld [vmem:[#allocation3 + $0x190] sm:$0xff]
        %v3931 = vld [vmem:[#allocation3 + $0x198] sm:$0xff]
        %v3932 = vld [vmem:[#allocation3 + $0x1a0] sm:$0xff]
        %v3933 = vld [vmem:[#allocation3 + $0x1a8] sm:$0xff]
        %v3934 = vld [vmem:[#allocation3 + $0x1b0] sm:$0xff]
        %v3935 = vld [vmem:[#allocation3 + $0x1b8] sm:$0xff]
        %v3936 = vld [vmem:[#allocation3 + $0x1c0] sm:$0xff]
        %v3937 = vld [vmem:[#allocation3 + $0x1c8] sm:$0xff]
        %v3938 = vld [vmem:[#allocation3 + $0x1d0] sm:$0xff]
        %v3939 = vld [vmem:[#allocation3 + $0x1d8] sm:$0xff]
        %v3940 = vld [vmem:[#allocation3 + $0x1e0] sm:$0xff]
        %v3941 = vld [vmem:[#allocation3 + $0x1e8] sm:$0xff]
        %v3942 = vld [vmem:[#allocation3 + $0x1f0] sm:$0xff]
        %v3943 = vld [vmem:[#allocation3 + $0x1f8] sm:$0xff]
        %v3944 = vld [vmem:[#allocation3 + $0x200] sm:$0xff]
        %v3945 = vld [vmem:[#allocation3 + $0x208] sm:$0xff]
        %v3946 = vld [vmem:[#allocation3 + $0x210] sm:$0x1]
        %v3947 = vpack.c.bf16 %v3881, %v3880
        %v3948 = vpack.c.bf16 %v3883, %v3882
        %v3949 = vpack.c.bf16 %v3885, %v3884
        %v3950 = vpack.c.bf16 %v3887, %v3886
        %v3951 = vpack.c.bf16 %v3889, %v3888
        %v3952 = vpack.c.bf16 %v3891, %v3890
        %v3953 = vpack.c.bf16 %v3893, %v3892
        %v3954 = vpack.c.bf16 %v3895, %v3894
        %v3955 = vpack.c.bf16 %v3897, %v3896
        %v3956 = vpack.c.bf16 %v3899, %v3898
        %v3957 = vpack.c.bf16 %v3901, %v3900
        %v3958 = vpack.c.bf16 %v3903, %v3902
        %v3959 = vpack.c.bf16 %v3905, %v3904
        %v3960 = vpack.c.bf16 %v3907, %v3906
        %v3961 = vpack.c.bf16 %v3909, %v3908
        %v3962 = vpack.c.bf16 %v3911, %v3910
        %v3963 = vpack.c.bf16 %v3913, %v3912
        %v3964 = vpack.c.bf16 %v3915, %v3914
        %v3965 = vpack.c.bf16 %v3917, %v3916
        %v3966 = vpack.c.bf16 %v3919, %v3918
        %v3967 = vpack.c.bf16 %v3921, %v3920
        %v3968 = vpack.c.bf16 %v3923, %v3922
        %v3969 = vpack.c.bf16 %v3925, %v3924
        %v3970 = vpack.c.bf16 %v3927, %v3926
        %v3971 = vpack.c.bf16 %v3929, %v3928
        %v3972 = vpack.c.bf16 %v3931, %v3930
        %v3973 = vpack.c.bf16 %v3933, %v3932
        %v3974 = vpack.c.bf16 %v3935, %v3934
        %v3975 = vpack.c.bf16 %v3937, %v3936
        %v3976 = vpack.c.bf16 %v3939, %v3938
        %v3977 = vpack.c.bf16 %v3941, %v3940
        %v3978 = vpack.c.bf16 %v3943, %v3942
        %v3979 = vpack.c.bf16 %v3945, %v3944
        %v3980 = vpack.c.bf16 %v3946, %v3946
        %v3981 = vld [vmem:[%s3] sm:$0xf]
        %v3982 = vld [vmem:[%s3 + $0x4] sm:$0xf]
        %v3983 = vld [vmem:[%s3 + $0x8] sm:$0xf]
        %v3984 = vld [vmem:[%s3 + $0xc] sm:$0xf]
        %v3985 = vld [vmem:[%s3 + $0x10] sm:$0xf]
        %v3986 = vld [vmem:[%s3 + $0x14] sm:$0xf]
        %v3987 = vld [vmem:[%s3 + $0x18] sm:$0xf]
        %v3988 = vld [vmem:[%s3 + $0x1c] sm:$0xf]
        %v3989 = vld [vmem:[%s4] sm:$0x1]
        %v3991 = vperm.slane %v3989, 0
        %v4001 = vunpack.c.l.b16 %v3981
        %v4002 = vunpack.c.l.b16 %v3982
        %v4003 = vunpack.c.l.b16 %v3983
        %v4004 = vunpack.c.l.b16 %v3984
        %v4005 = vunpack.c.l.b16 %v3985
        %v4006 = vunpack.c.l.b16 %v3986
        %v4007 = vunpack.c.l.b16 %v3987
        %v4008 = vunpack.c.l.b16 %v3988
        %v4009 = vpack.c.b16 %v4002, %v4001
        %v4010 = vpack.c.b16 %v4004, %v4003
        %v4011 = vpack.c.b16 %v4006, %v4005
        %v4012 = vpack.c.b16 %v4008, %v4007
        %v4018 = vsel %vm2785, %v3947, 0
        %v4021 = vsel %vm2785, %v3948, 0
        %v4024 = vsel %vm2785, %v3949, 0
        %v4027 = vsel %vm2785, %v3950, 0
        %v4030 = vsel %vm2785, %v3951, 0
        %v4033 = vsel %vm2785, %v3952, 0
        %v4036 = vsel %vm2785, %v3953, 0
        %v4039 = vsel %vm2785, %v3954, 0
        %v4042 = vsel %vm2785, %v3955, 0
        %v4045 = vsel %vm2785, %v3956, 0
        %v4048 = vsel %vm2785, %v3957, 0
        %v4051 = vsel %vm2785, %v3958, 0
        %v4054 = vsel %vm2785, %v3959, 0
        %v4057 = vsel %vm2785, %v3960, 0
        %v4060 = vsel %vm2785, %v3961, 0
        %v4063 = vsel %vm2785, %v3962, 0
        %v4066 = vsel %vm2785, %v3963, 0
        %v4069 = vsel %vm2785, %v3964, 0
        %v4072 = vsel %vm2785, %v3965, 0
        %v4075 = vsel %vm2785, %v3966, 0
        %v4078 = vsel %vm2785, %v3967, 0
        %v4081 = vsel %vm2785, %v3968, 0
        %v4084 = vsel %vm2785, %v3969, 0
        %v4087 = vsel %vm2785, %v3970, 0
        %v4090 = vsel %vm2785, %v3971, 0
        %v4093 = vsel %vm2785, %v3972, 0
        %v4096 = vsel %vm2785, %v3973, 0
        %v4099 = vsel %vm2785, %v3974, 0
        %v4102 = vsel %vm2785, %v3975, 0
        %v4105 = vsel %vm2785, %v3976, 0
        %v4108 = vsel %vm2785, %v3977, 0
        %v4111 = vsel %vm2785, %v3978, 0
        %v4114 = vsel %vm2785, %v3979, 0
        %v4117 = vsel %vm2785, %v3980, 0
        %4119 = vmatpush.bf16.msra.mxu0 0
        %4120 = vmatpush.bf16.msra.mxu0 0
        %4121 = vmatpush.bf16.msra.mxu0 0
        %4122 = vmatpush.bf16.msra.mxu0 0
        %4123 = vmatpush.bf16.msra.mxu0 %v4012
        %4124 = vmatpush.bf16.msra.mxu0 %v4011
        %4125 = vmatpush.bf16.msra.mxu0 %v4010
        %4126 = vmatpush.bf16.msra.mxu0 %v4009
        %4127 = vmatmul.bf16.gmra.mxu0 %v4018
        %v4128 = vpop.f32.mrf.mxu0
        %v4129 = vadd.f32 %v3991, %v4128
        %v4130 = vpop.f32.mrf.mxu0
        %v4131 = vadd.f32 %v3991, %v4130
        %4132 = vmatmul.bf16.gmra.mxu0 %v4021
        %v4133 = vpop.f32.mrf.mxu0
        %v4134 = vadd.f32 %v3991, %v4133
        %v4135 = vpop.f32.mrf.mxu0
        %v4136 = vadd.f32 %v3991, %v4135
        %4137 = vmatmul.bf16.gmra.mxu0 %v4024
        %v4138 = vpop.f32.mrf.mxu0
        %v4139 = vadd.f32 %v3991, %v4138
        %v4140 = vpop.f32.mrf.mxu0
        %v4141 = vadd.f32 %v3991, %v4140
        %4142 = vmatmul.bf16.gmra.mxu0 %v4027
        %v4143 = vpop.f32.mrf.mxu0
        %v4144 = vadd.f32 %v3991, %v4143
        %v4145 = vpop.f32.mrf.mxu0
        %v4146 = vadd.f32 %v3991, %v4145
        %4147 = vmatmul.bf16.gmra.mxu0 %v4030
        %v4148 = vpop.f32.mrf.mxu0
        %v4149 = vadd.f32 %v3991, %v4148
        %v4150 = vpop.f32.mrf.mxu0
        %v4151 = vadd.f32 %v3991, %v4150
        %4152 = vmatmul.bf16.gmra.mxu0 %v4033
        %v4153 = vpop.f32.mrf.mxu0
        %v4154 = vadd.f32 %v3991, %v4153
        %v4155 = vpop.f32.mrf.mxu0
        %v4156 = vadd.f32 %v3991, %v4155
        %4157 = vmatmul.bf16.gmra.mxu0 %v4036
        %v4158 = vpop.f32.mrf.mxu0
        %v4159 = vadd.f32 %v3991, %v4158
        %v4160 = vpop.f32.mrf.mxu0
        %v4161 = vadd.f32 %v3991, %v4160
        %4162 = vmatmul.bf16.gmra.mxu0 %v4039
        %v4163 = vpop.f32.mrf.mxu0
        %v4164 = vadd.f32 %v3991, %v4163
        %v4165 = vpop.f32.mrf.mxu0
        %v4166 = vadd.f32 %v3991, %v4165
        %4167 = vmatmul.bf16.gmra.mxu0 %v4042
        %v4168 = vpop.f32.mrf.mxu0
        %v4169 = vadd.f32 %v3991, %v4168
        %v4170 = vpop.f32.mrf.mxu0
        %v4171 = vadd.f32 %v3991, %v4170
        %4172 = vmatmul.bf16.gmra.mxu0 %v4045
        %v4173 = vpop.f32.mrf.mxu0
        %v4174 = vadd.f32 %v3991, %v4173
        %v4175 = vpop.f32.mrf.mxu0
        %v4176 = vadd.f32 %v3991, %v4175
        %4177 = vmatmul.bf16.gmra.mxu0 %v4048
        %v4178 = vpop.f32.mrf.mxu0
        %v4179 = vadd.f32 %v3991, %v4178
        %v4180 = vpop.f32.mrf.mxu0
        %v4181 = vadd.f32 %v3991, %v4180
        %4182 = vmatmul.bf16.gmra.mxu0 %v4051
        %v4183 = vpop.f32.mrf.mxu0
        %v4184 = vadd.f32 %v3991, %v4183
        %v4185 = vpop.f32.mrf.mxu0
        %v4186 = vadd.f32 %v3991, %v4185
        %4187 = vmatmul.bf16.gmra.mxu0 %v4054
        %v4188 = vpop.f32.mrf.mxu0
        %v4189 = vadd.f32 %v3991, %v4188
        %v4190 = vpop.f32.mrf.mxu0
        %v4191 = vadd.f32 %v3991, %v4190
        %4192 = vmatmul.bf16.gmra.mxu0 %v4057
        %v4193 = vpop.f32.mrf.mxu0
        %v4194 = vadd.f32 %v3991, %v4193
        %v4195 = vpop.f32.mrf.mxu0
        %v4196 = vadd.f32 %v3991, %v4195
        %4197 = vmatmul.bf16.gmra.mxu0 %v4060
        %v4198 = vpop.f32.mrf.mxu0
        %v4199 = vadd.f32 %v3991, %v4198
        %v4200 = vpop.f32.mrf.mxu0
        %v4201 = vadd.f32 %v3991, %v4200
        %4202 = vmatmul.bf16.gmra.mxu0 %v4063
        %v4203 = vpop.f32.mrf.mxu0
        %v4204 = vadd.f32 %v3991, %v4203
        %v4205 = vpop.f32.mrf.mxu0
        %v4206 = vadd.f32 %v3991, %v4205
        %4207 = vmatmul.bf16.gmra.mxu0 %v4066
        %v4208 = vpop.f32.mrf.mxu0
        %v4209 = vadd.f32 %v3991, %v4208
        %v4210 = vpop.f32.mrf.mxu0
        %v4211 = vadd.f32 %v3991, %v4210
        %4212 = vmatmul.bf16.gmra.mxu0 %v4069
        %v4213 = vpop.f32.mrf.mxu0
        %v4214 = vadd.f32 %v3991, %v4213
        %v4215 = vpop.f32.mrf.mxu0
        %v4216 = vadd.f32 %v3991, %v4215
        %4217 = vmatmul.bf16.gmra.mxu0 %v4072
        %v4218 = vpop.f32.mrf.mxu0
        %v4219 = vadd.f32 %v3991, %v4218
        %v4220 = vpop.f32.mrf.mxu0
        %v4221 = vadd.f32 %v3991, %v4220
        %4222 = vmatmul.bf16.gmra.mxu0 %v4075
        %v4223 = vpop.f32.mrf.mxu0
        %v4224 = vadd.f32 %v3991, %v4223
        %v4225 = vpop.f32.mrf.mxu0
        %v4226 = vadd.f32 %v3991, %v4225
        %4227 = vmatmul.bf16.gmra.mxu0 %v4078
        %v4228 = vpop.f32.mrf.mxu0
        %v4229 = vadd.f32 %v3991, %v4228
        %v4230 = vpop.f32.mrf.mxu0
        %v4231 = vadd.f32 %v3991, %v4230
        %4232 = vmatmul.bf16.gmra.mxu0 %v4081
        %v4233 = vpop.f32.mrf.mxu0
        %v4234 = vadd.f32 %v3991, %v4233
        %v4235 = vpop.f32.mrf.mxu0
        %v4236 = vadd.f32 %v3991, %v4235
        %4237 = vmatmul.bf16.gmra.mxu0 %v4084
        %v4238 = vpop.f32.mrf.mxu0
        %v4239 = vadd.f32 %v3991, %v4238
        %v4240 = vpop.f32.mrf.mxu0
        %v4241 = vadd.f32 %v3991, %v4240
        %4242 = vmatmul.bf16.gmra.mxu0 %v4087
        %v4243 = vpop.f32.mrf.mxu0
        %v4244 = vadd.f32 %v3991, %v4243
        %v4245 = vpop.f32.mrf.mxu0
        %v4246 = vadd.f32 %v3991, %v4245
        %4247 = vmatmul.bf16.gmra.mxu0 %v4090
        %v4248 = vpop.f32.mrf.mxu0
        %v4249 = vadd.f32 %v3991, %v4248
        %v4250 = vpop.f32.mrf.mxu0
        %v4251 = vadd.f32 %v3991, %v4250
        %4252 = vmatmul.bf16.gmra.mxu0 %v4093
        %v4253 = vpop.f32.mrf.mxu0
        %v4254 = vadd.f32 %v3991, %v4253
        %v4255 = vpop.f32.mrf.mxu0
        %v4256 = vadd.f32 %v3991, %v4255
        %4257 = vmatmul.bf16.gmra.mxu0 %v4096
        %v4258 = vpop.f32.mrf.mxu0
        %v4259 = vadd.f32 %v3991, %v4258
        %v4260 = vpop.f32.mrf.mxu0
        %v4261 = vadd.f32 %v3991, %v4260
        %4262 = vmatmul.bf16.gmra.mxu0 %v4099
        %v4263 = vpop.f32.mrf.mxu0
        %v4264 = vadd.f32 %v3991, %v4263
        %v4265 = vpop.f32.mrf.mxu0
        %v4266 = vadd.f32 %v3991, %v4265
        %4267 = vmatmul.bf16.gmra.mxu0 %v4102
        %v4268 = vpop.f32.mrf.mxu0
        %v4269 = vadd.f32 %v3991, %v4268
        %v4270 = vpop.f32.mrf.mxu0
        %v4271 = vadd.f32 %v3991, %v4270
        %4272 = vmatmul.bf16.gmra.mxu0 %v4105
        %v4273 = vpop.f32.mrf.mxu0
        %v4274 = vadd.f32 %v3991, %v4273
        %v4275 = vpop.f32.mrf.mxu0
        %v4276 = vadd.f32 %v3991, %v4275
        %4277 = vmatmul.bf16.gmra.mxu0 %v4108
        %v4278 = vpop.f32.mrf.mxu0
        %v4279 = vadd.f32 %v3991, %v4278
        %v4280 = vpop.f32.mrf.mxu0
        %v4281 = vadd.f32 %v3991, %v4280
        %4282 = vmatmul.bf16.gmra.mxu0 %v4111
        %v4283 = vpop.f32.mrf.mxu0
        %v4284 = vadd.f32 %v3991, %v4283
        %v4285 = vpop.f32.mrf.mxu0
        %v4286 = vadd.f32 %v3991, %v4285
        %4287 = vmatmul.bf16.gmra.mxu0 %v4114
        %v4288 = vpop.f32.mrf.mxu0
        %v4289 = vadd.f32 %v3991, %v4288
        %v4290 = vpop.f32.mrf.mxu0
        %v4291 = vadd.f32 %v3991, %v4290
        %4292 = vmatmul.bf16.gmra.mxu0 %v4117
        %v4293 = vpop.f32.mrf.mxu0
        %v4294 = vadd.f32 %v3991, %v4293
        %v4295 = vpop.f32.mrf.mxu0
        %4296 = vdwg.mxu0
        %v4297 = vmax.f32 %v4129, 0.0
        %v4298 = vmax.f32 %v4131, 0.0
        %v4299 = vmax.f32 %v4134, 0.0
        %v4300 = vmax.f32 %v4136, 0.0
        %v4301 = vmax.f32 %v4139, 0.0
        %v4302 = vmax.f32 %v4141, 0.0
        %v4303 = vmax.f32 %v4144, 0.0
        %v4304 = vmax.f32 %v4146, 0.0
        %v4305 = vmax.f32 %v4149, 0.0
        %v4306 = vmax.f32 %v4151, 0.0
        %v4307 = vmax.f32 %v4154, 0.0
        %v4308 = vmax.f32 %v4156, 0.0
        %v4309 = vmax.f32 %v4159, 0.0
        %v4310 = vmax.f32 %v4161, 0.0
        %v4311 = vmax.f32 %v4164, 0.0
        %v4312 = vmax.f32 %v4166, 0.0
        %v4313 = vmax.f32 %v4169, 0.0
        %v4314 = vmax.f32 %v4171, 0.0
        %v4315 = vmax.f32 %v4174, 0.0
        %v4316 = vmax.f32 %v4176, 0.0
        %v4317 = vmax.f32 %v4179, 0.0
        %v4318 = vmax.f32 %v4181, 0.0
        %v4319 = vmax.f32 %v4184, 0.0
        %v4320 = vmax.f32 %v4186, 0.0
        %v4321 = vmax.f32 %v4189, 0.0
        %v4322 = vmax.f32 %v4191, 0.0
        %v4323 = vmax.f32 %v4194, 0.0
        %v4324 = vmax.f32 %v4196, 0.0
        %v4325 = vmax.f32 %v4199, 0.0
        %v4326 = vmax.f32 %v4201, 0.0
        %v4327 = vmax.f32 %v4204, 0.0
        %v4328 = vmax.f32 %v4206, 0.0
        %v4329 = vmax.f32 %v4209, 0.0
        %v4330 = vmax.f32 %v4211, 0.0
        %v4331 = vmax.f32 %v4214, 0.0
        %v4332 = vmax.f32 %v4216, 0.0
        %v4333 = vmax.f32 %v4219, 0.0
        %v4334 = vmax.f32 %v4221, 0.0
        %v4335 = vmax.f32 %v4224, 0.0
        %v4336 = vmax.f32 %v4226, 0.0
        %v4337 = vmax.f32 %v4229, 0.0
        %v4338 = vmax.f32 %v4231, 0.0
        %v4339 = vmax.f32 %v4234, 0.0
        %v4340 = vmax.f32 %v4236, 0.0
        %v4341 = vmax.f32 %v4239, 0.0
        %v4342 = vmax.f32 %v4241, 0.0
        %v4343 = vmax.f32 %v4244, 0.0
        %v4344 = vmax.f32 %v4246, 0.0
        %v4345 = vmax.f32 %v4249, 0.0
        %v4346 = vmax.f32 %v4251, 0.0
        %v4347 = vmax.f32 %v4254, 0.0
        %v4348 = vmax.f32 %v4256, 0.0
        %v4349 = vmax.f32 %v4259, 0.0
        %v4350 = vmax.f32 %v4261, 0.0
        %v4351 = vmax.f32 %v4264, 0.0
        %v4352 = vmax.f32 %v4266, 0.0
        %v4353 = vmax.f32 %v4269, 0.0
        %v4354 = vmax.f32 %v4271, 0.0
        %v4355 = vmax.f32 %v4274, 0.0
        %v4356 = vmax.f32 %v4276, 0.0
        %v4357 = vmax.f32 %v4279, 0.0
        %v4358 = vmax.f32 %v4281, 0.0
        %v4359 = vmax.f32 %v4284, 0.0
        %v4360 = vmax.f32 %v4286, 0.0
        %v4361 = vmax.f32 %v4289, 0.0
        %v4362 = vmax.f32 %v4291, 0.0
        %v4363 = vmax.f32 %v4294, 0.0
        %v4364 = vpack.c.bf16 %v4297, %v4297
        %v4365 = vpack.c.bf16 %v4298, %v4298
        %v4366 = vpack.c.bf16 %v4299, %v4299
        %v4367 = vpack.c.bf16 %v4300, %v4300
        %v4368 = vpack.c.bf16 %v4301, %v4301
        %v4369 = vpack.c.bf16 %v4302, %v4302
        %v4370 = vpack.c.bf16 %v4303, %v4303
        %v4371 = vpack.c.bf16 %v4304, %v4304
        %v4372 = vpack.c.bf16 %v4305, %v4305
        %v4373 = vpack.c.bf16 %v4306, %v4306
        %v4374 = vpack.c.bf16 %v4307, %v4307
        %v4375 = vpack.c.bf16 %v4308, %v4308
        %v4376 = vpack.c.bf16 %v4309, %v4309
        %v4377 = vpack.c.bf16 %v4310, %v4310
        %v4378 = vpack.c.bf16 %v4311, %v4311
        %v4379 = vpack.c.bf16 %v4312, %v4312
        %v4380 = vpack.c.bf16 %v4313, %v4313
        %v4381 = vpack.c.bf16 %v4314, %v4314
        %v4382 = vpack.c.bf16 %v4315, %v4315
        %v4383 = vpack.c.bf16 %v4316, %v4316
        %v4384 = vpack.c.bf16 %v4317, %v4317
        %v4385 = vpack.c.bf16 %v4318, %v4318
        %v4386 = vpack.c.bf16 %v4319, %v4319
        %v4387 = vpack.c.bf16 %v4320, %v4320
        %v4388 = vpack.c.bf16 %v4321, %v4321
        %v4389 = vpack.c.bf16 %v4322, %v4322
        %v4390 = vpack.c.bf16 %v4323, %v4323
        %v4391 = vpack.c.bf16 %v4324, %v4324
        %v4392 = vpack.c.bf16 %v4325, %v4325
        %v4393 = vpack.c.bf16 %v4326, %v4326
        %v4394 = vpack.c.bf16 %v4327, %v4327
        %v4395 = vpack.c.bf16 %v4328, %v4328
        %v4396 = vpack.c.bf16 %v4329, %v4329
        %v4397 = vpack.c.bf16 %v4330, %v4330
        %v4398 = vpack.c.bf16 %v4331, %v4331
        %v4399 = vpack.c.bf16 %v4332, %v4332
        %v4400 = vpack.c.bf16 %v4333, %v4333
        %v4401 = vpack.c.bf16 %v4334, %v4334
        %v4402 = vpack.c.bf16 %v4335, %v4335
        %v4403 = vpack.c.bf16 %v4336, %v4336
        %v4404 = vpack.c.bf16 %v4337, %v4337
        %v4405 = vpack.c.bf16 %v4338, %v4338
        %v4406 = vpack.c.bf16 %v4339, %v4339
        %v4407 = vpack.c.bf16 %v4340, %v4340
        %v4408 = vpack.c.bf16 %v4341, %v4341
        %v4409 = vpack.c.bf16 %v4342, %v4342
        %v4410 = vpack.c.bf16 %v4343, %v4343
        %v4411 = vpack.c.bf16 %v4344, %v4344
        %v4412 = vpack.c.bf16 %v4345, %v4345
        %v4413 = vpack.c.bf16 %v4346, %v4346
        %v4414 = vpack.c.bf16 %v4347, %v4347
        %v4415 = vpack.c.bf16 %v4348, %v4348
        %v4416 = vpack.c.bf16 %v4349, %v4349
        %v4417 = vpack.c.bf16 %v4350, %v4350
        %v4418 = vpack.c.bf16 %v4351, %v4351
        %v4419 = vpack.c.bf16 %v4352, %v4352
        %v4420 = vpack.c.bf16 %v4353, %v4353
        %v4421 = vpack.c.bf16 %v4354, %v4354
        %v4422 = vpack.c.bf16 %v4355, %v4355
        %v4423 = vpack.c.bf16 %v4356, %v4356
        %v4424 = vpack.c.bf16 %v4357, %v4357
        %v4425 = vpack.c.bf16 %v4358, %v4358
        %v4426 = vpack.c.bf16 %v4359, %v4359
        %v4427 = vpack.c.bf16 %v4360, %v4360
        %v4428 = vpack.c.bf16 %v4361, %v4361
        %v4429 = vpack.c.bf16 %v4362, %v4362
        %v4430 = vpack.c.bf16 %v4363, %v4363
        %v4492 = vunpack.c.l.b16 %v4364
        %v4493 = vunpack.c.l.b16 %v4365
        %v4494 = vunpack.c.l.b16 %v4366
        %v4495 = vunpack.c.l.b16 %v4367
        %v4496 = vunpack.c.l.b16 %v4368
        %v4497 = vunpack.c.l.b16 %v4369
        %v4498 = vunpack.c.l.b16 %v4370
        %v4499 = vunpack.c.l.b16 %v4371
        %v4500 = vunpack.c.l.b16 %v4372
        %v4501 = vunpack.c.l.b16 %v4373
        %v4502 = vunpack.c.l.b16 %v4374
        %v4503 = vunpack.c.l.b16 %v4375
        %v4504 = vunpack.c.l.b16 %v4376
        %v4505 = vunpack.c.l.b16 %v4377
        %v4506 = vunpack.c.l.b16 %v4378
        %v4507 = vunpack.c.l.b16 %v4379
        %v4508 = vunpack.c.l.b16 %v4380
        %v4509 = vunpack.c.l.b16 %v4381
        %v4510 = vunpack.c.l.b16 %v4382
        %v4511 = vunpack.c.l.b16 %v4383
        %v4512 = vunpack.c.l.b16 %v4384
        %v4513 = vunpack.c.l.b16 %v4385
        %v4514 = vunpack.c.l.b16 %v4386
        %v4515 = vunpack.c.l.b16 %v4387
        %v4516 = vunpack.c.l.b16 %v4388
        %v4517 = vunpack.c.l.b16 %v4389
        %v4518 = vunpack.c.l.b16 %v4390
        %v4519 = vunpack.c.l.b16 %v4391
        %v4520 = vunpack.c.l.b16 %v4392
        %v4521 = vunpack.c.l.b16 %v4393
        %v4522 = vunpack.c.l.b16 %v4394
        %v4523 = vunpack.c.l.b16 %v4395
        %v4524 = vunpack.c.l.b16 %v4396
        %v4525 = vunpack.c.l.b16 %v4397
        %v4526 = vunpack.c.l.b16 %v4398
        %v4527 = vunpack.c.l.b16 %v4399
        %v4528 = vunpack.c.l.b16 %v4400
        %v4529 = vunpack.c.l.b16 %v4401
        %v4530 = vunpack.c.l.b16 %v4402
        %v4531 = vunpack.c.l.b16 %v4403
        %v4532 = vunpack.c.l.b16 %v4404
        %v4533 = vunpack.c.l.b16 %v4405
        %v4534 = vunpack.c.l.b16 %v4406
        %v4535 = vunpack.c.l.b16 %v4407
        %v4536 = vunpack.c.l.b16 %v4408
        %v4537 = vunpack.c.l.b16 %v4409
        %v4538 = vunpack.c.l.b16 %v4410
        %v4539 = vunpack.c.l.b16 %v4411
        %v4540 = vunpack.c.l.b16 %v4412
        %v4541 = vunpack.c.l.b16 %v4413
        %v4542 = vunpack.c.l.b16 %v4414
        %v4543 = vunpack.c.l.b16 %v4415
        %v4544 = vunpack.c.l.b16 %v4416
        %v4545 = vunpack.c.l.b16 %v4417
        %v4546 = vunpack.c.l.b16 %v4418
        %v4547 = vunpack.c.l.b16 %v4419
        %v4548 = vunpack.c.l.b16 %v4420
        %v4549 = vunpack.c.l.b16 %v4421
        %v4550 = vunpack.c.l.b16 %v4422
        %v4551 = vunpack.c.l.b16 %v4423
        %v4552 = vunpack.c.l.b16 %v4424
        %v4553 = vpack.c.b16 %v4493, %v4492
        %v4554 = vpack.c.b16 %v4495, %v4494
        %v4555 = vpack.c.b16 %v4497, %v4496
        %v4556 = vpack.c.b16 %v4499, %v4498
        %v4557 = vpack.c.b16 %v4501, %v4500
        %v4558 = vpack.c.b16 %v4503, %v4502
        %v4559 = vpack.c.b16 %v4505, %v4504
        %v4560 = vpack.c.b16 %v4507, %v4506
        %v4561 = vpack.c.b16 %v4509, %v4508
        %v4562 = vpack.c.b16 %v4511, %v4510
        %v4563 = vpack.c.b16 %v4513, %v4512
        %v4564 = vpack.c.b16 %v4515, %v4514
        %v4565 = vpack.c.b16 %v4517, %v4516
        %v4566 = vpack.c.b16 %v4519, %v4518
        %v4567 = vpack.c.b16 %v4521, %v4520
        %v4568 = vpack.c.b16 %v4523, %v4522
        %v4569 = vpack.c.b16 %v4525, %v4524
        %v4570 = vpack.c.b16 %v4527, %v4526
        %v4571 = vpack.c.b16 %v4529, %v4528
        %v4572 = vpack.c.b16 %v4531, %v4530
        %v4573 = vpack.c.b16 %v4533, %v4532
        %v4574 = vpack.c.b16 %v4535, %v4534
        %v4575 = vpack.c.b16 %v4537, %v4536
        %v4576 = vpack.c.b16 %v4539, %v4538
        %v4577 = vpack.c.b16 %v4541, %v4540
        %v4578 = vpack.c.b16 %v4543, %v4542
        %v4579 = vpack.c.b16 %v4545, %v4544
        %v4580 = vpack.c.b16 %v4547, %v4546
        %v4581 = vpack.c.b16 %v4549, %v4548
        %v4582 = vpack.c.b16 %v4551, %v4550
        %v4583 = vpack.c.b16 %v4552, %v4552
        %vm4584 = vsmask.f32 7424
        %v4586 = vshrl.u32 %v4553, 16
        %v4588 = vshll.u32 %v4553, 16
        %v4590 = vrot.slane %v4588, 1
        %v4591 = vor.u32 %v4586, %v4590
        %v4593 = vshll.u32 %v4554, 16
        %v4595 = vrot.slane %v4593, 1
        %v4596 = vsel %vm4584, %v4591, %v4595
        %v4597 = vshrl.u32 %v4554, 16
        %v4599 = vor.u32 %v4597, %v4595
        %v4601 = vshll.u32 %v4555, 16
        %v4603 = vrot.slane %v4601, 1
        %v4604 = vsel %vm4584, %v4599, %v4603
        %v4605 = vshrl.u32 %v4555, 16
        %v4607 = vor.u32 %v4605, %v4603
        %v4609 = vshll.u32 %v4556, 16
        %v4611 = vrot.slane %v4609, 1
        %v4612 = vsel %vm4584, %v4607, %v4611
        %v4613 = vshrl.u32 %v4556, 16
        %v4615 = vor.u32 %v4613, %v4611
        %v4617 = vshll.u32 %v4557, 16
        %v4619 = vrot.slane %v4617, 1
        %v4620 = vsel %vm4584, %v4615, %v4619
        %v4621 = vshrl.u32 %v4557, 16
        %v4623 = vor.u32 %v4621, %v4619
        %v4625 = vshll.u32 %v4558, 16
        %v4627 = vrot.slane %v4625, 1
        %v4628 = vsel %vm4584, %v4623, %v4627
        %v4629 = vshrl.u32 %v4558, 16
        %v4631 = vor.u32 %v4629, %v4627
        %v4633 = vshll.u32 %v4559, 16
        %v4635 = vrot.slane %v4633, 1
        %v4636 = vsel %vm4584, %v4631, %v4635
        %v4637 = vshrl.u32 %v4559, 16
        %v4639 = vor.u32 %v4637, %v4635
        %v4641 = vshll.u32 %v4560, 16
        %v4643 = vrot.slane %v4641, 1
        %v4644 = vsel %vm4584, %v4639, %v4643
        %v4645 = vshrl.u32 %v4560, 16
        %v4647 = vor.u32 %v4645, %v4643
        %v4649 = vshll.u32 %v4561, 16
        %v4651 = vrot.slane %v4649, 1
        %v4652 = vsel %vm4584, %v4647, %v4651
        %v4653 = vshrl.u32 %v4561, 16
        %v4655 = vor.u32 %v4653, %v4651
        %v4657 = vshll.u32 %v4562, 16
        %v4659 = vrot.slane %v4657, 1
        %v4660 = vsel %vm4584, %v4655, %v4659
        %v4661 = vshrl.u32 %v4562, 16
        %v4663 = vor.u32 %v4661, %v4659
        %v4665 = vshll.u32 %v4563, 16
        %v4667 = vrot.slane %v4665, 1
        %v4668 = vsel %vm4584, %v4663, %v4667
        %v4669 = vshrl.u32 %v4563, 16
        %v4671 = vor.u32 %v4669, %v4667
        %v4673 = vshll.u32 %v4564, 16
        %v4675 = vrot.slane %v4673, 1
        %v4676 = vsel %vm4584, %v4671, %v4675
        %v4677 = vshrl.u32 %v4564, 16
        %v4679 = vor.u32 %v4677, %v4675
        %v4681 = vshll.u32 %v4565, 16
        %v4683 = vrot.slane %v4681, 1
        %v4684 = vsel %vm4584, %v4679, %v4683
        %v4685 = vshrl.u32 %v4565, 16
        %v4687 = vor.u32 %v4685, %v4683
        %v4689 = vshll.u32 %v4566, 16
        %v4691 = vrot.slane %v4689, 1
        %v4692 = vsel %vm4584, %v4687, %v4691
        %v4693 = vshrl.u32 %v4566, 16
        %v4695 = vor.u32 %v4693, %v4691
        %v4697 = vshll.u32 %v4567, 16
        %v4699 = vrot.slane %v4697, 1
        %v4700 = vsel %vm4584, %v4695, %v4699
        %v4701 = vshrl.u32 %v4567, 16
        %v4703 = vor.u32 %v4701, %v4699
        %v4705 = vshll.u32 %v4568, 16
        %v4707 = vrot.slane %v4705, 1
        %v4708 = vsel %vm4584, %v4703, %v4707
        %v4709 = vshrl.u32 %v4568, 16
        %v4711 = vor.u32 %v4709, %v4707
        %v4713 = vshll.u32 %v4569, 16
        %v4715 = vrot.slane %v4713, 1
        %v4716 = vsel %vm4584, %v4711, %v4715
        %v4717 = vshrl.u32 %v4569, 16
        %v4719 = vor.u32 %v4717, %v4715
        %v4721 = vshll.u32 %v4570, 16
        %v4723 = vrot.slane %v4721, 1
        %v4724 = vsel %vm4584, %v4719, %v4723
        %v4725 = vshrl.u32 %v4570, 16
        %v4727 = vor.u32 %v4725, %v4723
        %v4729 = vshll.u32 %v4571, 16
        %v4731 = vrot.slane %v4729, 1
        %v4732 = vsel %vm4584, %v4727, %v4731
        %v4733 = vshrl.u32 %v4571, 16
        %v4735 = vor.u32 %v4733, %v4731
        %v4737 = vshll.u32 %v4572, 16
        %v4739 = vrot.slane %v4737, 1
        %v4740 = vsel %vm4584, %v4735, %v4739
        %v4741 = vshrl.u32 %v4572, 16
        %v4743 = vor.u32 %v4741, %v4739
        %v4745 = vshll.u32 %v4573, 16
        %v4747 = vrot.slane %v4745, 1
        %v4748 = vsel %vm4584, %v4743, %v4747
        %v4749 = vshrl.u32 %v4573, 16
        %v4751 = vor.u32 %v4749, %v4747
        %v4753 = vshll.u32 %v4574, 16
        %v4755 = vrot.slane %v4753, 1
        %v4756 = vsel %vm4584, %v4751, %v4755
        %v4757 = vshrl.u32 %v4574, 16
        %v4759 = vor.u32 %v4757, %v4755
        %v4761 = vshll.u32 %v4575, 16
        %v4763 = vrot.slane %v4761, 1
        %v4764 = vsel %vm4584, %v4759, %v4763
        %v4765 = vshrl.u32 %v4575, 16
        %v4767 = vor.u32 %v4765, %v4763
        %v4769 = vshll.u32 %v4576, 16
        %v4771 = vrot.slane %v4769, 1
        %v4772 = vsel %vm4584, %v4767, %v4771
        %v4773 = vshrl.u32 %v4576, 16
        %v4775 = vor.u32 %v4773, %v4771
        %v4777 = vshll.u32 %v4577, 16
        %v4779 = vrot.slane %v4777, 1
        %v4780 = vsel %vm4584, %v4775, %v4779
        %v4781 = vshrl.u32 %v4577, 16
        %v4783 = vor.u32 %v4781, %v4779
        %v4785 = vshll.u32 %v4578, 16
        %v4787 = vrot.slane %v4785, 1
        %v4788 = vsel %vm4584, %v4783, %v4787
        %v4789 = vshrl.u32 %v4578, 16
        %v4791 = vor.u32 %v4789, %v4787
        %v4793 = vshll.u32 %v4579, 16
        %v4795 = vrot.slane %v4793, 1
        %v4796 = vsel %vm4584, %v4791, %v4795
        %v4797 = vshrl.u32 %v4579, 16
        %v4799 = vor.u32 %v4797, %v4795
        %v4801 = vshll.u32 %v4580, 16
        %v4803 = vrot.slane %v4801, 1
        %v4804 = vsel %vm4584, %v4799, %v4803
        %v4805 = vshrl.u32 %v4580, 16
        %v4807 = vor.u32 %v4805, %v4803
        %v4809 = vshll.u32 %v4581, 16
        %v4811 = vrot.slane %v4809, 1
        %v4812 = vsel %vm4584, %v4807, %v4811
        %v4813 = vshrl.u32 %v4581, 16
        %v4815 = vor.u32 %v4813, %v4811
        %v4817 = vshll.u32 %v4582, 16
        %v4819 = vrot.slane %v4817, 1
        %v4820 = vsel %vm4584, %v4815, %v4819
        %v4821 = vshrl.u32 %v4582, 16
        %v4823 = vor.u32 %v4821, %v4819
        %v4825 = vshll.u32 %v4583, 16
        %v4827 = vrot.slane %v4825, 1
        %v4828 = vsel %vm4584, %v4823, %v4827
        %v4829 = vshrl.u32 %v4583, 16
        %4831 = vrot.lane.b32.xlu0 %v4596, 32
        %v4832 = vpop.permute.xlu0 %4831
        %4833 = vrot.lane.b32.xlu0 %v4604, 32
        %v4834 = vpop.permute.xlu0 %4833
        %4835 = vrot.lane.b32.xlu0 %v4612, 32
        %v4836 = vpop.permute.xlu0 %4835
        %4837 = vrot.lane.b32.xlu0 %v4620, 32
        %v4838 = vpop.permute.xlu0 %4837
        %4839 = vrot.lane.b32.xlu0 %v4628, 32
        %v4840 = vpop.permute.xlu0 %4839
        %4841 = vrot.lane.b32.xlu0 %v4636, 32
        %v4842 = vpop.permute.xlu0 %4841
        %4843 = vrot.lane.b32.xlu0 %v4644, 32
        %v4844 = vpop.permute.xlu0 %4843
        %4845 = vrot.lane.b32.xlu0 %v4652, 32
        %v4846 = vpop.permute.xlu0 %4845
        %4847 = vrot.lane.b32.xlu0 %v4660, 32
        %v4848 = vpop.permute.xlu0 %4847
        %4849 = vrot.lane.b32.xlu0 %v4668, 32
        %v4850 = vpop.permute.xlu0 %4849
        %4851 = vrot.lane.b32.xlu0 %v4676, 32
        %v4852 = vpop.permute.xlu0 %4851
        %4853 = vrot.lane.b32.xlu0 %v4684, 32
        %v4854 = vpop.permute.xlu0 %4853
        %4855 = vrot.lane.b32.xlu0 %v4692, 32
        %v4856 = vpop.permute.xlu0 %4855
        %4857 = vrot.lane.b32.xlu0 %v4700, 32
        %v4858 = vpop.permute.xlu0 %4857
        %4859 = vrot.lane.b32.xlu0 %v4708, 32
        %v4860 = vpop.permute.xlu0 %4859
        %4861 = vrot.lane.b32.xlu0 %v4716, 32
        %v4862 = vpop.permute.xlu0 %4861
        %4863 = vrot.lane.b32.xlu0 %v4724, 32
        %v4864 = vpop.permute.xlu0 %4863
        %4865 = vrot.lane.b32.xlu0 %v4732, 32
        %v4866 = vpop.permute.xlu0 %4865
        %4867 = vrot.lane.b32.xlu0 %v4740, 32
        %v4868 = vpop.permute.xlu0 %4867
        %4869 = vrot.lane.b32.xlu0 %v4748, 32
        %v4870 = vpop.permute.xlu0 %4869
        %4871 = vrot.lane.b32.xlu0 %v4756, 32
        %v4872 = vpop.permute.xlu0 %4871
        %4873 = vrot.lane.b32.xlu0 %v4764, 32
        %v4874 = vpop.permute.xlu0 %4873
        %4875 = vrot.lane.b32.xlu0 %v4772, 32
        %v4876 = vpop.permute.xlu0 %4875
        %4877 = vrot.lane.b32.xlu0 %v4780, 32
        %v4878 = vpop.permute.xlu0 %4877
        %4879 = vrot.lane.b32.xlu0 %v4788, 32
        %v4880 = vpop.permute.xlu0 %4879
        %4881 = vrot.lane.b32.xlu0 %v4796, 32
        %v4882 = vpop.permute.xlu0 %4881
        %4883 = vrot.lane.b32.xlu0 %v4804, 32
        %v4884 = vpop.permute.xlu0 %4883
        %4885 = vrot.lane.b32.xlu0 %v4812, 32
        %v4886 = vpop.permute.xlu0 %4885
        %4887 = vrot.lane.b32.xlu0 %v4820, 32
        %v4888 = vpop.permute.xlu0 %4887
        %4889 = vrot.lane.b32.xlu0 %v4828, 32
        %v4890 = vpop.permute.xlu0 %4889
        %4891 = vrot.lane.b32.xlu0 %v4829, 32
        %v4892 = vpop.permute.xlu0 %4891
        %vm4893 = vcmask 1046528
        %v4894 = vrot.slane %v4553, 1
        %v4895 = vrot.slane %v4554, 1
        %v4896 = vsel %vm4893, %v4894, %v4895
        %v4897 = vrot.slane %v4555, 1
        %v4898 = vsel %vm4893, %v4895, %v4897
        %v4899 = vrot.slane %v4556, 1
        %v4900 = vsel %vm4893, %v4897, %v4899
        %v4901 = vrot.slane %v4557, 1
        %v4902 = vsel %vm4893, %v4899, %v4901
        %v4903 = vrot.slane %v4558, 1
        %v4904 = vsel %vm4893, %v4901, %v4903
        %v4905 = vrot.slane %v4559, 1
        %v4906 = vsel %vm4893, %v4903, %v4905
        %v4907 = vrot.slane %v4560, 1
        %v4908 = vsel %vm4893, %v4905, %v4907
        %v4909 = vrot.slane %v4561, 1
        %v4910 = vsel %vm4893, %v4907, %v4909
        %v4911 = vrot.slane %v4562, 1
        %v4912 = vsel %vm4893, %v4909, %v4911
        %v4913 = vrot.slane %v4563, 1
        %v4914 = vsel %vm4893, %v4911, %v4913
        %v4915 = vrot.slane %v4564, 1
        %v4916 = vsel %vm4893, %v4913, %v4915
        %v4917 = vrot.slane %v4565, 1
        %v4918 = vsel %vm4893, %v4915, %v4917
        %v4919 = vrot.slane %v4566, 1
        %v4920 = vsel %vm4893, %v4917, %v4919
        %v4921 = vrot.slane %v4567, 1
        %v4922 = vsel %vm4893, %v4919, %v4921
        %v4923 = vrot.slane %v4568, 1
        %v4924 = vsel %vm4893, %v4921, %v4923
        %v4925 = vrot.slane %v4569, 1
        %v4926 = vsel %vm4893, %v4923, %v4925
        %v4927 = vrot.slane %v4570, 1
        %v4928 = vsel %vm4893, %v4925, %v4927
        %v4929 = vrot.slane %v4571, 1
        %v4930 = vsel %vm4893, %v4927, %v4929
        %v4931 = vrot.slane %v4572, 1
        %v4932 = vsel %vm4893, %v4929, %v4931
        %v4933 = vrot.slane %v4573, 1
        %v4934 = vsel %vm4893, %v4931, %v4933
        %v4935 = vrot.slane %v4574, 1
        %v4936 = vsel %vm4893, %v4933, %v4935
        %v4937 = vrot.slane %v4575, 1
        %v4938 = vsel %vm4893, %v4935, %v4937
        %v4939 = vrot.slane %v4576, 1
        %v4940 = vsel %vm4893, %v4937, %v4939
        %v4941 = vrot.slane %v4577, 1
        %v4942 = vsel %vm4893, %v4939, %v4941
        %v4943 = vrot.slane %v4578, 1
        %v4944 = vsel %vm4893, %v4941, %v4943
        %v4945 = vrot.slane %v4579, 1
        %v4946 = vsel %vm4893, %v4943, %v4945
        %v4947 = vrot.slane %v4580, 1
        %v4948 = vsel %vm4893, %v4945, %v4947
        %v4949 = vrot.slane %v4581, 1
        %v4950 = vsel %vm4893, %v4947, %v4949
        %v4951 = vrot.slane %v4582, 1
        %v4952 = vsel %vm4893, %v4949, %v4951
        %v4953 = vrot.slane %v4583, 1
        %v4954 = vsel %vm4893, %v4951, %v4953
        %4955 = vrot.lane.b32.xlu0 %v4896, 64
        %v4956 = vpop.permute.xlu0 %4955
        %4957 = vrot.lane.b32.xlu0 %v4898, 64
        %v4958 = vpop.permute.xlu0 %4957
        %4959 = vrot.lane.b32.xlu0 %v4900, 64
        %v4960 = vpop.permute.xlu0 %4959
        %4961 = vrot.lane.b32.xlu0 %v4902, 64
        %v4962 = vpop.permute.xlu0 %4961
        %4963 = vrot.lane.b32.xlu0 %v4904, 64
        %v4964 = vpop.permute.xlu0 %4963
        %4965 = vrot.lane.b32.xlu0 %v4906, 64
        %v4966 = vpop.permute.xlu0 %4965
        %4967 = vrot.lane.b32.xlu0 %v4908, 64
        %v4968 = vpop.permute.xlu0 %4967
        %4969 = vrot.lane.b32.xlu0 %v4910, 64
        %v4970 = vpop.permute.xlu0 %4969
        %4971 = vrot.lane.b32.xlu0 %v4912, 64
        %v4972 = vpop.permute.xlu0 %4971
        %4973 = vrot.lane.b32.xlu0 %v4914, 64
        %v4974 = vpop.permute.xlu0 %4973
        %4975 = vrot.lane.b32.xlu0 %v4916, 64
        %v4976 = vpop.permute.xlu0 %4975
        %4977 = vrot.lane.b32.xlu0 %v4918, 64
        %v4978 = vpop.permute.xlu0 %4977
        %4979 = vrot.lane.b32.xlu0 %v4920, 64
        %v4980 = vpop.permute.xlu0 %4979
        %4981 = vrot.lane.b32.xlu0 %v4922, 64
        %v4982 = vpop.permute.xlu0 %4981
        %4983 = vrot.lane.b32.xlu0 %v4924, 64
        %v4984 = vpop.permute.xlu0 %4983
        %4985 = vrot.lane.b32.xlu0 %v4926, 64
        %v4986 = vpop.permute.xlu0 %4985
        %4987 = vrot.lane.b32.xlu0 %v4928, 64
        %v4988 = vpop.permute.xlu0 %4987
        %4989 = vrot.lane.b32.xlu0 %v4930, 64
        %v4990 = vpop.permute.xlu0 %4989
        %4991 = vrot.lane.b32.xlu0 %v4932, 64
        %v4992 = vpop.permute.xlu0 %4991
        %4993 = vrot.lane.b32.xlu0 %v4934, 64
        %v4994 = vpop.permute.xlu0 %4993
        %4995 = vrot.lane.b32.xlu0 %v4936, 64
        %v4996 = vpop.permute.xlu0 %4995
        %4997 = vrot.lane.b32.xlu0 %v4938, 64
        %v4998 = vpop.permute.xlu0 %4997
        %4999 = vrot.lane.b32.xlu0 %v4940, 64
        %v5000 = vpop.permute.xlu0 %4999
        %5001 = vrot.lane.b32.xlu0 %v4942, 64
        %v5002 = vpop.permute.xlu0 %5001
        %5003 = vrot.lane.b32.xlu0 %v4944, 64
        %v5004 = vpop.permute.xlu0 %5003
        %5005 = vrot.lane.b32.xlu0 %v4946, 64
        %v5006 = vpop.permute.xlu0 %5005
        %5007 = vrot.lane.b32.xlu0 %v4948, 64
        %v5008 = vpop.permute.xlu0 %5007
        %5009 = vrot.lane.b32.xlu0 %v4950, 64
        %v5010 = vpop.permute.xlu0 %5009
        %5011 = vrot.lane.b32.xlu0 %v4952, 64
        %v5012 = vpop.permute.xlu0 %5011
        %5013 = vrot.lane.b32.xlu0 %v4954, 64
        %v5014 = vpop.permute.xlu0 %5013
        %5015 = vrot.lane.b32.xlu0 %v4953, 64
        %v5016 = vpop.permute.xlu0 %5015
        %v5019 = vunpack.c.l.b16 %v4425
        %v5020 = vunpack.c.l.b16 %v4426
        %v5021 = vpack.c.b16 %v5019, %v4552
        %v5022 = vpack.c.b16 %v5020, %v5020
        %vm5023 = vsmask.f32 4352
        %v5024 = vrot.slane %v4597, 3
        %v5025 = vrot.slane %v4593, 4
        %v5026 = vor.u32 %v5024, %v5025
        %v5027 = vrot.slane %v4605, 3
        %v5028 = vrot.slane %v4601, 4
        %v5029 = vor.u32 %v5027, %v5028
        %v5030 = vsel %vm5023, %v5026, %v5029
        %v5031 = vrot.slane %v4613, 3
        %v5032 = vrot.slane %v4609, 4
        %v5033 = vor.u32 %v5031, %v5032
        %v5034 = vsel %vm5023, %v5029, %v5033
        %v5035 = vrot.slane %v4621, 3
        %v5036 = vrot.slane %v4617, 4
        %v5037 = vor.u32 %v5035, %v5036
        %v5038 = vsel %vm5023, %v5033, %v5037
        %v5039 = vrot.slane %v4629, 3
        %v5040 = vrot.slane %v4625, 4
        %v5041 = vor.u32 %v5039, %v5040
        %v5042 = vsel %vm5023, %v5037, %v5041
        %v5043 = vrot.slane %v4637, 3
        %v5044 = vrot.slane %v4633, 4
        %v5045 = vor.u32 %v5043, %v5044
        %v5046 = vsel %vm5023, %v5041, %v5045
        %v5047 = vrot.slane %v4645, 3
        %v5048 = vrot.slane %v4641, 4
        %v5049 = vor.u32 %v5047, %v5048
        %v5050 = vsel %vm5023, %v5045, %v5049
        %v5051 = vrot.slane %v4653, 3
        %v5052 = vrot.slane %v4649, 4
        %v5053 = vor.u32 %v5051, %v5052
        %v5054 = vsel %vm5023, %v5049, %v5053
        %v5055 = vrot.slane %v4661, 3
        %v5056 = vrot.slane %v4657, 4
        %v5057 = vor.u32 %v5055, %v5056
        %v5058 = vsel %vm5023, %v5053, %v5057
        %v5059 = vrot.slane %v4669, 3
        %v5060 = vrot.slane %v4665, 4
        %v5061 = vor.u32 %v5059, %v5060
        %v5062 = vsel %vm5023, %v5057, %v5061
        %v5063 = vrot.slane %v4677, 3
        %v5064 = vrot.slane %v4673, 4
        %v5065 = vor.u32 %v5063, %v5064
        %v5066 = vsel %vm5023, %v5061, %v5065
        %v5067 = vrot.slane %v4685, 3
        %v5068 = vrot.slane %v4681, 4
        %v5069 = vor.u32 %v5067, %v5068
        %v5070 = vsel %vm5023, %v5065, %v5069
        %v5071 = vrot.slane %v4693, 3
        %v5072 = vrot.slane %v4689, 4
        %v5073 = vor.u32 %v5071, %v5072
        %v5074 = vsel %vm5023, %v5069, %v5073
        %v5075 = vrot.slane %v4701, 3
        %v5076 = vrot.slane %v4697, 4
        %v5077 = vor.u32 %v5075, %v5076
        %v5078 = vsel %vm5023, %v5073, %v5077
        %v5079 = vrot.slane %v4709, 3
        %v5080 = vrot.slane %v4705, 4
        %v5081 = vor.u32 %v5079, %v5080
        %v5082 = vsel %vm5023, %v5077, %v5081
        %v5083 = vrot.slane %v4717, 3
        %v5084 = vrot.slane %v4713, 4
        %v5085 = vor.u32 %v5083, %v5084
        %v5086 = vsel %vm5023, %v5081, %v5085
        %v5087 = vrot.slane %v4725, 3
        %v5088 = vrot.slane %v4721, 4
        %v5089 = vor.u32 %v5087, %v5088
        %v5090 = vsel %vm5023, %v5085, %v5089
        %v5091 = vrot.slane %v4733, 3
        %v5092 = vrot.slane %v4729, 4
        %v5093 = vor.u32 %v5091, %v5092
        %v5094 = vsel %vm5023, %v5089, %v5093
        %v5095 = vrot.slane %v4741, 3
        %v5096 = vrot.slane %v4737, 4
        %v5097 = vor.u32 %v5095, %v5096
        %v5098 = vsel %vm5023, %v5093, %v5097
        %v5099 = vrot.slane %v4749, 3
        %v5100 = vrot.slane %v4745, 4
        %v5101 = vor.u32 %v5099, %v5100
        %v5102 = vsel %vm5023, %v5097, %v5101
        %v5103 = vrot.slane %v4757, 3
        %v5104 = vrot.slane %v4753, 4
        %v5105 = vor.u32 %v5103, %v5104
        %v5106 = vsel %vm5023, %v5101, %v5105
        %v5107 = vrot.slane %v4765, 3
        %v5108 = vrot.slane %v4761, 4
        %v5109 = vor.u32 %v5107, %v5108
        %v5110 = vsel %vm5023, %v5105, %v5109
        %v5111 = vrot.slane %v4773, 3
        %v5112 = vrot.slane %v4769, 4
        %v5113 = vor.u32 %v5111, %v5112
        %v5114 = vsel %vm5023, %v5109, %v5113
        %v5115 = vrot.slane %v4781, 3
        %v5116 = vrot.slane %v4777, 4
        %v5117 = vor.u32 %v5115, %v5116
        %v5118 = vsel %vm5023, %v5113, %v5117
        %v5119 = vrot.slane %v4789, 3
        %v5120 = vrot.slane %v4785, 4
        %v5121 = vor.u32 %v5119, %v5120
        %v5122 = vsel %vm5023, %v5117, %v5121
        %v5123 = vrot.slane %v4797, 3
        %v5124 = vrot.slane %v4793, 4
        %v5125 = vor.u32 %v5123, %v5124
        %v5126 = vsel %vm5023, %v5121, %v5125
        %v5127 = vrot.slane %v4805, 3
        %v5128 = vrot.slane %v4801, 4
        %v5129 = vor.u32 %v5127, %v5128
        %v5130 = vsel %vm5023, %v5125, %v5129
        %v5131 = vrot.slane %v4813, 3
        %v5132 = vrot.slane %v4809, 4
        %v5133 = vor.u32 %v5131, %v5132
        %v5134 = vsel %vm5023, %v5129, %v5133
        %v5135 = vrot.slane %v4821, 3
        %v5136 = vrot.slane %v4817, 4
        %v5137 = vor.u32 %v5135, %v5136
        %v5138 = vsel %vm5023, %v5133, %v5137
        %v5140 = vshrl.u32 %v5021, 16
        %v5142 = vrot.slane %v5140, 3
        %v5143 = vshll.u32 %v5021, 16
        %v5145 = vrot.slane %v5143, 4
        %v5146 = vor.u32 %v5142, %v5145
        %v5147 = vsel %vm5023, %v5137, %v5146
        %v5149 = vshrl.u32 %v5022, 16
        %v5151 = vrot.slane %v5149, 3
        %v5152 = vshll.u32 %v5022, 16
        %v5154 = vrot.slane %v5152, 4
        %v5155 = vor.u32 %v5151, %v5154
        %v5156 = vsel %vm5023, %v5146, %v5155
        %5157 = vrot.lane.b32.xlu0 %v5030, 96
        %v5158 = vpop.permute.xlu0 %5157
        %5159 = vrot.lane.b32.xlu0 %v5034, 96
        %v5160 = vpop.permute.xlu0 %5159
        %5161 = vrot.lane.b32.xlu0 %v5038, 96
        %v5162 = vpop.permute.xlu0 %5161
        %5163 = vrot.lane.b32.xlu0 %v5042, 96
        %v5164 = vpop.permute.xlu0 %5163
        %5165 = vrot.lane.b32.xlu0 %v5046, 96
        %v5166 = vpop.permute.xlu0 %5165
        %5167 = vrot.lane.b32.xlu0 %v5050, 96
        %v5168 = vpop.permute.xlu0 %5167
        %5169 = vrot.lane.b32.xlu0 %v5054, 96
        %v5170 = vpop.permute.xlu0 %5169
        %5171 = vrot.lane.b32.xlu0 %v5058, 96
        %v5172 = vpop.permute.xlu0 %5171
        %5173 = vrot.lane.b32.xlu0 %v5062, 96
        %v5174 = vpop.permute.xlu0 %5173
        %5175 = vrot.lane.b32.xlu0 %v5066, 96
        %v5176 = vpop.permute.xlu0 %5175
        %5177 = vrot.lane.b32.xlu0 %v5070, 96
        %v5178 = vpop.permute.xlu0 %5177
        %5179 = vrot.lane.b32.xlu0 %v5074, 96
        %v5180 = vpop.permute.xlu0 %5179
        %5181 = vrot.lane.b32.xlu0 %v5078, 96
        %v5182 = vpop.permute.xlu0 %5181
        %5183 = vrot.lane.b32.xlu0 %v5082, 96
        %v5184 = vpop.permute.xlu0 %5183
        %5185 = vrot.lane.b32.xlu0 %v5086, 96
        %v5186 = vpop.permute.xlu0 %5185
        %5187 = vrot.lane.b32.xlu0 %v5090, 96
        %v5188 = vpop.permute.xlu0 %5187
        %5189 = vrot.lane.b32.xlu0 %v5094, 96
        %v5190 = vpop.permute.xlu0 %5189
        %5191 = vrot.lane.b32.xlu0 %v5098, 96
        %v5192 = vpop.permute.xlu0 %5191
        %5193 = vrot.lane.b32.xlu0 %v5102, 96
        %v5194 = vpop.permute.xlu0 %5193
        %5195 = vrot.lane.b32.xlu0 %v5106, 96
        %v5196 = vpop.permute.xlu0 %5195
        %5197 = vrot.lane.b32.xlu0 %v5110, 96
        %v5198 = vpop.permute.xlu0 %5197
        %5199 = vrot.lane.b32.xlu0 %v5114, 96
        %v5200 = vpop.permute.xlu0 %5199
        %5201 = vrot.lane.b32.xlu0 %v5118, 96
        %v5202 = vpop.permute.xlu0 %5201
        %5203 = vrot.lane.b32.xlu0 %v5122, 96
        %v5204 = vpop.permute.xlu0 %5203
        %5205 = vrot.lane.b32.xlu0 %v5126, 96
        %v5206 = vpop.permute.xlu0 %5205
        %5207 = vrot.lane.b32.xlu0 %v5130, 96
        %v5208 = vpop.permute.xlu0 %5207
        %5209 = vrot.lane.b32.xlu0 %v5134, 96
        %v5210 = vpop.permute.xlu0 %5209
        %5211 = vrot.lane.b32.xlu0 %v5138, 96
        %v5212 = vpop.permute.xlu0 %5211
        %5213 = vrot.lane.b32.xlu0 %v5147, 96
        %v5214 = vpop.permute.xlu0 %5213
        %5215 = vrot.lane.b32.xlu0 %v5156, 96
        %v5216 = vpop.permute.xlu0 %5215
        %5217 = vrot.lane.b32.xlu0 %v5151, 96
        %v5218 = vpop.permute.xlu0 %5217
        %v5220 = vunpack.c.l.b16 %v4427
        %v5221 = vpack.c.b16 %v4496, %v4495
        %v5222 = vpack.c.b16 %v4498, %v4497
        %v5223 = vpack.c.b16 %v4500, %v4499
        %v5224 = vpack.c.b16 %v4502, %v4501
        %v5225 = vpack.c.b16 %v4504, %v4503
        %v5226 = vpack.c.b16 %v4506, %v4505
        %v5227 = vpack.c.b16 %v4508, %v4507
        %v5228 = vpack.c.b16 %v4510, %v4509
        %v5229 = vpack.c.b16 %v4512, %v4511
        %v5230 = vpack.c.b16 %v4514, %v4513
        %v5231 = vpack.c.b16 %v4516, %v4515
        %v5232 = vpack.c.b16 %v4518, %v4517
        %v5233 = vpack.c.b16 %v4520, %v4519
        %v5234 = vpack.c.b16 %v4522, %v4521
        %v5235 = vpack.c.b16 %v4524, %v4523
        %v5236 = vpack.c.b16 %v4526, %v4525
        %v5237 = vpack.c.b16 %v4528, %v4527
        %v5238 = vpack.c.b16 %v4530, %v4529
        %v5239 = vpack.c.b16 %v4532, %v4531
        %v5240 = vpack.c.b16 %v4534, %v4533
        %v5241 = vpack.c.b16 %v4536, %v4535
        %v5242 = vpack.c.b16 %v4538, %v4537
        %v5243 = vpack.c.b16 %v4540, %v4539
        %v5244 = vpack.c.b16 %v4542, %v4541
        %v5245 = vpack.c.b16 %v4544, %v4543
        %v5246 = vpack.c.b16 %v4546, %v4545
        %v5247 = vpack.c.b16 %v4548, %v4547
        %v5248 = vpack.c.b16 %v4550, %v4549
        %v5249 = vpack.c.b16 %v4552, %v4551
        %v5250 = vpack.c.b16 %v5020, %v5019
        %v5251 = vpack.c.b16 %v5220, %v5220
        %v5253 = vshrl.u32 %v5221, 16
        %v5255 = vshll.u32 %v5221, 16
        %v5257 = vrot.slane %v5255, 1
        %v5258 = vor.u32 %v5253, %v5257
        %v5260 = vshll.u32 %v5222, 16
        %v5262 = vrot.slane %v5260, 1
        %v5263 = vsel %vm4584, %v5258, %v5262
        %v5264 = vshrl.u32 %v5222, 16
        %v5266 = vor.u32 %v5264, %v5262
        %v5268 = vshll.u32 %v5223, 16
        %v5270 = vrot.slane %v5268, 1
        %v5271 = vsel %vm4584, %v5266, %v5270
        %v5272 = vshrl.u32 %v5223, 16
        %v5274 = vor.u32 %v5272, %v5270
        %v5276 = vshll.u32 %v5224, 16
        %v5278 = vrot.slane %v5276, 1
        %v5279 = vsel %vm4584, %v5274, %v5278
        %v5280 = vshrl.u32 %v5224, 16
        %v5282 = vor.u32 %v5280, %v5278
        %v5284 = vshll.u32 %v5225, 16
        %v5286 = vrot.slane %v5284, 1
        %v5287 = vsel %vm4584, %v5282, %v5286
        %v5288 = vshrl.u32 %v5225, 16
        %v5290 = vor.u32 %v5288, %v5286
        %v5292 = vshll.u32 %v5226, 16
        %v5294 = vrot.slane %v5292, 1
        %v5295 = vsel %vm4584, %v5290, %v5294
        %v5296 = vshrl.u32 %v5226, 16
        %v5298 = vor.u32 %v5296, %v5294
        %v5300 = vshll.u32 %v5227, 16
        %v5302 = vrot.slane %v5300, 1
        %v5303 = vsel %vm4584, %v5298, %v5302
        %v5304 = vshrl.u32 %v5227, 16
        %v5306 = vor.u32 %v5304, %v5302
        %v5308 = vshll.u32 %v5228, 16
        %v5310 = vrot.slane %v5308, 1
        %v5311 = vsel %vm4584, %v5306, %v5310
        %v5312 = vshrl.u32 %v5228, 16
        %v5314 = vor.u32 %v5312, %v5310
        %v5316 = vshll.u32 %v5229, 16
        %v5318 = vrot.slane %v5316, 1
        %v5319 = vsel %vm4584, %v5314, %v5318
        %v5320 = vshrl.u32 %v5229, 16
        %v5322 = vor.u32 %v5320, %v5318
        %v5324 = vshll.u32 %v5230, 16
        %v5326 = vrot.slane %v5324, 1
        %v5327 = vsel %vm4584, %v5322, %v5326
        %v5328 = vshrl.u32 %v5230, 16
        %v5330 = vor.u32 %v5328, %v5326
        %v5332 = vshll.u32 %v5231, 16
        %v5334 = vrot.slane %v5332, 1
        %v5335 = vsel %vm4584, %v5330, %v5334
        %v5336 = vshrl.u32 %v5231, 16
        %v5338 = vor.u32 %v5336, %v5334
        %v5340 = vshll.u32 %v5232, 16
        %v5342 = vrot.slane %v5340, 1
        %v5343 = vsel %vm4584, %v5338, %v5342
        %v5344 = vshrl.u32 %v5232, 16
        %v5346 = vor.u32 %v5344, %v5342
        %v5348 = vshll.u32 %v5233, 16
        %v5350 = vrot.slane %v5348, 1
        %v5351 = vsel %vm4584, %v5346, %v5350
        %v5352 = vshrl.u32 %v5233, 16
        %v5354 = vor.u32 %v5352, %v5350
        %v5356 = vshll.u32 %v5234, 16
        %v5358 = vrot.slane %v5356, 1
        %v5359 = vsel %vm4584, %v5354, %v5358
        %v5360 = vshrl.u32 %v5234, 16
        %v5362 = vor.u32 %v5360, %v5358
        %v5364 = vshll.u32 %v5235, 16
        %v5366 = vrot.slane %v5364, 1
        %v5367 = vsel %vm4584, %v5362, %v5366
        %v5368 = vshrl.u32 %v5235, 16
        %v5370 = vor.u32 %v5368, %v5366
        %v5372 = vshll.u32 %v5236, 16
        %v5374 = vrot.slane %v5372, 1
        %v5375 = vsel %vm4584, %v5370, %v5374
        %v5376 = vshrl.u32 %v5236, 16
        %v5378 = vor.u32 %v5376, %v5374
        %v5380 = vshll.u32 %v5237, 16
        %v5382 = vrot.slane %v5380, 1
        %v5383 = vsel %vm4584, %v5378, %v5382
        %v5384 = vshrl.u32 %v5237, 16
        %v5386 = vor.u32 %v5384, %v5382
        %v5388 = vshll.u32 %v5238, 16
        %v5390 = vrot.slane %v5388, 1
        %v5391 = vsel %vm4584, %v5386, %v5390
        %v5392 = vshrl.u32 %v5238, 16
        %v5394 = vor.u32 %v5392, %v5390
        %v5396 = vshll.u32 %v5239, 16
        %v5398 = vrot.slane %v5396, 1
        %v5399 = vsel %vm4584, %v5394, %v5398
        %v5400 = vshrl.u32 %v5239, 16
        %v5402 = vor.u32 %v5400, %v5398
        %v5404 = vshll.u32 %v5240, 16
        %v5406 = vrot.slane %v5404, 1
        %v5407 = vsel %vm4584, %v5402, %v5406
        %v5408 = vshrl.u32 %v5240, 16
        %v5410 = vor.u32 %v5408, %v5406
        %v5412 = vshll.u32 %v5241, 16
        %v5414 = vrot.slane %v5412, 1
        %v5415 = vsel %vm4584, %v5410, %v5414
        %v5416 = vshrl.u32 %v5241, 16
        %v5418 = vor.u32 %v5416, %v5414
        %v5420 = vshll.u32 %v5242, 16
        %v5422 = vrot.slane %v5420, 1
        %v5423 = vsel %vm4584, %v5418, %v5422
        %v5424 = vshrl.u32 %v5242, 16
        %v5426 = vor.u32 %v5424, %v5422
        %v5428 = vshll.u32 %v5243, 16
        %v5430 = vrot.slane %v5428, 1
        %v5431 = vsel %vm4584, %v5426, %v5430
        %v5432 = vshrl.u32 %v5243, 16
        %v5434 = vor.u32 %v5432, %v5430
        %v5436 = vshll.u32 %v5244, 16
        %v5438 = vrot.slane %v5436, 1
        %v5439 = vsel %vm4584, %v5434, %v5438
        %v5440 = vshrl.u32 %v5244, 16
        %v5442 = vor.u32 %v5440, %v5438
        %v5444 = vshll.u32 %v5245, 16
        %v5446 = vrot.slane %v5444, 1
        %v5447 = vsel %vm4584, %v5442, %v5446
        %v5448 = vshrl.u32 %v5245, 16
        %v5450 = vor.u32 %v5448, %v5446
        %v5452 = vshll.u32 %v5246, 16
        %v5454 = vrot.slane %v5452, 1
        %v5455 = vsel %vm4584, %v5450, %v5454
        %v5456 = vshrl.u32 %v5246, 16
        %v5458 = vor.u32 %v5456, %v5454
        %v5460 = vshll.u32 %v5247, 16
        %v5462 = vrot.slane %v5460, 1
        %v5463 = vsel %vm4584, %v5458, %v5462
        %v5464 = vshrl.u32 %v5247, 16
        %v5466 = vor.u32 %v5464, %v5462
        %v5468 = vshll.u32 %v5248, 16
        %v5470 = vrot.slane %v5468, 1
        %v5471 = vsel %vm4584, %v5466, %v5470
        %v5472 = vshrl.u32 %v5248, 16
        %v5474 = vor.u32 %v5472, %v5470
        %v5476 = vshll.u32 %v5249, 16
        %v5478 = vrot.slane %v5476, 1
        %v5479 = vsel %vm4584, %v5474, %v5478
        %v5480 = vshrl.u32 %v5249, 16
        %v5482 = vor.u32 %v5480, %v5478
        %v5484 = vshll.u32 %v5250, 16
        %v5486 = vrot.slane %v5484, 1
        %v5487 = vsel %vm4584, %v5482, %v5486
        %v5488 = vshrl.u32 %v5250, 16
        %v5490 = vor.u32 %v5488, %v5486
        %v5492 = vshll.u32 %v5251, 16
        %v5494 = vrot.slane %v5492, 1
        %v5495 = vsel %vm4584, %v5490, %v5494
        %v5496 = vshrl.u32 %v5251, 16
        %5498 = vrot.lane.b32.xlu0 %v5263, 32
        %v5499 = vpop.permute.xlu0 %5498
        %5500 = vrot.lane.b32.xlu0 %v5271, 32
        %v5501 = vpop.permute.xlu0 %5500
        %5502 = vrot.lane.b32.xlu0 %v5279, 32
        %v5503 = vpop.permute.xlu0 %5502
        %5504 = vrot.lane.b32.xlu0 %v5287, 32
        %v5505 = vpop.permute.xlu0 %5504
        %5506 = vrot.lane.b32.xlu0 %v5295, 32
        %v5507 = vpop.permute.xlu0 %5506
        %5508 = vrot.lane.b32.xlu0 %v5303, 32
        %v5509 = vpop.permute.xlu0 %5508
        %5510 = vrot.lane.b32.xlu0 %v5311, 32
        %v5511 = vpop.permute.xlu0 %5510
        %5512 = vrot.lane.b32.xlu0 %v5319, 32
        %v5513 = vpop.permute.xlu0 %5512
        %5514 = vrot.lane.b32.xlu0 %v5327, 32
        %v5515 = vpop.permute.xlu0 %5514
        %5516 = vrot.lane.b32.xlu0 %v5335, 32
        %v5517 = vpop.permute.xlu0 %5516
        %5518 = vrot.lane.b32.xlu0 %v5343, 32
        %v5519 = vpop.permute.xlu0 %5518
        %5520 = vrot.lane.b32.xlu0 %v5351, 32
        %v5521 = vpop.permute.xlu0 %5520
        %5522 = vrot.lane.b32.xlu0 %v5359, 32
        %v5523 = vpop.permute.xlu0 %5522
        %5524 = vrot.lane.b32.xlu0 %v5367, 32
        %v5525 = vpop.permute.xlu0 %5524
        %5526 = vrot.lane.b32.xlu0 %v5375, 32
        %v5527 = vpop.permute.xlu0 %5526
        %5528 = vrot.lane.b32.xlu0 %v5383, 32
        %v5529 = vpop.permute.xlu0 %5528
        %5530 = vrot.lane.b32.xlu0 %v5391, 32
        %v5531 = vpop.permute.xlu0 %5530
        %5532 = vrot.lane.b32.xlu0 %v5399, 32
        %v5533 = vpop.permute.xlu0 %5532
        %5534 = vrot.lane.b32.xlu0 %v5407, 32
        %v5535 = vpop.permute.xlu0 %5534
        %5536 = vrot.lane.b32.xlu0 %v5415, 32
        %v5537 = vpop.permute.xlu0 %5536
        %5538 = vrot.lane.b32.xlu0 %v5423, 32
        %v5539 = vpop.permute.xlu0 %5538
        %5540 = vrot.lane.b32.xlu0 %v5431, 32
        %v5541 = vpop.permute.xlu0 %5540
        %5542 = vrot.lane.b32.xlu0 %v5439, 32
        %v5543 = vpop.permute.xlu0 %5542
        %5544 = vrot.lane.b32.xlu0 %v5447, 32
        %v5545 = vpop.permute.xlu0 %5544
        %5546 = vrot.lane.b32.xlu0 %v5455, 32
        %v5547 = vpop.permute.xlu0 %5546
        %5548 = vrot.lane.b32.xlu0 %v5463, 32
        %v5549 = vpop.permute.xlu0 %5548
        %5550 = vrot.lane.b32.xlu0 %v5471, 32
        %v5551 = vpop.permute.xlu0 %5550
        %5552 = vrot.lane.b32.xlu0 %v5479, 32
        %v5553 = vpop.permute.xlu0 %5552
        %5554 = vrot.lane.b32.xlu0 %v5487, 32
        %v5555 = vpop.permute.xlu0 %5554
        %5556 = vrot.lane.b32.xlu0 %v5495, 32
        %v5557 = vpop.permute.xlu0 %5556
        %5558 = vrot.lane.b32.xlu0 %v5496, 32
        %v5559 = vpop.permute.xlu0 %5558
        %v5562 = vunpack.c.l.b16 %v4428
        %v5563 = vunpack.c.l.b16 %v4429
        %v5564 = vpack.c.b16 %v5562, %v5220
        %v5565 = vpack.c.b16 %v5563, %v5563
        %vm5566 = vcmask 1044480
        %v5567 = vrot.slane %v5222, 3
        %v5568 = vrot.slane %v5223, 3
        %v5569 = vsel %vm5566, %v5567, %v5568
        %v5570 = vrot.slane %v5224, 3
        %v5571 = vsel %vm5566, %v5568, %v5570
        %v5572 = vrot.slane %v5225, 3
        %v5573 = vsel %vm5566, %v5570, %v5572
        %v5574 = vrot.slane %v5226, 3
        %v5575 = vsel %vm5566, %v5572, %v5574
        %v5576 = vrot.slane %v5227, 3
        %v5577 = vsel %vm5566, %v5574, %v5576
        %v5578 = vrot.slane %v5228, 3
        %v5579 = vsel %vm5566, %v5576, %v5578
        %v5580 = vrot.slane %v5229, 3
        %v5581 = vsel %vm5566, %v5578, %v5580
        %v5582 = vrot.slane %v5230, 3
        %v5583 = vsel %vm5566, %v5580, %v5582
        %v5584 = vrot.slane %v5231, 3
        %v5585 = vsel %vm5566, %v5582, %v5584
        %v5586 = vrot.slane %v5232, 3
        %v5587 = vsel %vm5566, %v5584, %v5586
        %v5588 = vrot.slane %v5233, 3
        %v5589 = vsel %vm5566, %v5586, %v5588
        %v5590 = vrot.slane %v5234, 3
        %v5591 = vsel %vm5566, %v5588, %v5590
        %v5592 = vrot.slane %v5235, 3
        %v5593 = vsel %vm5566, %v5590, %v5592
        %v5594 = vrot.slane %v5236, 3
        %v5595 = vsel %vm5566, %v5592, %v5594
        %v5596 = vrot.slane %v5237, 3
        %v5597 = vsel %vm5566, %v5594, %v5596
        %v5598 = vrot.slane %v5238, 3
        %v5599 = vsel %vm5566, %v5596, %v5598
        %v5600 = vrot.slane %v5239, 3
        %v5601 = vsel %vm5566, %v5598, %v5600
        %v5602 = vrot.slane %v5240, 3
        %v5603 = vsel %vm5566, %v5600, %v5602
        %v5604 = vrot.slane %v5241, 3
        %v5605 = vsel %vm5566, %v5602, %v5604
        %v5606 = vrot.slane %v5242, 3
        %v5607 = vsel %vm5566, %v5604, %v5606
        %v5608 = vrot.slane %v5243, 3
        %v5609 = vsel %vm5566, %v5606, %v5608
        %v5610 = vrot.slane %v5244, 3
        %v5611 = vsel %vm5566, %v5608, %v5610
        %v5612 = vrot.slane %v5245, 3
        %v5613 = vsel %vm5566, %v5610, %v5612
        %v5614 = vrot.slane %v5246, 3
        %v5615 = vsel %vm5566, %v5612, %v5614
        %v5616 = vrot.slane %v5247, 3
        %v5617 = vsel %vm5566, %v5614, %v5616
        %v5618 = vrot.slane %v5248, 3
        %v5619 = vsel %vm5566, %v5616, %v5618
        %v5620 = vrot.slane %v5249, 3
        %v5621 = vsel %vm5566, %v5618, %v5620
        %v5622 = vrot.slane %v5250, 3
        %v5623 = vsel %vm5566, %v5620, %v5622
        %v5624 = vrot.slane %v5564, 3
        %v5625 = vsel %vm5566, %v5622, %v5624
        %v5626 = vrot.slane %v5565, 3
        %v5627 = vsel %vm5566, %v5624, %v5626
        %5628 = vrot.lane.b32.xlu0 %v5569, 64
        %v5629 = vpop.permute.xlu0 %5628
        %5630 = vrot.lane.b32.xlu0 %v5571, 64
        %v5631 = vpop.permute.xlu0 %5630
        %5632 = vrot.lane.b32.xlu0 %v5573, 64
        %v5633 = vpop.permute.xlu0 %5632
        %5634 = vrot.lane.b32.xlu0 %v5575, 64
        %v5635 = vpop.permute.xlu0 %5634
        %5636 = vrot.lane.b32.xlu0 %v5577, 64
        %v5637 = vpop.permute.xlu0 %5636
        %5638 = vrot.lane.b32.xlu0 %v5579, 64
        %v5639 = vpop.permute.xlu0 %5638
        %5640 = vrot.lane.b32.xlu0 %v5581, 64
        %v5641 = vpop.permute.xlu0 %5640
        %5642 = vrot.lane.b32.xlu0 %v5583, 64
        %v5643 = vpop.permute.xlu0 %5642
        %5644 = vrot.lane.b32.xlu0 %v5585, 64
        %v5645 = vpop.permute.xlu0 %5644
        %5646 = vrot.lane.b32.xlu0 %v5587, 64
        %v5647 = vpop.permute.xlu0 %5646
        %5648 = vrot.lane.b32.xlu0 %v5589, 64
        %v5649 = vpop.permute.xlu0 %5648
        %5650 = vrot.lane.b32.xlu0 %v5591, 64
        %v5651 = vpop.permute.xlu0 %5650
        %5652 = vrot.lane.b32.xlu0 %v5593, 64
        %v5653 = vpop.permute.xlu0 %5652
        %5654 = vrot.lane.b32.xlu0 %v5595, 64
        %v5655 = vpop.permute.xlu0 %5654
        %5656 = vrot.lane.b32.xlu0 %v5597, 64
        %v5657 = vpop.permute.xlu0 %5656
        %5658 = vrot.lane.b32.xlu0 %v5599, 64
        %v5659 = vpop.permute.xlu0 %5658
        %5660 = vrot.lane.b32.xlu0 %v5601, 64
        %v5661 = vpop.permute.xlu0 %5660
        %5662 = vrot.lane.b32.xlu0 %v5603, 64
        %v5663 = vpop.permute.xlu0 %5662
        %5664 = vrot.lane.b32.xlu0 %v5605, 64
        %v5665 = vpop.permute.xlu0 %5664
        %5666 = vrot.lane.b32.xlu0 %v5607, 64
        %v5667 = vpop.permute.xlu0 %5666
        %5668 = vrot.lane.b32.xlu0 %v5609, 64
        %v5669 = vpop.permute.xlu0 %5668
        %5670 = vrot.lane.b32.xlu0 %v5611, 64
        %v5671 = vpop.permute.xlu0 %5670
        %5672 = vrot.lane.b32.xlu0 %v5613, 64
        %v5673 = vpop.permute.xlu0 %5672
        %5674 = vrot.lane.b32.xlu0 %v5615, 64
        %v5675 = vpop.permute.xlu0 %5674
        %5676 = vrot.lane.b32.xlu0 %v5617, 64
        %v5677 = vpop.permute.xlu0 %5676
        %5678 = vrot.lane.b32.xlu0 %v5619, 64
        %v5679 = vpop.permute.xlu0 %5678
        %5680 = vrot.lane.b32.xlu0 %v5621, 64
        %v5681 = vpop.permute.xlu0 %5680
        %5682 = vrot.lane.b32.xlu0 %v5623, 64
        %v5683 = vpop.permute.xlu0 %5682
        %5684 = vrot.lane.b32.xlu0 %v5625, 64
        %v5685 = vpop.permute.xlu0 %5684
        %5686 = vrot.lane.b32.xlu0 %v5627, 64
        %v5687 = vpop.permute.xlu0 %5686
        %5688 = vrot.lane.b32.xlu0 %v5626, 64
        %v5689 = vpop.permute.xlu0 %5688
        %v5690 = vrot.slane %v5264, 3
        %v5691 = vrot.slane %v5260, 4
        %v5692 = vor.u32 %v5690, %v5691
        %v5693 = vrot.slane %v5272, 3
        %v5694 = vrot.slane %v5268, 4
        %v5695 = vor.u32 %v5693, %v5694
        %v5696 = vsel %vm5023, %v5692, %v5695
        %v5697 = vrot.slane %v5280, 3
        %v5698 = vrot.slane %v5276, 4
        %v5699 = vor.u32 %v5697, %v5698
        %v5700 = vsel %vm5023, %v5695, %v5699
        %v5701 = vrot.slane %v5288, 3
        %v5702 = vrot.slane %v5284, 4
        %v5703 = vor.u32 %v5701, %v5702
        %v5704 = vsel %vm5023, %v5699, %v5703
        %v5705 = vrot.slane %v5296, 3
        %v5706 = vrot.slane %v5292, 4
        %v5707 = vor.u32 %v5705, %v5706
        %v5708 = vsel %vm5023, %v5703, %v5707
        %v5709 = vrot.slane %v5304, 3
        %v5710 = vrot.slane %v5300, 4
        %v5711 = vor.u32 %v5709, %v5710
        %v5712 = vsel %vm5023, %v5707, %v5711
        %v5713 = vrot.slane %v5312, 3
        %v5714 = vrot.slane %v5308, 4
        %v5715 = vor.u32 %v5713, %v5714
        %v5716 = vsel %vm5023, %v5711, %v5715
        %v5717 = vrot.slane %v5320, 3
        %v5718 = vrot.slane %v5316, 4
        %v5719 = vor.u32 %v5717, %v5718
        %v5720 = vsel %vm5023, %v5715, %v5719
        %v5721 = vrot.slane %v5328, 3
        %v5722 = vrot.slane %v5324, 4
        %v5723 = vor.u32 %v5721, %v5722
        %v5724 = vsel %vm5023, %v5719, %v5723
        %v5725 = vrot.slane %v5336, 3
        %v5726 = vrot.slane %v5332, 4
        %v5727 = vor.u32 %v5725, %v5726
        %v5728 = vsel %vm5023, %v5723, %v5727
        %v5729 = vrot.slane %v5344, 3
        %v5730 = vrot.slane %v5340, 4
        %v5731 = vor.u32 %v5729, %v5730
        %v5732 = vsel %vm5023, %v5727, %v5731
        %v5733 = vrot.slane %v5352, 3
        %v5734 = vrot.slane %v5348, 4
        %v5735 = vor.u32 %v5733, %v5734
        %v5736 = vsel %vm5023, %v5731, %v5735
        %v5737 = vrot.slane %v5360, 3
        %v5738 = vrot.slane %v5356, 4
        %v5739 = vor.u32 %v5737, %v5738
        %v5740 = vsel %vm5023, %v5735, %v5739
        %v5741 = vrot.slane %v5368, 3
        %v5742 = vrot.slane %v5364, 4
        %v5743 = vor.u32 %v5741, %v5742
        %v5744 = vsel %vm5023, %v5739, %v5743
        %v5745 = vrot.slane %v5376, 3
        %v5746 = vrot.slane %v5372, 4
        %v5747 = vor.u32 %v5745, %v5746
        %v5748 = vsel %vm5023, %v5743, %v5747
        %v5749 = vrot.slane %v5384, 3
        %v5750 = vrot.slane %v5380, 4
        %v5751 = vor.u32 %v5749, %v5750
        %v5752 = vsel %vm5023, %v5747, %v5751
        %v5753 = vrot.slane %v5392, 3
        %v5754 = vrot.slane %v5388, 4
        %v5755 = vor.u32 %v5753, %v5754
        %v5756 = vsel %vm5023, %v5751, %v5755
        %v5757 = vrot.slane %v5400, 3
        %v5758 = vrot.slane %v5396, 4
        %v5759 = vor.u32 %v5757, %v5758
        %v5760 = vsel %vm5023, %v5755, %v5759
        %v5761 = vrot.slane %v5408, 3
        %v5762 = vrot.slane %v5404, 4
        %v5763 = vor.u32 %v5761, %v5762
        %v5764 = vsel %vm5023, %v5759, %v5763
        %v5765 = vrot.slane %v5416, 3
        %v5766 = vrot.slane %v5412, 4
        %v5767 = vor.u32 %v5765, %v5766
        %v5768 = vsel %vm5023, %v5763, %v5767
        %v5769 = vrot.slane %v5424, 3
        %v5770 = vrot.slane %v5420, 4
        %v5771 = vor.u32 %v5769, %v5770
        %v5772 = vsel %vm5023, %v5767, %v5771
        %v5773 = vrot.slane %v5432, 3
        %v5774 = vrot.slane %v5428, 4
        %v5775 = vor.u32 %v5773, %v5774
        %v5776 = vsel %vm5023, %v5771, %v5775
        %v5777 = vrot.slane %v5440, 3
        %v5778 = vrot.slane %v5436, 4
        %v5779 = vor.u32 %v5777, %v5778
        %v5780 = vsel %vm5023, %v5775, %v5779
        %v5781 = vrot.slane %v5448, 3
        %v5782 = vrot.slane %v5444, 4
        %v5783 = vor.u32 %v5781, %v5782
        %v5784 = vsel %vm5023, %v5779, %v5783
        %v5785 = vrot.slane %v5456, 3
        %v5786 = vrot.slane %v5452, 4
        %v5787 = vor.u32 %v5785, %v5786
        %v5788 = vsel %vm5023, %v5783, %v5787
        %v5789 = vrot.slane %v5464, 3
        %v5790 = vrot.slane %v5460, 4
        %v5791 = vor.u32 %v5789, %v5790
        %v5792 = vsel %vm5023, %v5787, %v5791
        %v5793 = vrot.slane %v5472, 3
        %v5794 = vrot.slane %v5468, 4
        %v5795 = vor.u32 %v5793, %v5794
        %v5796 = vsel %vm5023, %v5791, %v5795
        %v5797 = vrot.slane %v5480, 3
        %v5798 = vrot.slane %v5476, 4
        %v5799 = vor.u32 %v5797, %v5798
        %v5800 = vsel %vm5023, %v5795, %v5799
        %v5801 = vrot.slane %v5488, 3
        %v5802 = vrot.slane %v5484, 4
        %v5803 = vor.u32 %v5801, %v5802
        %v5804 = vsel %vm5023, %v5799, %v5803
        %v5806 = vshrl.u32 %v5564, 16
        %v5808 = vrot.slane %v5806, 3
        %v5809 = vshll.u32 %v5564, 16
        %v5811 = vrot.slane %v5809, 4
        %v5812 = vor.u32 %v5808, %v5811
        %v5813 = vsel %vm5023, %v5803, %v5812
        %v5815 = vshrl.u32 %v5565, 16
        %v5817 = vrot.slane %v5815, 3
        %v5818 = vshll.u32 %v5565, 16
        %v5820 = vrot.slane %v5818, 4
        %v5821 = vor.u32 %v5817, %v5820
        %v5822 = vsel %vm5023, %v5812, %v5821
        %5823 = vrot.lane.b32.xlu0 %v5696, 96
        %v5824 = vpop.permute.xlu0 %5823
        %5825 = vrot.lane.b32.xlu0 %v5700, 96
        %v5826 = vpop.permute.xlu0 %5825
        %5827 = vrot.lane.b32.xlu0 %v5704, 96
        %v5828 = vpop.permute.xlu0 %5827
        %5829 = vrot.lane.b32.xlu0 %v5708, 96
        %v5830 = vpop.permute.xlu0 %5829
        %5831 = vrot.lane.b32.xlu0 %v5712, 96
        %v5832 = vpop.permute.xlu0 %5831
        %5833 = vrot.lane.b32.xlu0 %v5716, 96
        %v5834 = vpop.permute.xlu0 %5833
        %5835 = vrot.lane.b32.xlu0 %v5720, 96
        %v5836 = vpop.permute.xlu0 %5835
        %5837 = vrot.lane.b32.xlu0 %v5724, 96
        %v5838 = vpop.permute.xlu0 %5837
        %5839 = vrot.lane.b32.xlu0 %v5728, 96
        %v5840 = vpop.permute.xlu0 %5839
        %5841 = vrot.lane.b32.xlu0 %v5732, 96
        %v5842 = vpop.permute.xlu0 %5841
        %5843 = vrot.lane.b32.xlu0 %v5736, 96
        %v5844 = vpop.permute.xlu0 %5843
        %5845 = vrot.lane.b32.xlu0 %v5740, 96
        %v5846 = vpop.permute.xlu0 %5845
        %5847 = vrot.lane.b32.xlu0 %v5744, 96
        %v5848 = vpop.permute.xlu0 %5847
        %5849 = vrot.lane.b32.xlu0 %v5748, 96
        %v5850 = vpop.permute.xlu0 %5849
        %5851 = vrot.lane.b32.xlu0 %v5752, 96
        %v5852 = vpop.permute.xlu0 %5851
        %5853 = vrot.lane.b32.xlu0 %v5756, 96
        %v5854 = vpop.permute.xlu0 %5853
        %5855 = vrot.lane.b32.xlu0 %v5760, 96
        %v5856 = vpop.permute.xlu0 %5855
        %5857 = vrot.lane.b32.xlu0 %v5764, 96
        %v5858 = vpop.permute.xlu0 %5857
        %5859 = vrot.lane.b32.xlu0 %v5768, 96
        %v5860 = vpop.permute.xlu0 %5859
        %5861 = vrot.lane.b32.xlu0 %v5772, 96
        %v5862 = vpop.permute.xlu0 %5861
        %5863 = vrot.lane.b32.xlu0 %v5776, 96
        %v5864 = vpop.permute.xlu0 %5863
        %5865 = vrot.lane.b32.xlu0 %v5780, 96
        %v5866 = vpop.permute.xlu0 %5865
        %5867 = vrot.lane.b32.xlu0 %v5784, 96
        %v5868 = vpop.permute.xlu0 %5867
        %5869 = vrot.lane.b32.xlu0 %v5788, 96
        %v5870 = vpop.permute.xlu0 %5869
        %5871 = vrot.lane.b32.xlu0 %v5792, 96
        %v5872 = vpop.permute.xlu0 %5871
        %5873 = vrot.lane.b32.xlu0 %v5796, 96
        %v5874 = vpop.permute.xlu0 %5873
        %5875 = vrot.lane.b32.xlu0 %v5800, 96
        %v5876 = vpop.permute.xlu0 %5875
        %5877 = vrot.lane.b32.xlu0 %v5804, 96
        %v5878 = vpop.permute.xlu0 %5877
        %5879 = vrot.lane.b32.xlu0 %v5813, 96
        %v5880 = vpop.permute.xlu0 %5879
        %5881 = vrot.lane.b32.xlu0 %v5822, 96
        %v5882 = vpop.permute.xlu0 %5881
        %5883 = vrot.lane.b32.xlu0 %v5817, 96
        %v5884 = vpop.permute.xlu0 %5883
        %v5886 = vunpack.c.l.b16 %v4430
        %v5887 = vpack.c.b16 %v5220, %v5020
        %v5888 = vpack.c.b16 %v5563, %v5562
        %v5889 = vpack.c.b16 %v5886, %v5886
        %vm5890 = vcmask 261120
        %v5892 = vsel %vm5890, %v4553, %v4832
        %v5894 = vsel %vm5890, %v4554, %v4834
        %v5896 = vsel %vm5890, %v4555, %v4836
        %v5898 = vsel %vm5890, %v4556, %v4838
        %v5900 = vsel %vm5890, %v4557, %v4840
        %v5902 = vsel %vm5890, %v4558, %v4842
        %v5904 = vsel %vm5890, %v4559, %v4844
        %v5906 = vsel %vm5890, %v4560, %v4846
        %v5908 = vsel %vm5890, %v4561, %v4848
        %v5910 = vsel %vm5890, %v4562, %v4850
        %v5912 = vsel %vm5890, %v4563, %v4852
        %v5914 = vsel %vm5890, %v4564, %v4854
        %v5916 = vsel %vm5890, %v4565, %v4856
        %v5918 = vsel %vm5890, %v4566, %v4858
        %v5920 = vsel %vm5890, %v4567, %v4860
        %v5922 = vsel %vm5890, %v4568, %v4862
        %v5924 = vsel %vm5890, %v4569, %v4864
        %v5926 = vsel %vm5890, %v4570, %v4866
        %v5928 = vsel %vm5890, %v4571, %v4868
        %v5930 = vsel %vm5890, %v4572, %v4870
        %v5932 = vsel %vm5890, %v4573, %v4872
        %v5934 = vsel %vm5890, %v4574, %v4874
        %v5936 = vsel %vm5890, %v4575, %v4876
        %v5938 = vsel %vm5890, %v4576, %v4878
        %v5940 = vsel %vm5890, %v4577, %v4880
        %v5942 = vsel %vm5890, %v4578, %v4882
        %v5944 = vsel %vm5890, %v4579, %v4884
        %v5946 = vsel %vm5890, %v4580, %v4886
        %v5948 = vsel %vm5890, %v4581, %v4888
        %v5950 = vsel %vm5890, %v4582, %v4890
        %v5952 = vsel %vm5890, %v4583, %v4892
        %v5954 = vsel %vm2785, %v5892, %v4956
        %v5956 = vsel %vm2785, %v5894, %v4958
        %v5958 = vsel %vm2785, %v5896, %v4960
        %v5960 = vsel %vm2785, %v5898, %v4962
        %v5962 = vsel %vm2785, %v5900, %v4964
        %v5964 = vsel %vm2785, %v5902, %v4966
        %v5966 = vsel %vm2785, %v5904, %v4968
        %v5968 = vsel %vm2785, %v5906, %v4970
        %v5970 = vsel %vm2785, %v5908, %v4972
        %v5972 = vsel %vm2785, %v5910, %v4974
        %v5974 = vsel %vm2785, %v5912, %v4976
        %v5976 = vsel %vm2785, %v5914, %v4978
        %v5978 = vsel %vm2785, %v5916, %v4980
        %v5980 = vsel %vm2785, %v5918, %v4982
        %v5982 = vsel %vm2785, %v5920, %v4984
        %v5984 = vsel %vm2785, %v5922, %v4986
        %v5986 = vsel %vm2785, %v5924, %v4988
        %v5988 = vsel %vm2785, %v5926, %v4990
        %v5990 = vsel %vm2785, %v5928, %v4992
        %v5992 = vsel %vm2785, %v5930, %v4994
        %v5994 = vsel %vm2785, %v5932, %v4996
        %v5996 = vsel %vm2785, %v5934, %v4998
        %v5998 = vsel %vm2785, %v5936, %v5000
        %v6000 = vsel %vm2785, %v5938, %v5002
        %v6002 = vsel %vm2785, %v5940, %v5004
        %v6004 = vsel %vm2785, %v5942, %v5006
        %v6006 = vsel %vm2785, %v5944, %v5008
        %v6008 = vsel %vm2785, %v5946, %v5010
        %v6010 = vsel %vm2785, %v5948, %v5012
        %v6012 = vsel %vm2785, %v5950, %v5014
        %v6014 = vsel %vm2785, %v5952, %v5016
        %vm6015 = vcmask 785408
        %v6017 = vsel %vm6015, %v5954, %v5158
        %v6020 = vsel %vm6015, %v5956, %v5160
        %v6023 = vsel %vm6015, %v5958, %v5162
        %v6026 = vsel %vm6015, %v5960, %v5164
        %v6029 = vsel %vm6015, %v5962, %v5166
        %v6032 = vsel %vm6015, %v5964, %v5168
        %v6035 = vsel %vm6015, %v5966, %v5170
        %v6038 = vsel %vm6015, %v5968, %v5172
        %v6041 = vsel %vm6015, %v5970, %v5174
        %v6044 = vsel %vm6015, %v5972, %v5176
        %v6047 = vsel %vm6015, %v5974, %v5178
        %v6050 = vsel %vm6015, %v5976, %v5180
        %v6053 = vsel %vm6015, %v5978, %v5182
        %v6056 = vsel %vm6015, %v5980, %v5184
        %v6059 = vsel %vm6015, %v5982, %v5186
        %v6062 = vsel %vm6015, %v5984, %v5188
        %v6065 = vsel %vm6015, %v5986, %v5190
        %v6068 = vsel %vm6015, %v5988, %v5192
        %v6071 = vsel %vm6015, %v5990, %v5194
        %v6074 = vsel %vm6015, %v5992, %v5196
        %v6077 = vsel %vm6015, %v5994, %v5198
        %v6080 = vsel %vm6015, %v5996, %v5200
        %v6083 = vsel %vm6015, %v5998, %v5202
        %v6086 = vsel %vm6015, %v6000, %v5204
        %v6089 = vsel %vm6015, %v6002, %v5206
        %v6092 = vsel %vm6015, %v6004, %v5208
        %v6095 = vsel %vm6015, %v6006, %v5210
        %v6098 = vsel %vm6015, %v6008, %v5212
        %v6101 = vsel %vm6015, %v6010, %v5214
        %v6104 = vsel %vm6015, %v6012, %v5216
        %v6107 = vsel %vm6015, %v6014, %v5218
        %v6110 = vsel %vm5890, %v5221, %v5499
        %v6112 = vsel %vm5890, %v5222, %v5501
        %v6114 = vsel %vm5890, %v5223, %v5503
        %v6116 = vsel %vm5890, %v5224, %v5505
        %v6118 = vsel %vm5890, %v5225, %v5507
        %v6120 = vsel %vm5890, %v5226, %v5509
        %v6122 = vsel %vm5890, %v5227, %v5511
        %v6124 = vsel %vm5890, %v5228, %v5513
        %v6126 = vsel %vm5890, %v5229, %v5515
        %v6128 = vsel %vm5890, %v5230, %v5517
        %v6130 = vsel %vm5890, %v5231, %v5519
        %v6132 = vsel %vm5890, %v5232, %v5521
        %v6134 = vsel %vm5890, %v5233, %v5523
        %v6136 = vsel %vm5890, %v5234, %v5525
        %v6138 = vsel %vm5890, %v5235, %v5527
        %v6140 = vsel %vm5890, %v5236, %v5529
        %v6142 = vsel %vm5890, %v5237, %v5531
        %v6144 = vsel %vm5890, %v5238, %v5533
        %v6146 = vsel %vm5890, %v5239, %v5535
        %v6148 = vsel %vm5890, %v5240, %v5537
        %v6150 = vsel %vm5890, %v5241, %v5539
        %v6152 = vsel %vm5890, %v5242, %v5541
        %v6154 = vsel %vm5890, %v5243, %v5543
        %v6156 = vsel %vm5890, %v5244, %v5545
        %v6158 = vsel %vm5890, %v5245, %v5547
        %v6160 = vsel %vm5890, %v5246, %v5549
        %v6162 = vsel %vm5890, %v5247, %v5551
        %v6164 = vsel %vm5890, %v5248, %v5553
        %v6166 = vsel %vm5890, %v5249, %v5555
        %v6168 = vsel %vm5890, %v5250, %v5557
        %v6170 = vsel %vm5890, %v5251, %v5559
        %v6172 = vsel %vm2785, %v6110, %v5629
        %v6174 = vsel %vm2785, %v6112, %v5631
        %v6176 = vsel %vm2785, %v6114, %v5633
        %v6178 = vsel %vm2785, %v6116, %v5635
        %v6180 = vsel %vm2785, %v6118, %v5637
        %v6182 = vsel %vm2785, %v6120, %v5639
        %v6184 = vsel %vm2785, %v6122, %v5641
        %v6186 = vsel %vm2785, %v6124, %v5643
        %v6188 = vsel %vm2785, %v6126, %v5645
        %v6190 = vsel %vm2785, %v6128, %v5647
        %v6192 = vsel %vm2785, %v6130, %v5649
        %v6194 = vsel %vm2785, %v6132, %v5651
        %v6196 = vsel %vm2785, %v6134, %v5653
        %v6198 = vsel %vm2785, %v6136, %v5655
        %v6200 = vsel %vm2785, %v6138, %v5657
        %v6202 = vsel %vm2785, %v6140, %v5659
        %v6204 = vsel %vm2785, %v6142, %v5661
        %v6206 = vsel %vm2785, %v6144, %v5663
        %v6208 = vsel %vm2785, %v6146, %v5665
        %v6210 = vsel %vm2785, %v6148, %v5667
        %v6212 = vsel %vm2785, %v6150, %v5669
        %v6214 = vsel %vm2785, %v6152, %v5671
        %v6216 = vsel %vm2785, %v6154, %v5673
        %v6218 = vsel %vm2785, %v6156, %v5675
        %v6220 = vsel %vm2785, %v6158, %v5677
        %v6222 = vsel %vm2785, %v6160, %v5679
        %v6224 = vsel %vm2785, %v6162, %v5681
        %v6226 = vsel %vm2785, %v6164, %v5683
        %v6228 = vsel %vm2785, %v6166, %v5685
        %v6230 = vsel %vm2785, %v6168, %v5687
        %v6232 = vsel %vm2785, %v6170, %v5689
        %v6234 = vsel %vm6015, %v6172, %v5824
        %v6237 = vsel %vm6015, %v6174, %v5826
        %v6240 = vsel %vm6015, %v6176, %v5828
        %v6243 = vsel %vm6015, %v6178, %v5830
        %v6246 = vsel %vm6015, %v6180, %v5832
        %v6249 = vsel %vm6015, %v6182, %v5834
        %v6252 = vsel %vm6015, %v6184, %v5836
        %v6255 = vsel %vm6015, %v6186, %v5838
        %v6258 = vsel %vm6015, %v6188, %v5840
        %v6261 = vsel %vm6015, %v6190, %v5842
        %v6264 = vsel %vm6015, %v6192, %v5844
        %v6267 = vsel %vm6015, %v6194, %v5846
        %v6270 = vsel %vm6015, %v6196, %v5848
        %v6273 = vsel %vm6015, %v6198, %v5850
        %v6276 = vsel %vm6015, %v6200, %v5852
        %v6279 = vsel %vm6015, %v6202, %v5854
        %v6282 = vsel %vm6015, %v6204, %v5856
        %v6285 = vsel %vm6015, %v6206, %v5858
        %v6288 = vsel %vm6015, %v6208, %v5860
        %v6291 = vsel %vm6015, %v6210, %v5862
        %v6294 = vsel %vm6015, %v6212, %v5864
        %v6297 = vsel %vm6015, %v6214, %v5866
        %v6300 = vsel %vm6015, %v6216, %v5868
        %v6303 = vsel %vm6015, %v6218, %v5870
        %v6306 = vsel %vm6015, %v6220, %v5872
        %v6309 = vsel %vm6015, %v6222, %v5874
        %v6312 = vsel %vm6015, %v6224, %v5876
        %v6315 = vsel %vm6015, %v6226, %v5878
        %v6318 = vsel %vm6015, %v6228, %v5880
        %v6321 = vsel %vm6015, %v6230, %v5882
        %v6324 = vsel %vm6015, %v6232, %v5884
        %v6326 = vld [vmem:[%s5] sm:$0xf]
        %v6327 = vld [vmem:[%s5 + $0x4] sm:$0xf]
        %v6328 = vld [vmem:[%s5 + $0x8] sm:$0xf]
        %v6329 = vld [vmem:[%s5 + $0xc] sm:$0xf]
        %v6330 = vld [vmem:[%s5 + $0x10] sm:$0xf]
        %v6331 = vld [vmem:[%s5 + $0x14] sm:$0xf]
        %v6332 = vld [vmem:[%s5 + $0x18] sm:$0xf]
        %v6333 = vld [vmem:[%s5 + $0x1c] sm:$0xf]
        %v6334 = vld [vmem:[%s5 + $0x20] sm:$0xf]
        %v6335 = vld [vmem:[%s5 + $0x24] sm:$0xf]
        %v6336 = vld [vmem:[%s5 + $0x28] sm:$0xf]
        %v6337 = vld [vmem:[%s5 + $0x2c] sm:$0xf]
        %v6338 = vld [vmem:[%s5 + $0x30] sm:$0xf]
        %v6339 = vld [vmem:[%s5 + $0x34] sm:$0xf]
        %v6340 = vld [vmem:[%s5 + $0x38] sm:$0xf]
        %v6341 = vld [vmem:[%s5 + $0x3c] sm:$0xf]
        %v6342 = vld [vmem:[%s5 + $0x40] sm:$0xf]
        %v6343 = vld [vmem:[%s5 + $0x44] sm:$0xf]
        %v6344 = vld [vmem:[%s5 + $0x48] sm:$0xf]
        %v6345 = vld [vmem:[%s5 + $0x4c] sm:$0xf]
        %v6346 = vld [vmem:[%s5 + $0x50] sm:$0xf]
        %v6347 = vld [vmem:[%s5 + $0x54] sm:$0xf]
        %v6348 = vld [vmem:[%s5 + $0x58] sm:$0xf]
        %v6349 = vld [vmem:[%s5 + $0x5c] sm:$0xf]
        %v6350 = vld [vmem:[%s5 + $0x60] sm:$0xf]
        %v6351 = vld [vmem:[%s5 + $0x64] sm:$0xf]
        %v6352 = vld [vmem:[%s5 + $0x68] sm:$0xf]
        %v6353 = vld [vmem:[%s5 + $0x6c] sm:$0xf]
        %v6354 = vld [vmem:[%s5 + $0x70] sm:$0xf]
        %v6355 = vld [vmem:[%s5 + $0x74] sm:$0xf]
        %v6356 = vld [vmem:[%s5 + $0x78] sm:$0xf]
        %v6357 = vld [vmem:[%s5 + $0x7c] sm:$0xf]
        %v6358 = vld [vmem:[%s5 + $0x80] sm:$0xf]
        %v6359 = vld [vmem:[%s5 + $0x84] sm:$0xf]
        %v6360 = vld [vmem:[%s5 + $0x88] sm:$0xf]
        %v6361 = vld [vmem:[%s5 + $0x8c] sm:$0xf]
        %v6362 = vld [vmem:[%s6] sm:$0x1]
        %v6364 = vperm.slane %v6362, 0
        %v6402 = vunpack.c.l.b16 %v6326
        %v6403 = vunpack.c.l.b16 %v6327
        %v6404 = vunpack.c.l.b16 %v6328
        %v6405 = vunpack.c.l.b16 %v6329
        %v6406 = vunpack.c.l.b16 %v6330
        %v6407 = vunpack.c.l.b16 %v6331
        %v6408 = vunpack.c.l.b16 %v6332
        %v6409 = vunpack.c.l.b16 %v6333
        %v6410 = vunpack.c.l.b16 %v6334
        %v6411 = vunpack.c.l.b16 %v6335
        %v6412 = vunpack.c.l.b16 %v6336
        %v6413 = vunpack.c.l.b16 %v6337
        %v6414 = vunpack.c.l.b16 %v6338
        %v6415 = vunpack.c.l.b16 %v6339
        %v6416 = vunpack.c.l.b16 %v6340
        %v6417 = vunpack.c.l.b16 %v6341
        %v6418 = vunpack.c.l.b16 %v6342
        %v6419 = vunpack.c.l.b16 %v6343
        %v6420 = vunpack.c.l.b16 %v6344
        %v6421 = vunpack.c.l.b16 %v6345
        %v6422 = vunpack.c.l.b16 %v6346
        %v6423 = vunpack.c.l.b16 %v6347
        %v6424 = vunpack.c.l.b16 %v6348
        %v6425 = vunpack.c.l.b16 %v6349
        %v6426 = vunpack.c.l.b16 %v6350
        %v6427 = vunpack.c.l.b16 %v6351
        %v6428 = vunpack.c.l.b16 %v6352
        %v6429 = vunpack.c.l.b16 %v6353
        %v6430 = vunpack.c.l.b16 %v6354
        %v6431 = vunpack.c.l.b16 %v6355
        %v6432 = vunpack.c.l.b16 %v6356
        %v6433 = vunpack.c.l.b16 %v6357
        %v6434 = vunpack.c.l.b16 %v6358
        %v6435 = vunpack.c.l.b16 %v6359
        %v6436 = vunpack.c.l.b16 %v6360
        %v6437 = vunpack.c.l.b16 %v6361
        %v6438 = vpack.c.b16 %v6403, %v6402
        %v6439 = vpack.c.b16 %v6405, %v6404
        %v6440 = vpack.c.b16 %v6407, %v6406
        %v6441 = vpack.c.b16 %v6409, %v6408
        %v6442 = vpack.c.b16 %v6411, %v6410
        %v6443 = vpack.c.b16 %v6413, %v6412
        %v6444 = vpack.c.b16 %v6415, %v6414
        %v6445 = vpack.c.b16 %v6417, %v6416
        %v6446 = vpack.c.b16 %v6419, %v6418
        %v6447 = vpack.c.b16 %v6421, %v6420
        %v6448 = vpack.c.b16 %v6423, %v6422
        %v6449 = vpack.c.b16 %v6425, %v6424
        %v6450 = vpack.c.b16 %v6427, %v6426
        %v6451 = vpack.c.b16 %v6429, %v6428
        %v6452 = vpack.c.b16 %v6431, %v6430
        %v6453 = vpack.c.b16 %v6433, %v6432
        %v6454 = vpack.c.b16 %v6435, %v6434
        %v6455 = vpack.c.b16 %v6437, %v6436
        %v6474 = vsel %vm5890, %v4556, 0
        %v6476 = vsel %vm5890, %v4557, 0
        %v6478 = vsel %vm5890, %v4558, 0
        %v6480 = vsel %vm5890, %v4559, 0
        %v6482 = vsel %vm5890, %v4560, 0
        %v6484 = vsel %vm5890, %v4561, 0
        %v6486 = vsel %vm5890, %v4562, 0
        %v6488 = vsel %vm5890, %v4563, 0
        %v6490 = vsel %vm5890, %v4564, 0
        %v6492 = vsel %vm5890, %v4565, 0
        %v6494 = vsel %vm5890, %v4566, 0
        %v6496 = vsel %vm5890, %v4567, 0
        %v6498 = vsel %vm5890, %v4568, 0
        %v6500 = vsel %vm5890, %v4569, 0
        %v6502 = vsel %vm5890, %v4570, 0
        %v6504 = vsel %vm5890, %v4571, 0
        %v6506 = vsel %vm5890, %v4572, 0
        %v6508 = vsel %vm5890, %v4573, 0
        %v6510 = vsel %vm5890, %v4574, 0
        %v6512 = vsel %vm5890, %v4575, 0
        %v6514 = vsel %vm5890, %v4576, 0
        %v6516 = vsel %vm5890, %v4577, 0
        %v6518 = vsel %vm5890, %v4578, 0
        %v6520 = vsel %vm5890, %v4579, 0
        %v6522 = vsel %vm5890, %v4580, 0
        %v6524 = vsel %vm5890, %v4581, 0
        %v6526 = vsel %vm5890, %v4582, 0
        %v6528 = vsel %vm5890, %v5021, 0
        %v6531 = vsel %vm5890, %v5887, 0
        %v6534 = vsel %vm5890, %v5888, 0
        %v6537 = vsel %vm5890, %v5889, 0
        %6539 = vmatpush.bf16.msra.mxu0 %v6445
        %6540 = vmatpush.bf16.msra.mxu0 %v6444
        %6541 = vmatpush.bf16.msra.mxu0 %v6443
        %6542 = vmatpush.bf16.msra.mxu0 %v6442
        %6543 = vmatpush.bf16.msra.mxu0 %v6441
        %6544 = vmatpush.bf16.msra.mxu0 %v6440
        %6545 = vmatpush.bf16.msra.mxu0 %v6439
        %6546 = vmatpush.bf16.msra.mxu0 %v6438
        %6547 = vmatmul.bf16.gmra.mxu0 %v6017
        %v6548 = vpop.f32.mrf.mxu0
        %v6549 = vadd.f32 %v6364, %v6548
        %v6550 = vpop.f32.mrf.mxu0
        %v6551 = vadd.f32 %v6364, %v6550
        %6552 = vmatmul.bf16.gmra.mxu0 %v6020
        %v6553 = vpop.f32.mrf.mxu0
        %v6554 = vadd.f32 %v6364, %v6553
        %v6555 = vpop.f32.mrf.mxu0
        %v6556 = vadd.f32 %v6364, %v6555
        %6557 = vmatmul.bf16.gmra.mxu0 %v6023
        %v6558 = vpop.f32.mrf.mxu0
        %v6559 = vadd.f32 %v6364, %v6558
        %v6560 = vpop.f32.mrf.mxu0
        %v6561 = vadd.f32 %v6364, %v6560
        %6562 = vmatmul.bf16.gmra.mxu0 %v6026
        %v6563 = vpop.f32.mrf.mxu0
        %v6564 = vadd.f32 %v6364, %v6563
        %v6565 = vpop.f32.mrf.mxu0
        %v6566 = vadd.f32 %v6364, %v6565
        %6567 = vmatmul.bf16.gmra.mxu0 %v6029
        %v6568 = vpop.f32.mrf.mxu0
        %v6569 = vadd.f32 %v6364, %v6568
        %v6570 = vpop.f32.mrf.mxu0
        %v6571 = vadd.f32 %v6364, %v6570
        %6572 = vmatmul.bf16.gmra.mxu0 %v6032
        %v6573 = vpop.f32.mrf.mxu0
        %v6574 = vadd.f32 %v6364, %v6573
        %v6575 = vpop.f32.mrf.mxu0
        %v6576 = vadd.f32 %v6364, %v6575
        %6577 = vmatmul.bf16.gmra.mxu0 %v6035
        %v6578 = vpop.f32.mrf.mxu0
        %v6579 = vadd.f32 %v6364, %v6578
        %v6580 = vpop.f32.mrf.mxu0
        %v6581 = vadd.f32 %v6364, %v6580
        %6582 = vmatmul.bf16.gmra.mxu0 %v6038
        %v6583 = vpop.f32.mrf.mxu0
        %v6584 = vadd.f32 %v6364, %v6583
        %v6585 = vpop.f32.mrf.mxu0
        %v6586 = vadd.f32 %v6364, %v6585
        %6587 = vmatmul.bf16.gmra.mxu0 %v6041
        %v6588 = vpop.f32.mrf.mxu0
        %v6589 = vadd.f32 %v6364, %v6588
        %v6590 = vpop.f32.mrf.mxu0
        %v6591 = vadd.f32 %v6364, %v6590
        %6592 = vmatmul.bf16.gmra.mxu0 %v6044
        %v6593 = vpop.f32.mrf.mxu0
        %v6594 = vadd.f32 %v6364, %v6593
        %v6595 = vpop.f32.mrf.mxu0
        %v6596 = vadd.f32 %v6364, %v6595
        %6597 = vmatmul.bf16.gmra.mxu0 %v6047
        %v6598 = vpop.f32.mrf.mxu0
        %v6599 = vadd.f32 %v6364, %v6598
        %v6600 = vpop.f32.mrf.mxu0
        %v6601 = vadd.f32 %v6364, %v6600
        %6602 = vmatmul.bf16.gmra.mxu0 %v6050
        %v6603 = vpop.f32.mrf.mxu0
        %v6604 = vadd.f32 %v6364, %v6603
        %v6605 = vpop.f32.mrf.mxu0
        %v6606 = vadd.f32 %v6364, %v6605
        %6607 = vmatmul.bf16.gmra.mxu0 %v6053
        %v6608 = vpop.f32.mrf.mxu0
        %v6609 = vadd.f32 %v6364, %v6608
        %v6610 = vpop.f32.mrf.mxu0
        %v6611 = vadd.f32 %v6364, %v6610
        %6612 = vmatmul.bf16.gmra.mxu0 %v6056
        %v6613 = vpop.f32.mrf.mxu0
        %v6614 = vadd.f32 %v6364, %v6613
        %v6615 = vpop.f32.mrf.mxu0
        %v6616 = vadd.f32 %v6364, %v6615
        %6617 = vmatmul.bf16.gmra.mxu0 %v6059
        %v6618 = vpop.f32.mrf.mxu0
        %v6619 = vadd.f32 %v6364, %v6618
        %v6620 = vpop.f32.mrf.mxu0
        %v6621 = vadd.f32 %v6364, %v6620
        %6622 = vmatmul.bf16.gmra.mxu0 %v6062
        %v6623 = vpop.f32.mrf.mxu0
        %v6624 = vadd.f32 %v6364, %v6623
        %v6625 = vpop.f32.mrf.mxu0
        %v6626 = vadd.f32 %v6364, %v6625
        %6627 = vmatmul.bf16.gmra.mxu0 %v6065
        %v6628 = vpop.f32.mrf.mxu0
        %v6629 = vadd.f32 %v6364, %v6628
        %v6630 = vpop.f32.mrf.mxu0
        %v6631 = vadd.f32 %v6364, %v6630
        %6632 = vmatmul.bf16.gmra.mxu0 %v6068
        %v6633 = vpop.f32.mrf.mxu0
        %v6634 = vadd.f32 %v6364, %v6633
        %v6635 = vpop.f32.mrf.mxu0
        %v6636 = vadd.f32 %v6364, %v6635
        %6637 = vmatmul.bf16.gmra.mxu0 %v6071
        %v6638 = vpop.f32.mrf.mxu0
        %v6639 = vadd.f32 %v6364, %v6638
        %v6640 = vpop.f32.mrf.mxu0
        %v6641 = vadd.f32 %v6364, %v6640
        %6642 = vmatmul.bf16.gmra.mxu0 %v6074
        %v6643 = vpop.f32.mrf.mxu0
        %v6644 = vadd.f32 %v6364, %v6643
        %v6645 = vpop.f32.mrf.mxu0
        %v6646 = vadd.f32 %v6364, %v6645
        %6647 = vmatmul.bf16.gmra.mxu0 %v6077
        %v6648 = vpop.f32.mrf.mxu0
        %v6649 = vadd.f32 %v6364, %v6648
        %v6650 = vpop.f32.mrf.mxu0
        %v6651 = vadd.f32 %v6364, %v6650
        %6652 = vmatmul.bf16.gmra.mxu0 %v6080
        %v6653 = vpop.f32.mrf.mxu0
        %v6654 = vadd.f32 %v6364, %v6653
        %v6655 = vpop.f32.mrf.mxu0
        %v6656 = vadd.f32 %v6364, %v6655
        %6657 = vmatmul.bf16.gmra.mxu0 %v6083
        %v6658 = vpop.f32.mrf.mxu0
        %v6659 = vadd.f32 %v6364, %v6658
        %v6660 = vpop.f32.mrf.mxu0
        %v6661 = vadd.f32 %v6364, %v6660
        %6662 = vmatmul.bf16.gmra.mxu0 %v6086
        %v6663 = vpop.f32.mrf.mxu0
        %v6664 = vadd.f32 %v6364, %v6663
        %v6665 = vpop.f32.mrf.mxu0
        %v6666 = vadd.f32 %v6364, %v6665
        %6667 = vmatmul.bf16.gmra.mxu0 %v6089
        %v6668 = vpop.f32.mrf.mxu0
        %v6669 = vadd.f32 %v6364, %v6668
        %v6670 = vpop.f32.mrf.mxu0
        %v6671 = vadd.f32 %v6364, %v6670
        %6672 = vmatmul.bf16.gmra.mxu0 %v6092
        %v6673 = vpop.f32.mrf.mxu0
        %v6674 = vadd.f32 %v6364, %v6673
        %v6675 = vpop.f32.mrf.mxu0
        %v6676 = vadd.f32 %v6364, %v6675
        %6677 = vmatmul.bf16.gmra.mxu0 %v6095
        %v6678 = vpop.f32.mrf.mxu0
        %v6679 = vadd.f32 %v6364, %v6678
        %v6680 = vpop.f32.mrf.mxu0
        %v6681 = vadd.f32 %v6364, %v6680
        %6682 = vmatmul.bf16.gmra.mxu0 %v6098
        %v6683 = vpop.f32.mrf.mxu0
        %v6684 = vadd.f32 %v6364, %v6683
        %v6685 = vpop.f32.mrf.mxu0
        %v6686 = vadd.f32 %v6364, %v6685
        %6687 = vmatmul.bf16.gmra.mxu0 %v6101
        %v6688 = vpop.f32.mrf.mxu0
        %v6689 = vadd.f32 %v6364, %v6688
        %v6690 = vpop.f32.mrf.mxu0
        %v6691 = vadd.f32 %v6364, %v6690
        %6692 = vmatmul.bf16.gmra.mxu0 %v6104
        %v6693 = vpop.f32.mrf.mxu0
        %v6694 = vadd.f32 %v6364, %v6693
        %v6695 = vpop.f32.mrf.mxu0
        %v6696 = vadd.f32 %v6364, %v6695
        %6697 = vmatmul.bf16.gmra.mxu0 %v6107
        %v6698 = vpop.f32.mrf.mxu0
        %v6699 = vadd.f32 %v6364, %v6698
        %v6700 = vpop.f32.mrf.mxu0
        %6701 = vdwg.mxu0
        %6702 = vmatpush.bf16.msra.mxu0 %v6453
        %6703 = vmatpush.bf16.msra.mxu0 %v6452
        %6704 = vmatpush.bf16.msra.mxu0 %v6451
        %6705 = vmatpush.bf16.msra.mxu0 %v6450
        %6706 = vmatpush.bf16.msra.mxu0 %v6449
        %6707 = vmatpush.bf16.msra.mxu0 %v6448
        %6708 = vmatpush.bf16.msra.mxu0 %v6447
        %6709 = vmatpush.bf16.msra.mxu0 %v6446
        %6710 = vmatmul.bf16.gmra.mxu0 %v6234
        %v6711 = vpop.f32.mrf.mxu0
        %v6712 = vadd.f32 %v6549, %v6711
        %v6713 = vpop.f32.mrf.mxu0
        %v6714 = vadd.f32 %v6551, %v6713
        %6715 = vmatmul.bf16.gmra.mxu0 %v6237
        %v6716 = vpop.f32.mrf.mxu0
        %v6717 = vadd.f32 %v6554, %v6716
        %v6718 = vpop.f32.mrf.mxu0
        %v6719 = vadd.f32 %v6556, %v6718
        %6720 = vmatmul.bf16.gmra.mxu0 %v6240
        %v6721 = vpop.f32.mrf.mxu0
        %v6722 = vadd.f32 %v6559, %v6721
        %v6723 = vpop.f32.mrf.mxu0
        %v6724 = vadd.f32 %v6561, %v6723
        %6725 = vmatmul.bf16.gmra.mxu0 %v6243
        %v6726 = vpop.f32.mrf.mxu0
        %v6727 = vadd.f32 %v6564, %v6726
        %v6728 = vpop.f32.mrf.mxu0
        %v6729 = vadd.f32 %v6566, %v6728
        %6730 = vmatmul.bf16.gmra.mxu0 %v6246
        %v6731 = vpop.f32.mrf.mxu0
        %v6732 = vadd.f32 %v6569, %v6731
        %v6733 = vpop.f32.mrf.mxu0
        %v6734 = vadd.f32 %v6571, %v6733
        %6735 = vmatmul.bf16.gmra.mxu0 %v6249
        %v6736 = vpop.f32.mrf.mxu0
        %v6737 = vadd.f32 %v6574, %v6736
        %v6738 = vpop.f32.mrf.mxu0
        %v6739 = vadd.f32 %v6576, %v6738
        %6740 = vmatmul.bf16.gmra.mxu0 %v6252
        %v6741 = vpop.f32.mrf.mxu0
        %v6742 = vadd.f32 %v6579, %v6741
        %v6743 = vpop.f32.mrf.mxu0
        %v6744 = vadd.f32 %v6581, %v6743
        %6745 = vmatmul.bf16.gmra.mxu0 %v6255
        %v6746 = vpop.f32.mrf.mxu0
        %v6747 = vadd.f32 %v6584, %v6746
        %v6748 = vpop.f32.mrf.mxu0
        %v6749 = vadd.f32 %v6586, %v6748
        %6750 = vmatmul.bf16.gmra.mxu0 %v6258
        %v6751 = vpop.f32.mrf.mxu0
        %v6752 = vadd.f32 %v6589, %v6751
        %v6753 = vpop.f32.mrf.mxu0
        %v6754 = vadd.f32 %v6591, %v6753
        %6755 = vmatmul.bf16.gmra.mxu0 %v6261
        %v6756 = vpop.f32.mrf.mxu0
        %v6757 = vadd.f32 %v6594, %v6756
        %v6758 = vpop.f32.mrf.mxu0
        %v6759 = vadd.f32 %v6596, %v6758
        %6760 = vmatmul.bf16.gmra.mxu0 %v6264
        %v6761 = vpop.f32.mrf.mxu0
        %v6762 = vadd.f32 %v6599, %v6761
        %v6763 = vpop.f32.mrf.mxu0
        %v6764 = vadd.f32 %v6601, %v6763
        %6765 = vmatmul.bf16.gmra.mxu0 %v6267
        %v6766 = vpop.f32.mrf.mxu0
        %v6767 = vadd.f32 %v6604, %v6766
        %v6768 = vpop.f32.mrf.mxu0
        %v6769 = vadd.f32 %v6606, %v6768
        %6770 = vmatmul.bf16.gmra.mxu0 %v6270
        %v6771 = vpop.f32.mrf.mxu0
        %v6772 = vadd.f32 %v6609, %v6771
        %v6773 = vpop.f32.mrf.mxu0
        %v6774 = vadd.f32 %v6611, %v6773
        %6775 = vmatmul.bf16.gmra.mxu0 %v6273
        %v6776 = vpop.f32.mrf.mxu0
        %v6777 = vadd.f32 %v6614, %v6776
        %v6778 = vpop.f32.mrf.mxu0
        %v6779 = vadd.f32 %v6616, %v6778
        %6780 = vmatmul.bf16.gmra.mxu0 %v6276
        %v6781 = vpop.f32.mrf.mxu0
        %v6782 = vadd.f32 %v6619, %v6781
        %v6783 = vpop.f32.mrf.mxu0
        %v6784 = vadd.f32 %v6621, %v6783
        %6785 = vmatmul.bf16.gmra.mxu0 %v6279
        %v6786 = vpop.f32.mrf.mxu0
        %v6787 = vadd.f32 %v6624, %v6786
        %v6788 = vpop.f32.mrf.mxu0
        %v6789 = vadd.f32 %v6626, %v6788
        %6790 = vmatmul.bf16.gmra.mxu0 %v6282
        %v6791 = vpop.f32.mrf.mxu0
        %v6792 = vadd.f32 %v6629, %v6791
        %v6793 = vpop.f32.mrf.mxu0
        %v6794 = vadd.f32 %v6631, %v6793
        %6795 = vmatmul.bf16.gmra.mxu0 %v6285
        %v6796 = vpop.f32.mrf.mxu0
        %v6797 = vadd.f32 %v6634, %v6796
        %v6798 = vpop.f32.mrf.mxu0
        %v6799 = vadd.f32 %v6636, %v6798
        %6800 = vmatmul.bf16.gmra.mxu0 %v6288
        %v6801 = vpop.f32.mrf.mxu0
        %v6802 = vadd.f32 %v6639, %v6801
        %v6803 = vpop.f32.mrf.mxu0
        %v6804 = vadd.f32 %v6641, %v6803
        %6805 = vmatmul.bf16.gmra.mxu0 %v6291
        %v6806 = vpop.f32.mrf.mxu0
        %v6807 = vadd.f32 %v6644, %v6806
        %v6808 = vpop.f32.mrf.mxu0
        %v6809 = vadd.f32 %v6646, %v6808
        %6810 = vmatmul.bf16.gmra.mxu0 %v6294
        %v6811 = vpop.f32.mrf.mxu0
        %v6812 = vadd.f32 %v6649, %v6811
        %v6813 = vpop.f32.mrf.mxu0
        %v6814 = vadd.f32 %v6651, %v6813
        %6815 = vmatmul.bf16.gmra.mxu0 %v6297
        %v6816 = vpop.f32.mrf.mxu0
        %v6817 = vadd.f32 %v6654, %v6816
        %v6818 = vpop.f32.mrf.mxu0
        %v6819 = vadd.f32 %v6656, %v6818
        %6820 = vmatmul.bf16.gmra.mxu0 %v6300
        %v6821 = vpop.f32.mrf.mxu0
        %v6822 = vadd.f32 %v6659, %v6821
        %v6823 = vpop.f32.mrf.mxu0
        %v6824 = vadd.f32 %v6661, %v6823
        %6825 = vmatmul.bf16.gmra.mxu0 %v6303
        %v6826 = vpop.f32.mrf.mxu0
        %v6827 = vadd.f32 %v6664, %v6826
        %v6828 = vpop.f32.mrf.mxu0
        %v6829 = vadd.f32 %v6666, %v6828
        %6830 = vmatmul.bf16.gmra.mxu0 %v6306
        %v6831 = vpop.f32.mrf.mxu0
        %v6832 = vadd.f32 %v6669, %v6831
        %v6833 = vpop.f32.mrf.mxu0
        %v6834 = vadd.f32 %v6671, %v6833
        %6835 = vmatmul.bf16.gmra.mxu0 %v6309
        %v6836 = vpop.f32.mrf.mxu0
        %v6837 = vadd.f32 %v6674, %v6836
        %v6838 = vpop.f32.mrf.mxu0
        %v6839 = vadd.f32 %v6676, %v6838
        %6840 = vmatmul.bf16.gmra.mxu0 %v6312
        %v6841 = vpop.f32.mrf.mxu0
        %v6842 = vadd.f32 %v6679, %v6841
        %v6843 = vpop.f32.mrf.mxu0
        %v6844 = vadd.f32 %v6681, %v6843
        %6845 = vmatmul.bf16.gmra.mxu0 %v6315
        %v6846 = vpop.f32.mrf.mxu0
        %v6847 = vadd.f32 %v6684, %v6846
        %v6848 = vpop.f32.mrf.mxu0
        %v6849 = vadd.f32 %v6686, %v6848
        %6850 = vmatmul.bf16.gmra.mxu0 %v6318
        %v6851 = vpop.f32.mrf.mxu0
        %v6852 = vadd.f32 %v6689, %v6851
        %v6853 = vpop.f32.mrf.mxu0
        %v6854 = vadd.f32 %v6691, %v6853
        %6855 = vmatmul.bf16.gmra.mxu0 %v6321
        %v6856 = vpop.f32.mrf.mxu0
        %v6857 = vadd.f32 %v6694, %v6856
        %v6858 = vpop.f32.mrf.mxu0
        %v6859 = vadd.f32 %v6696, %v6858
        %6860 = vmatmul.bf16.gmra.mxu0 %v6324
        %v6861 = vpop.f32.mrf.mxu0
        %v6862 = vadd.f32 %v6699, %v6861
        %v6863 = vpop.f32.mrf.mxu0
        %6864 = vdwg.mxu0
        %6865 = vmatpush.bf16.msra.mxu0 0
        %6866 = vmatpush.bf16.msra.mxu0 0
        %6867 = vmatpush.bf16.msra.mxu0 0
        %6868 = vmatpush.bf16.msra.mxu0 0
        %6869 = vmatpush.bf16.msra.mxu0 0
        %6870 = vmatpush.bf16.msra.mxu0 0
        %6871 = vmatpush.bf16.msra.mxu0 %v6455
        %6872 = vmatpush.bf16.msra.mxu0 %v6454
        %6873 = vmatmul.bf16.gmra.mxu0 %v6474
        %v6874 = vpop.f32.mrf.mxu0
        %v6875 = vadd.f32 %v6712, %v6874
        %v6876 = vpop.f32.mrf.mxu0
        %v6877 = vadd.f32 %v6714, %v6876
        %6878 = vmatmul.bf16.gmra.mxu0 %v6476
        %v6879 = vpop.f32.mrf.mxu0
        %v6880 = vadd.f32 %v6717, %v6879
        %v6881 = vpop.f32.mrf.mxu0
        %v6882 = vadd.f32 %v6719, %v6881
        %6883 = vmatmul.bf16.gmra.mxu0 %v6478
        %v6884 = vpop.f32.mrf.mxu0
        %v6885 = vadd.f32 %v6722, %v6884
        %v6886 = vpop.f32.mrf.mxu0
        %v6887 = vadd.f32 %v6724, %v6886
        %6888 = vmatmul.bf16.gmra.mxu0 %v6480
        %v6889 = vpop.f32.mrf.mxu0
        %v6890 = vadd.f32 %v6727, %v6889
        %v6891 = vpop.f32.mrf.mxu0
        %v6892 = vadd.f32 %v6729, %v6891
        %6893 = vmatmul.bf16.gmra.mxu0 %v6482
        %v6894 = vpop.f32.mrf.mxu0
        %v6895 = vadd.f32 %v6732, %v6894
        %v6896 = vpop.f32.mrf.mxu0
        %v6897 = vadd.f32 %v6734, %v6896
        %6898 = vmatmul.bf16.gmra.mxu0 %v6484
        %v6899 = vpop.f32.mrf.mxu0
        %v6900 = vadd.f32 %v6737, %v6899
        %v6901 = vpop.f32.mrf.mxu0
        %v6902 = vadd.f32 %v6739, %v6901
        %6903 = vmatmul.bf16.gmra.mxu0 %v6486
        %v6904 = vpop.f32.mrf.mxu0
        %v6905 = vadd.f32 %v6742, %v6904
        %v6906 = vpop.f32.mrf.mxu0
        %v6907 = vadd.f32 %v6744, %v6906
        %6908 = vmatmul.bf16.gmra.mxu0 %v6488
        %v6909 = vpop.f32.mrf.mxu0
        %v6910 = vadd.f32 %v6747, %v6909
        %v6911 = vpop.f32.mrf.mxu0
        %v6912 = vadd.f32 %v6749, %v6911
        %6913 = vmatmul.bf16.gmra.mxu0 %v6490
        %v6914 = vpop.f32.mrf.mxu0
        %v6915 = vadd.f32 %v6752, %v6914
        %v6916 = vpop.f32.mrf.mxu0
        %v6917 = vadd.f32 %v6754, %v6916
        %6918 = vmatmul.bf16.gmra.mxu0 %v6492
        %v6919 = vpop.f32.mrf.mxu0
        %v6920 = vadd.f32 %v6757, %v6919
        %v6921 = vpop.f32.mrf.mxu0
        %v6922 = vadd.f32 %v6759, %v6921
        %6923 = vmatmul.bf16.gmra.mxu0 %v6494
        %v6924 = vpop.f32.mrf.mxu0
        %v6925 = vadd.f32 %v6762, %v6924
        %v6926 = vpop.f32.mrf.mxu0
        %v6927 = vadd.f32 %v6764, %v6926
        %6928 = vmatmul.bf16.gmra.mxu0 %v6496
        %v6929 = vpop.f32.mrf.mxu0
        %v6930 = vadd.f32 %v6767, %v6929
        %v6931 = vpop.f32.mrf.mxu0
        %v6932 = vadd.f32 %v6769, %v6931
        %6933 = vmatmul.bf16.gmra.mxu0 %v6498
        %v6934 = vpop.f32.mrf.mxu0
        %v6935 = vadd.f32 %v6772, %v6934
        %v6936 = vpop.f32.mrf.mxu0
        %v6937 = vadd.f32 %v6774, %v6936
        %6938 = vmatmul.bf16.gmra.mxu0 %v6500
        %v6939 = vpop.f32.mrf.mxu0
        %v6940 = vadd.f32 %v6777, %v6939
        %v6941 = vpop.f32.mrf.mxu0
        %v6942 = vadd.f32 %v6779, %v6941
        %6943 = vmatmul.bf16.gmra.mxu0 %v6502
        %v6944 = vpop.f32.mrf.mxu0
        %v6945 = vadd.f32 %v6782, %v6944
        %v6946 = vpop.f32.mrf.mxu0
        %v6947 = vadd.f32 %v6784, %v6946
        %6948 = vmatmul.bf16.gmra.mxu0 %v6504
        %v6949 = vpop.f32.mrf.mxu0
        %v6950 = vadd.f32 %v6787, %v6949
        %v6951 = vpop.f32.mrf.mxu0
        %v6952 = vadd.f32 %v6789, %v6951
        %6953 = vmatmul.bf16.gmra.mxu0 %v6506
        %v6954 = vpop.f32.mrf.mxu0
        %v6955 = vadd.f32 %v6792, %v6954
        %v6956 = vpop.f32.mrf.mxu0
        %v6957 = vadd.f32 %v6794, %v6956
        %6958 = vmatmul.bf16.gmra.mxu0 %v6508
        %v6959 = vpop.f32.mrf.mxu0
        %v6960 = vadd.f32 %v6797, %v6959
        %v6961 = vpop.f32.mrf.mxu0
        %v6962 = vadd.f32 %v6799, %v6961
        %6963 = vmatmul.bf16.gmra.mxu0 %v6510
        %v6964 = vpop.f32.mrf.mxu0
        %v6965 = vadd.f32 %v6802, %v6964
        %v6966 = vpop.f32.mrf.mxu0
        %v6967 = vadd.f32 %v6804, %v6966
        %6968 = vmatmul.bf16.gmra.mxu0 %v6512
        %v6969 = vpop.f32.mrf.mxu0
        %v6970 = vadd.f32 %v6807, %v6969
        %v6971 = vpop.f32.mrf.mxu0
        %v6972 = vadd.f32 %v6809, %v6971
        %6973 = vmatmul.bf16.gmra.mxu0 %v6514
        %v6974 = vpop.f32.mrf.mxu0
        %v6975 = vadd.f32 %v6812, %v6974
        %v6976 = vpop.f32.mrf.mxu0
        %v6977 = vadd.f32 %v6814, %v6976
        %6978 = vmatmul.bf16.gmra.mxu0 %v6516
        %v6979 = vpop.f32.mrf.mxu0
        %v6980 = vadd.f32 %v6817, %v6979
        %v6981 = vpop.f32.mrf.mxu0
        %v6982 = vadd.f32 %v6819, %v6981
        %6983 = vmatmul.bf16.gmra.mxu0 %v6518
        %v6984 = vpop.f32.mrf.mxu0
        %v6985 = vadd.f32 %v6822, %v6984
        %v6986 = vpop.f32.mrf.mxu0
        %v6987 = vadd.f32 %v6824, %v6986
        %6988 = vmatmul.bf16.gmra.mxu0 %v6520
        %v6989 = vpop.f32.mrf.mxu0
        %v6990 = vadd.f32 %v6827, %v6989
        %v6991 = vpop.f32.mrf.mxu0
        %v6992 = vadd.f32 %v6829, %v6991
        %6993 = vmatmul.bf16.gmra.mxu0 %v6522
        %v6994 = vpop.f32.mrf.mxu0
        %v6995 = vadd.f32 %v6832, %v6994
        %v6996 = vpop.f32.mrf.mxu0
        %v6997 = vadd.f32 %v6834, %v6996
        %6998 = vmatmul.bf16.gmra.mxu0 %v6524
        %v6999 = vpop.f32.mrf.mxu0
        %v7000 = vadd.f32 %v6837, %v6999
        %v7001 = vpop.f32.mrf.mxu0
        %v7002 = vadd.f32 %v6839, %v7001
        %7003 = vmatmul.bf16.gmra.mxu0 %v6526
        %v7004 = vpop.f32.mrf.mxu0
        %v7005 = vadd.f32 %v6842, %v7004
        %v7006 = vpop.f32.mrf.mxu0
        %v7007 = vadd.f32 %v6844, %v7006
        %7008 = vmatmul.bf16.gmra.mxu0 %v6528
        %v7009 = vpop.f32.mrf.mxu0
        %v7010 = vadd.f32 %v6847, %v7009
        %v7011 = vpop.f32.mrf.mxu0
        %v7012 = vadd.f32 %v6849, %v7011
        %7013 = vmatmul.bf16.gmra.mxu0 %v6531
        %v7014 = vpop.f32.mrf.mxu0
        %v7015 = vadd.f32 %v6852, %v7014
        %v7016 = vpop.f32.mrf.mxu0
        %v7017 = vadd.f32 %v6854, %v7016
        %7018 = vmatmul.bf16.gmra.mxu0 %v6534
        %v7019 = vpop.f32.mrf.mxu0
        %v7020 = vadd.f32 %v6857, %v7019
        %v7021 = vpop.f32.mrf.mxu0
        %v7022 = vadd.f32 %v6859, %v7021
        %7023 = vmatmul.bf16.gmra.mxu0 %v6537
        %v7024 = vpop.f32.mrf.mxu0
        %v7025 = vadd.f32 %v6862, %v7024
        %v7026 = vpop.f32.mrf.mxu0
        %7027 = vdwg.mxu0
        %v7028 = vmax.f32 %v6875, 0.0
        %v7029 = vmax.f32 %v6877, 0.0
        %v7030 = vmax.f32 %v6880, 0.0
        %v7031 = vmax.f32 %v6882, 0.0
        %v7032 = vmax.f32 %v6885, 0.0
        %v7033 = vmax.f32 %v6887, 0.0
        %v7034 = vmax.f32 %v6890, 0.0
        %v7035 = vmax.f32 %v6892, 0.0
        %v7036 = vmax.f32 %v6895, 0.0
        %v7037 = vmax.f32 %v6897, 0.0
        %v7038 = vmax.f32 %v6900, 0.0
        %v7039 = vmax.f32 %v6902, 0.0
        %v7040 = vmax.f32 %v6905, 0.0
        %v7041 = vmax.f32 %v6907, 0.0
        %v7042 = vmax.f32 %v6910, 0.0
        %v7043 = vmax.f32 %v6912, 0.0
        %v7044 = vmax.f32 %v6915, 0.0
        %v7045 = vmax.f32 %v6917, 0.0
        %v7046 = vmax.f32 %v6920, 0.0
        %v7047 = vmax.f32 %v6922, 0.0
        %v7048 = vmax.f32 %v6925, 0.0
        %v7049 = vmax.f32 %v6927, 0.0
        %v7050 = vmax.f32 %v6930, 0.0
        %v7051 = vmax.f32 %v6932, 0.0
        %v7052 = vmax.f32 %v6935, 0.0
        %v7053 = vmax.f32 %v6937, 0.0
        %v7054 = vmax.f32 %v6940, 0.0
        %v7055 = vmax.f32 %v6942, 0.0
        %v7056 = vmax.f32 %v6945, 0.0
        %v7057 = vmax.f32 %v6947, 0.0
        %v7058 = vmax.f32 %v6950, 0.0
        %v7059 = vmax.f32 %v6952, 0.0
        %v7060 = vmax.f32 %v6955, 0.0
        %v7061 = vmax.f32 %v6957, 0.0
        %v7062 = vmax.f32 %v6960, 0.0
        %v7063 = vmax.f32 %v6962, 0.0
        %v7064 = vmax.f32 %v6965, 0.0
        %v7065 = vmax.f32 %v6967, 0.0
        %v7066 = vmax.f32 %v6970, 0.0
        %v7067 = vmax.f32 %v6972, 0.0
        %v7068 = vmax.f32 %v6975, 0.0
        %v7069 = vmax.f32 %v6977, 0.0
        %v7070 = vmax.f32 %v6980, 0.0
        %v7071 = vmax.f32 %v6982, 0.0
        %v7072 = vmax.f32 %v6985, 0.0
        %v7073 = vmax.f32 %v6987, 0.0
        %v7074 = vmax.f32 %v6990, 0.0
        %v7075 = vmax.f32 %v6992, 0.0
        %v7076 = vmax.f32 %v6995, 0.0
        %v7077 = vmax.f32 %v6997, 0.0
        %v7078 = vmax.f32 %v7000, 0.0
        %v7079 = vmax.f32 %v7002, 0.0
        %v7080 = vmax.f32 %v7005, 0.0
        %v7081 = vmax.f32 %v7007, 0.0
        %v7082 = vmax.f32 %v7010, 0.0
        %v7083 = vmax.f32 %v7012, 0.0
        %v7084 = vmax.f32 %v7015, 0.0
        %v7085 = vmax.f32 %v7017, 0.0
        %v7086 = vmax.f32 %v7020, 0.0
        %v7087 = vmax.f32 %v7022, 0.0
        %v7088 = vmax.f32 %v7025, 0.0
        %7089 = vst.msk [vmem:[#allocation4] sm:$0xff] %vm5890, %v7028
        %7090 = vst.msk [vmem:[#allocation4 + $0x8] sm:$0xff] %vm5890, %v7029
        %7091 = vst.msk [vmem:[#allocation4 + $0x10] sm:$0xff] %vm5890, %v7030
        %7092 = vst.msk [vmem:[#allocation4 + $0x18] sm:$0xff] %vm5890, %v7031
        %7093 = vst.msk [vmem:[#allocation4 + $0x20] sm:$0xff] %vm5890, %v7032
        %7094 = vst.msk [vmem:[#allocation4 + $0x28] sm:$0xff] %vm5890, %v7033
        %7095 = vst.msk [vmem:[#allocation4 + $0x30] sm:$0xff] %vm5890, %v7034
        %7096 = vst.msk [vmem:[#allocation4 + $0x38] sm:$0xff] %vm5890, %v7035
        %7097 = vst.msk [vmem:[#allocation4 + $0x40] sm:$0xff] %vm5890, %v7036
        %7098 = vst.msk [vmem:[#allocation4 + $0x48] sm:$0xff] %vm5890, %v7037
        %7099 = vst.msk [vmem:[#allocation4 + $0x50] sm:$0xff] %vm5890, %v7038
        %7100 = vst.msk [vmem:[#allocation4 + $0x58] sm:$0xff] %vm5890, %v7039
        %7101 = vst.msk [vmem:[#allocation4 + $0x60] sm:$0xff] %vm5890, %v7040
        %7102 = vst.msk [vmem:[#allocation4 + $0x68] sm:$0xff] %vm5890, %v7041
        %7103 = vst.msk [vmem:[#allocation4 + $0x70] sm:$0xff] %vm5890, %v7042
        %7104 = vst.msk [vmem:[#allocation4 + $0x78] sm:$0xff] %vm5890, %v7043
        %7105 = vst.msk [vmem:[#allocation4 + $0x80] sm:$0xff] %vm5890, %v7044
        %7106 = vst.msk [vmem:[#allocation4 + $0x88] sm:$0xff] %vm5890, %v7045
        %7107 = vst.msk [vmem:[#allocation4 + $0x90] sm:$0xff] %vm5890, %v7046
        %7108 = vst.msk [vmem:[#allocation4 + $0x98] sm:$0xff] %vm5890, %v7047
        %7109 = vst.msk [vmem:[#allocation4 + $0xa0] sm:$0xff] %vm5890, %v7048
        %7110 = vst.msk [vmem:[#allocation4 + $0xa8] sm:$0xff] %vm5890, %v7049
        %7111 = vst.msk [vmem:[#allocation4 + $0xb0] sm:$0xff] %vm5890, %v7050
        %7112 = vst.msk [vmem:[#allocation4 + $0xb8] sm:$0xff] %vm5890, %v7051
        %7113 = vst.msk [vmem:[#allocation4 + $0xc0] sm:$0xff] %vm5890, %v7052
        %7114 = vst.msk [vmem:[#allocation4 + $0xc8] sm:$0xff] %vm5890, %v7053
        %7115 = vst.msk [vmem:[#allocation4 + $0xd0] sm:$0xff] %vm5890, %v7054
        %7116 = vst.msk [vmem:[#allocation4 + $0xd8] sm:$0xff] %vm5890, %v7055
        %7117 = vst.msk [vmem:[#allocation4 + $0xe0] sm:$0xff] %vm5890, %v7056
        %7118 = vst.msk [vmem:[#allocation4 + $0xe8] sm:$0xff] %vm5890, %v7057
        %7119 = vst.msk [vmem:[#allocation4 + $0xf0] sm:$0xff] %vm5890, %v7058
        %7120 = vst.msk [vmem:[#allocation4 + $0xf8] sm:$0xff] %vm5890, %v7059
        %7121 = vst.msk [vmem:[#allocation4 + $0x100] sm:$0xff] %vm5890, %v7060
        %7122 = vst.msk [vmem:[#allocation4 + $0x108] sm:$0xff] %vm5890, %v7061
        %7123 = vst.msk [vmem:[#allocation4 + $0x110] sm:$0xff] %vm5890, %v7062
        %7124 = vst.msk [vmem:[#allocation4 + $0x118] sm:$0xff] %vm5890, %v7063
        %7125 = vst.msk [vmem:[#allocation4 + $0x120] sm:$0xff] %vm5890, %v7064
        %7126 = vst.msk [vmem:[#allocation4 + $0x128] sm:$0xff] %vm5890, %v7065
        %7127 = vst.msk [vmem:[#allocation4 + $0x130] sm:$0xff] %vm5890, %v7066
        %7128 = vst.msk [vmem:[#allocation4 + $0x138] sm:$0xff] %vm5890, %v7067
        %7129 = vst.msk [vmem:[#allocation4 + $0x140] sm:$0xff] %vm5890, %v7068
        %7130 = vst.msk [vmem:[#allocation4 + $0x148] sm:$0xff] %vm5890, %v7069
        %7131 = vst.msk [vmem:[#allocation4 + $0x150] sm:$0xff] %vm5890, %v7070
        %7132 = vst.msk [vmem:[#allocation4 + $0x158] sm:$0xff] %vm5890, %v7071
        %7133 = vst.msk [vmem:[#allocation4 + $0x160] sm:$0xff] %vm5890, %v7072
        %7134 = vst.msk [vmem:[#allocation4 + $0x168] sm:$0xff] %vm5890, %v7073
        %7135 = vst.msk [vmem:[#allocation4 + $0x170] sm:$0xff] %vm5890, %v7074
        %7136 = vst.msk [vmem:[#allocation4 + $0x178] sm:$0xff] %vm5890, %v7075
        %7137 = vst.msk [vmem:[#allocation4 + $0x180] sm:$0xff] %vm5890, %v7076
        %7138 = vst.msk [vmem:[#allocation4 + $0x188] sm:$0xff] %vm5890, %v7077
        %7139 = vst.msk [vmem:[#allocation4 + $0x190] sm:$0xff] %vm5890, %v7078
        %7140 = vst.msk [vmem:[#allocation4 + $0x198] sm:$0xff] %vm5890, %v7079
        %7141 = vst.msk [vmem:[#allocation4 + $0x1a0] sm:$0xff] %vm5890, %v7080
        %7142 = vst.msk [vmem:[#allocation4 + $0x1a8] sm:$0xff] %vm5890, %v7081
        %7143 = vst.msk [vmem:[#allocation4 + $0x1b0] sm:$0xff] %vm5890, %v7082
        %7144 = vst.msk [vmem:[#allocation4 + $0x1b8] sm:$0xff] %vm5890, %v7083
        %7145 = vst.msk [vmem:[#allocation4 + $0x1c0] sm:$0xff] %vm5890, %v7084
        %7146 = vst.msk [vmem:[#allocation4 + $0x1c8] sm:$0xff] %vm5890, %v7085
        %7147 = vst.msk [vmem:[#allocation4 + $0x1d0] sm:$0xff] %vm5890, %v7086
        %7148 = vst.msk [vmem:[#allocation4 + $0x1d8] sm:$0xff] %vm5890, %v7087
        %vm7149 = vcmask 253952
        %7150 = vst.msk [vmem:[#allocation4 + $0x1e0] sm:$0x1] %vm7149, %v7088
        %v7151 = vld [vmem:[#allocation4] ss:$2 sm:$0xff]
        %s7152 = scalar_lea.vmem [#allocation4], 16
        %v7153 = vld [vmem:[%s7152] ss:$2 sm:$0x3]
        %s7154 = scalar_lea.vmem [#allocation4], 1
        %v7155 = vld [vmem:[%s7154] ss:$2 sm:$0xff]
        %s7156 = scalar_lea.vmem [#allocation4], 17
        %v7157 = vld [vmem:[%s7156] ss:$2 sm:$0x3]
        %v7158 = vmax.f32 %v7151, %v7155
        %v7159 = vmax.f32 %v7153, %v7157
        %s7160 = scalar_lea.vmem [#allocation4], 23
        %v7161 = vld [vmem:[%s7160] ss:$2 sm:$0xff]
        %s7162 = scalar_lea.vmem [#allocation4], 39
        %v7163 = vld [vmem:[%s7162] ss:$2 sm:$0x3]
        %s7164 = scalar_lea.vmem [#allocation4], 24
        %v7165 = vld [vmem:[%s7164] ss:$2 sm:$0xff]
        %s7166 = scalar_lea.vmem [#allocation4], 40
        %v7167 = vld [vmem:[%s7166] ss:$2 sm:$0x3]
        %v7168 = vmax.f32 %v7161, %v7165
        %v7169 = vmax.f32 %v7163, %v7167
        %v7170 = vmax.f32 %v7158, %v7168
        %v7171 = vmax.f32 %v7159, %v7169
        %7172 = vst.msk [vmem:[#allocation5] sm:$0xff] %vm5890, %v7170
        %vm7173 = vcmask 254976
        %7174 = vst.msk [vmem:[#allocation5 + $0x8] sm:$0x3] %vm7173, %v7171
        %s7175 = scalar_lea.vmem [#allocation4], 46
        %v7176 = vld [vmem:[%s7175] ss:$2 sm:$0xff]
        %s7177 = scalar_lea.vmem [#allocation4], 62
        %v7178 = vld [vmem:[%s7177] ss:$2 sm:$0x3]
        %s7179 = scalar_lea.vmem [#allocation4], 47
        %v7180 = vld [vmem:[%s7179] ss:$2 sm:$0xff]
        %s7181 = scalar_lea.vmem [#allocation4], 63
        %v7182 = vld [vmem:[%s7181] ss:$2 sm:$0x3]
        %v7183 = vmax.f32 %v7176, %v7180
        %v7184 = vmax.f32 %v7178, %v7182
        %s7185 = scalar_lea.vmem [#allocation4], 69
        %v7186 = vld [vmem:[%s7185] ss:$2 sm:$0xff]
        %s7187 = scalar_lea.vmem [#allocation4], 85
        %v7188 = vld [vmem:[%s7187] ss:$2 sm:$0x3]
        %s7189 = scalar_lea.vmem [#allocation4], 70
        %v7190 = vld [vmem:[%s7189] ss:$2 sm:$0xff]
        %s7191 = scalar_lea.vmem [#allocation4], 86
        %v7192 = vld [vmem:[%s7191] ss:$2 sm:$0x3]
        %v7193 = vmax.f32 %v7186, %v7190
        %v7194 = vmax.f32 %v7188, %v7192
        %v7195 = vmax.f32 %v7183, %v7193
        %v7196 = vmax.f32 %v7184, %v7194
        %7197 = vst.msk [vmem:[#allocation5 + $0xa] sm:$0xff] %vm5890, %v7195
        %7198 = vst.msk [vmem:[#allocation5 + $0x12] sm:$0x3] %vm7173, %v7196
        %s7199 = scalar_lea.vmem [#allocation4], 92
        %v7200 = vld [vmem:[%s7199] ss:$2 sm:$0xff]
        %s7201 = scalar_lea.vmem [#allocation4], 108
        %v7202 = vld [vmem:[%s7201] ss:$2 sm:$0x3]
        %s7203 = scalar_lea.vmem [#allocation4], 93
        %v7204 = vld [vmem:[%s7203] ss:$2 sm:$0xff]
        %s7205 = scalar_lea.vmem [#allocation4], 109
        %v7206 = vld [vmem:[%s7205] ss:$2 sm:$0x3]
        %v7207 = vmax.f32 %v7200, %v7204
        %v7208 = vmax.f32 %v7202, %v7206
        %s7209 = scalar_lea.vmem [#allocation4], 115
        %v7210 = vld [vmem:[%s7209] ss:$2 sm:$0xff]
        %s7211 = scalar_lea.vmem [#allocation4], 131
        %v7212 = vld [vmem:[%s7211] ss:$2 sm:$0x3]
        %s7213 = scalar_lea.vmem [#allocation4], 116
        %v7214 = vld [vmem:[%s7213] ss:$2 sm:$0xff]
        %s7215 = scalar_lea.vmem [#allocation4], 132
        %v7216 = vld [vmem:[%s7215] ss:$2 sm:$0x3]
        %v7217 = vmax.f32 %v7210, %v7214
        %v7218 = vmax.f32 %v7212, %v7216
        %v7219 = vmax.f32 %v7207, %v7217
        %v7220 = vmax.f32 %v7208, %v7218
        %7221 = vst.msk [vmem:[#allocation5 + $0x14] sm:$0xff] %vm5890, %v7219
        %7222 = vst.msk [vmem:[#allocation5 + $0x1c] sm:$0x3] %vm7173, %v7220
        %s7223 = scalar_lea.vmem [#allocation4], 138
        %v7224 = vld [vmem:[%s7223] ss:$2 sm:$0xff]
        %s7225 = scalar_lea.vmem [#allocation4], 154
        %v7226 = vld [vmem:[%s7225] ss:$2 sm:$0x3]
        %s7227 = scalar_lea.vmem [#allocation4], 139
        %v7228 = vld [vmem:[%s7227] ss:$2 sm:$0xff]
        %s7229 = scalar_lea.vmem [#allocation4], 155
        %v7230 = vld [vmem:[%s7229] ss:$2 sm:$0x3]
        %v7231 = vmax.f32 %v7224, %v7228
        %v7232 = vmax.f32 %v7226, %v7230
        %s7233 = scalar_lea.vmem [#allocation4], 161
        %v7234 = vld [vmem:[%s7233] ss:$2 sm:$0xff]
        %s7235 = scalar_lea.vmem [#allocation4], 177
        %v7236 = vld [vmem:[%s7235] ss:$2 sm:$0x3]
        %s7237 = scalar_lea.vmem [#allocation4], 162
        %v7238 = vld [vmem:[%s7237] ss:$2 sm:$0xff]
        %s7239 = scalar_lea.vmem [#allocation4], 178
        %v7240 = vld [vmem:[%s7239] ss:$2 sm:$0x3]
        %v7241 = vmax.f32 %v7234, %v7238
        %v7242 = vmax.f32 %v7236, %v7240
        %v7243 = vmax.f32 %v7231, %v7241
        %v7244 = vmax.f32 %v7232, %v7242
        %7245 = vst.msk [vmem:[#allocation5 + $0x1e] sm:$0xff] %vm5890, %v7243
        %7246 = vst.msk [vmem:[#allocation5 + $0x26] sm:$0x3] %vm7173, %v7244
        %s7247 = scalar_lea.vmem [#allocation4], 184
        %v7248 = vld [vmem:[%s7247] ss:$2 sm:$0xff]
        %s7249 = scalar_lea.vmem [#allocation4], 200
        %v7250 = vld [vmem:[%s7249] ss:$2 sm:$0x3]
        %s7251 = scalar_lea.vmem [#allocation4], 185
        %v7252 = vld [vmem:[%s7251] ss:$2 sm:$0xff]
        %s7253 = scalar_lea.vmem [#allocation4], 201
        %v7254 = vld [vmem:[%s7253] ss:$2 sm:$0x3]
        %v7255 = vmax.f32 %v7248, %v7252
        %v7256 = vmax.f32 %v7250, %v7254
        %s7257 = scalar_lea.vmem [#allocation4], 207
        %v7258 = vld [vmem:[%s7257] ss:$2 sm:$0xff]
        %s7259 = scalar_lea.vmem [#allocation4], 223
        %v7260 = vld [vmem:[%s7259] ss:$2 sm:$0x3]
        %s7261 = scalar_lea.vmem [#allocation4], 208
        %v7262 = vld [vmem:[%s7261] ss:$2 sm:$0xff]
        %s7263 = scalar_lea.vmem [#allocation4], 224
        %v7264 = vld [vmem:[%s7263] ss:$2 sm:$0x3]
        %v7265 = vmax.f32 %v7258, %v7262
        %v7266 = vmax.f32 %v7260, %v7264
        %v7267 = vmax.f32 %v7255, %v7265
        %v7268 = vmax.f32 %v7256, %v7266
        %7269 = vst.msk [vmem:[#allocation5 + $0x28] sm:$0xff] %vm5890, %v7267
        %7270 = vst.msk [vmem:[#allocation5 + $0x30] sm:$0x3] %vm7173, %v7268
        %s7271 = scalar_lea.vmem [#allocation4], 230
        %v7272 = vld [vmem:[%s7271] ss:$2 sm:$0xff]
        %s7273 = scalar_lea.vmem [#allocation4], 246
        %v7274 = vld [vmem:[%s7273] ss:$2 sm:$0x3]
        %s7275 = scalar_lea.vmem [#allocation4], 231
        %v7276 = vld [vmem:[%s7275] ss:$2 sm:$0xff]
        %s7277 = scalar_lea.vmem [#allocation4], 247
        %v7278 = vld [vmem:[%s7277] ss:$2 sm:$0x3]
        %v7279 = vmax.f32 %v7272, %v7276
        %v7280 = vmax.f32 %v7274, %v7278
        %s7281 = scalar_lea.vmem [#allocation4], 253
        %v7282 = vld [vmem:[%s7281] ss:$2 sm:$0xff]
        %s7283 = scalar_lea.vmem [#allocation4], 269
        %v7284 = vld [vmem:[%s7283] ss:$2 sm:$0x3]
        %s7285 = scalar_lea.vmem [#allocation4], 254
        %v7286 = vld [vmem:[%s7285] ss:$2 sm:$0xff]
        %s7287 = scalar_lea.vmem [#allocation4], 270
        %v7288 = vld [vmem:[%s7287] ss:$2 sm:$0x3]
        %v7289 = vmax.f32 %v7282, %v7286
        %v7290 = vmax.f32 %v7284, %v7288
        %v7291 = vmax.f32 %v7279, %v7289
        %v7292 = vmax.f32 %v7280, %v7290
        %7293 = vst.msk [vmem:[#allocation5 + $0x32] sm:$0xff] %vm5890, %v7291
        %7294 = vst.msk [vmem:[#allocation5 + $0x3a] sm:$0x3] %vm7173, %v7292
        %s7295 = scalar_lea.vmem [#allocation4], 276
        %v7296 = vld [vmem:[%s7295] ss:$2 sm:$0xff]
        %s7297 = scalar_lea.vmem [#allocation4], 292
        %v7298 = vld [vmem:[%s7297] ss:$2 sm:$0x3]
        %s7299 = scalar_lea.vmem [#allocation4], 277
        %v7300 = vld [vmem:[%s7299] ss:$2 sm:$0xff]
        %s7301 = scalar_lea.vmem [#allocation4], 293
        %v7302 = vld [vmem:[%s7301] ss:$2 sm:$0x3]
        %v7303 = vmax.f32 %v7296, %v7300
        %v7304 = vmax.f32 %v7298, %v7302
        %s7305 = scalar_lea.vmem [#allocation4], 299
        %v7306 = vld [vmem:[%s7305] ss:$2 sm:$0xff]
        %s7307 = scalar_lea.vmem [#allocation4], 315
        %v7308 = vld [vmem:[%s7307] ss:$2 sm:$0x3]
        %s7309 = scalar_lea.vmem [#allocation4], 300
        %v7310 = vld [vmem:[%s7309] ss:$2 sm:$0xff]
        %s7311 = scalar_lea.vmem [#allocation4], 316
        %v7312 = vld [vmem:[%s7311] ss:$2 sm:$0x3]
        %v7313 = vmax.f32 %v7306, %v7310
        %v7314 = vmax.f32 %v7308, %v7312
        %v7315 = vmax.f32 %v7303, %v7313
        %v7316 = vmax.f32 %v7304, %v7314
        %7317 = vst.msk [vmem:[#allocation5 + $0x3c] sm:$0xff] %vm5890, %v7315
        %7318 = vst.msk [vmem:[#allocation5 + $0x44] sm:$0x3] %vm7173, %v7316
        %s7319 = scalar_lea.vmem [#allocation4], 322
        %v7320 = vld [vmem:[%s7319] ss:$2 sm:$0xff]
        %s7321 = scalar_lea.vmem [#allocation4], 338
        %v7322 = vld [vmem:[%s7321] ss:$2 sm:$0x3]
        %s7323 = scalar_lea.vmem [#allocation4], 323
        %v7324 = vld [vmem:[%s7323] ss:$2 sm:$0xff]
        %s7325 = scalar_lea.vmem [#allocation4], 339
        %v7326 = vld [vmem:[%s7325] ss:$2 sm:$0x3]
        %v7327 = vmax.f32 %v7320, %v7324
        %v7328 = vmax.f32 %v7322, %v7326
        %s7329 = scalar_lea.vmem [#allocation4], 345
        %v7330 = vld [vmem:[%s7329] ss:$2 sm:$0xff]
        %s7331 = scalar_lea.vmem [#allocation4], 361
        %v7332 = vld [vmem:[%s7331] ss:$2 sm:$0x3]
        %s7333 = scalar_lea.vmem [#allocation4], 346
        %v7334 = vld [vmem:[%s7333] ss:$2 sm:$0xff]
        %s7335 = scalar_lea.vmem [#allocation4], 362
        %v7336 = vld [vmem:[%s7335] ss:$2 sm:$0x3]
        %v7337 = vmax.f32 %v7330, %v7334
        %v7338 = vmax.f32 %v7332, %v7336
        %v7339 = vmax.f32 %v7327, %v7337
        %v7340 = vmax.f32 %v7328, %v7338
        %7341 = vst.msk [vmem:[#allocation5 + $0x46] sm:$0xff] %vm5890, %v7339
        %7342 = vst.msk [vmem:[#allocation5 + $0x4e] sm:$0x3] %vm7173, %v7340
        %s7343 = scalar_lea.vmem [#allocation4], 368
        %v7344 = vld [vmem:[%s7343] ss:$2 sm:$0xff]
        %s7345 = scalar_lea.vmem [#allocation4], 384
        %v7346 = vld [vmem:[%s7345] ss:$2 sm:$0x3]
        %s7347 = scalar_lea.vmem [#allocation4], 369
        %v7348 = vld [vmem:[%s7347] ss:$2 sm:$0xff]
        %s7349 = scalar_lea.vmem [#allocation4], 385
        %v7350 = vld [vmem:[%s7349] ss:$2 sm:$0x3]
        %v7351 = vmax.f32 %v7344, %v7348
        %v7352 = vmax.f32 %v7346, %v7350
        %s7353 = scalar_lea.vmem [#allocation4], 391
        %v7354 = vld [vmem:[%s7353] ss:$2 sm:$0xff]
        %s7355 = scalar_lea.vmem [#allocation4], 407
        %v7356 = vld [vmem:[%s7355] ss:$2 sm:$0x3]
        %s7357 = scalar_lea.vmem [#allocation4], 392
        %v7358 = vld [vmem:[%s7357] ss:$2 sm:$0xff]
        %s7359 = scalar_lea.vmem [#allocation4], 408
        %v7360 = vld [vmem:[%s7359] ss:$2 sm:$0x3]
        %v7361 = vmax.f32 %v7354, %v7358
        %v7362 = vmax.f32 %v7356, %v7360
        %v7363 = vmax.f32 %v7351, %v7361
        %v7364 = vmax.f32 %v7352, %v7362
        %7365 = vst.msk [vmem:[#allocation5 + $0x50] sm:$0xff] %vm5890, %v7363
        %7366 = vst.msk [vmem:[#allocation5 + $0x58] sm:$0x3] %vm7173, %v7364
        %s7367 = scalar_lea.vmem [#allocation4], 414
        %v7368 = vld [vmem:[%s7367] ss:$2 sm:$0xff]
        %s7369 = scalar_lea.vmem [#allocation4], 430
        %v7370 = vld [vmem:[%s7369] ss:$2 sm:$0x3]
        %s7371 = scalar_lea.vmem [#allocation4], 415
        %v7372 = vld [vmem:[%s7371] ss:$2 sm:$0xff]
        %s7373 = scalar_lea.vmem [#allocation4], 431
        %v7374 = vld [vmem:[%s7373] ss:$2 sm:$0x3]
        %v7375 = vmax.f32 %v7368, %v7372
        %v7376 = vmax.f32 %v7370, %v7374
        %s7377 = scalar_lea.vmem [#allocation4], 437
        %v7378 = vld [vmem:[%s7377] ss:$2 sm:$0xff]
        %s7379 = scalar_lea.vmem [#allocation4], 453
        %v7380 = vld [vmem:[%s7379] ss:$2 sm:$0x3]
        %s7381 = scalar_lea.vmem [#allocation4], 438
        %v7382 = vld [vmem:[%s7381] ss:$2 sm:$0xff]
        %s7383 = scalar_lea.vmem [#allocation4], 454
        %v7384 = vld [vmem:[%s7383] ss:$2 sm:$0x3]
        %v7385 = vmax.f32 %v7378, %v7382
        %v7386 = vmax.f32 %v7380, %v7384
        %v7387 = vmax.f32 %v7375, %v7385
        %v7388 = vmax.f32 %v7376, %v7386
        %7389 = vst.msk [vmem:[#allocation5 + $0x5a] sm:$0xff] %vm5890, %v7387
        %7390 = vst.msk [vmem:[#allocation5 + $0x62] sm:$0x3] %vm7173, %v7388
        %v7391 = vld [vmem:[#allocation5] sm:$0xff]
        %v7392 = vld [vmem:[#allocation5 + $0x8] sm:$0xff]
        %v7393 = vld [vmem:[#allocation5 + $0x10] sm:$0xff]
        %v7394 = vld [vmem:[#allocation5 + $0x18] sm:$0xff]
        %v7395 = vld [vmem:[#allocation5 + $0x20] sm:$0xff]
        %v7396 = vld [vmem:[#allocation5 + $0x28] sm:$0xff]
        %v7397 = vld [vmem:[#allocation5 + $0x30] sm:$0xff]
        %v7398 = vld [vmem:[#allocation5 + $0x38] sm:$0xff]
        %v7399 = vld [vmem:[#allocation5 + $0x40] sm:$0xff]
        %v7400 = vld [vmem:[#allocation5 + $0x48] sm:$0xff]
        %v7401 = vld [vmem:[#allocation5 + $0x50] sm:$0xff]
        %v7402 = vld [vmem:[#allocation5 + $0x58] sm:$0xff]
        %v7403 = vld [vmem:[#allocation5 + $0x60] sm:$0xf]
        %v7404 = vpack.c.bf16 %v7392, %v7391
        %v7405 = vpack.c.bf16 %v7394, %v7393
        %v7406 = vpack.c.bf16 %v7396, %v7395
        %v7407 = vpack.c.bf16 %v7398, %v7397
        %v7408 = vpack.c.bf16 %v7400, %v7399
        %v7409 = vpack.c.bf16 %v7402, %v7401
        %v7410 = vpack.c.bf16 %v7403, %v7403
        %v7411 = vld [vmem:[%s7] sm:$0xf]
        %v7412 = vld [vmem:[%s7 + $0x4] sm:$0xf]
        %v7413 = vld [vmem:[%s7 + $0x8] sm:$0xf]
        %v7414 = vld [vmem:[%s7 + $0xc] sm:$0xf]
        %v7415 = vld [vmem:[%s8] sm:$0x1]
        %v7417 = vperm.slane %v7415, 0
        %v7423 = vunpack.c.l.b16 %v7411
        %v7424 = vunpack.c.l.b16 %v7412
        %v7425 = vunpack.c.l.b16 %v7413
        %v7426 = vunpack.c.l.b16 %v7414
        %v7427 = vpack.c.b16 %v7424, %v7423
        %v7428 = vpack.c.b16 %v7426, %v7425
        %v7432 = vsel %vm5890, %v7404, 0
        %v7435 = vsel %vm5890, %v7405, 0
        %v7438 = vsel %vm5890, %v7406, 0
        %v7441 = vsel %vm5890, %v7407, 0
        %v7444 = vsel %vm5890, %v7408, 0
        %v7447 = vsel %vm5890, %v7409, 0
        %v7450 = vsel %vm5890, %v7410, 0
        %7452 = vmatpush.bf16.msra.mxu0 0
        %7453 = vmatpush.bf16.msra.mxu0 0
        %7454 = vmatpush.bf16.msra.mxu0 0
        %7455 = vmatpush.bf16.msra.mxu0 0
        %7456 = vmatpush.bf16.msra.mxu0 0
        %7457 = vmatpush.bf16.msra.mxu0 0
        %7458 = vmatpush.bf16.msra.mxu0 %v7428
        %7459 = vmatpush.bf16.msra.mxu0 %v7427
        %7460 = vmatmul.bf16.gmra.mxu0 %v7432
        %v7461 = vpop.f32.mrf.mxu0
        %v7462 = vadd.f32 %v7417, %v7461
        %v7463 = vpop.f32.mrf.mxu0
        %v7464 = vadd.f32 %v7417, %v7463
        %7465 = vmatmul.bf16.gmra.mxu0 %v7435
        %v7466 = vpop.f32.mrf.mxu0
        %v7467 = vadd.f32 %v7417, %v7466
        %v7468 = vpop.f32.mrf.mxu0
        %v7469 = vadd.f32 %v7417, %v7468
        %7470 = vmatmul.bf16.gmra.mxu0 %v7438
        %v7471 = vpop.f32.mrf.mxu0
        %v7472 = vadd.f32 %v7417, %v7471
        %v7473 = vpop.f32.mrf.mxu0
        %v7474 = vadd.f32 %v7417, %v7473
        %7475 = vmatmul.bf16.gmra.mxu0 %v7441
        %v7476 = vpop.f32.mrf.mxu0
        %v7477 = vadd.f32 %v7417, %v7476
        %v7478 = vpop.f32.mrf.mxu0
        %v7479 = vadd.f32 %v7417, %v7478
        %7480 = vmatmul.bf16.gmra.mxu0 %v7444
        %v7481 = vpop.f32.mrf.mxu0
        %v7482 = vadd.f32 %v7417, %v7481
        %v7483 = vpop.f32.mrf.mxu0
        %v7484 = vadd.f32 %v7417, %v7483
        %7485 = vmatmul.bf16.gmra.mxu0 %v7447
        %v7486 = vpop.f32.mrf.mxu0
        %v7487 = vadd.f32 %v7417, %v7486
        %v7488 = vpop.f32.mrf.mxu0
        %v7489 = vadd.f32 %v7417, %v7488
        %7490 = vmatmul.bf16.gmra.mxu0 %v7450
        %v7491 = vpop.f32.mrf.mxu0
        %v7492 = vadd.f32 %v7417, %v7491
        %v7493 = vpop.f32.mrf.mxu0
        %7494 = vdwg.mxu0
        %v7495 = vmax.f32 %v7462, 0.0
        %v7496 = vmax.f32 %v7464, 0.0
        %v7497 = vmax.f32 %v7467, 0.0
        %v7498 = vmax.f32 %v7469, 0.0
        %v7499 = vmax.f32 %v7472, 0.0
        %v7500 = vmax.f32 %v7474, 0.0
        %v7501 = vmax.f32 %v7477, 0.0
        %v7502 = vmax.f32 %v7479, 0.0
        %v7503 = vmax.f32 %v7482, 0.0
        %v7504 = vmax.f32 %v7484, 0.0
        %v7505 = vmax.f32 %v7487, 0.0
        %v7506 = vmax.f32 %v7489, 0.0
        %v7507 = vmax.f32 %v7492, 0.0
        %v7508 = vpack.c.bf16 %v7495, %v7495
        %v7509 = vpack.c.bf16 %v7496, %v7496
        %v7510 = vpack.c.bf16 %v7497, %v7497
        %v7511 = vpack.c.bf16 %v7498, %v7498
        %v7512 = vpack.c.bf16 %v7499, %v7499
        %v7513 = vpack.c.bf16 %v7500, %v7500
        %v7514 = vpack.c.bf16 %v7501, %v7501
        %v7515 = vpack.c.bf16 %v7502, %v7502
        %v7516 = vpack.c.bf16 %v7503, %v7503
        %v7517 = vpack.c.bf16 %v7504, %v7504
        %v7518 = vpack.c.bf16 %v7505, %v7505
        %v7519 = vpack.c.bf16 %v7506, %v7506
        %v7520 = vpack.c.bf16 %v7507, %v7507
        %v7531 = vunpack.c.l.b16 %v7508
        %v7532 = vunpack.c.l.b16 %v7509
        %v7533 = vunpack.c.l.b16 %v7510
        %v7534 = vunpack.c.l.b16 %v7511
        %v7535 = vunpack.c.l.b16 %v7512
        %v7536 = vunpack.c.l.b16 %v7513
        %v7537 = vunpack.c.l.b16 %v7514
        %v7538 = vunpack.c.l.b16 %v7515
        %v7539 = vunpack.c.l.b16 %v7516
        %v7540 = vunpack.c.l.b16 %v7517
        %v7541 = vpack.c.b16 %v7532, %v7531
        %v7542 = vpack.c.b16 %v7534, %v7533
        %v7543 = vpack.c.b16 %v7536, %v7535
        %v7544 = vpack.c.b16 %v7538, %v7537
        %v7545 = vpack.c.b16 %v7540, %v7539
        %v7547 = vshrl.u32 %v7541, 16
        %v7549 = vshll.u32 %v7541, 16
        %v7551 = vrot.slane %v7549, 1
        %v7552 = vor.u32 %v7547, %v7551
        %v7554 = vshll.u32 %v7542, 16
        %v7556 = vrot.slane %v7554, 1
        %v7557 = vsel %vm4584, %v7552, %v7556
        %v7558 = vshrl.u32 %v7542, 16
        %v7560 = vor.u32 %v7558, %v7556
        %v7562 = vshll.u32 %v7543, 16
        %v7564 = vrot.slane %v7562, 1
        %v7565 = vsel %vm4584, %v7560, %v7564
        %v7566 = vshrl.u32 %v7543, 16
        %v7568 = vor.u32 %v7566, %v7564
        %v7570 = vshll.u32 %v7544, 16
        %v7572 = vrot.slane %v7570, 1
        %v7573 = vsel %vm4584, %v7568, %v7572
        %v7574 = vshrl.u32 %v7544, 16
        %v7576 = vor.u32 %v7574, %v7572
        %v7578 = vshll.u32 %v7545, 16
        %v7580 = vrot.slane %v7578, 1
        %v7581 = vsel %vm4584, %v7576, %v7580
        %v7582 = vshrl.u32 %v7545, 16
        %v7584 = vor.u32 %v7582, %v7580
        %7585 = vrot.lane.b32.xlu0 %v7557, 16
        %v7586 = vpop.permute.xlu0 %7585
        %7587 = vrot.lane.b32.xlu0 %v7565, 16
        %v7588 = vpop.permute.xlu0 %7587
        %7589 = vrot.lane.b32.xlu0 %v7573, 16
        %v7590 = vpop.permute.xlu0 %7589
        %7591 = vrot.lane.b32.xlu0 %v7581, 16
        %v7592 = vpop.permute.xlu0 %7591
        %7593 = vrot.lane.b32.xlu0 %v7584, 16
        %v7594 = vpop.permute.xlu0 %7593
        %v7595 = vrot.slane %v7541, 1
        %v7596 = vrot.slane %v7542, 1
        %v7597 = vsel %vm4893, %v7595, %v7596
        %v7598 = vrot.slane %v7543, 1
        %v7599 = vsel %vm4893, %v7596, %v7598
        %v7600 = vrot.slane %v7544, 1
        %v7601 = vsel %vm4893, %v7598, %v7600
        %v7602 = vrot.slane %v7545, 1
        %v7603 = vsel %vm4893, %v7600, %v7602
        %7604 = vrot.lane.b32.xlu0 %v7597, 32
        %v7605 = vpop.permute.xlu0 %7604
        %7606 = vrot.lane.b32.xlu0 %v7599, 32
        %v7607 = vpop.permute.xlu0 %7606
        %7608 = vrot.lane.b32.xlu0 %v7601, 32
        %v7609 = vpop.permute.xlu0 %7608
        %7610 = vrot.lane.b32.xlu0 %v7603, 32
        %v7611 = vpop.permute.xlu0 %7610
        %7612 = vrot.lane.b32.xlu0 %v7602, 32
        %v7613 = vpop.permute.xlu0 %7612
        %v7615 = vunpack.c.l.b16 %v7518
        %v7616 = vpack.c.b16 %v7533, %v7532
        %v7617 = vpack.c.b16 %v7535, %v7534
        %v7618 = vpack.c.b16 %v7537, %v7536
        %v7619 = vpack.c.b16 %v7539, %v7538
        %v7620 = vpack.c.b16 %v7615, %v7540
        %v7621 = vrot.slane %v7616, 1
        %v7622 = vrot.slane %v7617, 1
        %v7623 = vsel %vm4893, %v7621, %v7622
        %v7624 = vrot.slane %v7618, 1
        %v7625 = vsel %vm4893, %v7622, %v7624
        %v7626 = vrot.slane %v7619, 1
        %v7627 = vsel %vm4893, %v7624, %v7626
        %v7628 = vrot.slane %v7620, 1
        %v7629 = vsel %vm4893, %v7626, %v7628
        %7630 = vrot.lane.b32.xlu0 %v7623, 48
        %v7631 = vpop.permute.xlu0 %7630
        %7632 = vrot.lane.b32.xlu0 %v7625, 48
        %v7633 = vpop.permute.xlu0 %7632
        %7634 = vrot.lane.b32.xlu0 %v7627, 48
        %v7635 = vpop.permute.xlu0 %7634
        %7636 = vrot.lane.b32.xlu0 %v7629, 48
        %v7637 = vpop.permute.xlu0 %7636
        %7638 = vrot.lane.b32.xlu0 %v7628, 48
        %v7639 = vpop.permute.xlu0 %7638
        %v7641 = vunpack.c.l.b16 %v7519
        %v7642 = vpack.c.b16 %v7641, %v7641
        %vm7643 = vsmask.f32 6400
        %v7645 = vshrl.u32 %v7616, 16
        %v7647 = vrot.slane %v7645, 1
        %v7648 = vshll.u32 %v7616, 16
        %v7650 = vrot.slane %v7648, 2
        %v7651 = vor.u32 %v7647, %v7650
        %v7653 = vshrl.u32 %v7617, 16
        %v7655 = vrot.slane %v7653, 1
        %v7656 = vshll.u32 %v7617, 16
        %v7658 = vrot.slane %v7656, 2
        %v7659 = vor.u32 %v7655, %v7658
        %v7660 = vsel %vm7643, %v7651, %v7659
        %v7662 = vshrl.u32 %v7618, 16
        %v7664 = vrot.slane %v7662, 1
        %v7665 = vshll.u32 %v7618, 16
        %v7667 = vrot.slane %v7665, 2
        %v7668 = vor.u32 %v7664, %v7667
        %v7669 = vsel %vm7643, %v7659, %v7668
        %v7671 = vshrl.u32 %v7619, 16
        %v7673 = vrot.slane %v7671, 1
        %v7674 = vshll.u32 %v7619, 16
        %v7676 = vrot.slane %v7674, 2
        %v7677 = vor.u32 %v7673, %v7676
        %v7678 = vsel %vm7643, %v7668, %v7677
        %v7680 = vshrl.u32 %v7620, 16
        %v7682 = vrot.slane %v7680, 1
        %v7683 = vshll.u32 %v7620, 16
        %v7685 = vrot.slane %v7683, 2
        %v7686 = vor.u32 %v7682, %v7685
        %v7687 = vsel %vm7643, %v7677, %v7686
        %v7689 = vshll.u32 %v7642, 16
        %v7691 = vrot.slane %v7689, 2
        %v7692 = vsel %vm7643, %v7686, %v7691
        %7693 = vrot.lane.b32.xlu0 %v7660, 64
        %v7694 = vpop.permute.xlu0 %7693
        %7695 = vrot.lane.b32.xlu0 %v7669, 64
        %v7696 = vpop.permute.xlu0 %7695
        %7697 = vrot.lane.b32.xlu0 %v7678, 64
        %v7698 = vpop.permute.xlu0 %7697
        %7699 = vrot.lane.b32.xlu0 %v7687, 64
        %v7700 = vpop.permute.xlu0 %7699
        %7701 = vrot.lane.b32.xlu0 %v7692, 64
        %v7702 = vpop.permute.xlu0 %7701
        %vm7703 = vcmask 1045504
        %v7704 = vrot.slane %v7616, 2
        %v7705 = vrot.slane %v7617, 2
        %v7706 = vsel %vm7703, %v7704, %v7705
        %v7707 = vrot.slane %v7618, 2
        %v7708 = vsel %vm7703, %v7705, %v7707
        %v7709 = vrot.slane %v7619, 2
        %v7710 = vsel %vm7703, %v7707, %v7709
        %v7711 = vrot.slane %v7620, 2
        %v7712 = vsel %vm7703, %v7709, %v7711
        %v7713 = vrot.slane %v7642, 2
        %v7714 = vsel %vm7703, %v7711, %v7713
        %7715 = vrot.lane.b32.xlu0 %v7706, 80
        %v7716 = vpop.permute.xlu0 %7715
        %7717 = vrot.lane.b32.xlu0 %v7708, 80
        %v7718 = vpop.permute.xlu0 %7717
        %7719 = vrot.lane.b32.xlu0 %v7710, 80
        %v7720 = vpop.permute.xlu0 %7719
        %7721 = vrot.lane.b32.xlu0 %v7712, 80
        %v7722 = vpop.permute.xlu0 %7721
        %7723 = vrot.lane.b32.xlu0 %v7714, 80
        %v7724 = vpop.permute.xlu0 %7723
        %v7726 = vunpack.c.l.b16 %v7520
        %v7727 = vpack.c.b16 %v7641, %v7615
        %v7728 = vpack.c.b16 %v7726, %v7726
        %v7729 = vrot.slane %v7542, 2
        %v7730 = vrot.slane %v7543, 2
        %v7731 = vsel %vm7703, %v7729, %v7730
        %v7732 = vrot.slane %v7544, 2
        %v7733 = vsel %vm7703, %v7730, %v7732
        %v7734 = vrot.slane %v7545, 2
        %v7735 = vsel %vm7703, %v7732, %v7734
        %v7736 = vrot.slane %v7727, 2
        %v7737 = vsel %vm7703, %v7734, %v7736
        %v7738 = vrot.slane %v7728, 2
        %v7739 = vsel %vm7703, %v7736, %v7738
        %7740 = vrot.lane.b32.xlu0 %v7731, 96
        %v7741 = vpop.permute.xlu0 %7740
        %7742 = vrot.lane.b32.xlu0 %v7733, 96
        %v7743 = vpop.permute.xlu0 %7742
        %7744 = vrot.lane.b32.xlu0 %v7735, 96
        %v7745 = vpop.permute.xlu0 %7744
        %7746 = vrot.lane.b32.xlu0 %v7737, 96
        %v7747 = vpop.permute.xlu0 %7746
        %7748 = vrot.lane.b32.xlu0 %v7739, 96
        %v7749 = vpop.permute.xlu0 %7748
        %vm7750 = vsmask.f32 5376
        %v7751 = vrot.slane %v7558, 2
        %v7752 = vrot.slane %v7554, 3
        %v7753 = vor.u32 %v7751, %v7752
        %v7754 = vrot.slane %v7566, 2
        %v7755 = vrot.slane %v7562, 3
        %v7756 = vor.u32 %v7754, %v7755
        %v7757 = vsel %vm7750, %v7753, %v7756
        %v7758 = vrot.slane %v7574, 2
        %v7759 = vrot.slane %v7570, 3
        %v7760 = vor.u32 %v7758, %v7759
        %v7761 = vsel %vm7750, %v7756, %v7760
        %v7762 = vrot.slane %v7582, 2
        %v7763 = vrot.slane %v7578, 3
        %v7764 = vor.u32 %v7762, %v7763
        %v7765 = vsel %vm7750, %v7760, %v7764
        %v7767 = vshrl.u32 %v7727, 16
        %v7769 = vrot.slane %v7767, 2
        %v7770 = vshll.u32 %v7727, 16
        %v7772 = vrot.slane %v7770, 3
        %v7773 = vor.u32 %v7769, %v7772
        %v7774 = vsel %vm7750, %v7764, %v7773
        %v7776 = vshrl.u32 %v7728, 16
        %v7778 = vrot.slane %v7776, 2
        %v7779 = vshll.u32 %v7728, 16
        %v7781 = vrot.slane %v7779, 3
        %v7782 = vor.u32 %v7778, %v7781
        %v7783 = vsel %vm7750, %v7773, %v7782
        %7784 = vrot.lane.b32.xlu0 %v7757, 112
        %v7785 = vpop.permute.xlu0 %7784
        %7786 = vrot.lane.b32.xlu0 %v7761, 112
        %v7787 = vpop.permute.xlu0 %7786
        %7788 = vrot.lane.b32.xlu0 %v7765, 112
        %v7789 = vpop.permute.xlu0 %7788
        %7790 = vrot.lane.b32.xlu0 %v7774, 112
        %v7791 = vpop.permute.xlu0 %7790
        %7792 = vrot.lane.b32.xlu0 %v7783, 112
        %v7793 = vpop.permute.xlu0 %7792
        %v7794 = vrot.slane %v7542, 3
        %v7795 = vrot.slane %v7543, 3
        %v7796 = vsel %vm5566, %v7794, %v7795
        %v7797 = vrot.slane %v7544, 3
        %v7798 = vsel %vm5566, %v7795, %v7797
        %v7799 = vrot.slane %v7545, 3
        %v7800 = vsel %vm5566, %v7797, %v7799
        %v7801 = vrot.slane %v7727, 3
        %v7802 = vsel %vm5566, %v7799, %v7801
        %v7803 = vrot.slane %v7728, 3
        %v7804 = vsel %vm5566, %v7801, %v7803
        %vm7805 = vcmask 130048
        %v7807 = vsel %vm7805, %v7541, %v7586
        %v7809 = vsel %vm7805, %v7542, %v7588
        %v7811 = vsel %vm7805, %v7543, %v7590
        %v7813 = vsel %vm7805, %v7544, %v7592
        %v7815 = vsel %vm7805, %v7545, %v7594
        %v7817 = vsel %vm5890, %v7807, %v7605
        %v7819 = vsel %vm5890, %v7809, %v7607
        %v7821 = vsel %vm5890, %v7811, %v7609
        %v7823 = vsel %vm5890, %v7813, %v7611
        %v7825 = vsel %vm5890, %v7815, %v7613
        %vm7826 = vcmask 392192
        %v7828 = vsel %vm7826, %v7817, %v7631
        %v7830 = vsel %vm7826, %v7819, %v7633
        %v7832 = vsel %vm7826, %v7821, %v7635
        %v7834 = vsel %vm7826, %v7823, %v7637
        %v7836 = vsel %vm7826, %v7825, %v7639
        %v7838 = vsel %vm2785, %v7828, %v7694
        %v7840 = vsel %vm2785, %v7830, %v7696
        %v7842 = vsel %vm2785, %v7832, %v7698
        %v7844 = vsel %vm2785, %v7834, %v7700
        %v7846 = vsel %vm2785, %v7836, %v7702
        %vm7847 = vcmask 654336
        %v7849 = vsel %vm7847, %v7838, %v7716
        %v7851 = vsel %vm7847, %v7840, %v7718
        %v7853 = vsel %vm7847, %v7842, %v7720
        %v7855 = vsel %vm7847, %v7844, %v7722
        %v7857 = vsel %vm7847, %v7846, %v7724
        %v7859 = vsel %vm6015, %v7849, %v7741
        %v7861 = vsel %vm6015, %v7851, %v7743
        %v7863 = vsel %vm6015, %v7853, %v7745
        %v7865 = vsel %vm6015, %v7855, %v7747
        %v7867 = vsel %vm6015, %v7857, %v7749
        %vm7868 = vcmask 916480
        %v7870 = vsel %vm7868, %v7859, %v7785
        %v7873 = vsel %vm7868, %v7861, %v7787
        %v7876 = vsel %vm7868, %v7863, %v7789
        %v7879 = vsel %vm7868, %v7865, %v7791
        %v7882 = vsel %vm7868, %v7867, %v7793
        %v7884 = vld [vmem:[%s9] sm:$0xf]
        %v7885 = vld [vmem:[%s9 + $0x4] sm:$0xf]
        %v7886 = vld [vmem:[%s9 + $0x8] sm:$0xf]
        %v7887 = vld [vmem:[%s9 + $0xc] sm:$0xf]
        %v7888 = vld [vmem:[%s9 + $0x10] sm:$0xf]
        %v7889 = vld [vmem:[%s9 + $0x14] sm:$0xf]
        %v7890 = vld [vmem:[%s9 + $0x18] sm:$0xf]
        %v7891 = vld [vmem:[%s9 + $0x1c] sm:$0xf]
        %v7892 = vld [vmem:[%s9 + $0x20] sm:$0xf]
        %v7893 = vld [vmem:[%s9 + $0x24] sm:$0xf]
        %v7894 = vld [vmem:[%s9 + $0x28] sm:$0xf]
        %v7895 = vld [vmem:[%s9 + $0x2c] sm:$0xf]
        %v7896 = vld [vmem:[%s9 + $0x30] sm:$0xf]
        %v7897 = vld [vmem:[%s9 + $0x34] sm:$0xf]
        %v7898 = vld [vmem:[%s9 + $0x38] sm:$0xf]
        %v7899 = vld [vmem:[%s9 + $0x3c] sm:$0xf]
        %v7900 = vld [vmem:[%s9 + $0x40] sm:$0xf]
        %v7901 = vld [vmem:[%s9 + $0x44] sm:$0xf]
        %v7902 = vld [vmem:[%s10] sm:$0x1]
        %v7904 = vperm.slane %v7902, 0
        %v7924 = vunpack.c.l.b16 %v7884
        %v7925 = vunpack.c.l.b16 %v7885
        %v7926 = vunpack.c.l.b16 %v7886
        %v7927 = vunpack.c.l.b16 %v7887
        %v7928 = vunpack.c.l.b16 %v7888
        %v7929 = vunpack.c.l.b16 %v7889
        %v7930 = vunpack.c.l.b16 %v7890
        %v7931 = vunpack.c.l.b16 %v7891
        %v7932 = vunpack.c.l.b16 %v7892
        %v7933 = vunpack.c.l.b16 %v7893
        %v7934 = vunpack.c.l.b16 %v7894
        %v7935 = vunpack.c.l.b16 %v7895
        %v7936 = vunpack.c.l.b16 %v7896
        %v7937 = vunpack.c.l.b16 %v7897
        %v7938 = vunpack.c.l.b16 %v7898
        %v7939 = vunpack.c.l.b16 %v7899
        %v7940 = vunpack.c.l.b16 %v7900
        %v7941 = vunpack.c.l.b16 %v7901
        %v7942 = vpack.c.b16 %v7925, %v7924
        %v7943 = vpack.c.b16 %v7927, %v7926
        %v7944 = vpack.c.b16 %v7929, %v7928
        %v7945 = vpack.c.b16 %v7931, %v7930
        %v7946 = vpack.c.b16 %v7933, %v7932
        %v7947 = vpack.c.b16 %v7935, %v7934
        %v7948 = vpack.c.b16 %v7937, %v7936
        %v7949 = vpack.c.b16 %v7939, %v7938
        %v7950 = vpack.c.b16 %v7941, %v7940
        %v7961 = vsel %vm7805, %v7796, 0
        %v7964 = vsel %vm7805, %v7798, 0
        %v7967 = vsel %vm7805, %v7800, 0
        %v7970 = vsel %vm7805, %v7802, 0
        %v7973 = vsel %vm7805, %v7804, 0
        %7975 = vmatpush.bf16.msra.mxu0 %v7949
        %7976 = vmatpush.bf16.msra.mxu0 %v7948
        %7977 = vmatpush.bf16.msra.mxu0 %v7947
        %7978 = vmatpush.bf16.msra.mxu0 %v7946
        %7979 = vmatpush.bf16.msra.mxu0 %v7945
        %7980 = vmatpush.bf16.msra.mxu0 %v7944
        %7981 = vmatpush.bf16.msra.mxu0 %v7943
        %7982 = vmatpush.bf16.msra.mxu0 %v7942
        %7983 = vmatmul.bf16.gmra.mxu0 %v7870
        %v7984 = vpop.f32.mrf.mxu0
        %v7985 = vadd.f32 %v7904, %v7984
        %v7986 = vpop.f32.mrf.mxu0
        %v7987 = vadd.f32 %v7904, %v7986
        %7988 = vmatmul.bf16.gmra.mxu0 %v7873
        %v7989 = vpop.f32.mrf.mxu0
        %v7990 = vadd.f32 %v7904, %v7989
        %v7991 = vpop.f32.mrf.mxu0
        %v7992 = vadd.f32 %v7904, %v7991
        %7993 = vmatmul.bf16.gmra.mxu0 %v7876
        %v7994 = vpop.f32.mrf.mxu0
        %v7995 = vadd.f32 %v7904, %v7994
        %v7996 = vpop.f32.mrf.mxu0
        %v7997 = vadd.f32 %v7904, %v7996
        %7998 = vmatmul.bf16.gmra.mxu0 %v7879
        %v7999 = vpop.f32.mrf.mxu0
        %v8000 = vadd.f32 %v7904, %v7999
        %v8001 = vpop.f32.mrf.mxu0
        %v8002 = vadd.f32 %v7904, %v8001
        %8003 = vmatmul.bf16.gmra.mxu0 %v7882
        %v8004 = vpop.f32.mrf.mxu0
        %v8005 = vadd.f32 %v7904, %v8004
        %v8006 = vpop.f32.mrf.mxu0
        %v8007 = vadd.f32 %v7904, %v8006
        %8008 = vdwg.mxu0
        %8009 = vmatpush.bf16.msra.mxu0 0
        %8010 = vmatpush.bf16.msra.mxu0 0
        %8011 = vmatpush.bf16.msra.mxu0 0
        %8012 = vmatpush.bf16.msra.mxu0 0
        %8013 = vmatpush.bf16.msra.mxu0 0
        %8014 = vmatpush.bf16.msra.mxu0 0
        %8015 = vmatpush.bf16.msra.mxu0 0
        %8016 = vmatpush.bf16.msra.mxu0 %v7950
        %8017 = vmatmul.bf16.gmra.mxu0 %v7961
        %v8018 = vpop.f32.mrf.mxu0
        %v8019 = vadd.f32 %v7985, %v8018
        %v8020 = vpop.f32.mrf.mxu0
        %v8021 = vadd.f32 %v7987, %v8020
        %8022 = vmatmul.bf16.gmra.mxu0 %v7964
        %v8023 = vpop.f32.mrf.mxu0
        %v8024 = vadd.f32 %v7990, %v8023
        %v8025 = vpop.f32.mrf.mxu0
        %v8026 = vadd.f32 %v7992, %v8025
        %8027 = vmatmul.bf16.gmra.mxu0 %v7967
        %v8028 = vpop.f32.mrf.mxu0
        %v8029 = vadd.f32 %v7995, %v8028
        %v8030 = vpop.f32.mrf.mxu0
        %v8031 = vadd.f32 %v7997, %v8030
        %8032 = vmatmul.bf16.gmra.mxu0 %v7970
        %v8033 = vpop.f32.mrf.mxu0
        %v8034 = vadd.f32 %v8000, %v8033
        %v8035 = vpop.f32.mrf.mxu0
        %v8036 = vadd.f32 %v8002, %v8035
        %8037 = vmatmul.bf16.gmra.mxu0 %v7973
        %v8038 = vpop.f32.mrf.mxu0
        %v8039 = vadd.f32 %v8005, %v8038
        %v8040 = vpop.f32.mrf.mxu0
        %v8041 = vadd.f32 %v8007, %v8040
        %8042 = vdwg.mxu0
        %v8043 = vmax.f32 %v8019, 0.0
        %v8044 = vmax.f32 %v8021, 0.0
        %v8045 = vmax.f32 %v8024, 0.0
        %v8046 = vmax.f32 %v8026, 0.0
        %v8047 = vmax.f32 %v8029, 0.0
        %v8048 = vmax.f32 %v8031, 0.0
        %v8049 = vmax.f32 %v8034, 0.0
        %v8050 = vmax.f32 %v8036, 0.0
        %v8051 = vmax.f32 %v8039, 0.0
        %v8052 = vmax.f32 %v8041, 0.0
        %8053 = vst.msk [vmem:[#allocation6] sm:$0xff] %vm5890, %v8043
        %8054 = vst.msk [vmem:[#allocation6 + $0x8] sm:$0xff] %vm5890, %v8044
        %8055 = vst.msk [vmem:[#allocation6 + $0x10] sm:$0xff] %vm5890, %v8045
        %8056 = vst.msk [vmem:[#allocation6 + $0x18] sm:$0xff] %vm5890, %v8046
        %8057 = vst.msk [vmem:[#allocation6 + $0x20] sm:$0xff] %vm5890, %v8047
        %8058 = vst.msk [vmem:[#allocation6 + $0x28] sm:$0xff] %vm5890, %v8048
        %8059 = vst.msk [vmem:[#allocation6 + $0x30] sm:$0xff] %vm5890, %v8049
        %8060 = vst.msk [vmem:[#allocation6 + $0x38] sm:$0xff] %vm5890, %v8050
        %8061 = vst.msk [vmem:[#allocation6 + $0x40] sm:$0xff] %vm5890, %v8051
        %vm8062 = vcmask 259072
        %8063 = vst.msk [vmem:[#allocation6 + $0x48] sm:$0x3f] %vm8062, %v8052
        %v8064 = vld [vmem:[#allocation6] ss:$2 sm:$0xf]
        %s8065 = scalar_lea.vmem [#allocation6], 1
        %v8066 = vld [vmem:[%s8065] ss:$2 sm:$0xf]
        %v8067 = vmax.f32 %v8064, %v8066
        %s8068 = scalar_lea.vmem [#allocation6], 10
        %v8069 = vld [vmem:[%s8068] ss:$2 sm:$0xf]
        %s8070 = scalar_lea.vmem [#allocation6], 11
        %v8071 = vld [vmem:[%s8070] ss:$2 sm:$0xf]
        %v8072 = vmax.f32 %v8069, %v8071
        %v8073 = vmax.f32 %v8067, %v8072
        %vm8074 = vcmask 257024
        %8075 = vst.msk [vmem:[#allocation7] sm:$0xf] %vm8074, %v8073
        %s8076 = scalar_lea.vmem [#allocation6], 20
        %v8077 = vld [vmem:[%s8076] ss:$2 sm:$0xf]
        %s8078 = scalar_lea.vmem [#allocation6], 21
        %v8079 = vld [vmem:[%s8078] ss:$2 sm:$0xf]
        %v8080 = vmax.f32 %v8077, %v8079
        %s8081 = scalar_lea.vmem [#allocation6], 30
        %v8082 = vld [vmem:[%s8081] ss:$2 sm:$0xf]
        %s8083 = scalar_lea.vmem [#allocation6], 31
        %v8084 = vld [vmem:[%s8083] ss:$2 sm:$0xf]
        %v8085 = vmax.f32 %v8082, %v8084
        %v8086 = vmax.f32 %v8080, %v8085
        %8087 = vst.msk [vmem:[#allocation7 + $0x4] sm:$0xf] %vm8074, %v8086
        %s8088 = scalar_lea.vmem [#allocation6], 40
        %v8089 = vld [vmem:[%s8088] ss:$2 sm:$0xf]
        %s8090 = scalar_lea.vmem [#allocation6], 41
        %v8091 = vld [vmem:[%s8090] ss:$2 sm:$0xf]
        %v8092 = vmax.f32 %v8089, %v8091
        %s8093 = scalar_lea.vmem [#allocation6], 50
        %v8094 = vld [vmem:[%s8093] ss:$2 sm:$0xf]
        %s8095 = scalar_lea.vmem [#allocation6], 51
        %v8096 = vld [vmem:[%s8095] ss:$2 sm:$0xf]
        %v8097 = vmax.f32 %v8094, %v8096
        %v8098 = vmax.f32 %v8092, %v8097
        %8099 = vst.msk [vmem:[#allocation7 + $0x8] sm:$0xf] %vm8074, %v8098
        %s8100 = scalar_lea.vmem [#allocation6], 60
        %v8101 = vld [vmem:[%s8100] ss:$2 sm:$0xf]
        %s8102 = scalar_lea.vmem [#allocation6], 61
        %v8103 = vld [vmem:[%s8102] ss:$2 sm:$0xf]
        %v8104 = vmax.f32 %v8101, %v8103
        %s8105 = scalar_lea.vmem [#allocation6], 70
        %v8106 = vld [vmem:[%s8105] ss:$2 sm:$0xf]
        %s8107 = scalar_lea.vmem [#allocation6], 71
        %v8108 = vld [vmem:[%s8107] ss:$2 sm:$0xf]
        %v8109 = vmax.f32 %v8106, %v8108
        %v8110 = vmax.f32 %v8104, %v8109
        %8111 = vst.msk [vmem:[#allocation7 + $0xc] sm:$0xf] %vm8074, %v8110
        %v8112 = vld [vmem:[#allocation7] sm:$0xff]
        %v8113 = vld [vmem:[#allocation7 + $0x8] sm:$0xff]
        %v8114 = vpack.c.bf16 %v8112, %v8112
        %v8115 = vpack.c.bf16 %v8113, %v8113
        %v8117 = vunpack.c.l.b16 %v8114
        %v8118 = vpack.c.b16 %v8117, %v8117
        %v8120 = vshrl.u32 %v8118, 16
        %v8122 = vshll.u32 %v8118, 16
        %v8124 = vrot.slane %v8122, 1
        %v8125 = vor.u32 %v8120, %v8124
        %8126 = vrot.lane.b32.xlu0 %v8125, 32
        %v8127 = vpop.permute.xlu0 %8126
        %v8128 = vrot.slane %v8118, 1
        %8129 = vrot.lane.b32.xlu0 %v8128, 64
        %v8130 = vpop.permute.xlu0 %8129
        %v8132 = vunpack.c.l.b16 %v8115
        %v8133 = vpack.c.b16 %v8132, %v8117
        %v8134 = vrot.slane %v8133, 2
        %8135 = vrot.lane.b32.xlu0 %v8134, 96
        %v8136 = vpop.permute.xlu0 %8135
        %v8138 = vshrl.u32 %v8133, 16
        %v8140 = vrot.slane %v8138, 2
        %v8141 = vshll.u32 %v8133, 16
        %v8143 = vrot.slane %v8141, 3
        %v8144 = vor.u32 %v8140, %v8143
        %v8145 = vrot.slane %v8133, 3
        %8146 = vrot.lane.b32.xlu0 %v8145, 32
        %v8147 = vpop.permute.xlu0 %8146
        %v8148 = vpack.c.b16 %v8132, %v8132
        %8149 = vrot.lane.b32.xlu0 %v8148, 64
        %v8150 = vpop.permute.xlu0 %8149
        %v8152 = vshrl.u32 %v8148, 16
        %v8154 = vshll.u32 %v8148, 16
        %v8156 = vrot.slane %v8154, 1
        %v8157 = vor.u32 %v8152, %v8156
        %8158 = vrot.lane.b32.xlu0 %v8157, 96
        %v8159 = vpop.permute.xlu0 %8158
        %v8160 = vrot.slane %v8148, 1
        %v8163 = vsel %vm5890, %v8114, %v8127
        %v8165 = vsel %vm2785, %v8163, %v8130
        %v8167 = vsel %vm6015, %v8165, %v8136
        %v8171 = vsel %vm5890, %v8144, %v8147
        %v8173 = vsel %vm2785, %v8171, %v8150
        %v8175 = vsel %vm6015, %v8173, %v8159
        %v8177 = vld [vmem:[%s11] sm:$0xf]
        %v8178 = vld [vmem:[%s11 + $0x4] sm:$0xf]
        %v8179 = vld [vmem:[%s11 + $0x8] sm:$0xf]
        %v8180 = vld [vmem:[%s11 + $0xc] sm:$0xf]
        %v8181 = vld [vmem:[%s11 + $0x10] sm:$0xf]
        %v8182 = vld [vmem:[%s11 + $0x14] sm:$0xf]
        %v8183 = vld [vmem:[%s11 + $0x18] sm:$0xf]
        %v8184 = vld [vmem:[%s11 + $0x1c] sm:$0xf]
        %v8185 = vld [vmem:[%s11 + $0x20] sm:$0xf]
        %v8186 = vld [vmem:[%s11 + $0x24] sm:$0xf]
        %v8187 = vld [vmem:[%s11 + $0x28] sm:$0xf]
        %v8188 = vld [vmem:[%s11 + $0x2c] sm:$0xf]
        %v8189 = vld [vmem:[%s11 + $0x30] sm:$0xf]
        %v8190 = vld [vmem:[%s11 + $0x34] sm:$0xf]
        %v8191 = vld [vmem:[%s11 + $0x38] sm:$0xf]
        %v8192 = vld [vmem:[%s11 + $0x3c] sm:$0xf]
        %v8193 = vld [vmem:[%s11 + $0x40] sm:$0xf]
        %v8194 = vld [vmem:[%s11 + $0x44] sm:$0xf]
        %v8195 = vld [vmem:[%s11 + $0x48] sm:$0xf]
        %v8196 = vld [vmem:[%s11 + $0x4c] sm:$0xf]
        %v8197 = vld [vmem:[%s11 + $0x50] sm:$0xf]
        %v8198 = vld [vmem:[%s11 + $0x54] sm:$0xf]
        %v8199 = vld [vmem:[%s11 + $0x58] sm:$0xf]
        %v8200 = vld [vmem:[%s11 + $0x5c] sm:$0xf]
        %v8201 = vld [vmem:[%s11 + $0x60] sm:$0xf]
        %v8202 = vld [vmem:[%s11 + $0x64] sm:$0xf]
        %v8203 = vld [vmem:[%s11 + $0x68] sm:$0xf]
        %v8204 = vld [vmem:[%s11 + $0x6c] sm:$0xf]
        %v8205 = vld [vmem:[%s11 + $0x70] sm:$0xf]
        %v8206 = vld [vmem:[%s11 + $0x74] sm:$0xf]
        %v8207 = vld [vmem:[%s11 + $0x78] sm:$0xf]
        %v8208 = vld [vmem:[%s11 + $0x7c] sm:$0xf]
        %v8209 = vld [vmem:[%s11 + $0x80] sm:$0xf]
        %v8210 = vld [vmem:[%s11 + $0x84] sm:$0xf]
        %v8211 = vld [vmem:[%s11 + $0x88] sm:$0xf]
        %v8212 = vld [vmem:[%s11 + $0x8c] sm:$0xf]
        %v8213 = vld [vmem:[%s12] sm:$0x1]
        %v8215 = vperm.slane %v8213, 0
        %v8253 = vunpack.c.l.b16 %v8177
        %v8254 = vunpack.c.l.b16 %v8178
        %v8255 = vunpack.c.l.b16 %v8179
        %v8256 = vunpack.c.l.b16 %v8180
        %v8257 = vunpack.c.l.b16 %v8181
        %v8258 = vunpack.c.l.b16 %v8182
        %v8259 = vunpack.c.l.b16 %v8183
        %v8260 = vunpack.c.l.b16 %v8184
        %v8261 = vunpack.c.l.b16 %v8185
        %v8262 = vunpack.c.l.b16 %v8186
        %v8263 = vunpack.c.l.b16 %v8187
        %v8264 = vunpack.c.l.b16 %v8188
        %v8265 = vunpack.c.l.b16 %v8189
        %v8266 = vunpack.c.l.b16 %v8190
        %v8267 = vunpack.c.l.b16 %v8191
        %v8268 = vunpack.c.l.b16 %v8192
        %v8269 = vunpack.c.l.b16 %v8193
        %v8270 = vunpack.c.l.b16 %v8194
        %v8271 = vunpack.c.l.b16 %v8195
        %v8272 = vunpack.c.l.b16 %v8196
        %v8273 = vunpack.c.l.b16 %v8197
        %v8274 = vunpack.c.l.b16 %v8198
        %v8275 = vunpack.c.l.b16 %v8199
        %v8276 = vunpack.c.l.b16 %v8200
        %v8277 = vunpack.c.l.b16 %v8201
        %v8278 = vunpack.c.l.b16 %v8202
        %v8279 = vunpack.c.l.b16 %v8203
        %v8280 = vunpack.c.l.b16 %v8204
        %v8281 = vunpack.c.l.b16 %v8205
        %v8282 = vunpack.c.l.b16 %v8206
        %v8283 = vunpack.c.l.b16 %v8207
        %v8284 = vunpack.c.l.b16 %v8208
        %v8285 = vunpack.c.l.b16 %v8209
        %v8286 = vunpack.c.l.b16 %v8210
        %v8287 = vunpack.c.l.b16 %v8211
        %v8288 = vunpack.c.l.b16 %v8212
        %v8289 = vpack.c.b16 %v8254, %v8253
        %v8290 = vpack.c.b16 %v8256, %v8255
        %v8291 = vpack.c.b16 %v8258, %v8257
        %v8292 = vpack.c.b16 %v8260, %v8259
        %v8293 = vpack.c.b16 %v8262, %v8261
        %v8294 = vpack.c.b16 %v8264, %v8263
        %v8295 = vpack.c.b16 %v8266, %v8265
        %v8296 = vpack.c.b16 %v8268, %v8267
        %v8297 = vpack.c.b16 %v8270, %v8269
        %v8298 = vpack.c.b16 %v8272, %v8271
        %v8299 = vpack.c.b16 %v8274, %v8273
        %v8300 = vpack.c.b16 %v8276, %v8275
        %v8301 = vpack.c.b16 %v8278, %v8277
        %v8302 = vpack.c.b16 %v8280, %v8279
        %v8303 = vpack.c.b16 %v8282, %v8281
        %v8304 = vpack.c.b16 %v8284, %v8283
        %v8305 = vpack.c.b16 %v8286, %v8285
        %v8306 = vpack.c.b16 %v8288, %v8287
        %v8326 = vsel %vm5890, %v8160, 0
        %8328 = vmatpush.bf16.msra.mxu0 %v8296
        %8329 = vmatpush.bf16.msra.mxu0 %v8295
        %8330 = vmatpush.bf16.msra.mxu0 %v8294
        %8331 = vmatpush.bf16.msra.mxu0 %v8293
        %8332 = vmatpush.bf16.msra.mxu0 %v8292
        %8333 = vmatpush.bf16.msra.mxu0 %v8291
        %8334 = vmatpush.bf16.msra.mxu0 %v8290
        %8335 = vmatpush.bf16.msra.mxu0 %v8289
        %8336 = vmatmul.bf16.gmra.mxu0 %v8167
        %v8337 = vpop.f32.mrf.mxu0
        %v8338 = vadd.f32 %v8215, %v8337
        %v8339 = vpop.f32.mrf.mxu0
        %8340 = vdwg.mxu0
        %8341 = vmatpush.bf16.msra.mxu0 %v8304
        %8342 = vmatpush.bf16.msra.mxu0 %v8303
        %8343 = vmatpush.bf16.msra.mxu0 %v8302
        %8344 = vmatpush.bf16.msra.mxu0 %v8301
        %8345 = vmatpush.bf16.msra.mxu0 %v8300
        %8346 = vmatpush.bf16.msra.mxu0 %v8299
        %8347 = vmatpush.bf16.msra.mxu0 %v8298
        %8348 = vmatpush.bf16.msra.mxu0 %v8297
        %8349 = vmatmul.bf16.gmra.mxu0 %v8175
        %v8350 = vpop.f32.mrf.mxu0
        %v8351 = vadd.f32 %v8338, %v8350
        %v8352 = vpop.f32.mrf.mxu0
        %8353 = vdwg.mxu0
        %8354 = vmatpush.bf16.msra.mxu0 0
        %8355 = vmatpush.bf16.msra.mxu0 0
        %8356 = vmatpush.bf16.msra.mxu0 0
        %8357 = vmatpush.bf16.msra.mxu0 0
        %8358 = vmatpush.bf16.msra.mxu0 0
        %8359 = vmatpush.bf16.msra.mxu0 0
        %8360 = vmatpush.bf16.msra.mxu0 %v8306
        %8361 = vmatpush.bf16.msra.mxu0 %v8305
        %8362 = vmatmul.bf16.gmra.mxu0 %v8326
        %v8363 = vpop.f32.mrf.mxu0
        %v8364 = vadd.f32 %v8351, %v8363
        %v8365 = vpop.f32.mrf.mxu0
        %8366 = vdwg.mxu0
        %v8367 = vmax.f32 %v8364, 0.0
        %vm8368 = vcmask 123904
        %v8369 = vsel %vm8368, %v8367, 0.0
        %v8370 = vrot.slane %v8369, 4
        %v8371 = vadd.f32 %v8369, %v8370
        %v8372 = vrot.slane %v8371, 2
        %v8373 = vadd.f32 %v8371, %v8372
        %v8374 = vrot.slane %v8373, 1
        %v8375 = vadd.f32 %v8373, %v8374
        %v8376 = vadd.f32 %v8375, 0.0
        %v8378 = vrot.slane %v8367, 4
        %v8380 = vsel %vm8368, %v8378, 0.0
        %v8381 = vrot.slane %v8380, 4
        %v8382 = vadd.f32 %v8380, %v8381
        %v8383 = vrot.slane %v8382, 2
        %v8384 = vadd.f32 %v8382, %v8383
        %v8385 = vrot.slane %v8384, 1
        %v8386 = vadd.f32 %v8384, %v8385
        %v8387 = vadd.f32 %v8376, %v8386
        %v8388 = vmul.f32 %v8387, 0.25
        %v8389 = vld [vmem:[%s13] sm:$0xff]
        %v8390 = vld [vmem:[%s13 + $0x8] sm:$0xff]
        %v8391 = vld [vmem:[%s14] sm:$0x1]
        %v8393 = vsel %vm7805, %v8388, 0
        %8395 = vmatpush.msra.mxu0 0.0
        %8396 = vmatpush.msra.mxu0 0.0
        %8397 = vmatpush.msra.mxu0 0.0
        %8398 = vmatpush.msra.mxu0 0.0
        %8399 = vmatpush.msra.mxu0 0.0
        %8400 = vmatpush.msra.mxu0 0.0
        %8401 = vmatpush.msra.mxu0 0.0
        %8402 = vmatpush.msra.mxu0 0.0
        %8403 = vmatpush.msra.mxu0 0.0
        %8404 = vmatpush.msra.mxu0 0.0
        %8405 = vmatpush.msra.mxu0 0.0
        %8406 = vmatpush.msra.mxu0 0.0
        %8407 = vmatpush.msra.mxu0 0.0
        %8408 = vmatpush.msra.mxu0 0.0
        %8409 = vmatpush.msra.mxu0 %v8390
        %8410 = vmatpush.msra.mxu0 %v8389
        %8411 = vmatmul.f32.gmra.mxu0 %v8393
        %v8412 = vpop.f32.mrf.mxu0
        %v8413 = vadd.f32 %v8391, %v8412
        %8414 = vdwg.mxu0
        %vm8415 = vcmask 57344
        %8416 = vst.msk [vmem:[%s486] sm:$0x1] %vm8415, %v8413
        %s8417 = sand.u32 %s357, 1
        %s8418 = scalar_lea.sflag [#allocation9], %s8417
        %s8419 = sand.u32 %s357, 1
        %s8420 = scalar_lea.vmem [#allocation8], %s8419
        // Predicated region
        $region81: #{net_forward_pallas.1} parent=79 // pred_check
          %p8421 = pneg %p367
        $region82: #{net_forward_pallas.1} parent=79 // pred_check_branch
          %8423 = sbr.rel (%p8421) target = $region84
        $region83: #{net_forward_pallas.1} parent=79 // pred_region
          %8425 = vsyncadd %s8418, 0
          %s8426 = scalar_lea.hbm %s15, %s29
          %s8428 = sshll.u32 %s8420, 4
          %s8429 = int_to_ptr.vmem [resolvable:$true] %s8428
          %s8430 = sshll.u32 %s8426, 4
          %s8431 = int_to_ptr.hbm [resolvable:$true] %s8430
          %8433 = dma.vmem_to_hbm [thread:$0]  %s8429, 16, %s8431, %s8418
        $region84: #{net_forward_pallas.1} parent=79 // pred_fallthru
          _
      $region80: #{net_forward_pallas.1} parent=5 // pred_fallthru
        _
      %p8434 = scmp.le.s32.totalorder 2, %s24
      // Predicated region
      $region85: #{net_forward_pallas.1} parent=5 // pred_check
        %p8435 = pneg %p8434
      $region86: #{net_forward_pallas.1} parent=5 // pred_check_branch
        %8437 = sbr.rel (%p8435) target = $region88
      $region87: #{net_forward_pallas.1} parent=5 // pred_region
        %s8438 = ssub.s32 %s24, 2
        // Predicated region
        $region89: #{net_forward_pallas.1} parent=87 // pred_check
          %p8439 = pneg %p373
        $region90: #{net_forward_pallas.1} parent=87 // pred_check_branch
          %8441 = sbr.rel (%p8439) target = $region92
        $region91: #{net_forward_pallas.1} parent=87 // pred_region
          %s8442 = sand.u32 %s358, 1
          %s8443 = scalar_lea.sflag [#allocation9], %s8442
          %s8444 = sand.u32 %s358, 1
          %s8445 = scalar_lea.vmem [#allocation8], %s8444
          %8447 = dma.done %s8443, 16
        $region92: #{net_forward_pallas.1} parent=87 // pred_fallthru
          _
      $region88: #{net_forward_pallas.1} parent=5 // pred_fallthru
        _
    $region6: #{net_forward_pallas.1} parent=1 // loop_footer
      %s28 = sadd.s32 1, %s24
    $region7: #{net_forward_pallas.1} parent=1 // loop_footer_branch
      %23 = sbr.rel target = $region3
    $region8: #{net_forward_pallas.1} parent=1 // loop_exit
      _
    %8448 = vsyncpa [#allocation9], 1
    %s8449 = scalar_lea.sflag [#allocation9], 1
    %8450 = vsyncpa %s8449, 1

</llo_original>
